<compile_context>
chip_gen: v7x
topology: tpu7x:2x2x1
jax: 0.10.0
libtpu: 0.0.40
codegen_flags: <defaults>
</compile_context>

<pallas_src>
import jax
import jax.numpy as jnp
from jax import lax
from jax.experimental import pallas as pl
from jax.experimental.pallas import tpu as pltpu

# ---------------- small synthetic config (mirrors configs.*) ----------------
B = 2          # batch
C = 32         # configs.final_out_channels == num_channels == patch_size
T = 16         # encoder sequence length (features_aug*.shape[2])
K = 4          # configs.TC.timesteps
D = 64         # configs.TC.hidden_dim
HEADS = 4
DEPTH = 4
MLP = 64
DH = D // HEADS
N_PAD = 16     # fixed padded token count (>= max t_samples + 2 = 13, multiple of 8)
LN_EPS = 1e-5
BN_EPS = 1e-5


# ---------------------------------------------------------------------------
# helpers used inside the kernel
# ---------------------------------------------------------------------------
def _mm(a, b):
    """bf16-operand matmul with f32 MXU accumulation."""
    return jnp.dot(a.astype(jnp.bfloat16), b.astype(jnp.bfloat16),
                   preferred_element_type=jnp.float32)


def _mm_nt(a, b):
    """a @ b.T with bf16 operands, f32 accumulation."""
    return lax.dot_general(a.astype(jnp.bfloat16), b.astype(jnp.bfloat16),
                           (((1,), (1,)), ((), ())),
                           preferred_element_type=jnp.float32)


def _layernorm(x, g, b):
    mu = jnp.mean(x, axis=-1, keepdims=True)
    var = jnp.mean((x - mu) ** 2, axis=-1, keepdims=True)
    return (x - mu) * lax.rsqrt(var + LN_EPS) * g + b


def _gelu(x):
    # TODO(synk): torch nn.GELU is exact-erf; tanh approximation used here.
    return jax.nn.gelu(x, approximate=True)


def _softmax_last(x):
    m = jnp.max(x, axis=-1, keepdims=True)
    e = jnp.exp(x - m)
    return e * pl.reciprocal(jnp.sum(e, axis=-1, keepdims=True), approx=True)


# ---------------------------------------------------------------------------
# The fused kernel: embed -> transformer stack -> c_t -> Wk preds -> InfoNCE -> proj head
# ---------------------------------------------------------------------------
def tc_fused_kernel(t_ref, z1_ref, z2_ref,
                    embw_ref, embb_ref, ctok_ref,
                    ln1g_ref, ln1b_ref, wqkv_ref, wo_ref, bo_ref,
                    ln2g_ref, ln2b_ref, w1_ref, b1_ref, w2_ref, b2_ref,
                    wkw_ref, wkb_ref,
                    phw1_ref, phb1_ref, phg_ref, phbt_ref, phw2_ref, phb2_ref,
                    nce_ref, proj_ref):
    BN = B * N_PAD
    SHIFT = N_PAD.bit_length() - 1          # log2(N_PAD)
    t0 = t_ref[0]
    n_tok = t0 + 2                          # c-token + tokens 0..t_samples

    # ---- attention mask (built once): same example AND key token < n_tok --------
    qi = lax.broadcasted_iota(jnp.int32, (BN, BN), 0)
    ki = lax.broadcasted_iota(jnp.int32, (BN, BN), 1)
    valid = ((qi >> SHIFT) == (ki >> SHIFT)) & ((ki & (N_PAD - 1)) < n_tok)
    mask_add = jnp.where(valid, jnp.float32(0.0), jnp.float32(-1e30))     # (BN, BN)

    # ---- patch embedding + c-token prepend (rows: [c, tok0, tok1, ...] / example)
    emb = _mm(z1_ref[...], embw_ref[...]) + embb_ref[...]                 # (B*T, D) f32
    emb_shift = pltpu.roll(emb, shift=1, axis=0)                          # row r <- token r-1
    tok_idx = lax.broadcasted_iota(jnp.int32, (BN, D), 0) & (N_PAD - 1)
    ctok = jnp.broadcast_to(ctok_ref[...], (BN, D))
    x2 = jnp.where(tok_idx == 0, ctok, emb_shift)                         # (B*Np, D) f32

    # TODO(synk): dropout (p=0.1) in the transformer is omitted (inference semantics).
    # ---- transformer stack (DEPTH layers, unrolled) ------------------------------
    for l in range(DEPTH):
        # --- Residual(PreNorm(Attention)), batched over examples via mask_add ---
        h2 = _layernorm(x2, ln1g_ref[l], ln1b_ref[l])                     # (BN, D)
        qkv = _mm(h2, wqkv_ref[l])                                        # (BN, 3D); Q pre-scaled
        heads = []
        for hh in range(HEADS):
            q_h = qkv[:, hh * DH:(hh + 1) * DH]
            k_h = qkv[:, D + hh * DH:D + (hh + 1) * DH]
            v_h = qkv[:, 2 * D + hh * DH:2 * D + (hh + 1) * DH]
            s = _mm_nt(q_h, k_h) + mask_add                               # (BN, BN)
            p = _softmax_last(s)
            heads.append(_mm(p, v_h))                                     # (BN, DH)
        ob = jnp.concatenate(heads, axis=-1)                              # (BN, D)
        x2 = x2 + _mm(ob, wo_ref[l]) + bo_ref[l]

        # --- Residual(PreNorm(FeedForward)) ---
        h2 = _layernorm(x2, ln2g_ref[l], ln2b_ref[l])
        h2 = _gelu(_mm(h2, w1_ref[l]) + b1_ref[l])
        x2 = x2 + _mm(h2, w2_ref[l]) + b2_ref[l]

    # ---- c_t = c-token row (row 0) of every example ------------------------------
    c_t = jnp.concatenate([x2[b * N_PAD:b * N_PAD + 1, :] for b in range(B)],
                          axis=0)                                         # (B, D)

    # ---- K prediction heads fused into one lane-dense (B, K*C) matmul ------------
    pred_all = _mm(c_t, wkw_ref[...]) + wkb_ref[...]                      # (B, K*C)

    # ---- encode_samples gather + InfoNCE over the K future timesteps -------------
    acc = jnp.float32(0.0)
    for k in range(K):
        enc_k = z2_ref[t0 + 1 + k]                                        # (B, C) f32
        prd = pred_all[:, k * C:(k + 1) * C]                              # (B, C)
        total = lax.dot_general(enc_k, prd, (((1,), (1,)), ((), ())),
                                preferred_element_type=jnp.float32)       # (B, B)
        # torch nn.LogSoftmax() (implicit dim) on a 2-D tensor -> dim=1
        m = jnp.max(total, axis=-1, keepdims=True)
        lse = m + jnp.log(jnp.sum(jnp.exp(total - m), axis=-1, keepdims=True))
        diag = jnp.sum(enc_k * prd, axis=-1, keepdims=True)               # diag(total)
        acc = acc + jnp.sum(diag - lse)                                   # sum(diag(log_softmax))
    nce_ref[...] = jnp.zeros((1, 1), jnp.float32) + acc / (-1.0 * B * K)

    # ---- projection head: Linear -> BatchNorm1d(batch stats) -> ReLU -> Linear ---
    # TODO(synk): BatchNorm1d uses current-batch statistics (training-mode forward).
    h = _mm(c_t, phw1_ref[...]) + phb1_ref[...]                           # (B, C//2)
    mu = jnp.mean(h, axis=0, keepdims=True)
    var = jnp.mean((h - mu) ** 2, axis=0, keepdims=True)
    h = (h - mu) * lax.rsqrt(var + BN_EPS) * phg_ref[...] + phbt_ref[...]
    h = jnp.maximum(h, 0.0)
    proj_ref[...] = _mm(h, phw2_ref[...]) + phb2_ref[...]


def tc_fused_call(t_arr, z1_flat, z2_tbc, p):
    """One pallas_call, empty grid, everything VMEM-resident, no scratch."""
    args = (t_arr, z1_flat, z2_tbc,
            p["embed_w"], p["embed_b"], p["c_token"],
            p["ln1_g"], p["ln1_b"], p["wqkv"], p["wo"], p["bo"],
            p["ln2_g"], p["ln2_b"], p["w1"], p["b1"], p["w2"], p["b2"],
            p["wk_w"], p["wk_b"],
            p["ph_w1"], p["ph_b1"], p["ph_gamma"], p["ph_beta"], p["ph_w2"], p["ph_b2"])
    vmem = pl.BlockSpec(memory_space=pltpu.MemorySpace.VMEM)
    smem = pl.BlockSpec(memory_space=pltpu.MemorySpace.SMEM)
    nce, proj = pl.pallas_call(
        tc_fused_kernel,
        out_shape=(jax.ShapeDtypeStruct((1, 1), jnp.float32),
                   jax.ShapeDtypeStruct((B, C // 4), jnp.float32)),
        in_specs=[smem] + [vmem] * (len(args) - 1),
        out_specs=(vmem, vmem),
    )(*args)
    return nce[0, 0], proj


# ---------------------------------------------------------------------------
# parameters (deterministic synthetic init; shapes follow the torch __init__,
# pre-stacked / pre-transposed / pre-cast into kernel-friendly layouts)
# ---------------------------------------------------------------------------
def init_params(key):
    keys = iter(jax.random.split(key, 32))
    nrm = lambda shape, s=0.05: jax.random.normal(next(keys), shape, jnp.float32) * s
    bf = lambda x: x.astype(jnp.bfloat16)
    wqkv = nrm((DEPTH, D, 3 * D))
    # fold the TS-TCC attention scale (dim ** -0.5, full model dim) into Wq
    wqkv = wqkv.at[:, :, :D].multiply(D ** -0.5)
    p = {
        "embed_w": bf(nrm((C, D))),          # Seq_Transformer.patch_to_embedding (transposed)
        "embed_b": nrm((1, D)),
        "c_token": nrm((1, D)),
        "ln1_g": jnp.ones((DEPTH, 1, D), jnp.float32),
        "ln1_b": jnp.zeros((DEPTH, 1, D), jnp.float32),
        "wqkv": bf(wqkv),                    # to_qkv (no bias); heads along 16-lane blocks
        "wo": bf(nrm((DEPTH, D, D))),        # to_out weight, per-head row blocks
        "bo": nrm((DEPTH, 1, D)),            # to_out bias
        "ln2_g": jnp.ones((DEPTH, 1, D), jnp.float32),
        "ln2_b": jnp.zeros((DEPTH, 1, D), jnp.float32),
        "w1": bf(nrm((DEPTH, D, MLP))), "b1": nrm((DEPTH, 1, MLP)),
        "w2": bf(nrm((DEPTH, MLP, D))), "b2": nrm((DEPTH, 1, D)),
        # K x nn.Linear(hidden_dim, num_channels), concatenated -> lane-dense (D, K*C)
        "wk_w": bf(nrm((D, K * C))),
        "wk_b": nrm((1, K * C)),
        # projection head
        "ph_w1": bf(nrm((D, C // 2))),
        "ph_b1": nrm((1, C // 2)),
        "ph_gamma": jnp.ones((1, C // 2), jnp.float32),
        "ph_beta": jnp.zeros((1, C // 2), jnp.float32),
        "ph_w2": bf(nrm((C // 2, C // 4))),
        "ph_b2": nrm((1, C // 4)),
    }
    return p


# ---------------------------------------------------------------------------
# full TC forward (only two transposes remain as XLA glue; t_samples is traced)
# ---------------------------------------------------------------------------
def tc_forward(features_aug1, features_aug2, params, t_samples):
    # torch: z = features.transpose(1, 2) -> (B, T, C); flattened for the in-kernel
    # patch-embedding matmul, and (T, B, C) for the in-kernel encode_samples gather.
    z1_flat = jnp.transpose(features_aug1, (0, 2, 1)).reshape(B * T, C)   # (B*T, C)
    z2_tbc = jnp.transpose(features_aug2, (2, 0, 1))                      # (T, B, C)
    t_arr = jnp.reshape(t_samples, (1,)).astype(jnp.int32)
    return tc_fused_call(t_arr, z1_flat, z2_tbc, params)


if __name__ == "__main__":
    assert N_PAD == T and N_PAD % 8 == 0 and N_PAD >= (T - K) + 2
    key = jax.random.PRNGKey(0)
    k_p, k_x1, k_x2, k_t = jax.random.split(key, 4)
    params = init_params(k_p)
    features_aug1 = jax.random.normal(k_x1, (B, C, T), jnp.float32)
    features_aug2 = jax.random.normal(k_x2, (B, C, T), jnp.float32)
    # torch.randint(seq_len - timestep, size=(1,)); traced -> no per-value recompile
    t_samples = jax.random.randint(k_t, (), 0, T - K, dtype=jnp.int32)

    fwd = jax.jit(tc_forward)
    nce, proj = fwd(features_aug1, features_aug2, params, t_samples)
    jax.block_until_ready((nce, proj))
    assert proj.shape == (B, C // 4)
    print("KERNEL_OK")
</pallas_src>

<mosaic_0001>
module attributes {stable_mosaic.version = 11 : i64} {
  func.func @tc_fused_kernel(%arg0: memref<1xi32, #tpu.memory_space<smem>>, %arg1: memref<32x32xf32, #tpu.memory_space<vmem>>, %arg2: memref<16x2x32xf32, #tpu.memory_space<vmem>>, %arg3: memref<32x64xbf16, #tpu.memory_space<vmem>>, %arg4: memref<1x64xf32, #tpu.memory_space<vmem>>, %arg5: memref<1x64xf32, #tpu.memory_space<vmem>>, %arg6: memref<4x1x64xf32, #tpu.memory_space<vmem>>, %arg7: memref<4x1x64xf32, #tpu.memory_space<vmem>>, %arg8: memref<4x64x192xbf16, #tpu.memory_space<vmem>>, %arg9: memref<4x64x64xbf16, #tpu.memory_space<vmem>>, %arg10: memref<4x1x64xf32, #tpu.memory_space<vmem>>, %arg11: memref<4x1x64xf32, #tpu.memory_space<vmem>>, %arg12: memref<4x1x64xf32, #tpu.memory_space<vmem>>, %arg13: memref<4x64x64xbf16, #tpu.memory_space<vmem>>, %arg14: memref<4x1x64xf32, #tpu.memory_space<vmem>>, %arg15: memref<4x64x64xbf16, #tpu.memory_space<vmem>>, %arg16: memref<4x1x64xf32, #tpu.memory_space<vmem>>, %arg17: memref<64x128xbf16, #tpu.memory_space<vmem>>, %arg18: memref<1x128xf32, #tpu.memory_space<vmem>>, %arg19: memref<64x16xbf16, #tpu.memory_space<vmem>>, %arg20: memref<1x16xf32, #tpu.memory_space<vmem>>, %arg21: memref<1x16xf32, #tpu.memory_space<vmem>>, %arg22: memref<1x16xf32, #tpu.memory_space<vmem>>, %arg23: memref<16x8xbf16, #tpu.memory_space<vmem>>, %arg24: memref<1x8xf32, #tpu.memory_space<vmem>>, %arg25: memref<1x1xf32, #tpu.memory_space<vmem>>, %arg26: memref<2x8xf32, #tpu.memory_space<vmem>>) attributes {dimension_semantics = [], scalar_prefetch = 0 : i64, scratch_operands = 0 : i64, tpu.core_type = #tpu.core_type<tc>} {
    %c0 = arith.constant 0 : index
    %0 = memref.load %arg0[%c0] : memref<1xi32, #tpu.memory_space<smem>>
    %c2_i32 = arith.constant 2 : i32
    %1 = arith.addi %0, %c2_i32 : i32
    %2 = tpu.iota {dimensions = array<i32: 0>} : vector<32x32xi32>
    %3 = tpu.iota {dimensions = array<i32: 1>} : vector<32x32xi32>
    %c4_i32 = arith.constant 4 : i32
    %4 = vector.broadcast %c4_i32 : i32 to vector<32x32xi32>
    %5 = arith.shrsi %2, %4 : vector<32x32xi32>
    %c4_i32_0 = arith.constant 4 : i32
    %6 = vector.broadcast %c4_i32_0 : i32 to vector<32x32xi32>
    %7 = arith.shrsi %3, %6 : vector<32x32xi32>
    %8 = arith.cmpi eq, %5, %7 : vector<32x32xi32>
    %c15_i32 = arith.constant 15 : i32
    %9 = vector.broadcast %c15_i32 : i32 to vector<32x32xi32>
    %10 = arith.andi %3, %9 : vector<32x32xi32>
    %11 = vector.broadcast %1 : i32 to vector<32x32xi32>
    %12 = arith.cmpi slt, %10, %11 : vector<32x32xi32>
    %13 = arith.andi %8, %12 : vector<32x32xi1>
    %cst = arith.constant 0.000000e+00 : f32
    %cst_1 = arith.constant -1.000000e+30 : f32
    %14 = vector.broadcast %cst : f32 to vector<32x32xf32>
    %15 = vector.broadcast %cst_1 : f32 to vector<32x32xf32>
    %16 = arith.select %13, %14, %15 : vector<32x32xi1>, vector<32x32xf32>
    %c0_2 = arith.constant 0 : index
    %c0_3 = arith.constant 0 : index
    %17 = vector.load %arg1[%c0_2, %c0_3] : memref<32x32xf32, #tpu.memory_space<vmem>>, vector<32x32xf32>
    %c0_4 = arith.constant 0 : index
    %c0_5 = arith.constant 0 : index
    %18 = vector.load %arg3[%c0_4, %c0_5] : memref<32x64xbf16, #tpu.memory_space<vmem>>, vector<32x64xbf16>
    %19 = arith.truncf %17 : vector<32x32xf32> to vector<32x32xbf16>
    %cst_6 = arith.constant dense<0.000000e+00> : vector<32x64xf32>
    %20 = tpu.matmul %19, %18, %cst_6 {dimension_numbers = #tpu.dot_dimension_numbers<[1], [0], [0], [1], [0, 0, 1, 1], [], []>} : vector<32x32xbf16>, vector<32x64xbf16>, vector<32x64xf32> -> vector<32x64xf32>
    %c0_7 = arith.constant 0 : index
    %c0_8 = arith.constant 0 : index
    %21 = vector.load %arg4[%c0_7, %c0_8] : memref<1x64xf32, #tpu.memory_space<vmem>>, vector<1x64xf32>
    %22 = vector.broadcast %21 : vector<1x64xf32> to vector<32x64xf32>
    %23 = arith.addf %20, %22 : vector<32x64xf32>
    %c1_i32 = arith.constant 1 : i32
    %24 = tpu.dynamic_rotate %23 by %c1_i32 dim 0 : vector<32x64xf32>, i32 -> vector<32x64xf32>
    %25 = tpu.iota {dimensions = array<i32: 0>} : vector<32x64xi32>
    %c15_i32_9 = arith.constant 15 : i32
    %26 = vector.broadcast %c15_i32_9 : i32 to vector<32x64xi32>
    %27 = arith.andi %25, %26 : vector<32x64xi32>
    %c0_10 = arith.constant 0 : index
    %c0_11 = arith.constant 0 : index
    %28 = vector.load %arg5[%c0_10, %c0_11] : memref<1x64xf32, #tpu.memory_space<vmem>>, vector<1x64xf32>
    %29 = vector.shape_cast %28 : vector<1x64xf32> to vector<1x64xf32>
    %30 = vector.broadcast %29 : vector<1x64xf32> to vector<32x64xf32>
    %c0_i32 = arith.constant 0 : i32
    %31 = vector.broadcast %c0_i32 : i32 to vector<32x64xi32>
    %32 = arith.cmpi eq, %27, %31 : vector<32x64xi32>
    %33 = arith.select %32, %30, %24 : vector<32x64xi1>, vector<32x64xf32>
    %c0_12 = arith.constant 0 : index
    %c0_13 = arith.constant 0 : index
    %c0_14 = arith.constant 0 : index
    %34 = vector.load %arg6[%c0_12, %c0_13, %c0_14] : memref<4x1x64xf32, #tpu.memory_space<vmem>>, vector<1x1x64xf32>
    %35 = vector.shape_cast %34 : vector<1x1x64xf32> to vector<1x64xf32>
    %c0_15 = arith.constant 0 : index
    %c0_16 = arith.constant 0 : index
    %c0_17 = arith.constant 0 : index
    %36 = vector.load %arg7[%c0_15, %c0_16, %c0_17] : memref<4x1x64xf32, #tpu.memory_space<vmem>>, vector<1x1x64xf32>
    %37 = vector.shape_cast %36 : vector<1x1x64xf32> to vector<1x64xf32>
    %cst_18 = arith.constant dense<0.000000e+00> : vector<32xf32>
    %38 = vector.multi_reduction <add>, %33, %cst_18 [1] : vector<32x64xf32> to vector<32xf32>
    %39 = vector.shape_cast %38 : vector<32xf32> to vector<32x1xf32>
    %cst_19 = arith.constant 6.400000e+01 : f32
    %40 = vector.broadcast %cst_19 : f32 to vector<32x1xf32>
    %41 = arith.divf %39, %40 : vector<32x1xf32>
    %42 = vector.broadcast %41 : vector<32x1xf32> to vector<32x64xf32>
    %43 = arith.subf %33, %42 : vector<32x64xf32>
    %44 = arith.mulf %43, %43 : vector<32x64xf32>
    %cst_20 = arith.constant dense<0.000000e+00> : vector<32xf32>
    %45 = vector.multi_reduction <add>, %44, %cst_20 [1] : vector<32x64xf32> to vector<32xf32>
    %46 = vector.shape_cast %45 : vector<32xf32> to vector<32x1xf32>
    %cst_21 = arith.constant 6.400000e+01 : f32
    %47 = vector.broadcast %cst_21 : f32 to vector<32x1xf32>
    %48 = arith.divf %46, %47 : vector<32x1xf32>
    %49 = vector.broadcast %41 : vector<32x1xf32> to vector<32x64xf32>
    %50 = arith.subf %33, %49 : vector<32x64xf32>
    %cst_22 = arith.constant 9.99999974E-6 : f32
    %51 = vector.broadcast %cst_22 : f32 to vector<32x1xf32>
    %52 = arith.addf %48, %51 : vector<32x1xf32>
    %53 = math.rsqrt %52 : vector<32x1xf32>
    %54 = vector.broadcast %53 : vector<32x1xf32> to vector<32x64xf32>
    %55 = arith.mulf %50, %54 : vector<32x64xf32>
    %56 = vector.broadcast %35 : vector<1x64xf32> to vector<32x64xf32>
    %57 = arith.mulf %55, %56 : vector<32x64xf32>
    %58 = vector.broadcast %37 : vector<1x64xf32> to vector<32x64xf32>
    %59 = arith.addf %57, %58 : vector<32x64xf32>
    %c0_23 = arith.constant 0 : index
    %c0_24 = arith.constant 0 : index
    %c0_25 = arith.constant 0 : index
    %60 = vector.load %arg8[%c0_23, %c0_24, %c0_25] : memref<4x64x192xbf16, #tpu.memory_space<vmem>>, vector<1x64x192xbf16>
    %61 = vector.shape_cast %60 : vector<1x64x192xbf16> to vector<64x192xbf16>
    %62 = arith.truncf %59 : vector<32x64xf32> to vector<32x64xbf16>
    %cst_26 = arith.constant dense<0.000000e+00> : vector<32x192xf32>
    %63 = tpu.matmul %62, %61, %cst_26 {dimension_numbers = #tpu.dot_dimension_numbers<[1], [0], [0], [1], [0, 0, 1, 1], [], []>} : vector<32x64xbf16>, vector<64x192xbf16>, vector<32x192xf32> -> vector<32x192xf32>
    %64 = vector.extract_strided_slice %63 {offsets = [0, 0], sizes = [32, 16], strides = [1, 1]} : vector<32x192xf32> to vector<32x16xf32>
    %65 = vector.extract_strided_slice %63 {offsets = [0, 64], sizes = [32, 16], strides = [1, 1]} : vector<32x192xf32> to vector<32x16xf32>
    %66 = vector.extract_strided_slice %63 {offsets = [0, 128], sizes = [32, 16], strides = [1, 1]} : vector<32x192xf32> to vector<32x16xf32>
    %67 = arith.truncf %64 : vector<32x16xf32> to vector<32x16xbf16>
    %68 = arith.truncf %65 : vector<32x16xf32> to vector<32x16xbf16>
    %cst_27 = arith.constant dense<0.000000e+00> : vector<32x32xf32>
    %69 = tpu.matmul %67, %68, %cst_27 {dimension_numbers = #tpu.dot_dimension_numbers<[1], [1], [0], [0], [0, 0, 1, 0], [], []>} : vector<32x16xbf16>, vector<32x16xbf16>, vector<32x32xf32> -> vector<32x32xf32>
    %70 = arith.addf %69, %16 : vector<32x32xf32>
    %cst_28 = arith.constant dense<0xFF800000> : vector<32xf32>
    %71 = vector.multi_reduction <maximumf>, %70, %cst_28 [1] : vector<32x32xf32> to vector<32xf32>
    %72 = vector.shape_cast %71 : vector<32xf32> to vector<32x1xf32>
    %73 = vector.broadcast %72 : vector<32x1xf32> to vector<32x32xf32>
    %74 = arith.subf %70, %73 : vector<32x32xf32>
    %75 = math.exp %74 : vector<32x32xf32>
    %cst_29 = arith.constant dense<0.000000e+00> : vector<32xf32>
    %76 = vector.multi_reduction <add>, %75, %cst_29 [1] : vector<32x32xf32> to vector<32xf32>
    %77 = vector.shape_cast %76 : vector<32xf32> to vector<32x1xf32>
    %78 = tpu.reciprocal %77 {approx = true} : vector<32x1xf32> -> vector<32x1xf32>
    %79 = vector.broadcast %78 : vector<32x1xf32> to vector<32x32xf32>
    %80 = arith.mulf %75, %79 : vector<32x32xf32>
    %81 = arith.truncf %80 : vector<32x32xf32> to vector<32x32xbf16>
    %82 = arith.truncf %66 : vector<32x16xf32> to vector<32x16xbf16>
    %cst_30 = arith.constant dense<0.000000e+00> : vector<32x16xf32>
    %83 = tpu.matmul %81, %82, %cst_30 {dimension_numbers = #tpu.dot_dimension_numbers<[1], [0], [0], [1], [0, 0, 1, 1], [], []>} : vector<32x32xbf16>, vector<32x16xbf16>, vector<32x16xf32> -> vector<32x16xf32>
    %84 = vector.extract_strided_slice %63 {offsets = [0, 16], sizes = [32, 16], strides = [1, 1]} : vector<32x192xf32> to vector<32x16xf32>
    %85 = vector.extract_strided_slice %63 {offsets = [0, 80], sizes = [32, 16], strides = [1, 1]} : vector<32x192xf32> to vector<32x16xf32>
    %86 = vector.extract_strided_slice %63 {offsets = [0, 144], sizes = [32, 16], strides = [1, 1]} : vector<32x192xf32> to vector<32x16xf32>
    %87 = arith.truncf %84 : vector<32x16xf32> to vector<32x16xbf16>
    %88 = arith.truncf %85 : vector<32x16xf32> to vector<32x16xbf16>
    %cst_31 = arith.constant dense<0.000000e+00> : vector<32x32xf32>
    %89 = tpu.matmul %87, %88, %cst_31 {dimension_numbers = #tpu.dot_dimension_numbers<[1], [1], [0], [0], [0, 0, 1, 0], [], []>} : vector<32x16xbf16>, vector<32x16xbf16>, vector<32x32xf32> -> vector<32x32xf32>
    %90 = arith.addf %89, %16 : vector<32x32xf32>
    %cst_32 = arith.constant dense<0xFF800000> : vector<32xf32>
    %91 = vector.multi_reduction <maximumf>, %90, %cst_32 [1] : vector<32x32xf32> to vector<32xf32>
    %92 = vector.shape_cast %91 : vector<32xf32> to vector<32x1xf32>
    %93 = vector.broadcast %92 : vector<32x1xf32> to vector<32x32xf32>
    %94 = arith.subf %90, %93 : vector<32x32xf32>
    %95 = math.exp %94 : vector<32x32xf32>
    %cst_33 = arith.constant dense<0.000000e+00> : vector<32xf32>
    %96 = vector.multi_reduction <add>, %95, %cst_33 [1] : vector<32x32xf32> to vector<32xf32>
    %97 = vector.shape_cast %96 : vector<32xf32> to vector<32x1xf32>
    %98 = tpu.reciprocal %97 {approx = true} : vector<32x1xf32> -> vector<32x1xf32>
    %99 = vector.broadcast %98 : vector<32x1xf32> to vector<32x32xf32>
    %100 = arith.mulf %95, %99 : vector<32x32xf32>
    %101 = arith.truncf %100 : vector<32x32xf32> to vector<32x32xbf16>
    %102 = arith.truncf %86 : vector<32x16xf32> to vector<32x16xbf16>
    %cst_34 = arith.constant dense<0.000000e+00> : vector<32x16xf32>
    %103 = tpu.matmul %101, %102, %cst_34 {dimension_numbers = #tpu.dot_dimension_numbers<[1], [0], [0], [1], [0, 0, 1, 1], [], []>} : vector<32x32xbf16>, vector<32x16xbf16>, vector<32x16xf32> -> vector<32x16xf32>
    %104 = vector.extract_strided_slice %63 {offsets = [0, 32], sizes = [32, 16], strides = [1, 1]} : vector<32x192xf32> to vector<32x16xf32>
    %105 = vector.extract_strided_slice %63 {offsets = [0, 96], sizes = [32, 16], strides = [1, 1]} : vector<32x192xf32> to vector<32x16xf32>
    %106 = vector.extract_strided_slice %63 {offsets = [0, 160], sizes = [32, 16], strides = [1, 1]} : vector<32x192xf32> to vector<32x16xf32>
    %107 = arith.truncf %104 : vector<32x16xf32> to vector<32x16xbf16>
    %108 = arith.truncf %105 : vector<32x16xf32> to vector<32x16xbf16>
    %cst_35 = arith.constant dense<0.000000e+00> : vector<32x32xf32>
    %109 = tpu.matmul %107, %108, %cst_35 {dimension_numbers = #tpu.dot_dimension_numbers<[1], [1], [0], [0], [0, 0, 1, 0], [], []>} : vector<32x16xbf16>, vector<32x16xbf16>, vector<32x32xf32> -> vector<32x32xf32>
    %110 = arith.addf %109, %16 : vector<32x32xf32>
    %cst_36 = arith.constant dense<0xFF800000> : vector<32xf32>
    %111 = vector.multi_reduction <maximumf>, %110, %cst_36 [1] : vector<32x32xf32> to vector<32xf32>
    %112 = vector.shape_cast %111 : vector<32xf32> to vector<32x1xf32>
    %113 = vector.broadcast %112 : vector<32x1xf32> to vector<32x32xf32>
    %114 = arith.subf %110, %113 : vector<32x32xf32>
    %115 = math.exp %114 : vector<32x32xf32>
    %cst_37 = arith.constant dense<0.000000e+00> : vector<32xf32>
    %116 = vector.multi_reduction <add>, %115, %cst_37 [1] : vector<32x32xf32> to vector<32xf32>
    %117 = vector.shape_cast %116 : vector<32xf32> to vector<32x1xf32>
    %118 = tpu.reciprocal %117 {approx = true} : vector<32x1xf32> -> vector<32x1xf32>
    %119 = vector.broadcast %118 : vector<32x1xf32> to vector<32x32xf32>
    %120 = arith.mulf %115, %119 : vector<32x32xf32>
    %121 = arith.truncf %120 : vector<32x32xf32> to vector<32x32xbf16>
    %122 = arith.truncf %106 : vector<32x16xf32> to vector<32x16xbf16>
    %cst_38 = arith.constant dense<0.000000e+00> : vector<32x16xf32>
    %123 = tpu.matmul %121, %122, %cst_38 {dimension_numbers = #tpu.dot_dimension_numbers<[1], [0], [0], [1], [0, 0, 1, 1], [], []>} : vector<32x32xbf16>, vector<32x16xbf16>, vector<32x16xf32> -> vector<32x16xf32>
    %124 = vector.extract_strided_slice %63 {offsets = [0, 48], sizes = [32, 16], strides = [1, 1]} : vector<32x192xf32> to vector<32x16xf32>
    %125 = vector.extract_strided_slice %63 {offsets = [0, 112], sizes = [32, 16], strides = [1, 1]} : vector<32x192xf32> to vector<32x16xf32>
    %126 = vector.extract_strided_slice %63 {offsets = [0, 176], sizes = [32, 16], strides = [1, 1]} : vector<32x192xf32> to vector<32x16xf32>
    %127 = arith.truncf %124 : vector<32x16xf32> to vector<32x16xbf16>
    %128 = arith.truncf %125 : vector<32x16xf32> to vector<32x16xbf16>
    %cst_39 = arith.constant dense<0.000000e+00> : vector<32x32xf32>
    %129 = tpu.matmul %127, %128, %cst_39 {dimension_numbers = #tpu.dot_dimension_numbers<[1], [1], [0], [0], [0, 0, 1, 0], [], []>} : vector<32x16xbf16>, vector<32x16xbf16>, vector<32x32xf32> -> vector<32x32xf32>
    %130 = arith.addf %129, %16 : vector<32x32xf32>
    %cst_40 = arith.constant dense<0xFF800000> : vector<32xf32>
    %131 = vector.multi_reduction <maximumf>, %130, %cst_40 [1] : vector<32x32xf32> to vector<32xf32>
    %132 = vector.shape_cast %131 : vector<32xf32> to vector<32x1xf32>
    %133 = vector.broadcast %132 : vector<32x1xf32> to vector<32x32xf32>
    %134 = arith.subf %130, %133 : vector<32x32xf32>
    %135 = math.exp %134 : vector<32x32xf32>
    %cst_41 = arith.constant dense<0.000000e+00> : vector<32xf32>
    %136 = vector.multi_reduction <add>, %135, %cst_41 [1] : vector<32x32xf32> to vector<32xf32>
    %137 = vector.shape_cast %136 : vector<32xf32> to vector<32x1xf32>
    %138 = tpu.reciprocal %137 {approx = true} : vector<32x1xf32> -> vector<32x1xf32>
    %139 = vector.broadcast %138 : vector<32x1xf32> to vector<32x32xf32>
    %140 = arith.mulf %135, %139 : vector<32x32xf32>
    %141 = arith.truncf %140 : vector<32x32xf32> to vector<32x32xbf16>
    %142 = arith.truncf %126 : vector<32x16xf32> to vector<32x16xbf16>
    %cst_42 = arith.constant dense<0.000000e+00> : vector<32x16xf32>
    %143 = tpu.matmul %141, %142, %cst_42 {dimension_numbers = #tpu.dot_dimension_numbers<[1], [0], [0], [1], [0, 0, 1, 1], [], []>} : vector<32x32xbf16>, vector<32x16xbf16>, vector<32x16xf32> -> vector<32x16xf32>
    %144 = tpu.concatenate %83, %103, %123, %143 in 1 : vector<32x16xf32>, vector<32x16xf32>, vector<32x16xf32>, vector<32x16xf32> -> vector<32x64xf32>
    %c0_43 = arith.constant 0 : index
    %c0_44 = arith.constant 0 : index
    %c0_45 = arith.constant 0 : index
    %145 = vector.load %arg9[%c0_43, %c0_44, %c0_45] : memref<4x64x64xbf16, #tpu.memory_space<vmem>>, vector<1x64x64xbf16>
    %146 = vector.shape_cast %145 : vector<1x64x64xbf16> to vector<64x64xbf16>
    %147 = arith.truncf %144 : vector<32x64xf32> to vector<32x64xbf16>
    %cst_46 = arith.constant dense<0.000000e+00> : vector<32x64xf32>
    %148 = tpu.matmul %147, %146, %cst_46 {dimension_numbers = #tpu.dot_dimension_numbers<[1], [0], [0], [1], [0, 0, 1, 1], [], []>} : vector<32x64xbf16>, vector<64x64xbf16>, vector<32x64xf32> -> vector<32x64xf32>
    %149 = arith.addf %33, %148 : vector<32x64xf32>
    %c0_47 = arith.constant 0 : index
    %c0_48 = arith.constant 0 : index
    %c0_49 = arith.constant 0 : index
    %150 = vector.load %arg10[%c0_47, %c0_48, %c0_49] : memref<4x1x64xf32, #tpu.memory_space<vmem>>, vector<1x1x64xf32>
    %151 = vector.shape_cast %150 : vector<1x1x64xf32> to vector<1x64xf32>
    %152 = vector.broadcast %151 : vector<1x64xf32> to vector<32x64xf32>
    %153 = arith.addf %149, %152 : vector<32x64xf32>
    %c0_50 = arith.constant 0 : index
    %c0_51 = arith.constant 0 : index
    %c0_52 = arith.constant 0 : index
    %154 = vector.load %arg11[%c0_50, %c0_51, %c0_52] : memref<4x1x64xf32, #tpu.memory_space<vmem>>, vector<1x1x64xf32>
    %155 = vector.shape_cast %154 : vector<1x1x64xf32> to vector<1x64xf32>
    %c0_53 = arith.constant 0 : index
    %c0_54 = arith.constant 0 : index
    %c0_55 = arith.constant 0 : index
    %156 = vector.load %arg12[%c0_53, %c0_54, %c0_55] : memref<4x1x64xf32, #tpu.memory_space<vmem>>, vector<1x1x64xf32>
    %157 = vector.shape_cast %156 : vector<1x1x64xf32> to vector<1x64xf32>
    %cst_56 = arith.constant dense<0.000000e+00> : vector<32xf32>
    %158 = vector.multi_reduction <add>, %153, %cst_56 [1] : vector<32x64xf32> to vector<32xf32>
    %159 = vector.shape_cast %158 : vector<32xf32> to vector<32x1xf32>
    %cst_57 = arith.constant 6.400000e+01 : f32
    %160 = vector.broadcast %cst_57 : f32 to vector<32x1xf32>
    %161 = arith.divf %159, %160 : vector<32x1xf32>
    %162 = vector.broadcast %161 : vector<32x1xf32> to vector<32x64xf32>
    %163 = arith.subf %153, %162 : vector<32x64xf32>
    %164 = arith.mulf %163, %163 : vector<32x64xf32>
    %cst_58 = arith.constant dense<0.000000e+00> : vector<32xf32>
    %165 = vector.multi_reduction <add>, %164, %cst_58 [1] : vector<32x64xf32> to vector<32xf32>
    %166 = vector.shape_cast %165 : vector<32xf32> to vector<32x1xf32>
    %cst_59 = arith.constant 6.400000e+01 : f32
    %167 = vector.broadcast %cst_59 : f32 to vector<32x1xf32>
    %168 = arith.divf %166, %167 : vector<32x1xf32>
    %169 = vector.broadcast %161 : vector<32x1xf32> to vector<32x64xf32>
    %170 = arith.subf %153, %169 : vector<32x64xf32>
    %cst_60 = arith.constant 9.99999974E-6 : f32
    %171 = vector.broadcast %cst_60 : f32 to vector<32x1xf32>
    %172 = arith.addf %168, %171 : vector<32x1xf32>
    %173 = math.rsqrt %172 : vector<32x1xf32>
    %174 = vector.broadcast %173 : vector<32x1xf32> to vector<32x64xf32>
    %175 = arith.mulf %170, %174 : vector<32x64xf32>
    %176 = vector.broadcast %155 : vector<1x64xf32> to vector<32x64xf32>
    %177 = arith.mulf %175, %176 : vector<32x64xf32>
    %178 = vector.broadcast %157 : vector<1x64xf32> to vector<32x64xf32>
    %179 = arith.addf %177, %178 : vector<32x64xf32>
    %c0_61 = arith.constant 0 : index
    %c0_62 = arith.constant 0 : index
    %c0_63 = arith.constant 0 : index
    %180 = vector.load %arg13[%c0_61, %c0_62, %c0_63] : memref<4x64x64xbf16, #tpu.memory_space<vmem>>, vector<1x64x64xbf16>
    %181 = vector.shape_cast %180 : vector<1x64x64xbf16> to vector<64x64xbf16>
    %182 = arith.truncf %179 : vector<32x64xf32> to vector<32x64xbf16>
    %cst_64 = arith.constant dense<0.000000e+00> : vector<32x64xf32>
    %183 = tpu.matmul %182, %181, %cst_64 {dimension_numbers = #tpu.dot_dimension_numbers<[1], [0], [0], [1], [0, 0, 1, 1], [], []>} : vector<32x64xbf16>, vector<64x64xbf16>, vector<32x64xf32> -> vector<32x64xf32>
    %c0_65 = arith.constant 0 : index
    %c0_66 = arith.constant 0 : index
    %c0_67 = arith.constant 0 : index
    %184 = vector.load %arg14[%c0_65, %c0_66, %c0_67] : memref<4x1x64xf32, #tpu.memory_space<vmem>>, vector<1x1x64xf32>
    %185 = vector.shape_cast %184 : vector<1x1x64xf32> to vector<1x64xf32>
    %186 = vector.broadcast %185 : vector<1x64xf32> to vector<32x64xf32>
    %187 = arith.addf %183, %186 : vector<32x64xf32>
    %188 = arith.mulf %187, %187 : vector<32x64xf32>
    %189 = arith.mulf %187, %188 : vector<32x64xf32>
    %cst_68 = arith.constant 4.471500e-02 : f32
    %190 = vector.broadcast %cst_68 : f32 to vector<32x64xf32>
    %191 = arith.mulf %190, %189 : vector<32x64xf32>
    %192 = arith.addf %187, %191 : vector<32x64xf32>
    %cst_69 = arith.constant 0.797884583 : f32
    %193 = vector.broadcast %cst_69 : f32 to vector<32x64xf32>
    %194 = arith.mulf %193, %192 : vector<32x64xf32>
    %195 = math.tanh %194 : vector<32x64xf32>
    %cst_70 = arith.constant 1.000000e+00 : f32
    %196 = vector.broadcast %cst_70 : f32 to vector<32x64xf32>
    %197 = arith.addf %196, %195 : vector<32x64xf32>
    %cst_71 = arith.constant 5.000000e-01 : f32
    %198 = vector.broadcast %cst_71 : f32 to vector<32x64xf32>
    %199 = arith.mulf %198, %197 : vector<32x64xf32>
    %200 = arith.mulf %187, %199 : vector<32x64xf32>
    %c0_72 = arith.constant 0 : index
    %c0_73 = arith.constant 0 : index
    %c0_74 = arith.constant 0 : index
    %201 = vector.load %arg15[%c0_72, %c0_73, %c0_74] : memref<4x64x64xbf16, #tpu.memory_space<vmem>>, vector<1x64x64xbf16>
    %202 = vector.shape_cast %201 : vector<1x64x64xbf16> to vector<64x64xbf16>
    %203 = arith.truncf %200 : vector<32x64xf32> to vector<32x64xbf16>
    %cst_75 = arith.constant dense<0.000000e+00> : vector<32x64xf32>
    %204 = tpu.matmul %203, %202, %cst_75 {dimension_numbers = #tpu.dot_dimension_numbers<[1], [0], [0], [1], [0, 0, 1, 1], [], []>} : vector<32x64xbf16>, vector<64x64xbf16>, vector<32x64xf32> -> vector<32x64xf32>
    %205 = arith.addf %153, %204 : vector<32x64xf32>
    %c0_76 = arith.constant 0 : index
    %c0_77 = arith.constant 0 : index
    %c0_78 = arith.constant 0 : index
    %206 = vector.load %arg16[%c0_76, %c0_77, %c0_78] : memref<4x1x64xf32, #tpu.memory_space<vmem>>, vector<1x1x64xf32>
    %207 = vector.shape_cast %206 : vector<1x1x64xf32> to vector<1x64xf32>
    %208 = vector.broadcast %207 : vector<1x64xf32> to vector<32x64xf32>
    %209 = arith.addf %205, %208 : vector<32x64xf32>
    %c1 = arith.constant 1 : index
    %c0_79 = arith.constant 0 : index
    %c0_80 = arith.constant 0 : index
    %210 = vector.load %arg6[%c1, %c0_79, %c0_80] : memref<4x1x64xf32, #tpu.memory_space<vmem>>, vector<1x1x64xf32>
    %211 = vector.shape_cast %210 : vector<1x1x64xf32> to vector<1x64xf32>
    %c1_81 = arith.constant 1 : index
    %c0_82 = arith.constant 0 : index
    %c0_83 = arith.constant 0 : index
    %212 = vector.load %arg7[%c1_81, %c0_82, %c0_83] : memref<4x1x64xf32, #tpu.memory_space<vmem>>, vector<1x1x64xf32>
    %213 = vector.shape_cast %212 : vector<1x1x64xf32> to vector<1x64xf32>
    %cst_84 = arith.constant dense<0.000000e+00> : vector<32xf32>
    %214 = vector.multi_reduction <add>, %209, %cst_84 [1] : vector<32x64xf32> to vector<32xf32>
    %215 = vector.shape_cast %214 : vector<32xf32> to vector<32x1xf32>
    %cst_85 = arith.constant 6.400000e+01 : f32
    %216 = vector.broadcast %cst_85 : f32 to vector<32x1xf32>
    %217 = arith.divf %215, %216 : vector<32x1xf32>
    %218 = vector.broadcast %217 : vector<32x1xf32> to vector<32x64xf32>
    %219 = arith.subf %209, %218 : vector<32x64xf32>
    %220 = arith.mulf %219, %219 : vector<32x64xf32>
    %cst_86 = arith.constant dense<0.000000e+00> : vector<32xf32>
    %221 = vector.multi_reduction <add>, %220, %cst_86 [1] : vector<32x64xf32> to vector<32xf32>
    %222 = vector.shape_cast %221 : vector<32xf32> to vector<32x1xf32>
    %cst_87 = arith.constant 6.400000e+01 : f32
    %223 = vector.broadcast %cst_87 : f32 to vector<32x1xf32>
    %224 = arith.divf %222, %223 : vector<32x1xf32>
    %225 = vector.broadcast %217 : vector<32x1xf32> to vector<32x64xf32>
    %226 = arith.subf %209, %225 : vector<32x64xf32>
    %cst_88 = arith.constant 9.99999974E-6 : f32
    %227 = vector.broadcast %cst_88 : f32 to vector<32x1xf32>
    %228 = arith.addf %224, %227 : vector<32x1xf32>
    %229 = math.rsqrt %228 : vector<32x1xf32>
    %230 = vector.broadcast %229 : vector<32x1xf32> to vector<32x64xf32>
    %231 = arith.mulf %226, %230 : vector<32x64xf32>
    %232 = vector.broadcast %211 : vector<1x64xf32> to vector<32x64xf32>
    %233 = arith.mulf %231, %232 : vector<32x64xf32>
    %234 = vector.broadcast %213 : vector<1x64xf32> to vector<32x64xf32>
    %235 = arith.addf %233, %234 : vector<32x64xf32>
    %c1_89 = arith.constant 1 : index
    %c0_90 = arith.constant 0 : index
    %c0_91 = arith.constant 0 : index
    %236 = vector.load %arg8[%c1_89, %c0_90, %c0_91] : memref<4x64x192xbf16, #tpu.memory_space<vmem>>, vector<1x64x192xbf16>
    %237 = vector.shape_cast %236 : vector<1x64x192xbf16> to vector<64x192xbf16>
    %238 = arith.truncf %235 : vector<32x64xf32> to vector<32x64xbf16>
    %cst_92 = arith.constant dense<0.000000e+00> : vector<32x192xf32>
    %239 = tpu.matmul %238, %237, %cst_92 {dimension_numbers = #tpu.dot_dimension_numbers<[1], [0], [0], [1], [0, 0, 1, 1], [], []>} : vector<32x64xbf16>, vector<64x192xbf16>, vector<32x192xf32> -> vector<32x192xf32>
    %240 = vector.extract_strided_slice %239 {offsets = [0, 0], sizes = [32, 16], strides = [1, 1]} : vector<32x192xf32> to vector<32x16xf32>
    %241 = vector.extract_strided_slice %239 {offsets = [0, 64], sizes = [32, 16], strides = [1, 1]} : vector<32x192xf32> to vector<32x16xf32>
    %242 = vector.extract_strided_slice %239 {offsets = [0, 128], sizes = [32, 16], strides = [1, 1]} : vector<32x192xf32> to vector<32x16xf32>
    %243 = arith.truncf %240 : vector<32x16xf32> to vector<32x16xbf16>
    %244 = arith.truncf %241 : vector<32x16xf32> to vector<32x16xbf16>
    %cst_93 = arith.constant dense<0.000000e+00> : vector<32x32xf32>
    %245 = tpu.matmul %243, %244, %cst_93 {dimension_numbers = #tpu.dot_dimension_numbers<[1], [1], [0], [0], [0, 0, 1, 0], [], []>} : vector<32x16xbf16>, vector<32x16xbf16>, vector<32x32xf32> -> vector<32x32xf32>
    %246 = arith.addf %245, %16 : vector<32x32xf32>
    %cst_94 = arith.constant dense<0xFF800000> : vector<32xf32>
    %247 = vector.multi_reduction <maximumf>, %246, %cst_94 [1] : vector<32x32xf32> to vector<32xf32>
    %248 = vector.shape_cast %247 : vector<32xf32> to vector<32x1xf32>
    %249 = vector.broadcast %248 : vector<32x1xf32> to vector<32x32xf32>
    %250 = arith.subf %246, %249 : vector<32x32xf32>
    %251 = math.exp %250 : vector<32x32xf32>
    %cst_95 = arith.constant dense<0.000000e+00> : vector<32xf32>
    %252 = vector.multi_reduction <add>, %251, %cst_95 [1] : vector<32x32xf32> to vector<32xf32>
    %253 = vector.shape_cast %252 : vector<32xf32> to vector<32x1xf32>
    %254 = tpu.reciprocal %253 {approx = true} : vector<32x1xf32> -> vector<32x1xf32>
    %255 = vector.broadcast %254 : vector<32x1xf32> to vector<32x32xf32>
    %256 = arith.mulf %251, %255 : vector<32x32xf32>
    %257 = arith.truncf %256 : vector<32x32xf32> to vector<32x32xbf16>
    %258 = arith.truncf %242 : vector<32x16xf32> to vector<32x16xbf16>
    %cst_96 = arith.constant dense<0.000000e+00> : vector<32x16xf32>
    %259 = tpu.matmul %257, %258, %cst_96 {dimension_numbers = #tpu.dot_dimension_numbers<[1], [0], [0], [1], [0, 0, 1, 1], [], []>} : vector<32x32xbf16>, vector<32x16xbf16>, vector<32x16xf32> -> vector<32x16xf32>
    %260 = vector.extract_strided_slice %239 {offsets = [0, 16], sizes = [32, 16], strides = [1, 1]} : vector<32x192xf32> to vector<32x16xf32>
    %261 = vector.extract_strided_slice %239 {offsets = [0, 80], sizes = [32, 16], strides = [1, 1]} : vector<32x192xf32> to vector<32x16xf32>
    %262 = vector.extract_strided_slice %239 {offsets = [0, 144], sizes = [32, 16], strides = [1, 1]} : vector<32x192xf32> to vector<32x16xf32>
    %263 = arith.truncf %260 : vector<32x16xf32> to vector<32x16xbf16>
    %264 = arith.truncf %261 : vector<32x16xf32> to vector<32x16xbf16>
    %cst_97 = arith.constant dense<0.000000e+00> : vector<32x32xf32>
    %265 = tpu.matmul %263, %264, %cst_97 {dimension_numbers = #tpu.dot_dimension_numbers<[1], [1], [0], [0], [0, 0, 1, 0], [], []>} : vector<32x16xbf16>, vector<32x16xbf16>, vector<32x32xf32> -> vector<32x32xf32>
    %266 = arith.addf %265, %16 : vector<32x32xf32>
    %cst_98 = arith.constant dense<0xFF800000> : vector<32xf32>
    %267 = vector.multi_reduction <maximumf>, %266, %cst_98 [1] : vector<32x32xf32> to vector<32xf32>
    %268 = vector.shape_cast %267 : vector<32xf32> to vector<32x1xf32>
    %269 = vector.broadcast %268 : vector<32x1xf32> to vector<32x32xf32>
    %270 = arith.subf %266, %269 : vector<32x32xf32>
    %271 = math.exp %270 : vector<32x32xf32>
    %cst_99 = arith.constant dense<0.000000e+00> : vector<32xf32>
    %272 = vector.multi_reduction <add>, %271, %cst_99 [1] : vector<32x32xf32> to vector<32xf32>
    %273 = vector.shape_cast %272 : vector<32xf32> to vector<32x1xf32>
    %274 = tpu.reciprocal %273 {approx = true} : vector<32x1xf32> -> vector<32x1xf32>
    %275 = vector.broadcast %274 : vector<32x1xf32> to vector<32x32xf32>
    %276 = arith.mulf %271, %275 : vector<32x32xf32>
    %277 = arith.truncf %276 : vector<32x32xf32> to vector<32x32xbf16>
    %278 = arith.truncf %262 : vector<32x16xf32> to vector<32x16xbf16>
    %cst_100 = arith.constant dense<0.000000e+00> : vector<32x16xf32>
    %279 = tpu.matmul %277, %278, %cst_100 {dimension_numbers = #tpu.dot_dimension_numbers<[1], [0], [0], [1], [0, 0, 1, 1], [], []>} : vector<32x32xbf16>, vector<32x16xbf16>, vector<32x16xf32> -> vector<32x16xf32>
    %280 = vector.extract_strided_slice %239 {offsets = [0, 32], sizes = [32, 16], strides = [1, 1]} : vector<32x192xf32> to vector<32x16xf32>
    %281 = vector.extract_strided_slice %239 {offsets = [0, 96], sizes = [32, 16], strides = [1, 1]} : vector<32x192xf32> to vector<32x16xf32>
    %282 = vector.extract_strided_slice %239 {offsets = [0, 160], sizes = [32, 16], strides = [1, 1]} : vector<32x192xf32> to vector<32x16xf32>
    %283 = arith.truncf %280 : vector<32x16xf32> to vector<32x16xbf16>
    %284 = arith.truncf %281 : vector<32x16xf32> to vector<32x16xbf16>
    %cst_101 = arith.constant dense<0.000000e+00> : vector<32x32xf32>
    %285 = tpu.matmul %283, %284, %cst_101 {dimension_numbers = #tpu.dot_dimension_numbers<[1], [1], [0], [0], [0, 0, 1, 0], [], []>} : vector<32x16xbf16>, vector<32x16xbf16>, vector<32x32xf32> -> vector<32x32xf32>
    %286 = arith.addf %285, %16 : vector<32x32xf32>
    %cst_102 = arith.constant dense<0xFF800000> : vector<32xf32>
    %287 = vector.multi_reduction <maximumf>, %286, %cst_102 [1] : vector<32x32xf32> to vector<32xf32>
    %288 = vector.shape_cast %287 : vector<32xf32> to vector<32x1xf32>
    %289 = vector.broadcast %288 : vector<32x1xf32> to vector<32x32xf32>
    %290 = arith.subf %286, %289 : vector<32x32xf32>
    %291 = math.exp %290 : vector<32x32xf32>
    %cst_103 = arith.constant dense<0.000000e+00> : vector<32xf32>
    %292 = vector.multi_reduction <add>, %291, %cst_103 [1] : vector<32x32xf32> to vector<32xf32>
    %293 = vector.shape_cast %292 : vector<32xf32> to vector<32x1xf32>
    %294 = tpu.reciprocal %293 {approx = true} : vector<32x1xf32> -> vector<32x1xf32>
    %295 = vector.broadcast %294 : vector<32x1xf32> to vector<32x32xf32>
    %296 = arith.mulf %291, %295 : vector<32x32xf32>
    %297 = arith.truncf %296 : vector<32x32xf32> to vector<32x32xbf16>
    %298 = arith.truncf %282 : vector<32x16xf32> to vector<32x16xbf16>
    %cst_104 = arith.constant dense<0.000000e+00> : vector<32x16xf32>
    %299 = tpu.matmul %297, %298, %cst_104 {dimension_numbers = #tpu.dot_dimension_numbers<[1], [0], [0], [1], [0, 0, 1, 1], [], []>} : vector<32x32xbf16>, vector<32x16xbf16>, vector<32x16xf32> -> vector<32x16xf32>
    %300 = vector.extract_strided_slice %239 {offsets = [0, 48], sizes = [32, 16], strides = [1, 1]} : vector<32x192xf32> to vector<32x16xf32>
    %301 = vector.extract_strided_slice %239 {offsets = [0, 112], sizes = [32, 16], strides = [1, 1]} : vector<32x192xf32> to vector<32x16xf32>
    %302 = vector.extract_strided_slice %239 {offsets = [0, 176], sizes = [32, 16], strides = [1, 1]} : vector<32x192xf32> to vector<32x16xf32>
    %303 = arith.truncf %300 : vector<32x16xf32> to vector<32x16xbf16>
    %304 = arith.truncf %301 : vector<32x16xf32> to vector<32x16xbf16>
    %cst_105 = arith.constant dense<0.000000e+00> : vector<32x32xf32>
    %305 = tpu.matmul %303, %304, %cst_105 {dimension_numbers = #tpu.dot_dimension_numbers<[1], [1], [0], [0], [0, 0, 1, 0], [], []>} : vector<32x16xbf16>, vector<32x16xbf16>, vector<32x32xf32> -> vector<32x32xf32>
    %306 = arith.addf %305, %16 : vector<32x32xf32>
    %cst_106 = arith.constant dense<0xFF800000> : vector<32xf32>
    %307 = vector.multi_reduction <maximumf>, %306, %cst_106 [1] : vector<32x32xf32> to vector<32xf32>
    %308 = vector.shape_cast %307 : vector<32xf32> to vector<32x1xf32>
    %309 = vector.broadcast %308 : vector<32x1xf32> to vector<32x32xf32>
    %310 = arith.subf %306, %309 : vector<32x32xf32>
    %311 = math.exp %310 : vector<32x32xf32>
    %cst_107 = arith.constant dense<0.000000e+00> : vector<32xf32>
    %312 = vector.multi_reduction <add>, %311, %cst_107 [1] : vector<32x32xf32> to vector<32xf32>
    %313 = vector.shape_cast %312 : vector<32xf32> to vector<32x1xf32>
    %314 = tpu.reciprocal %313 {approx = true} : vector<32x1xf32> -> vector<32x1xf32>
    %315 = vector.broadcast %314 : vector<32x1xf32> to vector<32x32xf32>
    %316 = arith.mulf %311, %315 : vector<32x32xf32>
    %317 = arith.truncf %316 : vector<32x32xf32> to vector<32x32xbf16>
    %318 = arith.truncf %302 : vector<32x16xf32> to vector<32x16xbf16>
    %cst_108 = arith.constant dense<0.000000e+00> : vector<32x16xf32>
    %319 = tpu.matmul %317, %318, %cst_108 {dimension_numbers = #tpu.dot_dimension_numbers<[1], [0], [0], [1], [0, 0, 1, 1], [], []>} : vector<32x32xbf16>, vector<32x16xbf16>, vector<32x16xf32> -> vector<32x16xf32>
    %320 = tpu.concatenate %259, %279, %299, %319 in 1 : vector<32x16xf32>, vector<32x16xf32>, vector<32x16xf32>, vector<32x16xf32> -> vector<32x64xf32>
    %c1_109 = arith.constant 1 : index
    %c0_110 = arith.constant 0 : index
    %c0_111 = arith.constant 0 : index
    %321 = vector.load %arg9[%c1_109, %c0_110, %c0_111] : memref<4x64x64xbf16, #tpu.memory_space<vmem>>, vector<1x64x64xbf16>
    %322 = vector.shape_cast %321 : vector<1x64x64xbf16> to vector<64x64xbf16>
    %323 = arith.truncf %320 : vector<32x64xf32> to vector<32x64xbf16>
    %cst_112 = arith.constant dense<0.000000e+00> : vector<32x64xf32>
    %324 = tpu.matmul %323, %322, %cst_112 {dimension_numbers = #tpu.dot_dimension_numbers<[1], [0], [0], [1], [0, 0, 1, 1], [], []>} : vector<32x64xbf16>, vector<64x64xbf16>, vector<32x64xf32> -> vector<32x64xf32>
    %325 = arith.addf %209, %324 : vector<32x64xf32>
    %c1_113 = arith.constant 1 : index
    %c0_114 = arith.constant 0 : index
    %c0_115 = arith.constant 0 : index
    %326 = vector.load %arg10[%c1_113, %c0_114, %c0_115] : memref<4x1x64xf32, #tpu.memory_space<vmem>>, vector<1x1x64xf32>
    %327 = vector.shape_cast %326 : vector<1x1x64xf32> to vector<1x64xf32>
    %328 = vector.broadcast %327 : vector<1x64xf32> to vector<32x64xf32>
    %329 = arith.addf %325, %328 : vector<32x64xf32>
    %c1_116 = arith.constant 1 : index
    %c0_117 = arith.constant 0 : index
    %c0_118 = arith.constant 0 : index
    %330 = vector.load %arg11[%c1_116, %c0_117, %c0_118] : memref<4x1x64xf32, #tpu.memory_space<vmem>>, vector<1x1x64xf32>
    %331 = vector.shape_cast %330 : vector<1x1x64xf32> to vector<1x64xf32>
    %c1_119 = arith.constant 1 : index
    %c0_120 = arith.constant 0 : index
    %c0_121 = arith.constant 0 : index
    %332 = vector.load %arg12[%c1_119, %c0_120, %c0_121] : memref<4x1x64xf32, #tpu.memory_space<vmem>>, vector<1x1x64xf32>
    %333 = vector.shape_cast %332 : vector<1x1x64xf32> to vector<1x64xf32>
    %cst_122 = arith.constant dense<0.000000e+00> : vector<32xf32>
    %334 = vector.multi_reduction <add>, %329, %cst_122 [1] : vector<32x64xf32> to vector<32xf32>
    %335 = vector.shape_cast %334 : vector<32xf32> to vector<32x1xf32>
    %cst_123 = arith.constant 6.400000e+01 : f32
    %336 = vector.broadcast %cst_123 : f32 to vector<32x1xf32>
    %337 = arith.divf %335, %336 : vector<32x1xf32>
    %338 = vector.broadcast %337 : vector<32x1xf32> to vector<32x64xf32>
    %339 = arith.subf %329, %338 : vector<32x64xf32>
    %340 = arith.mulf %339, %339 : vector<32x64xf32>
    %cst_124 = arith.constant dense<0.000000e+00> : vector<32xf32>
    %341 = vector.multi_reduction <add>, %340, %cst_124 [1] : vector<32x64xf32> to vector<32xf32>
    %342 = vector.shape_cast %341 : vector<32xf32> to vector<32x1xf32>
    %cst_125 = arith.constant 6.400000e+01 : f32
    %343 = vector.broadcast %cst_125 : f32 to vector<32x1xf32>
    %344 = arith.divf %342, %343 : vector<32x1xf32>
    %345 = vector.broadcast %337 : vector<32x1xf32> to vector<32x64xf32>
    %346 = arith.subf %329, %345 : vector<32x64xf32>
    %cst_126 = arith.constant 9.99999974E-6 : f32
    %347 = vector.broadcast %cst_126 : f32 to vector<32x1xf32>
    %348 = arith.addf %344, %347 : vector<32x1xf32>
    %349 = math.rsqrt %348 : vector<32x1xf32>
    %350 = vector.broadcast %349 : vector<32x1xf32> to vector<32x64xf32>
    %351 = arith.mulf %346, %350 : vector<32x64xf32>
    %352 = vector.broadcast %331 : vector<1x64xf32> to vector<32x64xf32>
    %353 = arith.mulf %351, %352 : vector<32x64xf32>
    %354 = vector.broadcast %333 : vector<1x64xf32> to vector<32x64xf32>
    %355 = arith.addf %353, %354 : vector<32x64xf32>
    %c1_127 = arith.constant 1 : index
    %c0_128 = arith.constant 0 : index
    %c0_129 = arith.constant 0 : index
    %356 = vector.load %arg13[%c1_127, %c0_128, %c0_129] : memref<4x64x64xbf16, #tpu.memory_space<vmem>>, vector<1x64x64xbf16>
    %357 = vector.shape_cast %356 : vector<1x64x64xbf16> to vector<64x64xbf16>
    %358 = arith.truncf %355 : vector<32x64xf32> to vector<32x64xbf16>
    %cst_130 = arith.constant dense<0.000000e+00> : vector<32x64xf32>
    %359 = tpu.matmul %358, %357, %cst_130 {dimension_numbers = #tpu.dot_dimension_numbers<[1], [0], [0], [1], [0, 0, 1, 1], [], []>} : vector<32x64xbf16>, vector<64x64xbf16>, vector<32x64xf32> -> vector<32x64xf32>
    %c1_131 = arith.constant 1 : index
    %c0_132 = arith.constant 0 : index
    %c0_133 = arith.constant 0 : index
    %360 = vector.load %arg14[%c1_131, %c0_132, %c0_133] : memref<4x1x64xf32, #tpu.memory_space<vmem>>, vector<1x1x64xf32>
    %361 = vector.shape_cast %360 : vector<1x1x64xf32> to vector<1x64xf32>
    %362 = vector.broadcast %361 : vector<1x64xf32> to vector<32x64xf32>
    %363 = arith.addf %359, %362 : vector<32x64xf32>
    %364 = arith.mulf %363, %363 : vector<32x64xf32>
    %365 = arith.mulf %363, %364 : vector<32x64xf32>
    %cst_134 = arith.constant 4.471500e-02 : f32
    %366 = vector.broadcast %cst_134 : f32 to vector<32x64xf32>
    %367 = arith.mulf %366, %365 : vector<32x64xf32>
    %368 = arith.addf %363, %367 : vector<32x64xf32>
    %cst_135 = arith.constant 0.797884583 : f32
    %369 = vector.broadcast %cst_135 : f32 to vector<32x64xf32>
    %370 = arith.mulf %369, %368 : vector<32x64xf32>
    %371 = math.tanh %370 : vector<32x64xf32>
    %cst_136 = arith.constant 1.000000e+00 : f32
    %372 = vector.broadcast %cst_136 : f32 to vector<32x64xf32>
    %373 = arith.addf %372, %371 : vector<32x64xf32>
    %cst_137 = arith.constant 5.000000e-01 : f32
    %374 = vector.broadcast %cst_137 : f32 to vector<32x64xf32>
    %375 = arith.mulf %374, %373 : vector<32x64xf32>
    %376 = arith.mulf %363, %375 : vector<32x64xf32>
    %c1_138 = arith.constant 1 : index
    %c0_139 = arith.constant 0 : index
    %c0_140 = arith.constant 0 : index
    %377 = vector.load %arg15[%c1_138, %c0_139, %c0_140] : memref<4x64x64xbf16, #tpu.memory_space<vmem>>, vector<1x64x64xbf16>
    %378 = vector.shape_cast %377 : vector<1x64x64xbf16> to vector<64x64xbf16>
    %379 = arith.truncf %376 : vector<32x64xf32> to vector<32x64xbf16>
    %cst_141 = arith.constant dense<0.000000e+00> : vector<32x64xf32>
    %380 = tpu.matmul %379, %378, %cst_141 {dimension_numbers = #tpu.dot_dimension_numbers<[1], [0], [0], [1], [0, 0, 1, 1], [], []>} : vector<32x64xbf16>, vector<64x64xbf16>, vector<32x64xf32> -> vector<32x64xf32>
    %381 = arith.addf %329, %380 : vector<32x64xf32>
    %c1_142 = arith.constant 1 : index
    %c0_143 = arith.constant 0 : index
    %c0_144 = arith.constant 0 : index
    %382 = vector.load %arg16[%c1_142, %c0_143, %c0_144] : memref<4x1x64xf32, #tpu.memory_space<vmem>>, vector<1x1x64xf32>
    %383 = vector.shape_cast %382 : vector<1x1x64xf32> to vector<1x64xf32>
    %384 = vector.broadcast %383 : vector<1x64xf32> to vector<32x64xf32>
    %385 = arith.addf %381, %384 : vector<32x64xf32>
    %c2 = arith.constant 2 : index
    %c0_145 = arith.constant 0 : index
    %c0_146 = arith.constant 0 : index
    %386 = vector.load %arg6[%c2, %c0_145, %c0_146] : memref<4x1x64xf32, #tpu.memory_space<vmem>>, vector<1x1x64xf32>
    %387 = vector.shape_cast %386 : vector<1x1x64xf32> to vector<1x64xf32>
    %c2_147 = arith.constant 2 : index
    %c0_148 = arith.constant 0 : index
    %c0_149 = arith.constant 0 : index
    %388 = vector.load %arg7[%c2_147, %c0_148, %c0_149] : memref<4x1x64xf32, #tpu.memory_space<vmem>>, vector<1x1x64xf32>
    %389 = vector.shape_cast %388 : vector<1x1x64xf32> to vector<1x64xf32>
    %cst_150 = arith.constant dense<0.000000e+00> : vector<32xf32>
    %390 = vector.multi_reduction <add>, %385, %cst_150 [1] : vector<32x64xf32> to vector<32xf32>
    %391 = vector.shape_cast %390 : vector<32xf32> to vector<32x1xf32>
    %cst_151 = arith.constant 6.400000e+01 : f32
    %392 = vector.broadcast %cst_151 : f32 to vector<32x1xf32>
    %393 = arith.divf %391, %392 : vector<32x1xf32>
    %394 = vector.broadcast %393 : vector<32x1xf32> to vector<32x64xf32>
    %395 = arith.subf %385, %394 : vector<32x64xf32>
    %396 = arith.mulf %395, %395 : vector<32x64xf32>
    %cst_152 = arith.constant dense<0.000000e+00> : vector<32xf32>
    %397 = vector.multi_reduction <add>, %396, %cst_152 [1] : vector<32x64xf32> to vector<32xf32>
    %398 = vector.shape_cast %397 : vector<32xf32> to vector<32x1xf32>
    %cst_153 = arith.constant 6.400000e+01 : f32
    %399 = vector.broadcast %cst_153 : f32 to vector<32x1xf32>
    %400 = arith.divf %398, %399 : vector<32x1xf32>
    %401 = vector.broadcast %393 : vector<32x1xf32> to vector<32x64xf32>
    %402 = arith.subf %385, %401 : vector<32x64xf32>
    %cst_154 = arith.constant 9.99999974E-6 : f32
    %403 = vector.broadcast %cst_154 : f32 to vector<32x1xf32>
    %404 = arith.addf %400, %403 : vector<32x1xf32>
    %405 = math.rsqrt %404 : vector<32x1xf32>
    %406 = vector.broadcast %405 : vector<32x1xf32> to vector<32x64xf32>
    %407 = arith.mulf %402, %406 : vector<32x64xf32>
    %408 = vector.broadcast %387 : vector<1x64xf32> to vector<32x64xf32>
    %409 = arith.mulf %407, %408 : vector<32x64xf32>
    %410 = vector.broadcast %389 : vector<1x64xf32> to vector<32x64xf32>
    %411 = arith.addf %409, %410 : vector<32x64xf32>
    %c2_155 = arith.constant 2 : index
    %c0_156 = arith.constant 0 : index
    %c0_157 = arith.constant 0 : index
    %412 = vector.load %arg8[%c2_155, %c0_156, %c0_157] : memref<4x64x192xbf16, #tpu.memory_space<vmem>>, vector<1x64x192xbf16>
    %413 = vector.shape_cast %412 : vector<1x64x192xbf16> to vector<64x192xbf16>
    %414 = arith.truncf %411 : vector<32x64xf32> to vector<32x64xbf16>
    %cst_158 = arith.constant dense<0.000000e+00> : vector<32x192xf32>
    %415 = tpu.matmul %414, %413, %cst_158 {dimension_numbers = #tpu.dot_dimension_numbers<[1], [0], [0], [1], [0, 0, 1, 1], [], []>} : vector<32x64xbf16>, vector<64x192xbf16>, vector<32x192xf32> -> vector<32x192xf32>
    %416 = vector.extract_strided_slice %415 {offsets = [0, 0], sizes = [32, 16], strides = [1, 1]} : vector<32x192xf32> to vector<32x16xf32>
    %417 = vector.extract_strided_slice %415 {offsets = [0, 64], sizes = [32, 16], strides = [1, 1]} : vector<32x192xf32> to vector<32x16xf32>
    %418 = vector.extract_strided_slice %415 {offsets = [0, 128], sizes = [32, 16], strides = [1, 1]} : vector<32x192xf32> to vector<32x16xf32>
    %419 = arith.truncf %416 : vector<32x16xf32> to vector<32x16xbf16>
    %420 = arith.truncf %417 : vector<32x16xf32> to vector<32x16xbf16>
    %cst_159 = arith.constant dense<0.000000e+00> : vector<32x32xf32>
    %421 = tpu.matmul %419, %420, %cst_159 {dimension_numbers = #tpu.dot_dimension_numbers<[1], [1], [0], [0], [0, 0, 1, 0], [], []>} : vector<32x16xbf16>, vector<32x16xbf16>, vector<32x32xf32> -> vector<32x32xf32>
    %422 = arith.addf %421, %16 : vector<32x32xf32>
    %cst_160 = arith.constant dense<0xFF800000> : vector<32xf32>
    %423 = vector.multi_reduction <maximumf>, %422, %cst_160 [1] : vector<32x32xf32> to vector<32xf32>
    %424 = vector.shape_cast %423 : vector<32xf32> to vector<32x1xf32>
    %425 = vector.broadcast %424 : vector<32x1xf32> to vector<32x32xf32>
    %426 = arith.subf %422, %425 : vector<32x32xf32>
    %427 = math.exp %426 : vector<32x32xf32>
    %cst_161 = arith.constant dense<0.000000e+00> : vector<32xf32>
    %428 = vector.multi_reduction <add>, %427, %cst_161 [1] : vector<32x32xf32> to vector<32xf32>
    %429 = vector.shape_cast %428 : vector<32xf32> to vector<32x1xf32>
    %430 = tpu.reciprocal %429 {approx = true} : vector<32x1xf32> -> vector<32x1xf32>
    %431 = vector.broadcast %430 : vector<32x1xf32> to vector<32x32xf32>
    %432 = arith.mulf %427, %431 : vector<32x32xf32>
    %433 = arith.truncf %432 : vector<32x32xf32> to vector<32x32xbf16>
    %434 = arith.truncf %418 : vector<32x16xf32> to vector<32x16xbf16>
    %cst_162 = arith.constant dense<0.000000e+00> : vector<32x16xf32>
    %435 = tpu.matmul %433, %434, %cst_162 {dimension_numbers = #tpu.dot_dimension_numbers<[1], [0], [0], [1], [0, 0, 1, 1], [], []>} : vector<32x32xbf16>, vector<32x16xbf16>, vector<32x16xf32> -> vector<32x16xf32>
    %436 = vector.extract_strided_slice %415 {offsets = [0, 16], sizes = [32, 16], strides = [1, 1]} : vector<32x192xf32> to vector<32x16xf32>
    %437 = vector.extract_strided_slice %415 {offsets = [0, 80], sizes = [32, 16], strides = [1, 1]} : vector<32x192xf32> to vector<32x16xf32>
    %438 = vector.extract_strided_slice %415 {offsets = [0, 144], sizes = [32, 16], strides = [1, 1]} : vector<32x192xf32> to vector<32x16xf32>
    %439 = arith.truncf %436 : vector<32x16xf32> to vector<32x16xbf16>
    %440 = arith.truncf %437 : vector<32x16xf32> to vector<32x16xbf16>
    %cst_163 = arith.constant dense<0.000000e+00> : vector<32x32xf32>
    %441 = tpu.matmul %439, %440, %cst_163 {dimension_numbers = #tpu.dot_dimension_numbers<[1], [1], [0], [0], [0, 0, 1, 0], [], []>} : vector<32x16xbf16>, vector<32x16xbf16>, vector<32x32xf32> -> vector<32x32xf32>
    %442 = arith.addf %441, %16 : vector<32x32xf32>
    %cst_164 = arith.constant dense<0xFF800000> : vector<32xf32>
    %443 = vector.multi_reduction <maximumf>, %442, %cst_164 [1] : vector<32x32xf32> to vector<32xf32>
    %444 = vector.shape_cast %443 : vector<32xf32> to vector<32x1xf32>
    %445 = vector.broadcast %444 : vector<32x1xf32> to vector<32x32xf32>
    %446 = arith.subf %442, %445 : vector<32x32xf32>
    %447 = math.exp %446 : vector<32x32xf32>
    %cst_165 = arith.constant dense<0.000000e+00> : vector<32xf32>
    %448 = vector.multi_reduction <add>, %447, %cst_165 [1] : vector<32x32xf32> to vector<32xf32>
    %449 = vector.shape_cast %448 : vector<32xf32> to vector<32x1xf32>
    %450 = tpu.reciprocal %449 {approx = true} : vector<32x1xf32> -> vector<32x1xf32>
    %451 = vector.broadcast %450 : vector<32x1xf32> to vector<32x32xf32>
    %452 = arith.mulf %447, %451 : vector<32x32xf32>
    %453 = arith.truncf %452 : vector<32x32xf32> to vector<32x32xbf16>
    %454 = arith.truncf %438 : vector<32x16xf32> to vector<32x16xbf16>
    %cst_166 = arith.constant dense<0.000000e+00> : vector<32x16xf32>
    %455 = tpu.matmul %453, %454, %cst_166 {dimension_numbers = #tpu.dot_dimension_numbers<[1], [0], [0], [1], [0, 0, 1, 1], [], []>} : vector<32x32xbf16>, vector<32x16xbf16>, vector<32x16xf32> -> vector<32x16xf32>
    %456 = vector.extract_strided_slice %415 {offsets = [0, 32], sizes = [32, 16], strides = [1, 1]} : vector<32x192xf32> to vector<32x16xf32>
    %457 = vector.extract_strided_slice %415 {offsets = [0, 96], sizes = [32, 16], strides = [1, 1]} : vector<32x192xf32> to vector<32x16xf32>
    %458 = vector.extract_strided_slice %415 {offsets = [0, 160], sizes = [32, 16], strides = [1, 1]} : vector<32x192xf32> to vector<32x16xf32>
    %459 = arith.truncf %456 : vector<32x16xf32> to vector<32x16xbf16>
    %460 = arith.truncf %457 : vector<32x16xf32> to vector<32x16xbf16>
    %cst_167 = arith.constant dense<0.000000e+00> : vector<32x32xf32>
    %461 = tpu.matmul %459, %460, %cst_167 {dimension_numbers = #tpu.dot_dimension_numbers<[1], [1], [0], [0], [0, 0, 1, 0], [], []>} : vector<32x16xbf16>, vector<32x16xbf16>, vector<32x32xf32> -> vector<32x32xf32>
    %462 = arith.addf %461, %16 : vector<32x32xf32>
    %cst_168 = arith.constant dense<0xFF800000> : vector<32xf32>
    %463 = vector.multi_reduction <maximumf>, %462, %cst_168 [1] : vector<32x32xf32> to vector<32xf32>
    %464 = vector.shape_cast %463 : vector<32xf32> to vector<32x1xf32>
    %465 = vector.broadcast %464 : vector<32x1xf32> to vector<32x32xf32>
    %466 = arith.subf %462, %465 : vector<32x32xf32>
    %467 = math.exp %466 : vector<32x32xf32>
    %cst_169 = arith.constant dense<0.000000e+00> : vector<32xf32>
    %468 = vector.multi_reduction <add>, %467, %cst_169 [1] : vector<32x32xf32> to vector<32xf32>
    %469 = vector.shape_cast %468 : vector<32xf32> to vector<32x1xf32>
    %470 = tpu.reciprocal %469 {approx = true} : vector<32x1xf32> -> vector<32x1xf32>
    %471 = vector.broadcast %470 : vector<32x1xf32> to vector<32x32xf32>
    %472 = arith.mulf %467, %471 : vector<32x32xf32>
    %473 = arith.truncf %472 : vector<32x32xf32> to vector<32x32xbf16>
    %474 = arith.truncf %458 : vector<32x16xf32> to vector<32x16xbf16>
    %cst_170 = arith.constant dense<0.000000e+00> : vector<32x16xf32>
    %475 = tpu.matmul %473, %474, %cst_170 {dimension_numbers = #tpu.dot_dimension_numbers<[1], [0], [0], [1], [0, 0, 1, 1], [], []>} : vector<32x32xbf16>, vector<32x16xbf16>, vector<32x16xf32> -> vector<32x16xf32>
    %476 = vector.extract_strided_slice %415 {offsets = [0, 48], sizes = [32, 16], strides = [1, 1]} : vector<32x192xf32> to vector<32x16xf32>
    %477 = vector.extract_strided_slice %415 {offsets = [0, 112], sizes = [32, 16], strides = [1, 1]} : vector<32x192xf32> to vector<32x16xf32>
    %478 = vector.extract_strided_slice %415 {offsets = [0, 176], sizes = [32, 16], strides = [1, 1]} : vector<32x192xf32> to vector<32x16xf32>
    %479 = arith.truncf %476 : vector<32x16xf32> to vector<32x16xbf16>
    %480 = arith.truncf %477 : vector<32x16xf32> to vector<32x16xbf16>
    %cst_171 = arith.constant dense<0.000000e+00> : vector<32x32xf32>
    %481 = tpu.matmul %479, %480, %cst_171 {dimension_numbers = #tpu.dot_dimension_numbers<[1], [1], [0], [0], [0, 0, 1, 0], [], []>} : vector<32x16xbf16>, vector<32x16xbf16>, vector<32x32xf32> -> vector<32x32xf32>
    %482 = arith.addf %481, %16 : vector<32x32xf32>
    %cst_172 = arith.constant dense<0xFF800000> : vector<32xf32>
    %483 = vector.multi_reduction <maximumf>, %482, %cst_172 [1] : vector<32x32xf32> to vector<32xf32>
    %484 = vector.shape_cast %483 : vector<32xf32> to vector<32x1xf32>
    %485 = vector.broadcast %484 : vector<32x1xf32> to vector<32x32xf32>
    %486 = arith.subf %482, %485 : vector<32x32xf32>
    %487 = math.exp %486 : vector<32x32xf32>
    %cst_173 = arith.constant dense<0.000000e+00> : vector<32xf32>
    %488 = vector.multi_reduction <add>, %487, %cst_173 [1] : vector<32x32xf32> to vector<32xf32>
    %489 = vector.shape_cast %488 : vector<32xf32> to vector<32x1xf32>
    %490 = tpu.reciprocal %489 {approx = true} : vector<32x1xf32> -> vector<32x1xf32>
    %491 = vector.broadcast %490 : vector<32x1xf32> to vector<32x32xf32>
    %492 = arith.mulf %487, %491 : vector<32x32xf32>
    %493 = arith.truncf %492 : vector<32x32xf32> to vector<32x32xbf16>
    %494 = arith.truncf %478 : vector<32x16xf32> to vector<32x16xbf16>
    %cst_174 = arith.constant dense<0.000000e+00> : vector<32x16xf32>
    %495 = tpu.matmul %493, %494, %cst_174 {dimension_numbers = #tpu.dot_dimension_numbers<[1], [0], [0], [1], [0, 0, 1, 1], [], []>} : vector<32x32xbf16>, vector<32x16xbf16>, vector<32x16xf32> -> vector<32x16xf32>
    %496 = tpu.concatenate %435, %455, %475, %495 in 1 : vector<32x16xf32>, vector<32x16xf32>, vector<32x16xf32>, vector<32x16xf32> -> vector<32x64xf32>
    %c2_175 = arith.constant 2 : index
    %c0_176 = arith.constant 0 : index
    %c0_177 = arith.constant 0 : index
    %497 = vector.load %arg9[%c2_175, %c0_176, %c0_177] : memref<4x64x64xbf16, #tpu.memory_space<vmem>>, vector<1x64x64xbf16>
    %498 = vector.shape_cast %497 : vector<1x64x64xbf16> to vector<64x64xbf16>
    %499 = arith.truncf %496 : vector<32x64xf32> to vector<32x64xbf16>
    %cst_178 = arith.constant dense<0.000000e+00> : vector<32x64xf32>
    %500 = tpu.matmul %499, %498, %cst_178 {dimension_numbers = #tpu.dot_dimension_numbers<[1], [0], [0], [1], [0, 0, 1, 1], [], []>} : vector<32x64xbf16>, vector<64x64xbf16>, vector<32x64xf32> -> vector<32x64xf32>
    %501 = arith.addf %385, %500 : vector<32x64xf32>
    %c2_179 = arith.constant 2 : index
    %c0_180 = arith.constant 0 : index
    %c0_181 = arith.constant 0 : index
    %502 = vector.load %arg10[%c2_179, %c0_180, %c0_181] : memref<4x1x64xf32, #tpu.memory_space<vmem>>, vector<1x1x64xf32>
    %503 = vector.shape_cast %502 : vector<1x1x64xf32> to vector<1x64xf32>
    %504 = vector.broadcast %503 : vector<1x64xf32> to vector<32x64xf32>
    %505 = arith.addf %501, %504 : vector<32x64xf32>
    %c2_182 = arith.constant 2 : index
    %c0_183 = arith.constant 0 : index
    %c0_184 = arith.constant 0 : index
    %506 = vector.load %arg11[%c2_182, %c0_183, %c0_184] : memref<4x1x64xf32, #tpu.memory_space<vmem>>, vector<1x1x64xf32>
    %507 = vector.shape_cast %506 : vector<1x1x64xf32> to vector<1x64xf32>
    %c2_185 = arith.constant 2 : index
    %c0_186 = arith.constant 0 : index
    %c0_187 = arith.constant 0 : index
    %508 = vector.load %arg12[%c2_185, %c0_186, %c0_187] : memref<4x1x64xf32, #tpu.memory_space<vmem>>, vector<1x1x64xf32>
    %509 = vector.shape_cast %508 : vector<1x1x64xf32> to vector<1x64xf32>
    %cst_188 = arith.constant dense<0.000000e+00> : vector<32xf32>
    %510 = vector.multi_reduction <add>, %505, %cst_188 [1] : vector<32x64xf32> to vector<32xf32>
    %511 = vector.shape_cast %510 : vector<32xf32> to vector<32x1xf32>
    %cst_189 = arith.constant 6.400000e+01 : f32
    %512 = vector.broadcast %cst_189 : f32 to vector<32x1xf32>
    %513 = arith.divf %511, %512 : vector<32x1xf32>
    %514 = vector.broadcast %513 : vector<32x1xf32> to vector<32x64xf32>
    %515 = arith.subf %505, %514 : vector<32x64xf32>
    %516 = arith.mulf %515, %515 : vector<32x64xf32>
    %cst_190 = arith.constant dense<0.000000e+00> : vector<32xf32>
    %517 = vector.multi_reduction <add>, %516, %cst_190 [1] : vector<32x64xf32> to vector<32xf32>
    %518 = vector.shape_cast %517 : vector<32xf32> to vector<32x1xf32>
    %cst_191 = arith.constant 6.400000e+01 : f32
    %519 = vector.broadcast %cst_191 : f32 to vector<32x1xf32>
    %520 = arith.divf %518, %519 : vector<32x1xf32>
    %521 = vector.broadcast %513 : vector<32x1xf32> to vector<32x64xf32>
    %522 = arith.subf %505, %521 : vector<32x64xf32>
    %cst_192 = arith.constant 9.99999974E-6 : f32
    %523 = vector.broadcast %cst_192 : f32 to vector<32x1xf32>
    %524 = arith.addf %520, %523 : vector<32x1xf32>
    %525 = math.rsqrt %524 : vector<32x1xf32>
    %526 = vector.broadcast %525 : vector<32x1xf32> to vector<32x64xf32>
    %527 = arith.mulf %522, %526 : vector<32x64xf32>
    %528 = vector.broadcast %507 : vector<1x64xf32> to vector<32x64xf32>
    %529 = arith.mulf %527, %528 : vector<32x64xf32>
    %530 = vector.broadcast %509 : vector<1x64xf32> to vector<32x64xf32>
    %531 = arith.addf %529, %530 : vector<32x64xf32>
    %c2_193 = arith.constant 2 : index
    %c0_194 = arith.constant 0 : index
    %c0_195 = arith.constant 0 : index
    %532 = vector.load %arg13[%c2_193, %c0_194, %c0_195] : memref<4x64x64xbf16, #tpu.memory_space<vmem>>, vector<1x64x64xbf16>
    %533 = vector.shape_cast %532 : vector<1x64x64xbf16> to vector<64x64xbf16>
    %534 = arith.truncf %531 : vector<32x64xf32> to vector<32x64xbf16>
    %cst_196 = arith.constant dense<0.000000e+00> : vector<32x64xf32>
    %535 = tpu.matmul %534, %533, %cst_196 {dimension_numbers = #tpu.dot_dimension_numbers<[1], [0], [0], [1], [0, 0, 1, 1], [], []>} : vector<32x64xbf16>, vector<64x64xbf16>, vector<32x64xf32> -> vector<32x64xf32>
    %c2_197 = arith.constant 2 : index
    %c0_198 = arith.constant 0 : index
    %c0_199 = arith.constant 0 : index
    %536 = vector.load %arg14[%c2_197, %c0_198, %c0_199] : memref<4x1x64xf32, #tpu.memory_space<vmem>>, vector<1x1x64xf32>
    %537 = vector.shape_cast %536 : vector<1x1x64xf32> to vector<1x64xf32>
    %538 = vector.broadcast %537 : vector<1x64xf32> to vector<32x64xf32>
    %539 = arith.addf %535, %538 : vector<32x64xf32>
    %540 = arith.mulf %539, %539 : vector<32x64xf32>
    %541 = arith.mulf %539, %540 : vector<32x64xf32>
    %cst_200 = arith.constant 4.471500e-02 : f32
    %542 = vector.broadcast %cst_200 : f32 to vector<32x64xf32>
    %543 = arith.mulf %542, %541 : vector<32x64xf32>
    %544 = arith.addf %539, %543 : vector<32x64xf32>
    %cst_201 = arith.constant 0.797884583 : f32
    %545 = vector.broadcast %cst_201 : f32 to vector<32x64xf32>
    %546 = arith.mulf %545, %544 : vector<32x64xf32>
    %547 = math.tanh %546 : vector<32x64xf32>
    %cst_202 = arith.constant 1.000000e+00 : f32
    %548 = vector.broadcast %cst_202 : f32 to vector<32x64xf32>
    %549 = arith.addf %548, %547 : vector<32x64xf32>
    %cst_203 = arith.constant 5.000000e-01 : f32
    %550 = vector.broadcast %cst_203 : f32 to vector<32x64xf32>
    %551 = arith.mulf %550, %549 : vector<32x64xf32>
    %552 = arith.mulf %539, %551 : vector<32x64xf32>
    %c2_204 = arith.constant 2 : index
    %c0_205 = arith.constant 0 : index
    %c0_206 = arith.constant 0 : index
    %553 = vector.load %arg15[%c2_204, %c0_205, %c0_206] : memref<4x64x64xbf16, #tpu.memory_space<vmem>>, vector<1x64x64xbf16>
    %554 = vector.shape_cast %553 : vector<1x64x64xbf16> to vector<64x64xbf16>
    %555 = arith.truncf %552 : vector<32x64xf32> to vector<32x64xbf16>
    %cst_207 = arith.constant dense<0.000000e+00> : vector<32x64xf32>
    %556 = tpu.matmul %555, %554, %cst_207 {dimension_numbers = #tpu.dot_dimension_numbers<[1], [0], [0], [1], [0, 0, 1, 1], [], []>} : vector<32x64xbf16>, vector<64x64xbf16>, vector<32x64xf32> -> vector<32x64xf32>
    %557 = arith.addf %505, %556 : vector<32x64xf32>
    %c2_208 = arith.constant 2 : index
    %c0_209 = arith.constant 0 : index
    %c0_210 = arith.constant 0 : index
    %558 = vector.load %arg16[%c2_208, %c0_209, %c0_210] : memref<4x1x64xf32, #tpu.memory_space<vmem>>, vector<1x1x64xf32>
    %559 = vector.shape_cast %558 : vector<1x1x64xf32> to vector<1x64xf32>
    %560 = vector.broadcast %559 : vector<1x64xf32> to vector<32x64xf32>
    %561 = arith.addf %557, %560 : vector<32x64xf32>
    %c3 = arith.constant 3 : index
    %c0_211 = arith.constant 0 : index
    %c0_212 = arith.constant 0 : index
    %562 = vector.load %arg6[%c3, %c0_211, %c0_212] : memref<4x1x64xf32, #tpu.memory_space<vmem>>, vector<1x1x64xf32>
    %563 = vector.shape_cast %562 : vector<1x1x64xf32> to vector<1x64xf32>
    %c3_213 = arith.constant 3 : index
    %c0_214 = arith.constant 0 : index
    %c0_215 = arith.constant 0 : index
    %564 = vector.load %arg7[%c3_213, %c0_214, %c0_215] : memref<4x1x64xf32, #tpu.memory_space<vmem>>, vector<1x1x64xf32>
    %565 = vector.shape_cast %564 : vector<1x1x64xf32> to vector<1x64xf32>
    %cst_216 = arith.constant dense<0.000000e+00> : vector<32xf32>
    %566 = vector.multi_reduction <add>, %561, %cst_216 [1] : vector<32x64xf32> to vector<32xf32>
    %567 = vector.shape_cast %566 : vector<32xf32> to vector<32x1xf32>
    %cst_217 = arith.constant 6.400000e+01 : f32
    %568 = vector.broadcast %cst_217 : f32 to vector<32x1xf32>
    %569 = arith.divf %567, %568 : vector<32x1xf32>
    %570 = vector.broadcast %569 : vector<32x1xf32> to vector<32x64xf32>
    %571 = arith.subf %561, %570 : vector<32x64xf32>
    %572 = arith.mulf %571, %571 : vector<32x64xf32>
    %cst_218 = arith.constant dense<0.000000e+00> : vector<32xf32>
    %573 = vector.multi_reduction <add>, %572, %cst_218 [1] : vector<32x64xf32> to vector<32xf32>
    %574 = vector.shape_cast %573 : vector<32xf32> to vector<32x1xf32>
    %cst_219 = arith.constant 6.400000e+01 : f32
    %575 = vector.broadcast %cst_219 : f32 to vector<32x1xf32>
    %576 = arith.divf %574, %575 : vector<32x1xf32>
    %577 = vector.broadcast %569 : vector<32x1xf32> to vector<32x64xf32>
    %578 = arith.subf %561, %577 : vector<32x64xf32>
    %cst_220 = arith.constant 9.99999974E-6 : f32
    %579 = vector.broadcast %cst_220 : f32 to vector<32x1xf32>
    %580 = arith.addf %576, %579 : vector<32x1xf32>
    %581 = math.rsqrt %580 : vector<32x1xf32>
    %582 = vector.broadcast %581 : vector<32x1xf32> to vector<32x64xf32>
    %583 = arith.mulf %578, %582 : vector<32x64xf32>
    %584 = vector.broadcast %563 : vector<1x64xf32> to vector<32x64xf32>
    %585 = arith.mulf %583, %584 : vector<32x64xf32>
    %586 = vector.broadcast %565 : vector<1x64xf32> to vector<32x64xf32>
    %587 = arith.addf %585, %586 : vector<32x64xf32>
    %c3_221 = arith.constant 3 : index
    %c0_222 = arith.constant 0 : index
    %c0_223 = arith.constant 0 : index
    %588 = vector.load %arg8[%c3_221, %c0_222, %c0_223] : memref<4x64x192xbf16, #tpu.memory_space<vmem>>, vector<1x64x192xbf16>
    %589 = vector.shape_cast %588 : vector<1x64x192xbf16> to vector<64x192xbf16>
    %590 = arith.truncf %587 : vector<32x64xf32> to vector<32x64xbf16>
    %cst_224 = arith.constant dense<0.000000e+00> : vector<32x192xf32>
    %591 = tpu.matmul %590, %589, %cst_224 {dimension_numbers = #tpu.dot_dimension_numbers<[1], [0], [0], [1], [0, 0, 1, 1], [], []>} : vector<32x64xbf16>, vector<64x192xbf16>, vector<32x192xf32> -> vector<32x192xf32>
    %592 = vector.extract_strided_slice %591 {offsets = [0, 0], sizes = [32, 16], strides = [1, 1]} : vector<32x192xf32> to vector<32x16xf32>
    %593 = vector.extract_strided_slice %591 {offsets = [0, 64], sizes = [32, 16], strides = [1, 1]} : vector<32x192xf32> to vector<32x16xf32>
    %594 = vector.extract_strided_slice %591 {offsets = [0, 128], sizes = [32, 16], strides = [1, 1]} : vector<32x192xf32> to vector<32x16xf32>
    %595 = arith.truncf %592 : vector<32x16xf32> to vector<32x16xbf16>
    %596 = arith.truncf %593 : vector<32x16xf32> to vector<32x16xbf16>
    %cst_225 = arith.constant dense<0.000000e+00> : vector<32x32xf32>
    %597 = tpu.matmul %595, %596, %cst_225 {dimension_numbers = #tpu.dot_dimension_numbers<[1], [1], [0], [0], [0, 0, 1, 0], [], []>} : vector<32x16xbf16>, vector<32x16xbf16>, vector<32x32xf32> -> vector<32x32xf32>
    %598 = arith.addf %597, %16 : vector<32x32xf32>
    %cst_226 = arith.constant dense<0xFF800000> : vector<32xf32>
    %599 = vector.multi_reduction <maximumf>, %598, %cst_226 [1] : vector<32x32xf32> to vector<32xf32>
    %600 = vector.shape_cast %599 : vector<32xf32> to vector<32x1xf32>
    %601 = vector.broadcast %600 : vector<32x1xf32> to vector<32x32xf32>
    %602 = arith.subf %598, %601 : vector<32x32xf32>
    %603 = math.exp %602 : vector<32x32xf32>
    %cst_227 = arith.constant dense<0.000000e+00> : vector<32xf32>
    %604 = vector.multi_reduction <add>, %603, %cst_227 [1] : vector<32x32xf32> to vector<32xf32>
    %605 = vector.shape_cast %604 : vector<32xf32> to vector<32x1xf32>
    %606 = tpu.reciprocal %605 {approx = true} : vector<32x1xf32> -> vector<32x1xf32>
    %607 = vector.broadcast %606 : vector<32x1xf32> to vector<32x32xf32>
    %608 = arith.mulf %603, %607 : vector<32x32xf32>
    %609 = arith.truncf %608 : vector<32x32xf32> to vector<32x32xbf16>
    %610 = arith.truncf %594 : vector<32x16xf32> to vector<32x16xbf16>
    %cst_228 = arith.constant dense<0.000000e+00> : vector<32x16xf32>
    %611 = tpu.matmul %609, %610, %cst_228 {dimension_numbers = #tpu.dot_dimension_numbers<[1], [0], [0], [1], [0, 0, 1, 1], [], []>} : vector<32x32xbf16>, vector<32x16xbf16>, vector<32x16xf32> -> vector<32x16xf32>
    %612 = vector.extract_strided_slice %591 {offsets = [0, 16], sizes = [32, 16], strides = [1, 1]} : vector<32x192xf32> to vector<32x16xf32>
    %613 = vector.extract_strided_slice %591 {offsets = [0, 80], sizes = [32, 16], strides = [1, 1]} : vector<32x192xf32> to vector<32x16xf32>
    %614 = vector.extract_strided_slice %591 {offsets = [0, 144], sizes = [32, 16], strides = [1, 1]} : vector<32x192xf32> to vector<32x16xf32>
    %615 = arith.truncf %612 : vector<32x16xf32> to vector<32x16xbf16>
    %616 = arith.truncf %613 : vector<32x16xf32> to vector<32x16xbf16>
    %cst_229 = arith.constant dense<0.000000e+00> : vector<32x32xf32>
    %617 = tpu.matmul %615, %616, %cst_229 {dimension_numbers = #tpu.dot_dimension_numbers<[1], [1], [0], [0], [0, 0, 1, 0], [], []>} : vector<32x16xbf16>, vector<32x16xbf16>, vector<32x32xf32> -> vector<32x32xf32>
    %618 = arith.addf %617, %16 : vector<32x32xf32>
    %cst_230 = arith.constant dense<0xFF800000> : vector<32xf32>
    %619 = vector.multi_reduction <maximumf>, %618, %cst_230 [1] : vector<32x32xf32> to vector<32xf32>
    %620 = vector.shape_cast %619 : vector<32xf32> to vector<32x1xf32>
    %621 = vector.broadcast %620 : vector<32x1xf32> to vector<32x32xf32>
    %622 = arith.subf %618, %621 : vector<32x32xf32>
    %623 = math.exp %622 : vector<32x32xf32>
    %cst_231 = arith.constant dense<0.000000e+00> : vector<32xf32>
    %624 = vector.multi_reduction <add>, %623, %cst_231 [1] : vector<32x32xf32> to vector<32xf32>
    %625 = vector.shape_cast %624 : vector<32xf32> to vector<32x1xf32>
    %626 = tpu.reciprocal %625 {approx = true} : vector<32x1xf32> -> vector<32x1xf32>
    %627 = vector.broadcast %626 : vector<32x1xf32> to vector<32x32xf32>
    %628 = arith.mulf %623, %627 : vector<32x32xf32>
    %629 = arith.truncf %628 : vector<32x32xf32> to vector<32x32xbf16>
    %630 = arith.truncf %614 : vector<32x16xf32> to vector<32x16xbf16>
    %cst_232 = arith.constant dense<0.000000e+00> : vector<32x16xf32>
    %631 = tpu.matmul %629, %630, %cst_232 {dimension_numbers = #tpu.dot_dimension_numbers<[1], [0], [0], [1], [0, 0, 1, 1], [], []>} : vector<32x32xbf16>, vector<32x16xbf16>, vector<32x16xf32> -> vector<32x16xf32>
    %632 = vector.extract_strided_slice %591 {offsets = [0, 32], sizes = [32, 16], strides = [1, 1]} : vector<32x192xf32> to vector<32x16xf32>
    %633 = vector.extract_strided_slice %591 {offsets = [0, 96], sizes = [32, 16], strides = [1, 1]} : vector<32x192xf32> to vector<32x16xf32>
    %634 = vector.extract_strided_slice %591 {offsets = [0, 160], sizes = [32, 16], strides = [1, 1]} : vector<32x192xf32> to vector<32x16xf32>
    %635 = arith.truncf %632 : vector<32x16xf32> to vector<32x16xbf16>
    %636 = arith.truncf %633 : vector<32x16xf32> to vector<32x16xbf16>
    %cst_233 = arith.constant dense<0.000000e+00> : vector<32x32xf32>
    %637 = tpu.matmul %635, %636, %cst_233 {dimension_numbers = #tpu.dot_dimension_numbers<[1], [1], [0], [0], [0, 0, 1, 0], [], []>} : vector<32x16xbf16>, vector<32x16xbf16>, vector<32x32xf32> -> vector<32x32xf32>
    %638 = arith.addf %637, %16 : vector<32x32xf32>
    %cst_234 = arith.constant dense<0xFF800000> : vector<32xf32>
    %639 = vector.multi_reduction <maximumf>, %638, %cst_234 [1] : vector<32x32xf32> to vector<32xf32>
    %640 = vector.shape_cast %639 : vector<32xf32> to vector<32x1xf32>
    %641 = vector.broadcast %640 : vector<32x1xf32> to vector<32x32xf32>
    %642 = arith.subf %638, %641 : vector<32x32xf32>
    %643 = math.exp %642 : vector<32x32xf32>
    %cst_235 = arith.constant dense<0.000000e+00> : vector<32xf32>
    %644 = vector.multi_reduction <add>, %643, %cst_235 [1] : vector<32x32xf32> to vector<32xf32>
    %645 = vector.shape_cast %644 : vector<32xf32> to vector<32x1xf32>
    %646 = tpu.reciprocal %645 {approx = true} : vector<32x1xf32> -> vector<32x1xf32>
    %647 = vector.broadcast %646 : vector<32x1xf32> to vector<32x32xf32>
    %648 = arith.mulf %643, %647 : vector<32x32xf32>
    %649 = arith.truncf %648 : vector<32x32xf32> to vector<32x32xbf16>
    %650 = arith.truncf %634 : vector<32x16xf32> to vector<32x16xbf16>
    %cst_236 = arith.constant dense<0.000000e+00> : vector<32x16xf32>
    %651 = tpu.matmul %649, %650, %cst_236 {dimension_numbers = #tpu.dot_dimension_numbers<[1], [0], [0], [1], [0, 0, 1, 1], [], []>} : vector<32x32xbf16>, vector<32x16xbf16>, vector<32x16xf32> -> vector<32x16xf32>
    %652 = vector.extract_strided_slice %591 {offsets = [0, 48], sizes = [32, 16], strides = [1, 1]} : vector<32x192xf32> to vector<32x16xf32>
    %653 = vector.extract_strided_slice %591 {offsets = [0, 112], sizes = [32, 16], strides = [1, 1]} : vector<32x192xf32> to vector<32x16xf32>
    %654 = vector.extract_strided_slice %591 {offsets = [0, 176], sizes = [32, 16], strides = [1, 1]} : vector<32x192xf32> to vector<32x16xf32>
    %655 = arith.truncf %652 : vector<32x16xf32> to vector<32x16xbf16>
    %656 = arith.truncf %653 : vector<32x16xf32> to vector<32x16xbf16>
    %cst_237 = arith.constant dense<0.000000e+00> : vector<32x32xf32>
    %657 = tpu.matmul %655, %656, %cst_237 {dimension_numbers = #tpu.dot_dimension_numbers<[1], [1], [0], [0], [0, 0, 1, 0], [], []>} : vector<32x16xbf16>, vector<32x16xbf16>, vector<32x32xf32> -> vector<32x32xf32>
    %658 = arith.addf %657, %16 : vector<32x32xf32>
    %cst_238 = arith.constant dense<0xFF800000> : vector<32xf32>
    %659 = vector.multi_reduction <maximumf>, %658, %cst_238 [1] : vector<32x32xf32> to vector<32xf32>
    %660 = vector.shape_cast %659 : vector<32xf32> to vector<32x1xf32>
    %661 = vector.broadcast %660 : vector<32x1xf32> to vector<32x32xf32>
    %662 = arith.subf %658, %661 : vector<32x32xf32>
    %663 = math.exp %662 : vector<32x32xf32>
    %cst_239 = arith.constant dense<0.000000e+00> : vector<32xf32>
    %664 = vector.multi_reduction <add>, %663, %cst_239 [1] : vector<32x32xf32> to vector<32xf32>
    %665 = vector.shape_cast %664 : vector<32xf32> to vector<32x1xf32>
    %666 = tpu.reciprocal %665 {approx = true} : vector<32x1xf32> -> vector<32x1xf32>
    %667 = vector.broadcast %666 : vector<32x1xf32> to vector<32x32xf32>
    %668 = arith.mulf %663, %667 : vector<32x32xf32>
    %669 = arith.truncf %668 : vector<32x32xf32> to vector<32x32xbf16>
    %670 = arith.truncf %654 : vector<32x16xf32> to vector<32x16xbf16>
    %cst_240 = arith.constant dense<0.000000e+00> : vector<32x16xf32>
    %671 = tpu.matmul %669, %670, %cst_240 {dimension_numbers = #tpu.dot_dimension_numbers<[1], [0], [0], [1], [0, 0, 1, 1], [], []>} : vector<32x32xbf16>, vector<32x16xbf16>, vector<32x16xf32> -> vector<32x16xf32>
    %672 = tpu.concatenate %611, %631, %651, %671 in 1 : vector<32x16xf32>, vector<32x16xf32>, vector<32x16xf32>, vector<32x16xf32> -> vector<32x64xf32>
    %c3_241 = arith.constant 3 : index
    %c0_242 = arith.constant 0 : index
    %c0_243 = arith.constant 0 : index
    %673 = vector.load %arg9[%c3_241, %c0_242, %c0_243] : memref<4x64x64xbf16, #tpu.memory_space<vmem>>, vector<1x64x64xbf16>
    %674 = vector.shape_cast %673 : vector<1x64x64xbf16> to vector<64x64xbf16>
    %675 = arith.truncf %672 : vector<32x64xf32> to vector<32x64xbf16>
    %cst_244 = arith.constant dense<0.000000e+00> : vector<32x64xf32>
    %676 = tpu.matmul %675, %674, %cst_244 {dimension_numbers = #tpu.dot_dimension_numbers<[1], [0], [0], [1], [0, 0, 1, 1], [], []>} : vector<32x64xbf16>, vector<64x64xbf16>, vector<32x64xf32> -> vector<32x64xf32>
    %677 = arith.addf %561, %676 : vector<32x64xf32>
    %c3_245 = arith.constant 3 : index
    %c0_246 = arith.constant 0 : index
    %c0_247 = arith.constant 0 : index
    %678 = vector.load %arg10[%c3_245, %c0_246, %c0_247] : memref<4x1x64xf32, #tpu.memory_space<vmem>>, vector<1x1x64xf32>
    %679 = vector.shape_cast %678 : vector<1x1x64xf32> to vector<1x64xf32>
    %680 = vector.broadcast %679 : vector<1x64xf32> to vector<32x64xf32>
    %681 = arith.addf %677, %680 : vector<32x64xf32>
    %c3_248 = arith.constant 3 : index
    %c0_249 = arith.constant 0 : index
    %c0_250 = arith.constant 0 : index
    %682 = vector.load %arg11[%c3_248, %c0_249, %c0_250] : memref<4x1x64xf32, #tpu.memory_space<vmem>>, vector<1x1x64xf32>
    %683 = vector.shape_cast %682 : vector<1x1x64xf32> to vector<1x64xf32>
    %c3_251 = arith.constant 3 : index
    %c0_252 = arith.constant 0 : index
    %c0_253 = arith.constant 0 : index
    %684 = vector.load %arg12[%c3_251, %c0_252, %c0_253] : memref<4x1x64xf32, #tpu.memory_space<vmem>>, vector<1x1x64xf32>
    %685 = vector.shape_cast %684 : vector<1x1x64xf32> to vector<1x64xf32>
    %cst_254 = arith.constant dense<0.000000e+00> : vector<32xf32>
    %686 = vector.multi_reduction <add>, %681, %cst_254 [1] : vector<32x64xf32> to vector<32xf32>
    %687 = vector.shape_cast %686 : vector<32xf32> to vector<32x1xf32>
    %cst_255 = arith.constant 6.400000e+01 : f32
    %688 = vector.broadcast %cst_255 : f32 to vector<32x1xf32>
    %689 = arith.divf %687, %688 : vector<32x1xf32>
    %690 = vector.broadcast %689 : vector<32x1xf32> to vector<32x64xf32>
    %691 = arith.subf %681, %690 : vector<32x64xf32>
    %692 = arith.mulf %691, %691 : vector<32x64xf32>
    %cst_256 = arith.constant dense<0.000000e+00> : vector<32xf32>
    %693 = vector.multi_reduction <add>, %692, %cst_256 [1] : vector<32x64xf32> to vector<32xf32>
    %694 = vector.shape_cast %693 : vector<32xf32> to vector<32x1xf32>
    %cst_257 = arith.constant 6.400000e+01 : f32
    %695 = vector.broadcast %cst_257 : f32 to vector<32x1xf32>
    %696 = arith.divf %694, %695 : vector<32x1xf32>
    %697 = vector.broadcast %689 : vector<32x1xf32> to vector<32x64xf32>
    %698 = arith.subf %681, %697 : vector<32x64xf32>
    %cst_258 = arith.constant 9.99999974E-6 : f32
    %699 = vector.broadcast %cst_258 : f32 to vector<32x1xf32>
    %700 = arith.addf %696, %699 : vector<32x1xf32>
    %701 = math.rsqrt %700 : vector<32x1xf32>
    %702 = vector.broadcast %701 : vector<32x1xf32> to vector<32x64xf32>
    %703 = arith.mulf %698, %702 : vector<32x64xf32>
    %704 = vector.broadcast %683 : vector<1x64xf32> to vector<32x64xf32>
    %705 = arith.mulf %703, %704 : vector<32x64xf32>
    %706 = vector.broadcast %685 : vector<1x64xf32> to vector<32x64xf32>
    %707 = arith.addf %705, %706 : vector<32x64xf32>
    %c3_259 = arith.constant 3 : index
    %c0_260 = arith.constant 0 : index
    %c0_261 = arith.constant 0 : index
    %708 = vector.load %arg13[%c3_259, %c0_260, %c0_261] : memref<4x64x64xbf16, #tpu.memory_space<vmem>>, vector<1x64x64xbf16>
    %709 = vector.shape_cast %708 : vector<1x64x64xbf16> to vector<64x64xbf16>
    %710 = arith.truncf %707 : vector<32x64xf32> to vector<32x64xbf16>
    %cst_262 = arith.constant dense<0.000000e+00> : vector<32x64xf32>
    %711 = tpu.matmul %710, %709, %cst_262 {dimension_numbers = #tpu.dot_dimension_numbers<[1], [0], [0], [1], [0, 0, 1, 1], [], []>} : vector<32x64xbf16>, vector<64x64xbf16>, vector<32x64xf32> -> vector<32x64xf32>
    %c3_263 = arith.constant 3 : index
    %c0_264 = arith.constant 0 : index
    %c0_265 = arith.constant 0 : index
    %712 = vector.load %arg14[%c3_263, %c0_264, %c0_265] : memref<4x1x64xf32, #tpu.memory_space<vmem>>, vector<1x1x64xf32>
    %713 = vector.shape_cast %712 : vector<1x1x64xf32> to vector<1x64xf32>
    %714 = vector.broadcast %713 : vector<1x64xf32> to vector<32x64xf32>
    %715 = arith.addf %711, %714 : vector<32x64xf32>
    %716 = arith.mulf %715, %715 : vector<32x64xf32>
    %717 = arith.mulf %715, %716 : vector<32x64xf32>
    %cst_266 = arith.constant 4.471500e-02 : f32
    %718 = vector.broadcast %cst_266 : f32 to vector<32x64xf32>
    %719 = arith.mulf %718, %717 : vector<32x64xf32>
    %720 = arith.addf %715, %719 : vector<32x64xf32>
    %cst_267 = arith.constant 0.797884583 : f32
    %721 = vector.broadcast %cst_267 : f32 to vector<32x64xf32>
    %722 = arith.mulf %721, %720 : vector<32x64xf32>
    %723 = math.tanh %722 : vector<32x64xf32>
    %cst_268 = arith.constant 1.000000e+00 : f32
    %724 = vector.broadcast %cst_268 : f32 to vector<32x64xf32>
    %725 = arith.addf %724, %723 : vector<32x64xf32>
    %cst_269 = arith.constant 5.000000e-01 : f32
    %726 = vector.broadcast %cst_269 : f32 to vector<32x64xf32>
    %727 = arith.mulf %726, %725 : vector<32x64xf32>
    %728 = arith.mulf %715, %727 : vector<32x64xf32>
    %c3_270 = arith.constant 3 : index
    %c0_271 = arith.constant 0 : index
    %c0_272 = arith.constant 0 : index
    %729 = vector.load %arg15[%c3_270, %c0_271, %c0_272] : memref<4x64x64xbf16, #tpu.memory_space<vmem>>, vector<1x64x64xbf16>
    %730 = vector.shape_cast %729 : vector<1x64x64xbf16> to vector<64x64xbf16>
    %731 = arith.truncf %728 : vector<32x64xf32> to vector<32x64xbf16>
    %cst_273 = arith.constant dense<0.000000e+00> : vector<32x64xf32>
    %732 = tpu.matmul %731, %730, %cst_273 {dimension_numbers = #tpu.dot_dimension_numbers<[1], [0], [0], [1], [0, 0, 1, 1], [], []>} : vector<32x64xbf16>, vector<64x64xbf16>, vector<32x64xf32> -> vector<32x64xf32>
    %733 = arith.addf %681, %732 : vector<32x64xf32>
    %c3_274 = arith.constant 3 : index
    %c0_275 = arith.constant 0 : index
    %c0_276 = arith.constant 0 : index
    %734 = vector.load %arg16[%c3_274, %c0_275, %c0_276] : memref<4x1x64xf32, #tpu.memory_space<vmem>>, vector<1x1x64xf32>
    %735 = vector.shape_cast %734 : vector<1x1x64xf32> to vector<1x64xf32>
    %736 = vector.broadcast %735 : vector<1x64xf32> to vector<32x64xf32>
    %737 = arith.addf %733, %736 : vector<32x64xf32>
    %738 = vector.extract_strided_slice %737 {offsets = [0, 0], sizes = [1, 64], strides = [1, 1]} : vector<32x64xf32> to vector<1x64xf32>
    %739 = vector.extract_strided_slice %737 {offsets = [16, 0], sizes = [1, 64], strides = [1, 1]} : vector<32x64xf32> to vector<1x64xf32>
    %740 = tpu.concatenate %738, %739 in 0 : vector<1x64xf32>, vector<1x64xf32> -> vector<2x64xf32>
    %c0_277 = arith.constant 0 : index
    %c0_278 = arith.constant 0 : index
    %741 = vector.load %arg17[%c0_277, %c0_278] : memref<64x128xbf16, #tpu.memory_space<vmem>>, vector<64x128xbf16>
    %742 = arith.truncf %740 : vector<2x64xf32> to vector<2x64xbf16>
    %cst_279 = arith.constant dense<0.000000e+00> : vector<2x128xf32>
    %743 = tpu.matmul %742, %741, %cst_279 {dimension_numbers = #tpu.dot_dimension_numbers<[1], [0], [0], [1], [0, 0, 1, 1], [], []>} : vector<2x64xbf16>, vector<64x128xbf16>, vector<2x128xf32> -> vector<2x128xf32>
    %c0_280 = arith.constant 0 : index
    %c0_281 = arith.constant 0 : index
    %744 = vector.load %arg18[%c0_280, %c0_281] : memref<1x128xf32, #tpu.memory_space<vmem>>, vector<1x128xf32>
    %745 = vector.broadcast %744 : vector<1x128xf32> to vector<2x128xf32>
    %746 = arith.addf %743, %745 : vector<2x128xf32>
    %c1_i32_282 = arith.constant 1 : i32
    %747 = arith.addi %0, %c1_i32_282 : i32
    %c0_i32_283 = arith.constant 0 : i32
    %748 = arith.addi %747, %c0_i32_283 : i32
    %749 = arith.index_cast %748 : i32 to index
    %c0_284 = arith.constant 0 : index
    %c0_285 = arith.constant 0 : index
    %750 = vector.load %arg2[%749, %c0_284, %c0_285] : memref<16x2x32xf32, #tpu.memory_space<vmem>>, vector<1x2x32xf32>
    %751 = vector.shape_cast %750 : vector<1x2x32xf32> to vector<2x32xf32>
    %752 = vector.extract_strided_slice %746 {offsets = [0, 0], sizes = [2, 32], strides = [1, 1]} : vector<2x128xf32> to vector<2x32xf32>
    %cst_286 = arith.constant dense<0.000000e+00> : vector<2x2xf32>
    %753 = tpu.matmul %751, %752, %cst_286 {dimension_numbers = #tpu.dot_dimension_numbers<[1], [1], [0], [0], [0, 0, 1, 0], [], []>} : vector<2x32xf32>, vector<2x32xf32>, vector<2x2xf32> -> vector<2x2xf32>
    %cst_287 = arith.constant dense<0xFF800000> : vector<2xf32>
    %754 = vector.multi_reduction <maximumf>, %753, %cst_287 [1] : vector<2x2xf32> to vector<2xf32>
    %755 = vector.shape_cast %754 : vector<2xf32> to vector<2x1xf32>
    %756 = vector.broadcast %755 : vector<2x1xf32> to vector<2x2xf32>
    %757 = arith.subf %753, %756 : vector<2x2xf32>
    %758 = math.exp %757 : vector<2x2xf32>
    %cst_288 = arith.constant dense<0.000000e+00> : vector<2xf32>
    %759 = vector.multi_reduction <add>, %758, %cst_288 [1] : vector<2x2xf32> to vector<2xf32>
    %760 = vector.shape_cast %759 : vector<2xf32> to vector<2x1xf32>
    %761 = math.log %760 : vector<2x1xf32>
    %762 = arith.addf %755, %761 : vector<2x1xf32>
    %763 = arith.mulf %751, %752 : vector<2x32xf32>
    %cst_289 = arith.constant dense<0.000000e+00> : vector<2xf32>
    %764 = vector.multi_reduction <add>, %763, %cst_289 [1] : vector<2x32xf32> to vector<2xf32>
    %765 = vector.shape_cast %764 : vector<2xf32> to vector<2x1xf32>
    %766 = arith.subf %765, %762 : vector<2x1xf32>
    %767 = vector.shape_cast %766 : vector<2x1xf32> to vector<1x2x1xf32>
    %cst_290 = arith.constant dense<0.000000e+00> : vector<1xf32>
    %768 = vector.multi_reduction <add>, %767, %cst_290 [1, 2] : vector<1x2x1xf32> to vector<1xf32>
    %769 = vector.shape_cast %768 : vector<1xf32> to vector<1x1x1xf32>
    %770 = vector.extract %769[0, 0, 0] : f32 from vector<1x1x1xf32>
    %cst_291 = arith.constant 0.000000e+00 : f32
    %771 = arith.addf %cst_291, %770 : f32
    %c1_i32_292 = arith.constant 1 : i32
    %772 = arith.addi %0, %c1_i32_292 : i32
    %c1_i32_293 = arith.constant 1 : i32
    %773 = arith.addi %772, %c1_i32_293 : i32
    %774 = arith.index_cast %773 : i32 to index
    %c0_294 = arith.constant 0 : index
    %c0_295 = arith.constant 0 : index
    %775 = vector.load %arg2[%774, %c0_294, %c0_295] : memref<16x2x32xf32, #tpu.memory_space<vmem>>, vector<1x2x32xf32>
    %776 = vector.shape_cast %775 : vector<1x2x32xf32> to vector<2x32xf32>
    %777 = vector.extract_strided_slice %746 {offsets = [0, 32], sizes = [2, 32], strides = [1, 1]} : vector<2x128xf32> to vector<2x32xf32>
    %cst_296 = arith.constant dense<0.000000e+00> : vector<2x2xf32>
    %778 = tpu.matmul %776, %777, %cst_296 {dimension_numbers = #tpu.dot_dimension_numbers<[1], [1], [0], [0], [0, 0, 1, 0], [], []>} : vector<2x32xf32>, vector<2x32xf32>, vector<2x2xf32> -> vector<2x2xf32>
    %cst_297 = arith.constant dense<0xFF800000> : vector<2xf32>
    %779 = vector.multi_reduction <maximumf>, %778, %cst_297 [1] : vector<2x2xf32> to vector<2xf32>
    %780 = vector.shape_cast %779 : vector<2xf32> to vector<2x1xf32>
    %781 = vector.broadcast %780 : vector<2x1xf32> to vector<2x2xf32>
    %782 = arith.subf %778, %781 : vector<2x2xf32>
    %783 = math.exp %782 : vector<2x2xf32>
    %cst_298 = arith.constant dense<0.000000e+00> : vector<2xf32>
    %784 = vector.multi_reduction <add>, %783, %cst_298 [1] : vector<2x2xf32> to vector<2xf32>
    %785 = vector.shape_cast %784 : vector<2xf32> to vector<2x1xf32>
    %786 = math.log %785 : vector<2x1xf32>
    %787 = arith.addf %780, %786 : vector<2x1xf32>
    %788 = arith.mulf %776, %777 : vector<2x32xf32>
    %cst_299 = arith.constant dense<0.000000e+00> : vector<2xf32>
    %789 = vector.multi_reduction <add>, %788, %cst_299 [1] : vector<2x32xf32> to vector<2xf32>
    %790 = vector.shape_cast %789 : vector<2xf32> to vector<2x1xf32>
    %791 = arith.subf %790, %787 : vector<2x1xf32>
    %792 = vector.shape_cast %791 : vector<2x1xf32> to vector<1x2x1xf32>
    %cst_300 = arith.constant dense<0.000000e+00> : vector<1xf32>
    %793 = vector.multi_reduction <add>, %792, %cst_300 [1, 2] : vector<1x2x1xf32> to vector<1xf32>
    %794 = vector.shape_cast %793 : vector<1xf32> to vector<1x1x1xf32>
    %795 = vector.extract %794[0, 0, 0] : f32 from vector<1x1x1xf32>
    %796 = arith.addf %771, %795 : f32
    %c1_i32_301 = arith.constant 1 : i32
    %797 = arith.addi %0, %c1_i32_301 : i32
    %c2_i32_302 = arith.constant 2 : i32
    %798 = arith.addi %797, %c2_i32_302 : i32
    %799 = arith.index_cast %798 : i32 to index
    %c0_303 = arith.constant 0 : index
    %c0_304 = arith.constant 0 : index
    %800 = vector.load %arg2[%799, %c0_303, %c0_304] : memref<16x2x32xf32, #tpu.memory_space<vmem>>, vector<1x2x32xf32>
    %801 = vector.shape_cast %800 : vector<1x2x32xf32> to vector<2x32xf32>
    %802 = vector.extract_strided_slice %746 {offsets = [0, 64], sizes = [2, 32], strides = [1, 1]} : vector<2x128xf32> to vector<2x32xf32>
    %cst_305 = arith.constant dense<0.000000e+00> : vector<2x2xf32>
    %803 = tpu.matmul %801, %802, %cst_305 {dimension_numbers = #tpu.dot_dimension_numbers<[1], [1], [0], [0], [0, 0, 1, 0], [], []>} : vector<2x32xf32>, vector<2x32xf32>, vector<2x2xf32> -> vector<2x2xf32>
    %cst_306 = arith.constant dense<0xFF800000> : vector<2xf32>
    %804 = vector.multi_reduction <maximumf>, %803, %cst_306 [1] : vector<2x2xf32> to vector<2xf32>
    %805 = vector.shape_cast %804 : vector<2xf32> to vector<2x1xf32>
    %806 = vector.broadcast %805 : vector<2x1xf32> to vector<2x2xf32>
    %807 = arith.subf %803, %806 : vector<2x2xf32>
    %808 = math.exp %807 : vector<2x2xf32>
    %cst_307 = arith.constant dense<0.000000e+00> : vector<2xf32>
    %809 = vector.multi_reduction <add>, %808, %cst_307 [1] : vector<2x2xf32> to vector<2xf32>
    %810 = vector.shape_cast %809 : vector<2xf32> to vector<2x1xf32>
    %811 = math.log %810 : vector<2x1xf32>
    %812 = arith.addf %805, %811 : vector<2x1xf32>
    %813 = arith.mulf %801, %802 : vector<2x32xf32>
    %cst_308 = arith.constant dense<0.000000e+00> : vector<2xf32>
    %814 = vector.multi_reduction <add>, %813, %cst_308 [1] : vector<2x32xf32> to vector<2xf32>
    %815 = vector.shape_cast %814 : vector<2xf32> to vector<2x1xf32>
    %816 = arith.subf %815, %812 : vector<2x1xf32>
    %817 = vector.shape_cast %816 : vector<2x1xf32> to vector<1x2x1xf32>
    %cst_309 = arith.constant dense<0.000000e+00> : vector<1xf32>
    %818 = vector.multi_reduction <add>, %817, %cst_309 [1, 2] : vector<1x2x1xf32> to vector<1xf32>
    %819 = vector.shape_cast %818 : vector<1xf32> to vector<1x1x1xf32>
    %820 = vector.extract %819[0, 0, 0] : f32 from vector<1x1x1xf32>
    %821 = arith.addf %796, %820 : f32
    %c1_i32_310 = arith.constant 1 : i32
    %822 = arith.addi %0, %c1_i32_310 : i32
    %c3_i32 = arith.constant 3 : i32
    %823 = arith.addi %822, %c3_i32 : i32
    %824 = arith.index_cast %823 : i32 to index
    %c0_311 = arith.constant 0 : index
    %c0_312 = arith.constant 0 : index
    %825 = vector.load %arg2[%824, %c0_311, %c0_312] : memref<16x2x32xf32, #tpu.memory_space<vmem>>, vector<1x2x32xf32>
    %826 = vector.shape_cast %825 : vector<1x2x32xf32> to vector<2x32xf32>
    %827 = vector.extract_strided_slice %746 {offsets = [0, 96], sizes = [2, 32], strides = [1, 1]} : vector<2x128xf32> to vector<2x32xf32>
    %cst_313 = arith.constant dense<0.000000e+00> : vector<2x2xf32>
    %828 = tpu.matmul %826, %827, %cst_313 {dimension_numbers = #tpu.dot_dimension_numbers<[1], [1], [0], [0], [0, 0, 1, 0], [], []>} : vector<2x32xf32>, vector<2x32xf32>, vector<2x2xf32> -> vector<2x2xf32>
    %cst_314 = arith.constant dense<0xFF800000> : vector<2xf32>
    %829 = vector.multi_reduction <maximumf>, %828, %cst_314 [1] : vector<2x2xf32> to vector<2xf32>
    %830 = vector.shape_cast %829 : vector<2xf32> to vector<2x1xf32>
    %831 = vector.broadcast %830 : vector<2x1xf32> to vector<2x2xf32>
    %832 = arith.subf %828, %831 : vector<2x2xf32>
    %833 = math.exp %832 : vector<2x2xf32>
    %cst_315 = arith.constant dense<0.000000e+00> : vector<2xf32>
    %834 = vector.multi_reduction <add>, %833, %cst_315 [1] : vector<2x2xf32> to vector<2xf32>
    %835 = vector.shape_cast %834 : vector<2xf32> to vector<2x1xf32>
    %836 = math.log %835 : vector<2x1xf32>
    %837 = arith.addf %830, %836 : vector<2x1xf32>
    %838 = arith.mulf %826, %827 : vector<2x32xf32>
    %cst_316 = arith.constant dense<0.000000e+00> : vector<2xf32>
    %839 = vector.multi_reduction <add>, %838, %cst_316 [1] : vector<2x32xf32> to vector<2xf32>
    %840 = vector.shape_cast %839 : vector<2xf32> to vector<2x1xf32>
    %841 = arith.subf %840, %837 : vector<2x1xf32>
    %842 = vector.shape_cast %841 : vector<2x1xf32> to vector<1x2x1xf32>
    %cst_317 = arith.constant dense<0.000000e+00> : vector<1xf32>
    %843 = vector.multi_reduction <add>, %842, %cst_317 [1, 2] : vector<1x2x1xf32> to vector<1xf32>
    %844 = vector.shape_cast %843 : vector<1xf32> to vector<1x1x1xf32>
    %845 = vector.extract %844[0, 0, 0] : f32 from vector<1x1x1xf32>
    %846 = arith.addf %821, %845 : f32
    %cst_318 = arith.constant 0.000000e+00 : f32
    %847 = vector.broadcast %cst_318 : f32 to vector<1x1xf32>
    %cst_319 = arith.constant -8.000000e+00 : f32
    %848 = arith.divf %846, %cst_319 : f32
    %849 = vector.broadcast %848 : f32 to vector<1x1xf32>
    %850 = arith.addf %847, %849 : vector<1x1xf32>
    %c0_320 = arith.constant 0 : index
    %c0_321 = arith.constant 0 : index
    %851 = vector.load %arg25[%c0_320, %c0_321] : memref<1x1xf32, #tpu.memory_space<vmem>>, vector<1x1xf32>
    tpu.vector_store %arg25[%c0_320, %c0_321], %850 {strides = array<i32>} : memref<1x1xf32, #tpu.memory_space<vmem>>, vector<1x1xf32>,
    %c0_322 = arith.constant 0 : index
    %c0_323 = arith.constant 0 : index
    %852 = vector.load %arg19[%c0_322, %c0_323] : memref<64x16xbf16, #tpu.memory_space<vmem>>, vector<64x16xbf16>
    %853 = arith.truncf %740 : vector<2x64xf32> to vector<2x64xbf16>
    %cst_324 = arith.constant dense<0.000000e+00> : vector<2x16xf32>
    %854 = tpu.matmul %853, %852, %cst_324 {dimension_numbers = #tpu.dot_dimension_numbers<[1], [0], [0], [1], [0, 0, 1, 1], [], []>} : vector<2x64xbf16>, vector<64x16xbf16>, vector<2x16xf32> -> vector<2x16xf32>
    %c0_325 = arith.constant 0 : index
    %c0_326 = arith.constant 0 : index
    %855 = vector.load %arg20[%c0_325, %c0_326] : memref<1x16xf32, #tpu.memory_space<vmem>>, vector<1x16xf32>
    %856 = vector.broadcast %855 : vector<1x16xf32> to vector<2x16xf32>
    %857 = arith.addf %854, %856 : vector<2x16xf32>
    %cst_327 = arith.constant dense<0.000000e+00> : vector<16xf32>
    %858 = vector.multi_reduction <add>, %857, %cst_327 [0] : vector<2x16xf32> to vector<16xf32>
    %859 = vector.shape_cast %858 : vector<16xf32> to vector<1x16xf32>
    %cst_328 = arith.constant 2.000000e+00 : f32
    %860 = vector.broadcast %cst_328 : f32 to vector<1x16xf32>
    %861 = arith.divf %859, %860 : vector<1x16xf32>
    %862 = vector.broadcast %861 : vector<1x16xf32> to vector<2x16xf32>
    %863 = arith.subf %857, %862 : vector<2x16xf32>
    %864 = arith.mulf %863, %863 : vector<2x16xf32>
    %cst_329 = arith.constant dense<0.000000e+00> : vector<16xf32>
    %865 = vector.multi_reduction <add>, %864, %cst_329 [0] : vector<2x16xf32> to vector<16xf32>
    %866 = vector.shape_cast %865 : vector<16xf32> to vector<1x16xf32>
    %cst_330 = arith.constant 2.000000e+00 : f32
    %867 = vector.broadcast %cst_330 : f32 to vector<1x16xf32>
    %868 = arith.divf %866, %867 : vector<1x16xf32>
    %869 = vector.broadcast %861 : vector<1x16xf32> to vector<2x16xf32>
    %870 = arith.subf %857, %869 : vector<2x16xf32>
    %cst_331 = arith.constant 9.99999974E-6 : f32
    %871 = vector.broadcast %cst_331 : f32 to vector<1x16xf32>
    %872 = arith.addf %868, %871 : vector<1x16xf32>
    %873 = math.rsqrt %872 : vector<1x16xf32>
    %874 = vector.broadcast %873 : vector<1x16xf32> to vector<2x16xf32>
    %875 = arith.mulf %870, %874 : vector<2x16xf32>
    %c0_332 = arith.constant 0 : index
    %c0_333 = arith.constant 0 : index
    %876 = vector.load %arg21[%c0_332, %c0_333] : memref<1x16xf32, #tpu.memory_space<vmem>>, vector<1x16xf32>
    %877 = vector.broadcast %876 : vector<1x16xf32> to vector<2x16xf32>
    %878 = arith.mulf %875, %877 : vector<2x16xf32>
    %c0_334 = arith.constant 0 : index
    %c0_335 = arith.constant 0 : index
    %879 = vector.load %arg22[%c0_334, %c0_335] : memref<1x16xf32, #tpu.memory_space<vmem>>, vector<1x16xf32>
    %880 = vector.broadcast %879 : vector<1x16xf32> to vector<2x16xf32>
    %881 = arith.addf %878, %880 : vector<2x16xf32>
    %cst_336 = arith.constant 0.000000e+00 : f32
    %882 = vector.broadcast %cst_336 : f32 to vector<2x16xf32>
    %883 = arith.maximumf %881, %882 : vector<2x16xf32>
    %c0_337 = arith.constant 0 : index
    %c0_338 = arith.constant 0 : index
    %884 = vector.load %arg23[%c0_337, %c0_338] : memref<16x8xbf16, #tpu.memory_space<vmem>>, vector<16x8xbf16>
    %885 = arith.truncf %883 : vector<2x16xf32> to vector<2x16xbf16>
    %cst_339 = arith.constant dense<0.000000e+00> : vector<2x8xf32>
    %886 = tpu.matmul %885, %884, %cst_339 {dimension_numbers = #tpu.dot_dimension_numbers<[1], [0], [0], [1], [0, 0, 1, 1], [], []>} : vector<2x16xbf16>, vector<16x8xbf16>, vector<2x8xf32> -> vector<2x8xf32>
    %c0_340 = arith.constant 0 : index
    %c0_341 = arith.constant 0 : index
    %887 = vector.load %arg24[%c0_340, %c0_341] : memref<1x8xf32, #tpu.memory_space<vmem>>, vector<1x8xf32>
    %888 = vector.broadcast %887 : vector<1x8xf32> to vector<2x8xf32>
    %889 = arith.addf %886, %888 : vector<2x8xf32>
    %c0_342 = arith.constant 0 : index
    %c0_343 = arith.constant 0 : index
    %890 = vector.load %arg26[%c0_342, %c0_343] : memref<2x8xf32, #tpu.memory_space<vmem>>, vector<2x8xf32>
    tpu.vector_store %arg26[%c0_342, %c0_343], %889 {strides = array<i32>} : memref<2x8xf32, #tpu.memory_space<vmem>>, vector<2x8xf32>,
    return
  }
}

</mosaic_0001>

<llo_original>
// kernel: tc_forward.1
$region0: #{tc_forward.1}
  #allocation0 [shape = 'u32[]', space=smem, size = 0x4, offset = 0x4, fixed_abs, tag = 'smem constant byte address 0x4 - core index']
  #allocation1 [shape = 'u32[144,128]{1,0:T(1,128)}', space=vmem, size = 0x12000, scoped, tag = 'internal scratch']
  #allocation2 [shape = 's32[1]{0:T(128)S(6)}', space=smem, size = 0x200, scoped, tag = 'scoped memory for tc_forward.1']
  %s0 = inlined_call_operand.<no memory space> [shape: s32[1], index: 0, kind: input, shape index: {}]
  %s1 = inlined_call_operand.vmem [shape: f32[32,32], index: 1, kind: input, shape index: {}]
  %s2 = inlined_call_operand.vmem [shape: f32[16,2,32], index: 2, kind: input, shape index: {}]
  %s3 = inlined_call_operand.vmem [shape: bf16[32,64], index: 3, kind: input, shape index: {}]
  %s4 = inlined_call_operand.vmem [shape: f32[1,64], index: 4, kind: input, shape index: {}]
  %s5 = inlined_call_operand.vmem [shape: f32[1,64], index: 5, kind: input, shape index: {}]
  %s6 = inlined_call_operand.hbm [shape: f32[4,1,64], index: 6, kind: input, shape index: {}]
  %s7 = inlined_call_operand.hbm [shape: f32[4,1,64], index: 7, kind: input, shape index: {}]
  %s8 = inlined_call_operand.hbm [shape: bf16[4,64,192], index: 8, kind: input, shape index: {}]
  %s9 = inlined_call_operand.vmem [shape: bf16[4,64,64], index: 9, kind: input, shape index: {}]
  %s10 = inlined_call_operand.hbm [shape: f32[4,1,64], index: 10, kind: input, shape index: {}]
  %s11 = inlined_call_operand.hbm [shape: f32[4,1,64], index: 11, kind: input, shape index: {}]
  %s12 = inlined_call_operand.hbm [shape: f32[4,1,64], index: 12, kind: input, shape index: {}]
  %s13 = inlined_call_operand.hbm [shape: bf16[4,64,64], index: 13, kind: input, shape index: {}]
  %s14 = inlined_call_operand.hbm [shape: f32[4,1,64], index: 14, kind: input, shape index: {}]
  %s15 = inlined_call_operand.hbm [shape: bf16[4,64,64], index: 15, kind: input, shape index: {}]
  %s16 = inlined_call_operand.hbm [shape: f32[4,1,64], index: 16, kind: input, shape index: {}]
  %s17 = inlined_call_operand.vmem [shape: bf16[64,128], index: 17, kind: input, shape index: {}]
  %s18 = inlined_call_operand.hbm [shape: f32[1,128], index: 18, kind: input, shape index: {}]
  %s19 = inlined_call_operand.vmem [shape: bf16[64,16], index: 19, kind: input, shape index: {}]
  %s20 = inlined_call_operand.hbm [shape: f32[1,16], index: 20, kind: input, shape index: {}]
  %s21 = inlined_call_operand.hbm [shape: f32[1,16], index: 21, kind: input, shape index: {}]
  %s22 = inlined_call_operand.hbm [shape: f32[1,16], index: 22, kind: input, shape index: {}]
  %s23 = inlined_call_operand.vmem [shape: bf16[16,8], index: 23, kind: input, shape index: {}]
  %s24 = inlined_call_operand.hbm [shape: f32[1,8], index: 24, kind: input, shape index: {}]
  %s25 = inlined_call_operand.hbm [shape: f32[1,1], index: 25, kind: output, shape index: {0}]
  %s26 = inlined_call_operand.hbm [shape: f32[2,8], index: 26, kind: output, shape index: {1}]
  %27 = xla_tuple %s25, %s26
  %s28 = sld [smem:[#allocation0]]
  $region178: #{tc_forward.1} parent=0
    _
  %s30 = ssub.s32 1, %s28
  %s31 = scalar_select 0, %s30, %s28
  %32 = sst [smem:[#allocation2]] %s0
  $region1: #{tc_forward.1} parent=0
    #allocation3 [shape = 'u8[2048]{0}', space=vmem, size = 0x800, scoped, tag = 'input window, operand 6, single buffered']
    #allocation4 [shape = 's32[1]{0}', space=sflag, size = 0x4, scoped, tag = 'scoped memory for tc_forward.1']
    #allocation5 [shape = 's32[1]{0}', space=sflag, size = 0x4, scoped, tag = 'scoped memory for tc_forward.1']
    #allocation6 [shape = 'u8[2048]{0}', space=vmem, size = 0x800, scoped, tag = 'input window, operand 7, single buffered']
    #allocation7 [shape = 's32[1]{0}', space=sflag, size = 0x4, scoped, tag = 'scoped memory for tc_forward.1']
    #allocation8 [shape = 'u8[131072]{0}', space=vmem, size = 0x20000, scoped, tag = 'input window, operand 8, single buffered']
    #allocation9 [shape = 'u8[2048]{0}', space=vmem, size = 0x800, scoped, tag = 'input window, operand 10, single buffered']
    #allocation10 [shape = 's32[1]{0}', space=sflag, size = 0x4, scoped, tag = 'scoped memory for tc_forward.1']
    #allocation11 [shape = 'u8[2048]{0}', space=vmem, size = 0x800, scoped, tag = 'input window, operand 11, single buffered']
    #allocation12 [shape = 'u8[2048]{0}', space=vmem, size = 0x800, scoped, tag = 'input window, operand 12, single buffered']
    #allocation13 [shape = 's32[1]{0}', space=sflag, size = 0x4, scoped, tag = 'scoped memory for tc_forward.1']
    #allocation14 [shape = 'u8[65536]{0}', space=vmem, size = 0x10000, scoped, tag = 'input window, operand 13, single buffered']
    #allocation15 [shape = 'u8[2048]{0}', space=vmem, size = 0x800, scoped, tag = 'input window, operand 14, single buffered']
    #allocation16 [shape = 's32[1]{0}', space=sflag, size = 0x4, scoped, tag = 'scoped memory for tc_forward.1']
    #allocation17 [shape = 'u8[65536]{0}', space=vmem, size = 0x10000, scoped, tag = 'input window, operand 15, single buffered']
    #allocation18 [shape = 'u8[2048]{0}', space=vmem, size = 0x800, scoped, tag = 'input window, operand 16, single buffered']
    #allocation19 [shape = 's32[1]{0}', space=sflag, size = 0x4, scoped, tag = 'scoped memory for tc_forward.1']
    #allocation20 [shape = 'u8[512]{0}', space=vmem, size = 0x400, scoped, tag = 'input window, operand 18, single buffered']
    #allocation21 [shape = 'u8[512]{0}', space=vmem, size = 0x400, scoped, tag = 'input window, operand 20, single buffered']
    #allocation22 [shape = 's32[1]{0}', space=sflag, size = 0x4, scoped, tag = 'scoped memory for tc_forward.1']
    #allocation23 [shape = 'u8[512]{0}', space=vmem, size = 0x400, scoped, tag = 'input window, operand 21, single buffered']
    #allocation24 [shape = 'u8[512]{0}', space=vmem, size = 0x400, scoped, tag = 'input window, operand 22, single buffered']
    #allocation25 [shape = 's32[1]{0}', space=sflag, size = 0x4, scoped, tag = 'scoped memory for tc_forward.1']
    #allocation26 [shape = 'u8[512]{0}', space=vmem, size = 0x400, scoped, tag = 'input window, operand 24, single buffered']
    #allocation27 [shape = 'u8[512]{0}', space=vmem, size = 0x400, scoped, tag = 'output window, operand 0, single buffered']
    #allocation28 [shape = 'u8[1024]{0}', space=vmem, size = 0x400, scoped, tag = 'output window, operand 1, single buffered']
    #allocation29 [shape = 's32[1]{0}', space=sflag, size = 0x4, scoped, tag = 'scoped memory for tc_forward.1']
    %33 = vsyncpa [#allocation4], 0
    %34 = vsyncpa [#allocation7], 0
    %35 = vsyncpa [#allocation10], 0
    %36 = vsyncpa [#allocation13], 0
    %37 = vsyncpa [#allocation16], 0
    %38 = vsyncpa [#allocation19], 0
    %39 = vsyncpa [#allocation22], 0
    %40 = vsyncpa [#allocation25], 0
    %41 = vsyncpa [#allocation5], 0
    %42 = vsyncpa [#allocation29], 0
    // Predicated region
    $region2: #{tc_forward.1} parent=1 // pred_check
      _
    $region3: #{tc_forward.1} parent=1 // pred_check_branch
      %44 = sbr.rel (0) target = $region5
    $region4: #{tc_forward.1} parent=1 // pred_region
      _
    $region5: #{tc_forward.1} parent=1 // pred_fallthru
      _
    // Predicated region
    $region6: #{tc_forward.1} parent=1 // pred_check
      _
    $region7: #{tc_forward.1} parent=1 // pred_check_branch
      %46 = sbr.rel (0) target = $region9
    $region8: #{tc_forward.1} parent=1 // pred_region
      _
    $region9: #{tc_forward.1} parent=1 // pred_fallthru
      _
    // Predicated region
    $region10: #{tc_forward.1} parent=1 // pred_check
      _
    $region11: #{tc_forward.1} parent=1 // pred_check_branch
      %48 = sbr.rel (0) target = $region13
    $region12: #{tc_forward.1} parent=1 // pred_region
      _
    $region13: #{tc_forward.1} parent=1 // pred_fallthru
      _
    // Predicated region
    $region14: #{tc_forward.1} parent=1 // pred_check
      _
    $region15: #{tc_forward.1} parent=1 // pred_check_branch
      %50 = sbr.rel (0) target = $region17
    $region16: #{tc_forward.1} parent=1 // pred_region
      _
    $region17: #{tc_forward.1} parent=1 // pred_fallthru
      _
    // Predicated region
    $region18: #{tc_forward.1} parent=1 // pred_check
      _
    $region19: #{tc_forward.1} parent=1 // pred_check_branch
      %52 = sbr.rel (0) target = $region21
    $region20: #{tc_forward.1} parent=1 // pred_region
      _
    $region21: #{tc_forward.1} parent=1 // pred_fallthru
      _
    // Predicated region
    $region22: #{tc_forward.1} parent=1 // pred_check
      _
    $region23: #{tc_forward.1} parent=1 // pred_check_branch
      %54 = sbr.rel (0) target = $region25
    $region24: #{tc_forward.1} parent=1 // pred_region
      _
    $region25: #{tc_forward.1} parent=1 // pred_fallthru
      _
    // Predicated region
    $region26: #{tc_forward.1} parent=1 // pred_check
      _
    $region27: #{tc_forward.1} parent=1 // pred_check_branch
      %56 = sbr.rel (0) target = $region29
    $region28: #{tc_forward.1} parent=1 // pred_region
      %s58 = ssub.s32 64, 64
      %59 = vsyncadd [#allocation4], %s58
      %s60 = sshll.u32 [#allocation3], 4
      %s61 = int_to_ptr.vmem [resolvable:$true] %s60
      %66 = dma.hbm_to_vmem [thread:$0]  %s6, 64, %s61, [#allocation4], 16, 16, 1
    $region29: #{tc_forward.1} parent=1 // pred_fallthru
      _
    // Predicated region
    $region30: #{tc_forward.1} parent=1 // pred_check
      _
    $region31: #{tc_forward.1} parent=1 // pred_check_branch
      %68 = sbr.rel (0) target = $region33
    $region32: #{tc_forward.1} parent=1 // pred_region
      %s70 = ssub.s32 64, 64
      %71 = vsyncadd [#allocation7], %s70
      %s72 = sshll.u32 [#allocation6], 4
      %s73 = int_to_ptr.vmem [resolvable:$true] %s72
      %78 = dma.hbm_to_vmem [thread:$0]  %s7, 64, %s73, [#allocation7], 16, 16, 1
    $region33: #{tc_forward.1} parent=1 // pred_fallthru
      _
    // Predicated region
    $region34: #{tc_forward.1} parent=1 // pred_check
      _
    $region35: #{tc_forward.1} parent=1 // pred_check_branch
      %80 = sbr.rel (0) target = $region37
    $region36: #{tc_forward.1} parent=1 // pred_region
      %s82 = ssub.s32 4096, 4096
      %83 = vsyncadd [#allocation7], %s82
      %s84 = sshll.u32 [#allocation8], 4
      %s85 = int_to_ptr.vmem [resolvable:$true] %s84
      %90 = dma.hbm_to_vmem [thread:$0]  %s8, 4096, %s85, [#allocation7], 128, 128, 8
    $region37: #{tc_forward.1} parent=1 // pred_fallthru
      _
    // Predicated region
    $region38: #{tc_forward.1} parent=1 // pred_check
      _
    $region39: #{tc_forward.1} parent=1 // pred_check_branch
      %92 = sbr.rel (0) target = $region41
    $region40: #{tc_forward.1} parent=1 // pred_region
      _
    $region41: #{tc_forward.1} parent=1 // pred_fallthru
      _
    // Predicated region
    $region42: #{tc_forward.1} parent=1 // pred_check
      _
    $region43: #{tc_forward.1} parent=1 // pred_check_branch
      %94 = sbr.rel (0) target = $region45
    $region44: #{tc_forward.1} parent=1 // pred_region
      %s96 = ssub.s32 64, 64
      %97 = vsyncadd [#allocation10], %s96
      %s98 = sshll.u32 [#allocation9], 4
      %s99 = int_to_ptr.vmem [resolvable:$true] %s98
      %104 = dma.hbm_to_vmem [thread:$0]  %s10, 64, %s99, [#allocation10], 16, 16, 1
    $region45: #{tc_forward.1} parent=1 // pred_fallthru
      _
    // Predicated region
    $region46: #{tc_forward.1} parent=1 // pred_check
      _
    $region47: #{tc_forward.1} parent=1 // pred_check_branch
      %106 = sbr.rel (0) target = $region49
    $region48: #{tc_forward.1} parent=1 // pred_region
      %s108 = ssub.s32 64, 64
      %109 = vsyncadd [#allocation10], %s108
      %s110 = sshll.u32 [#allocation11], 4
      %s111 = int_to_ptr.vmem [resolvable:$true] %s110
      %116 = dma.hbm_to_vmem [thread:$0]  %s11, 64, %s111, [#allocation10], 16, 16, 1
    $region49: #{tc_forward.1} parent=1 // pred_fallthru
      _
    // Predicated region
    $region50: #{tc_forward.1} parent=1 // pred_check
      _
    $region51: #{tc_forward.1} parent=1 // pred_check_branch
      %118 = sbr.rel (0) target = $region53
    $region52: #{tc_forward.1} parent=1 // pred_region
      %s120 = ssub.s32 64, 64
      %121 = vsyncadd [#allocation13], %s120
      %s122 = sshll.u32 [#allocation12], 4
      %s123 = int_to_ptr.vmem [resolvable:$true] %s122
      %128 = dma.hbm_to_vmem [thread:$0]  %s12, 64, %s123, [#allocation13], 16, 16, 1
    $region53: #{tc_forward.1} parent=1 // pred_fallthru
      _
    // Predicated region
    $region54: #{tc_forward.1} parent=1 // pred_check
      _
    $region55: #{tc_forward.1} parent=1 // pred_check_branch
      %130 = sbr.rel (0) target = $region57
    $region56: #{tc_forward.1} parent=1 // pred_region
      %s132 = ssub.s32 2048, 2048
      %133 = vsyncadd [#allocation13], %s132
      %s134 = sshll.u32 [#allocation14], 4
      %s135 = int_to_ptr.vmem [resolvable:$true] %s134
      %140 = dma.hbm_to_vmem [thread:$0]  %s13, 2048, %s135, [#allocation13], 64, 64, 4
    $region57: #{tc_forward.1} parent=1 // pred_fallthru
      _
    // Predicated region
    $region58: #{tc_forward.1} parent=1 // pred_check
      _
    $region59: #{tc_forward.1} parent=1 // pred_check_branch
      %142 = sbr.rel (0) target = $region61
    $region60: #{tc_forward.1} parent=1 // pred_region
      %s144 = ssub.s32 64, 64
      %145 = vsyncadd [#allocation16], %s144
      %s146 = sshll.u32 [#allocation15], 4
      %s147 = int_to_ptr.vmem [resolvable:$true] %s146
      %152 = dma.hbm_to_vmem [thread:$0]  %s14, 64, %s147, [#allocation16], 16, 16, 1
    $region61: #{tc_forward.1} parent=1 // pred_fallthru
      _
    // Predicated region
    $region62: #{tc_forward.1} parent=1 // pred_check
      _
    $region63: #{tc_forward.1} parent=1 // pred_check_branch
      %154 = sbr.rel (0) target = $region65
    $region64: #{tc_forward.1} parent=1 // pred_region
      %s156 = ssub.s32 2048, 2048
      %157 = vsyncadd [#allocation16], %s156
      %s158 = sshll.u32 [#allocation17], 4
      %s159 = int_to_ptr.vmem [resolvable:$true] %s158
      %164 = dma.hbm_to_vmem [thread:$0]  %s15, 2048, %s159, [#allocation16], 64, 64, 4
    $region65: #{tc_forward.1} parent=1 // pred_fallthru
      _
    // Predicated region
    $region66: #{tc_forward.1} parent=1 // pred_check
      _
    $region67: #{tc_forward.1} parent=1 // pred_check_branch
      %166 = sbr.rel (0) target = $region69
    $region68: #{tc_forward.1} parent=1 // pred_region
      %s168 = ssub.s32 64, 64
      %169 = vsyncadd [#allocation19], %s168
      %s170 = sshll.u32 [#allocation18], 4
      %s171 = int_to_ptr.vmem [resolvable:$true] %s170
      %176 = dma.hbm_to_vmem [thread:$0]  %s16, 64, %s171, [#allocation19], 16, 16, 1
    $region69: #{tc_forward.1} parent=1 // pred_fallthru
      _
    // Predicated region
    $region70: #{tc_forward.1} parent=1 // pred_check
      _
    $region71: #{tc_forward.1} parent=1 // pred_check_branch
      %178 = sbr.rel (0) target = $region73
    $region72: #{tc_forward.1} parent=1 // pred_region
      _
    $region73: #{tc_forward.1} parent=1 // pred_fallthru
      _
    // Predicated region
    $region74: #{tc_forward.1} parent=1 // pred_check
      _
    $region75: #{tc_forward.1} parent=1 // pred_check_branch
      %180 = sbr.rel (0) target = $region77
    $region76: #{tc_forward.1} parent=1 // pred_region
      %s182 = ssub.s32 16, 16
      %183 = vsyncadd [#allocation19], %s182
      %s185 = sshll.u32 [#allocation20], 4
      %s186 = int_to_ptr.vmem [resolvable:$true] %s185
      %188 = dma.hbm_to_vmem [thread:$0]  %s18, 16, %s186, [#allocation19]
    $region77: #{tc_forward.1} parent=1 // pred_fallthru
      _
    // Predicated region
    $region78: #{tc_forward.1} parent=1 // pred_check
      _
    $region79: #{tc_forward.1} parent=1 // pred_check_branch
      %190 = sbr.rel (0) target = $region81
    $region80: #{tc_forward.1} parent=1 // pred_region
      _
    $region81: #{tc_forward.1} parent=1 // pred_fallthru
      _
    // Predicated region
    $region82: #{tc_forward.1} parent=1 // pred_check
      _
    $region83: #{tc_forward.1} parent=1 // pred_check_branch
      %192 = sbr.rel (0) target = $region85
    $region84: #{tc_forward.1} parent=1 // pred_region
      %s194 = ssub.s32 16, 16
      %195 = vsyncadd [#allocation22], %s194
      %s197 = sshll.u32 [#allocation21], 4
      %s198 = int_to_ptr.vmem [resolvable:$true] %s197
      %200 = dma.hbm_to_vmem [thread:$0]  %s20, 16, %s198, [#allocation22]
    $region85: #{tc_forward.1} parent=1 // pred_fallthru
      _
    // Predicated region
    $region86: #{tc_forward.1} parent=1 // pred_check
      _
    $region87: #{tc_forward.1} parent=1 // pred_check_branch
      %202 = sbr.rel (0) target = $region89
    $region88: #{tc_forward.1} parent=1 // pred_region
      %s204 = ssub.s32 16, 16
      %205 = vsyncadd [#allocation22], %s204
      %s207 = sshll.u32 [#allocation23], 4
      %s208 = int_to_ptr.vmem [resolvable:$true] %s207
      %210 = dma.hbm_to_vmem [thread:$0]  %s21, 16, %s208, [#allocation22]
    $region89: #{tc_forward.1} parent=1 // pred_fallthru
      _
    // Predicated region
    $region90: #{tc_forward.1} parent=1 // pred_check
      _
    $region91: #{tc_forward.1} parent=1 // pred_check_branch
      %212 = sbr.rel (0) target = $region93
    $region92: #{tc_forward.1} parent=1 // pred_region
      %s214 = ssub.s32 16, 16
      %215 = vsyncadd [#allocation25], %s214
      %s217 = sshll.u32 [#allocation24], 4
      %s218 = int_to_ptr.vmem [resolvable:$true] %s217
      %220 = dma.hbm_to_vmem [thread:$0]  %s22, 16, %s218, [#allocation25]
    $region93: #{tc_forward.1} parent=1 // pred_fallthru
      _
    // Predicated region
    $region94: #{tc_forward.1} parent=1 // pred_check
      _
    $region95: #{tc_forward.1} parent=1 // pred_check_branch
      %222 = sbr.rel (0) target = $region97
    $region96: #{tc_forward.1} parent=1 // pred_region
      _
    $region97: #{tc_forward.1} parent=1 // pred_fallthru
      _
    // Predicated region
    $region98: #{tc_forward.1} parent=1 // pred_check
      _
    $region99: #{tc_forward.1} parent=1 // pred_check_branch
      %224 = sbr.rel (0) target = $region101
    $region100: #{tc_forward.1} parent=1 // pred_region
      %s226 = ssub.s32 16, 16
      %227 = vsyncadd [#allocation25], %s226
      %s229 = sshll.u32 [#allocation26], 4
      %s230 = int_to_ptr.vmem [resolvable:$true] %s229
      %232 = dma.hbm_to_vmem [thread:$0]  %s24, 16, %s230, [#allocation25]
    $region101: #{tc_forward.1} parent=1 // pred_fallthru
      _
    // Predicated region
    $region102: #{tc_forward.1} parent=1 // pred_check
      _
    $region103: #{tc_forward.1} parent=1 // pred_check_branch
      %234 = sbr.rel (0) target = $region105
    $region104: #{tc_forward.1} parent=1 // pred_region
      %235 = dma.done [#allocation4], 64
    $region105: #{tc_forward.1} parent=1 // pred_fallthru
      _
    // Predicated region
    $region106: #{tc_forward.1} parent=1 // pred_check
      _
    $region107: #{tc_forward.1} parent=1 // pred_check_branch
      %237 = sbr.rel (0) target = $region109
    $region108: #{tc_forward.1} parent=1 // pred_region
      %238 = dma.done [#allocation7], 64
    $region109: #{tc_forward.1} parent=1 // pred_fallthru
      _
    // Predicated region
    $region110: #{tc_forward.1} parent=1 // pred_check
      _
    $region111: #{tc_forward.1} parent=1 // pred_check_branch
      %240 = sbr.rel (0) target = $region113
    $region112: #{tc_forward.1} parent=1 // pred_region
      %241 = dma.done [#allocation7], 4096
    $region113: #{tc_forward.1} parent=1 // pred_fallthru
      _
    // Predicated region
    $region114: #{tc_forward.1} parent=1 // pred_check
      _
    $region115: #{tc_forward.1} parent=1 // pred_check_branch
      %243 = sbr.rel (0) target = $region117
    $region116: #{tc_forward.1} parent=1 // pred_region
      %244 = dma.done [#allocation10], 64
    $region117: #{tc_forward.1} parent=1 // pred_fallthru
      _
    // Predicated region
    $region118: #{tc_forward.1} parent=1 // pred_check
      _
    $region119: #{tc_forward.1} parent=1 // pred_check_branch
      %246 = sbr.rel (0) target = $region121
    $region120: #{tc_forward.1} parent=1 // pred_region
      %247 = dma.done [#allocation10], 64
    $region121: #{tc_forward.1} parent=1 // pred_fallthru
      _
    // Predicated region
    $region122: #{tc_forward.1} parent=1 // pred_check
      _
    $region123: #{tc_forward.1} parent=1 // pred_check_branch
      %249 = sbr.rel (0) target = $region125
    $region124: #{tc_forward.1} parent=1 // pred_region
      %250 = dma.done [#allocation13], 64
    $region125: #{tc_forward.1} parent=1 // pred_fallthru
      _
    // Predicated region
    $region126: #{tc_forward.1} parent=1 // pred_check
      _
    $region127: #{tc_forward.1} parent=1 // pred_check_branch
      %252 = sbr.rel (0) target = $region129
    $region128: #{tc_forward.1} parent=1 // pred_region
      %253 = dma.done [#allocation13], 2048
    $region129: #{tc_forward.1} parent=1 // pred_fallthru
      _
    // Predicated region
    $region130: #{tc_forward.1} parent=1 // pred_check
      _
    $region131: #{tc_forward.1} parent=1 // pred_check_branch
      %255 = sbr.rel (0) target = $region133
    $region132: #{tc_forward.1} parent=1 // pred_region
      %256 = dma.done [#allocation16], 64
    $region133: #{tc_forward.1} parent=1 // pred_fallthru
      _
    // Predicated region
    $region134: #{tc_forward.1} parent=1 // pred_check
      _
    $region135: #{tc_forward.1} parent=1 // pred_check_branch
      %258 = sbr.rel (0) target = $region137
    $region136: #{tc_forward.1} parent=1 // pred_region
      %259 = dma.done [#allocation16], 2048
    $region137: #{tc_forward.1} parent=1 // pred_fallthru
      _
    // Predicated region
    $region138: #{tc_forward.1} parent=1 // pred_check
      _
    $region139: #{tc_forward.1} parent=1 // pred_check_branch
      %261 = sbr.rel (0) target = $region141
    $region140: #{tc_forward.1} parent=1 // pred_region
      %262 = dma.done [#allocation19], 64
    $region141: #{tc_forward.1} parent=1 // pred_fallthru
      _
    // Predicated region
    $region142: #{tc_forward.1} parent=1 // pred_check
      _
    $region143: #{tc_forward.1} parent=1 // pred_check_branch
      %264 = sbr.rel (0) target = $region145
    $region144: #{tc_forward.1} parent=1 // pred_region
      %265 = dma.done [#allocation19], 16
    $region145: #{tc_forward.1} parent=1 // pred_fallthru
      _
    // Predicated region
    $region146: #{tc_forward.1} parent=1 // pred_check
      _
    $region147: #{tc_forward.1} parent=1 // pred_check_branch
      %267 = sbr.rel (0) target = $region149
    $region148: #{tc_forward.1} parent=1 // pred_region
      %268 = dma.done [#allocation22], 16
    $region149: #{tc_forward.1} parent=1 // pred_fallthru
      _
    // Predicated region
    $region150: #{tc_forward.1} parent=1 // pred_check
      _
    $region151: #{tc_forward.1} parent=1 // pred_check_branch
      %270 = sbr.rel (0) target = $region153
    $region152: #{tc_forward.1} parent=1 // pred_region
      %271 = dma.done [#allocation22], 16
    $region153: #{tc_forward.1} parent=1 // pred_fallthru
      _
    // Predicated region
    $region154: #{tc_forward.1} parent=1 // pred_check
      _
    $region155: #{tc_forward.1} parent=1 // pred_check_branch
      %273 = sbr.rel (0) target = $region157
    $region156: #{tc_forward.1} parent=1 // pred_region
      %274 = dma.done [#allocation25], 16
    $region157: #{tc_forward.1} parent=1 // pred_fallthru
      _
    // Predicated region
    $region158: #{tc_forward.1} parent=1 // pred_check
      _
    $region159: #{tc_forward.1} parent=1 // pred_check_branch
      %276 = sbr.rel (0) target = $region161
    $region160: #{tc_forward.1} parent=1 // pred_region
      %277 = dma.done [#allocation25], 16
    $region161: #{tc_forward.1} parent=1 // pred_fallthru
      _
    %s279 = sld [smem:[#allocation2]]
    %s280 = sadd.s32 %s279, 2
    %v281 = vlaneseq
    %v282 = vshrl.u32 %v281, 7
    %v283 = vadd.s32 %v282, 8
    %v284 = vadd.s32 %v282, 16
    %v285 = vadd.s32 %v282, 24
    %v286 = vlaneseq
    %v287 = vand.u32 %v286, 127
    %v288 = vshra.s32 %v282, 4
    %v289 = vshra.s32 %v283, 4
    %v290 = vshra.s32 %v284, 4
    %v291 = vshra.s32 %v285, 4
    %v292 = vshra.s32 %v287, 4
    %vm293 = vcmp.eq.s32.totalorder %v288, %v292
    %vm294 = vcmp.eq.s32.totalorder %v289, %v292
    %vm295 = vcmp.eq.s32.totalorder %v290, %v292
    %vm296 = vcmp.eq.s32.totalorder %v291, %v292
    %v297 = vand.u32 %v287, 15
    %v298 = vstv %s280
    %vm299 = vcmp.lt.s32.totalorder %v297, %v298
    %vm300 = vmand %vm293, %vm299
    %vm301 = vmand %vm294, %vm299
    %vm302 = vmand %vm295, %vm299
    %vm303 = vmand %vm296, %vm299
    %v304 = vsel %vm300, 0.0, -1e+30
    %v305 = vsel %vm301, 0.0, -1e+30
    %v306 = vsel %vm302, 0.0, -1e+30
    %v307 = vsel %vm303, 0.0, -1e+30
    %v308 = vld [vmem:[%s1] sm:$0xff]
    %v309 = vld [vmem:[%s1 + $0x8] sm:$0xff]
    %v310 = vld [vmem:[%s1 + $0x10] sm:$0xff]
    %v311 = vld [vmem:[%s1 + $0x18] sm:$0xff]
    %v312 = vld [vmem:[%s3] sm:$0xf]
    %v313 = vld [vmem:[%s3 + $0x4] sm:$0xf]
    %v314 = vld [vmem:[%s3 + $0x8] sm:$0xf]
    %v315 = vld [vmem:[%s3 + $0xc] sm:$0xf]
    %v316 = vpack.c.bf16 %v309, %v308
    %v317 = vpack.c.bf16 %v311, %v310
    %v318 = vld [vmem:[%s4] sm:$0x1]
    %v320 = vlaneseq
    %v321 = vshrl.u32 %v320, 7
    %v322 = vsub.s32 0, %v321
    %v323 = vrot.slane %v318, %v322
    %v329 = vunpack.c.l.b16 %v312
    %v330 = vunpack.c.l.b16 %v313
    %v331 = vunpack.c.l.b16 %v314
    %v332 = vunpack.c.l.b16 %v315
    %v333 = vpack.c.b16 %v330, %v329
    %v334 = vpack.c.b16 %v332, %v331
    %vm337 = vcmask 261120
    %v339 = vsel %vm337, %v316, 0
    %v342 = vsel %vm337, %v317, 0
    %344 = vmatprep.subr.bf16.mxu0 0
    %345 = vmatpush1.bf16.msra.mxu0 %v333
    %346 = vmatprep.subr.bf16.mxu0 0
    %347 = vmatpush1.bf16.msra.mxu0 %v334
    %348 = vmatprep.subr.bf16.mxu0 0
    %349 = vmatpush1.bf16.msra.mxu0 0
    %350 = vmatprep.subr.bf16.mxu0 0
    %351 = vmatpush1.bf16.msra.mxu0 0
    %352 = vmatprep.subr.bf16.mxu0 0
    %353 = vmatpush1.bf16.msra.mxu0 0
    %354 = vmatprep.subr.bf16.mxu0 0
    %355 = vmatpush1.bf16.msra.mxu0 0
    %356 = vmatprep.subr.bf16.mxu0 0
    %357 = vmatpush1.bf16.msra.mxu0 0
    %358 = vmatprep.subr.bf16.mxu0 0
    %359 = vmatpush1.bf16.msra.mxu0 0
    %360 = vmatprep.subr.bf16.mxu0 0
    %361 = vmatpush1.bf16.msra.mxu0 0
    %362 = vmatprep.subr.bf16.mxu0 0
    %363 = vmatpush1.bf16.msra.mxu0 0
    %364 = vmatprep.subr.bf16.mxu0 0
    %365 = vmatpush1.bf16.msra.mxu0 0
    %366 = vmatprep.subr.bf16.mxu0 0
    %367 = vmatpush1.bf16.msra.mxu0 0
    %368 = vmatprep.subr.bf16.mxu0 0
    %369 = vmatpush1.bf16.msra.mxu0 0
    %370 = vmatprep.subr.bf16.mxu0 0
    %371 = vmatpush1.bf16.msra.mxu0 0
    %372 = vmatprep.subr.bf16.mxu0 0
    %373 = vmatpush1.bf16.msra.mxu0 0
    %374 = vmatprep.subr.bf16.mxu0 0
    %375 = vmatpush1.bf16.msra.mxu0 0
    %376 = vmatprep.mubr.bf16.mxu0 0
    %377 = vmatmul.mubr.bf16.gmra.mrb[0].mxu0 %v339
    %v378 = vpop.f32.mrb[0].mxu0
    %v379 = vadd.f32 %v323, %v378
    %v380 = vpop.f32.mrb[0].mxu0
    %v381 = vpop.f32.mrb[0].mxu0
    %v382 = vadd.f32 %v323, %v381
    %v383 = vpop.f32.mrb[0].mxu0
    %384 = vmatprep.mubr.bf16.mxu0 0
    %385 = vmatmul.mubr.bf16.gmra.mrb[0].mxu0 %v342
    %v386 = vpop.f32.mrb[0].mxu0
    %v387 = vadd.f32 %v323, %v386
    %v388 = vpop.f32.mrb[0].mxu0
    %v389 = vpop.f32.mrb[0].mxu0
    %v390 = vadd.f32 %v323, %v389
    %v391 = vpop.f32.mrb[0].mxu0
    %392 = vdwg.mxu0
    %v393 = vrot.slane %v379, 7
    %v394 = vrot.slane %v382, 7
    %v395 = vrot.slane %v387, 7
    %v396 = vrot.slane %v390, 7
    %vm397 = vcmp.lt.s32.totalorder %v282, 1
    %v398 = vsel %vm397, %v395, %v396
    %v399 = vsel %vm397, %v394, %v395
    %v400 = vsel %vm397, %v393, %v394
    %v401 = vsel %vm397, %v396, %v393
    %v402 = vand.u32 %v282, 15
    %v403 = vand.u32 %v283, 15
    %v404 = vand.u32 %v284, 15
    %v405 = vand.u32 %v285, 15
    %v406 = vld [vmem:[%s5] sm:$0x1]
    %v408 = vlaneseq
    %v409 = vshrl.u32 %v408, 7
    %v410 = vsub.s32 0, %v409
    %v411 = vrot.slane %v406, %v410
    %vm413 = vcmp.eq.s32.totalorder %v402, 0
    %vm414 = vcmp.eq.s32.totalorder %v403, 0
    %vm415 = vcmp.eq.s32.totalorder %v404, 0
    %vm416 = vcmp.eq.s32.totalorder %v405, 0
    %v417 = vsel %vm413, %v411, %v401
    %v418 = vsel %vm414, %v411, %v400
    %v419 = vsel %vm415, %v411, %v399
    %v420 = vsel %vm416, %v411, %v398
    %v421 = vld [vmem:[#allocation3] sm:$0x1]
    %v422 = vld [vmem:[#allocation6] sm:$0x1]
    %vm423 = vcmask 523264
    %v424 = vsel %vm423, %v417, 0.0
    %425 = vadd.xlane.f32.xlu0 %v424
    %v426 = vpop.xlane.xlu0 %425
    %v427 = vsel %vm423, %v418, 0.0
    %428 = vadd.xlane.f32.xlu0 %v427
    %v429 = vpop.xlane.xlu0 %428
    %v430 = vsel %vm423, %v419, 0.0
    %431 = vadd.xlane.f32.xlu0 %v430
    %v432 = vpop.xlane.xlu0 %431
    %v433 = vsel %vm423, %v420, 0.0
    %434 = vadd.xlane.f32.xlu0 %v433
    %v435 = vpop.xlane.xlu0 %434
    %v436 = vrcp.pop 64.0
    %v437 = vmul.f32 %v426, %v436
    %v438 = vmul.f32 %v429, %v436
    %v439 = vmul.f32 %v432, %v436
    %v440 = vmul.f32 %v435, %v436
    %v441 = vsub.f32 %v417, %v437
    %v442 = vsub.f32 %v418, %v438
    %v443 = vsub.f32 %v419, %v439
    %v444 = vsub.f32 %v420, %v440
    %v445 = vmul.f32 %v441, %v441
    %v446 = vmul.f32 %v442, %v442
    %v447 = vmul.f32 %v443, %v443
    %v448 = vmul.f32 %v444, %v444
    %v449 = vsel %vm423, %v445, 0.0
    %450 = vadd.xlane.f32.xlu0 %v449
    %v451 = vpop.xlane.xlu0 %450
    %v452 = vsel %vm423, %v446, 0.0
    %453 = vadd.xlane.f32.xlu0 %v452
    %v454 = vpop.xlane.xlu0 %453
    %v455 = vsel %vm423, %v447, 0.0
    %456 = vadd.xlane.f32.xlu0 %v455
    %v457 = vpop.xlane.xlu0 %456
    %v458 = vsel %vm423, %v448, 0.0
    %459 = vadd.xlane.f32.xlu0 %v458
    %v460 = vpop.xlane.xlu0 %459
    %v461 = vmul.f32 %v451, %v436
    %v462 = vmul.f32 %v454, %v436
    %v463 = vmul.f32 %v457, %v436
    %v464 = vmul.f32 %v460, %v436
    %v465 = vadd.f32 %v461, 1e-05
    %v466 = vadd.f32 %v462, 1e-05
    %v467 = vadd.f32 %v463, 1e-05
    %v468 = vadd.f32 %v464, 1e-05
    %v469 = vrsqrt.pop %v465
    %v470 = vrsqrt.pop %v466
    %v471 = vrsqrt.pop %v467
    %v472 = vrsqrt.pop %v468
    %v473 = vmul.f32 %v441, %v469
    %v474 = vmul.f32 %v442, %v470
    %v475 = vmul.f32 %v443, %v471
    %v476 = vmul.f32 %v444, %v472
    %v478 = vlaneseq
    %v479 = vshrl.u32 %v478, 7
    %v480 = vsub.s32 0, %v479
    %v481 = vrot.slane %v421, %v480
    %v483 = vmul.f32 %v473, %v481
    %v484 = vmul.f32 %v474, %v481
    %v485 = vmul.f32 %v475, %v481
    %v486 = vmul.f32 %v476, %v481
    %v488 = vlaneseq
    %v489 = vshrl.u32 %v488, 7
    %v490 = vsub.s32 0, %v489
    %v491 = vrot.slane %v422, %v490
    %v493 = vadd.f32 %v483, %v491
    %v494 = vadd.f32 %v484, %v491
    %v495 = vadd.f32 %v485, %v491
    %v496 = vadd.f32 %v486, %v491
    %v497 = vld [vmem:[#allocation8] sm:$0xff]
    %v498 = vld [vmem:[#allocation8 + $0x8] sm:$0xff]
    %v499 = vld [vmem:[#allocation8 + $0x10] sm:$0xff]
    %v500 = vld [vmem:[#allocation8 + $0x18] sm:$0xff]
    %v501 = vld [vmem:[#allocation8 + $0x20] sm:$0xff]
    %v502 = vld [vmem:[#allocation8 + $0x28] sm:$0xff]
    %v503 = vld [vmem:[#allocation8 + $0x30] sm:$0xff]
    %v504 = vld [vmem:[#allocation8 + $0x38] sm:$0xff]
    %v505 = vpack.c.bf16 %v494, %v493
    %v506 = vpack.c.bf16 %v496, %v495
    %v515 = vunpack.c.l.b16 %v497
    %v516 = vunpack.c.h.b16 %v497
    %v517 = vunpack.c.l.b16 %v498
    %v518 = vunpack.c.h.b16 %v498
    %v519 = vunpack.c.l.b16 %v499
    %v520 = vunpack.c.h.b16 %v499
    %v521 = vunpack.c.l.b16 %v500
    %v522 = vunpack.c.h.b16 %v500
    %v523 = vunpack.c.l.b16 %v501
    %v524 = vunpack.c.h.b16 %v501
    %v525 = vunpack.c.l.b16 %v502
    %v526 = vunpack.c.h.b16 %v502
    %v527 = vunpack.c.l.b16 %v503
    %v528 = vunpack.c.h.b16 %v503
    %v529 = vunpack.c.l.b16 %v504
    %v530 = vunpack.c.h.b16 %v504
    %v531 = vpack.c.b16 %v517, %v515
    %v532 = vpack.c.b16 %v518, %v516
    %v533 = vpack.c.b16 %v521, %v519
    %v534 = vpack.c.b16 %v522, %v520
    %v535 = vpack.c.b16 %v525, %v523
    %v536 = vpack.c.b16 %v526, %v524
    %v537 = vpack.c.b16 %v529, %v527
    %v538 = vpack.c.b16 %v530, %v528
    %v548 = vsel %vm423, %v505, 0
    %v551 = vsel %vm423, %v506, 0
    %553 = vmatprep.subr.bf16.mxu0 %v532
    %554 = vmatpush1.bf16.msra.mxu0 %v531
    %555 = vmatprep.subr.bf16.mxu0 %v534
    %556 = vmatpush1.bf16.msra.mxu0 %v533
    %557 = vmatprep.subr.bf16.mxu0 %v536
    %558 = vmatpush1.bf16.msra.mxu0 %v535
    %559 = vmatprep.subr.bf16.mxu0 %v538
    %560 = vmatpush1.bf16.msra.mxu0 %v537
    %561 = vmatprep.subr.bf16.mxu0 0
    %562 = vmatpush1.bf16.msra.mxu0 0
    %563 = vmatprep.subr.bf16.mxu0 0
    %564 = vmatpush1.bf16.msra.mxu0 0
    %565 = vmatprep.subr.bf16.mxu0 0
    %566 = vmatpush1.bf16.msra.mxu0 0
    %567 = vmatprep.subr.bf16.mxu0 0
    %568 = vmatpush1.bf16.msra.mxu0 0
    %569 = vmatprep.subr.bf16.mxu0 0
    %570 = vmatpush1.bf16.msra.mxu0 0
    %571 = vmatprep.subr.bf16.mxu0 0
    %572 = vmatpush1.bf16.msra.mxu0 0
    %573 = vmatprep.subr.bf16.mxu0 0
    %574 = vmatpush1.bf16.msra.mxu0 0
    %575 = vmatprep.subr.bf16.mxu0 0
    %576 = vmatpush1.bf16.msra.mxu0 0
    %577 = vmatprep.subr.bf16.mxu0 0
    %578 = vmatpush1.bf16.msra.mxu0 0
    %579 = vmatprep.subr.bf16.mxu0 0
    %580 = vmatpush1.bf16.msra.mxu0 0
    %581 = vmatprep.subr.bf16.mxu0 0
    %582 = vmatpush1.bf16.msra.mxu0 0
    %583 = vmatprep.subr.bf16.mxu0 0
    %584 = vmatpush1.bf16.msra.mxu0 0
    %585 = vmatprep.mubr.bf16.mxu0 0
    %586 = vmatmul.mubr.bf16.gmra.mrb[0].mxu0 %v548
    %v587 = vpop.f32.mrb[0].mxu0
    %v588 = vadd.f32 0.0, %v587
    %v589 = vpop.f32.mrb[0].mxu0
    %v590 = vadd.f32 0.0, %v589
    %v591 = vpop.f32.mrb[0].mxu0
    %v592 = vadd.f32 0.0, %v591
    %v593 = vpop.f32.mrb[0].mxu0
    %v594 = vadd.f32 0.0, %v593
    %595 = vmatprep.mubr.bf16.mxu0 0
    %596 = vmatmul.mubr.bf16.gmra.mrb[0].mxu0 %v551
    %v597 = vpop.f32.mrb[0].mxu0
    %v598 = vadd.f32 0.0, %v597
    %v599 = vpop.f32.mrb[0].mxu0
    %v600 = vadd.f32 0.0, %v599
    %v601 = vpop.f32.mrb[0].mxu0
    %v602 = vadd.f32 0.0, %v601
    %v603 = vpop.f32.mrb[0].mxu0
    %v604 = vadd.f32 0.0, %v603
    %605 = vdwg.mxu0
    %v606 = vpack.c.bf16 %v592, %v588
    %v607 = vpack.c.bf16 %v602, %v598
    %610 = vrot.lane.b32.xlu0 %v606, 64
    %v611 = vpop.permute.xlu0 %610
    %612 = vrot.lane.b32.xlu0 %v607, 64
    %v613 = vpop.permute.xlu0 %612
    %vm614 = vcmask 130048
    %v616 = vsel %vm614, %v606, 0
    %v619 = vsel %vm614, %v607, 0
    %v622 = vsel %vm614, %v611, 0
    %v625 = vsel %vm614, %v613, 0
    %627 = vmatprep.subr.bf16.mxu0 0
    %628 = vmatpush1.bf16.xpose.msra.mxu0 %v622
    %629 = vmatprep.subr.bf16.mxu0 0
    %630 = vmatpush1.bf16.xpose.msra.mxu0 %v625
    %631 = vmatprep.subr.bf16.mxu0 0
    %632 = vmatpush1.bf16.xpose.msra.mxu0 0
    %633 = vmatprep.subr.bf16.mxu0 0
    %634 = vmatpush1.bf16.xpose.msra.mxu0 0
    %635 = vmatprep.subr.bf16.mxu0 0
    %636 = vmatpush1.bf16.xpose.msra.mxu0 0
    %637 = vmatprep.subr.bf16.mxu0 0
    %638 = vmatpush1.bf16.xpose.msra.mxu0 0
    %639 = vmatprep.subr.bf16.mxu0 0
    %640 = vmatpush1.bf16.xpose.msra.mxu0 0
    %641 = vmatprep.subr.bf16.mxu0 0
    %642 = vmatpush1.bf16.xpose.msra.mxu0 0
    %643 = vmatprep.subr.bf16.mxu0 0
    %644 = vmatpush1.bf16.xpose.msra.mxu0 0
    %645 = vmatprep.subr.bf16.mxu0 0
    %646 = vmatpush1.bf16.xpose.msra.mxu0 0
    %647 = vmatprep.subr.bf16.mxu0 0
    %648 = vmatpush1.bf16.xpose.msra.mxu0 0
    %649 = vmatprep.subr.bf16.mxu0 0
    %650 = vmatpush1.bf16.xpose.msra.mxu0 0
    %651 = vmatprep.subr.bf16.mxu0 0
    %652 = vmatpush1.bf16.xpose.msra.mxu0 0
    %653 = vmatprep.subr.bf16.mxu0 0
    %654 = vmatpush1.bf16.xpose.msra.mxu0 0
    %655 = vmatprep.subr.bf16.mxu0 0
    %656 = vmatpush1.bf16.xpose.msra.mxu0 0
    %657 = vmatprep.subr.bf16.mxu0 0
    %658 = vmatpush1.bf16.xpose.msra.mxu0 0
    %659 = vmatprep.mubr.bf16.mxu0 0
    %660 = vmatmul.mubr.bf16.gmra.mrb[0].mxu0 %v616
    %v661 = vpop.f32.mrb[0].mxu0
    %v662 = vadd.f32 %v304, %v661
    %v663 = vpop.f32.mrb[0].mxu0
    %v664 = vpop.f32.mrb[0].mxu0
    %v665 = vadd.f32 %v305, %v664
    %v666 = vpop.f32.mrb[0].mxu0
    %667 = vmatprep.mubr.bf16.mxu0 0
    %668 = vmatmul.mubr.bf16.gmra.mrb[0].mxu0 %v619
    %v669 = vpop.f32.mrb[0].mxu0
    %v670 = vadd.f32 %v306, %v669
    %v671 = vpop.f32.mrb[0].mxu0
    %v672 = vpop.f32.mrb[0].mxu0
    %v673 = vadd.f32 %v307, %v672
    %v674 = vpop.f32.mrb[0].mxu0
    %675 = vdwg.mxu0
    %v676 = vsel %vm337, %v662, -inf
    %677 = vmax.xlane.f32.xlu0 %v676
    %v678 = vpop.xlane.xlu0 %677
    %v679 = vsel %vm337, %v665, -inf
    %680 = vmax.xlane.f32.xlu0 %v679
    %v681 = vpop.xlane.xlu0 %680
    %v682 = vsel %vm337, %v670, -inf
    %683 = vmax.xlane.f32.xlu0 %v682
    %v684 = vpop.xlane.xlu0 %683
    %v685 = vsel %vm337, %v673, -inf
    %686 = vmax.xlane.f32.xlu0 %v685
    %v687 = vpop.xlane.xlu0 %686
    %v688 = vsub.f32 %v662, %v678
    %v689 = vsub.f32 %v665, %v681
    %v690 = vsub.f32 %v670, %v684
    %v691 = vsub.f32 %v673, %v687
    %v692 = vmul.f32 %v688, 1.442695
    %v693 = vpow.pop %v692
    %v694 = vmul.f32 %v689, 1.442695
    %v695 = vpow.pop %v694
    %v696 = vmul.f32 %v690, 1.442695
    %v697 = vpow.pop %v696
    %v698 = vmul.f32 %v691, 1.442695
    %v699 = vpow.pop %v698
    %v700 = vsel %vm337, %v693, 0.0
    %701 = vadd.xlane.f32.xlu0 %v700
    %v702 = vpop.xlane.xlu0 %701
    %v703 = vsel %vm337, %v695, 0.0
    %704 = vadd.xlane.f32.xlu0 %v703
    %v705 = vpop.xlane.xlu0 %704
    %v706 = vsel %vm337, %v697, 0.0
    %707 = vadd.xlane.f32.xlu0 %v706
    %v708 = vpop.xlane.xlu0 %707
    %v709 = vsel %vm337, %v699, 0.0
    %710 = vadd.xlane.f32.xlu0 %v709
    %v711 = vpop.xlane.xlu0 %710
    %v712 = vrcp.pop %v702
    %v713 = vrcp.pop %v705
    %v714 = vrcp.pop %v708
    %v715 = vrcp.pop %v711
    %v716 = vmul.f32 %v693, %v712
    %v717 = vmul.f32 %v695, %v713
    %v718 = vmul.f32 %v697, %v714
    %v719 = vmul.f32 %v699, %v715
    %v720 = vpack.c.bf16 %v717, %v716
    %v721 = vpack.c.bf16 %v719, %v718
    %v722 = vpack.c.bf16 %v594, %v590
    %v723 = vpack.c.bf16 %v604, %v600
    %v725 = vsel %vm337, %v720, 0
    %v728 = vsel %vm337, %v721, 0
    %730 = vmatprep.subr.bf16.mxu0 0
    %731 = vmatpush1.bf16.msra.mxu0 %v722
    %732 = vmatprep.subr.bf16.mxu0 0
    %733 = vmatpush1.bf16.msra.mxu0 %v723
    %734 = vmatprep.subr.bf16.mxu0 0
    %735 = vmatpush1.bf16.msra.mxu0 0
    %736 = vmatprep.subr.bf16.mxu0 0
    %737 = vmatpush1.bf16.msra.mxu0 0
    %738 = vmatprep.subr.bf16.mxu0 0
    %739 = vmatpush1.bf16.msra.mxu0 0
    %740 = vmatprep.subr.bf16.mxu0 0
    %741 = vmatpush1.bf16.msra.mxu0 0
    %742 = vmatprep.subr.bf16.mxu0 0
    %743 = vmatpush1.bf16.msra.mxu0 0
    %744 = vmatprep.subr.bf16.mxu0 0
    %745 = vmatpush1.bf16.msra.mxu0 0
    %746 = vmatprep.subr.bf16.mxu0 0
    %747 = vmatpush1.bf16.msra.mxu0 0
    %748 = vmatprep.subr.bf16.mxu0 0
    %749 = vmatpush1.bf16.msra.mxu0 0
    %750 = vmatprep.subr.bf16.mxu0 0
    %751 = vmatpush1.bf16.msra.mxu0 0
    %752 = vmatprep.subr.bf16.mxu0 0
    %753 = vmatpush1.bf16.msra.mxu0 0
    %754 = vmatprep.subr.bf16.mxu0 0
    %755 = vmatpush1.bf16.msra.mxu0 0
    %756 = vmatprep.subr.bf16.mxu0 0
    %757 = vmatpush1.bf16.msra.mxu0 0
    %758 = vmatprep.subr.bf16.mxu0 0
    %759 = vmatpush1.bf16.msra.mxu0 0
    %760 = vmatprep.subr.bf16.mxu0 0
    %761 = vmatpush1.bf16.msra.mxu0 0
    %762 = vmatprep.mubr.bf16.mxu0 0
    %763 = vmatmul.mubr.bf16.gmra.mrb[0].mxu0 %v725
    %v764 = vpop.f32.mrb[0].mxu0
    %v765 = vadd.f32 0.0, %v764
    %v766 = vpop.f32.mrb[0].mxu0
    %v767 = vpop.f32.mrb[0].mxu0
    %v768 = vadd.f32 0.0, %v767
    %v769 = vpop.f32.mrb[0].mxu0
    %770 = vmatprep.mubr.bf16.mxu0 0
    %771 = vmatmul.mubr.bf16.gmra.mrb[0].mxu0 %v728
    %v772 = vpop.f32.mrb[0].mxu0
    %v773 = vadd.f32 0.0, %v772
    %v774 = vpop.f32.mrb[0].mxu0
    %v775 = vpop.f32.mrb[0].mxu0
    %v776 = vadd.f32 0.0, %v775
    %v777 = vpop.f32.mrb[0].mxu0
    %778 = vdwg.mxu0
    %779 = vrot.lane.b32.xlu0 %v606, 112
    %v780 = vpop.permute.xlu0 %779
    %781 = vrot.lane.b32.xlu0 %v607, 112
    %v782 = vpop.permute.xlu0 %781
    %783 = vrot.lane.b32.xlu0 %v606, 48
    %v784 = vpop.permute.xlu0 %783
    %785 = vrot.lane.b32.xlu0 %v607, 48
    %v786 = vpop.permute.xlu0 %785
    %v788 = vsel %vm614, %v780, 0
    %v791 = vsel %vm614, %v782, 0
    %v794 = vsel %vm614, %v784, 0
    %v797 = vsel %vm614, %v786, 0
    %799 = vmatprep.subr.bf16.mxu0 0
    %800 = vmatpush1.bf16.xpose.msra.mxu0 %v794
    %801 = vmatprep.subr.bf16.mxu0 0
    %802 = vmatpush1.bf16.xpose.msra.mxu0 %v797
    %803 = vmatprep.subr.bf16.mxu0 0
    %804 = vmatpush1.bf16.xpose.msra.mxu0 0
    %805 = vmatprep.subr.bf16.mxu0 0
    %806 = vmatpush1.bf16.xpose.msra.mxu0 0
    %807 = vmatprep.subr.bf16.mxu0 0
    %808 = vmatpush1.bf16.xpose.msra.mxu0 0
    %809 = vmatprep.subr.bf16.mxu0 0
    %810 = vmatpush1.bf16.xpose.msra.mxu0 0
    %811 = vmatprep.subr.bf16.mxu0 0
    %812 = vmatpush1.bf16.xpose.msra.mxu0 0
    %813 = vmatprep.subr.bf16.mxu0 0
    %814 = vmatpush1.bf16.xpose.msra.mxu0 0
    %815 = vmatprep.subr.bf16.mxu0 0
    %816 = vmatpush1.bf16.xpose.msra.mxu0 0
    %817 = vmatprep.subr.bf16.mxu0 0
    %818 = vmatpush1.bf16.xpose.msra.mxu0 0
    %819 = vmatprep.subr.bf16.mxu0 0
    %820 = vmatpush1.bf16.xpose.msra.mxu0 0
    %821 = vmatprep.subr.bf16.mxu0 0
    %822 = vmatpush1.bf16.xpose.msra.mxu0 0
    %823 = vmatprep.subr.bf16.mxu0 0
    %824 = vmatpush1.bf16.xpose.msra.mxu0 0
    %825 = vmatprep.subr.bf16.mxu0 0
    %826 = vmatpush1.bf16.xpose.msra.mxu0 0
    %827 = vmatprep.subr.bf16.mxu0 0
    %828 = vmatpush1.bf16.xpose.msra.mxu0 0
    %829 = vmatprep.subr.bf16.mxu0 0
    %830 = vmatpush1.bf16.xpose.msra.mxu0 0
    %831 = vmatprep.mubr.bf16.mxu0 0
    %832 = vmatmul.mubr.bf16.gmra.mrb[0].mxu0 %v788
    %v833 = vpop.f32.mrb[0].mxu0
    %v834 = vadd.f32 %v304, %v833
    %v835 = vpop.f32.mrb[0].mxu0
    %v836 = vpop.f32.mrb[0].mxu0
    %v837 = vadd.f32 %v305, %v836
    %v838 = vpop.f32.mrb[0].mxu0
    %839 = vmatprep.mubr.bf16.mxu0 0
    %840 = vmatmul.mubr.bf16.gmra.mrb[0].mxu0 %v791
    %v841 = vpop.f32.mrb[0].mxu0
    %v842 = vadd.f32 %v306, %v841
    %v843 = vpop.f32.mrb[0].mxu0
    %v844 = vpop.f32.mrb[0].mxu0
    %v845 = vadd.f32 %v307, %v844
    %v846 = vpop.f32.mrb[0].mxu0
    %847 = vdwg.mxu0
    %v848 = vsel %vm337, %v834, -inf
    %849 = vmax.xlane.f32.xlu0 %v848
    %v850 = vpop.xlane.xlu0 %849
    %v851 = vsel %vm337, %v837, -inf
    %852 = vmax.xlane.f32.xlu0 %v851
    %v853 = vpop.xlane.xlu0 %852
    %v854 = vsel %vm337, %v842, -inf
    %855 = vmax.xlane.f32.xlu0 %v854
    %v856 = vpop.xlane.xlu0 %855
    %v857 = vsel %vm337, %v845, -inf
    %858 = vmax.xlane.f32.xlu0 %v857
    %v859 = vpop.xlane.xlu0 %858
    %v860 = vsub.f32 %v834, %v850
    %v861 = vsub.f32 %v837, %v853
    %v862 = vsub.f32 %v842, %v856
    %v863 = vsub.f32 %v845, %v859
    %v864 = vmul.f32 %v860, 1.442695
    %v865 = vpow.pop %v864
    %v866 = vmul.f32 %v861, 1.442695
    %v867 = vpow.pop %v866
    %v868 = vmul.f32 %v862, 1.442695
    %v869 = vpow.pop %v868
    %v870 = vmul.f32 %v863, 1.442695
    %v871 = vpow.pop %v870
    %v872 = vsel %vm337, %v865, 0.0
    %873 = vadd.xlane.f32.xlu0 %v872
    %v874 = vpop.xlane.xlu0 %873
    %v875 = vsel %vm337, %v867, 0.0
    %876 = vadd.xlane.f32.xlu0 %v875
    %v877 = vpop.xlane.xlu0 %876
    %v878 = vsel %vm337, %v869, 0.0
    %879 = vadd.xlane.f32.xlu0 %v878
    %v880 = vpop.xlane.xlu0 %879
    %v881 = vsel %vm337, %v871, 0.0
    %882 = vadd.xlane.f32.xlu0 %v881
    %v883 = vpop.xlane.xlu0 %882
    %v884 = vrcp.pop %v874
    %v885 = vrcp.pop %v877
    %v886 = vrcp.pop %v880
    %v887 = vrcp.pop %v883
    %v888 = vmul.f32 %v865, %v884
    %v889 = vmul.f32 %v867, %v885
    %v890 = vmul.f32 %v869, %v886
    %v891 = vmul.f32 %v871, %v887
    %v892 = vpack.c.bf16 %v889, %v888
    %v893 = vpack.c.bf16 %v891, %v890
    %896 = vrot.lane.b32.xlu0 %v722, 112
    %v897 = vpop.permute.xlu0 %896
    %898 = vrot.lane.b32.xlu0 %v723, 112
    %v899 = vpop.permute.xlu0 %898
    %v903 = vsel %vm337, %v892, 0
    %v906 = vsel %vm337, %v893, 0
    %908 = vmatprep.subr.bf16.mxu0 0
    %909 = vmatpush1.bf16.msra.mxu0 %v897
    %910 = vmatprep.subr.bf16.mxu0 0
    %911 = vmatpush1.bf16.msra.mxu0 %v899
    %912 = vmatprep.subr.bf16.mxu0 0
    %913 = vmatpush1.bf16.msra.mxu0 0
    %914 = vmatprep.subr.bf16.mxu0 0
    %915 = vmatpush1.bf16.msra.mxu0 0
    %916 = vmatprep.subr.bf16.mxu0 0
    %917 = vmatpush1.bf16.msra.mxu0 0
    %918 = vmatprep.subr.bf16.mxu0 0
    %919 = vmatpush1.bf16.msra.mxu0 0
    %920 = vmatprep.subr.bf16.mxu0 0
    %921 = vmatpush1.bf16.msra.mxu0 0
    %922 = vmatprep.subr.bf16.mxu0 0
    %923 = vmatpush1.bf16.msra.mxu0 0
    %924 = vmatprep.subr.bf16.mxu0 0
    %925 = vmatpush1.bf16.msra.mxu0 0
    %926 = vmatprep.subr.bf16.mxu0 0
    %927 = vmatpush1.bf16.msra.mxu0 0
    %928 = vmatprep.subr.bf16.mxu0 0
    %929 = vmatpush1.bf16.msra.mxu0 0
    %930 = vmatprep.subr.bf16.mxu0 0
    %931 = vmatpush1.bf16.msra.mxu0 0
    %932 = vmatprep.subr.bf16.mxu0 0
    %933 = vmatpush1.bf16.msra.mxu0 0
    %934 = vmatprep.subr.bf16.mxu0 0
    %935 = vmatpush1.bf16.msra.mxu0 0
    %936 = vmatprep.subr.bf16.mxu0 0
    %937 = vmatpush1.bf16.msra.mxu0 0
    %938 = vmatprep.subr.bf16.mxu0 0
    %939 = vmatpush1.bf16.msra.mxu0 0
    %940 = vmatprep.mubr.bf16.mxu0 0
    %941 = vmatmul.mubr.bf16.gmra.mrb[0].mxu0 %v903
    %v942 = vpop.f32.mrb[0].mxu0
    %v943 = vadd.f32 0.0, %v942
    %v944 = vpop.f32.mrb[0].mxu0
    %v945 = vpop.f32.mrb[0].mxu0
    %v946 = vadd.f32 0.0, %v945
    %v947 = vpop.f32.mrb[0].mxu0
    %948 = vmatprep.mubr.bf16.mxu0 0
    %949 = vmatmul.mubr.bf16.gmra.mrb[0].mxu0 %v906
    %v950 = vpop.f32.mrb[0].mxu0
    %v951 = vadd.f32 0.0, %v950
    %v952 = vpop.f32.mrb[0].mxu0
    %v953 = vpop.f32.mrb[0].mxu0
    %v954 = vadd.f32 0.0, %v953
    %v955 = vpop.f32.mrb[0].mxu0
    %956 = vdwg.mxu0
    %957 = vrot.lane.b32.xlu0 %v606, 96
    %v958 = vpop.permute.xlu0 %957
    %959 = vrot.lane.b32.xlu0 %v607, 96
    %v960 = vpop.permute.xlu0 %959
    %961 = vrot.lane.b32.xlu0 %v606, 32
    %v962 = vpop.permute.xlu0 %961
    %963 = vrot.lane.b32.xlu0 %v607, 32
    %v964 = vpop.permute.xlu0 %963
    %v966 = vsel %vm614, %v958, 0
    %v969 = vsel %vm614, %v960, 0
    %v972 = vsel %vm614, %v962, 0
    %v975 = vsel %vm614, %v964, 0
    %977 = vmatprep.subr.bf16.mxu0 0
    %978 = vmatpush1.bf16.xpose.msra.mxu0 %v972
    %979 = vmatprep.subr.bf16.mxu0 0
    %980 = vmatpush1.bf16.xpose.msra.mxu0 %v975
    %981 = vmatprep.subr.bf16.mxu0 0
    %982 = vmatpush1.bf16.xpose.msra.mxu0 0
    %983 = vmatprep.subr.bf16.mxu0 0
    %984 = vmatpush1.bf16.xpose.msra.mxu0 0
    %985 = vmatprep.subr.bf16.mxu0 0
    %986 = vmatpush1.bf16.xpose.msra.mxu0 0
    %987 = vmatprep.subr.bf16.mxu0 0
    %988 = vmatpush1.bf16.xpose.msra.mxu0 0
    %989 = vmatprep.subr.bf16.mxu0 0
    %990 = vmatpush1.bf16.xpose.msra.mxu0 0
    %991 = vmatprep.subr.bf16.mxu0 0
    %992 = vmatpush1.bf16.xpose.msra.mxu0 0
    %993 = vmatprep.subr.bf16.mxu0 0
    %994 = vmatpush1.bf16.xpose.msra.mxu0 0
    %995 = vmatprep.subr.bf16.mxu0 0
    %996 = vmatpush1.bf16.xpose.msra.mxu0 0
    %997 = vmatprep.subr.bf16.mxu0 0
    %998 = vmatpush1.bf16.xpose.msra.mxu0 0
    %999 = vmatprep.subr.bf16.mxu0 0
    %1000 = vmatpush1.bf16.xpose.msra.mxu0 0
    %1001 = vmatprep.subr.bf16.mxu0 0
    %1002 = vmatpush1.bf16.xpose.msra.mxu0 0
    %1003 = vmatprep.subr.bf16.mxu0 0
    %1004 = vmatpush1.bf16.xpose.msra.mxu0 0
    %1005 = vmatprep.subr.bf16.mxu0 0
    %1006 = vmatpush1.bf16.xpose.msra.mxu0 0
    %1007 = vmatprep.subr.bf16.mxu0 0
    %1008 = vmatpush1.bf16.xpose.msra.mxu0 0
    %1009 = vmatprep.mubr.bf16.mxu0 0
    %1010 = vmatmul.mubr.bf16.gmra.mrb[0].mxu0 %v966
    %v1011 = vpop.f32.mrb[0].mxu0
    %v1012 = vadd.f32 %v304, %v1011
    %v1013 = vpop.f32.mrb[0].mxu0
    %v1014 = vpop.f32.mrb[0].mxu0
    %v1015 = vadd.f32 %v305, %v1014
    %v1016 = vpop.f32.mrb[0].mxu0
    %1017 = vmatprep.mubr.bf16.mxu0 0
    %1018 = vmatmul.mubr.bf16.gmra.mrb[0].mxu0 %v969
    %v1019 = vpop.f32.mrb[0].mxu0
    %v1020 = vadd.f32 %v306, %v1019
    %v1021 = vpop.f32.mrb[0].mxu0
    %v1022 = vpop.f32.mrb[0].mxu0
    %v1023 = vadd.f32 %v307, %v1022
    %v1024 = vpop.f32.mrb[0].mxu0
    %1025 = vdwg.mxu0
    %v1026 = vsel %vm337, %v1012, -inf
    %1027 = vmax.xlane.f32.xlu0 %v1026
    %v1028 = vpop.xlane.xlu0 %1027
    %v1029 = vsel %vm337, %v1015, -inf
    %1030 = vmax.xlane.f32.xlu0 %v1029
    %v1031 = vpop.xlane.xlu0 %1030
    %v1032 = vsel %vm337, %v1020, -inf
    %1033 = vmax.xlane.f32.xlu0 %v1032
    %v1034 = vpop.xlane.xlu0 %1033
    %v1035 = vsel %vm337, %v1023, -inf
    %1036 = vmax.xlane.f32.xlu0 %v1035
    %v1037 = vpop.xlane.xlu0 %1036
    %v1038 = vsub.f32 %v1012, %v1028
    %v1039 = vsub.f32 %v1015, %v1031
    %v1040 = vsub.f32 %v1020, %v1034
    %v1041 = vsub.f32 %v1023, %v1037
    %v1042 = vmul.f32 %v1038, 1.442695
    %v1043 = vpow.pop %v1042
    %v1044 = vmul.f32 %v1039, 1.442695
    %v1045 = vpow.pop %v1044
    %v1046 = vmul.f32 %v1040, 1.442695
    %v1047 = vpow.pop %v1046
    %v1048 = vmul.f32 %v1041, 1.442695
    %v1049 = vpow.pop %v1048
    %v1050 = vsel %vm337, %v1043, 0.0
    %1051 = vadd.xlane.f32.xlu0 %v1050
    %v1052 = vpop.xlane.xlu0 %1051
    %v1053 = vsel %vm337, %v1045, 0.0
    %1054 = vadd.xlane.f32.xlu0 %v1053
    %v1055 = vpop.xlane.xlu0 %1054
    %v1056 = vsel %vm337, %v1047, 0.0
    %1057 = vadd.xlane.f32.xlu0 %v1056
    %v1058 = vpop.xlane.xlu0 %1057
    %v1059 = vsel %vm337, %v1049, 0.0
    %1060 = vadd.xlane.f32.xlu0 %v1059
    %v1061 = vpop.xlane.xlu0 %1060
    %v1062 = vrcp.pop %v1052
    %v1063 = vrcp.pop %v1055
    %v1064 = vrcp.pop %v1058
    %v1065 = vrcp.pop %v1061
    %v1066 = vmul.f32 %v1043, %v1062
    %v1067 = vmul.f32 %v1045, %v1063
    %v1068 = vmul.f32 %v1047, %v1064
    %v1069 = vmul.f32 %v1049, %v1065
    %v1070 = vpack.c.bf16 %v1067, %v1066
    %v1071 = vpack.c.bf16 %v1069, %v1068
    %1072 = vrot.lane.b32.xlu0 %v722, 96
    %v1073 = vpop.permute.xlu0 %1072
    %1074 = vrot.lane.b32.xlu0 %v723, 96
    %v1075 = vpop.permute.xlu0 %1074
    %v1079 = vsel %vm337, %v1070, 0
    %v1082 = vsel %vm337, %v1071, 0
    %1084 = vmatprep.subr.bf16.mxu0 0
    %1085 = vmatpush1.bf16.msra.mxu0 %v1073
    %1086 = vmatprep.subr.bf16.mxu0 0
    %1087 = vmatpush1.bf16.msra.mxu0 %v1075
    %1088 = vmatprep.subr.bf16.mxu0 0
    %1089 = vmatpush1.bf16.msra.mxu0 0
    %1090 = vmatprep.subr.bf16.mxu0 0
    %1091 = vmatpush1.bf16.msra.mxu0 0
    %1092 = vmatprep.subr.bf16.mxu0 0
    %1093 = vmatpush1.bf16.msra.mxu0 0
    %1094 = vmatprep.subr.bf16.mxu0 0
    %1095 = vmatpush1.bf16.msra.mxu0 0
    %1096 = vmatprep.subr.bf16.mxu0 0
    %1097 = vmatpush1.bf16.msra.mxu0 0
    %1098 = vmatprep.subr.bf16.mxu0 0
    %1099 = vmatpush1.bf16.msra.mxu0 0
    %1100 = vmatprep.subr.bf16.mxu0 0
    %1101 = vmatpush1.bf16.msra.mxu0 0
    %1102 = vmatprep.subr.bf16.mxu0 0
    %1103 = vmatpush1.bf16.msra.mxu0 0
    %1104 = vmatprep.subr.bf16.mxu0 0
    %1105 = vmatpush1.bf16.msra.mxu0 0
    %1106 = vmatprep.subr.bf16.mxu0 0
    %1107 = vmatpush1.bf16.msra.mxu0 0
    %1108 = vmatprep.subr.bf16.mxu0 0
    %1109 = vmatpush1.bf16.msra.mxu0 0
    %1110 = vmatprep.subr.bf16.mxu0 0
    %1111 = vmatpush1.bf16.msra.mxu0 0
    %1112 = vmatprep.subr.bf16.mxu0 0
    %1113 = vmatpush1.bf16.msra.mxu0 0
    %1114 = vmatprep.subr.bf16.mxu0 0
    %1115 = vmatpush1.bf16.msra.mxu0 0
    %1116 = vmatprep.mubr.bf16.mxu0 0
    %1117 = vmatmul.mubr.bf16.gmra.mrb[0].mxu0 %v1079
    %v1118 = vpop.f32.mrb[0].mxu0
    %v1119 = vadd.f32 0.0, %v1118
    %v1120 = vpop.f32.mrb[0].mxu0
    %v1121 = vpop.f32.mrb[0].mxu0
    %v1122 = vadd.f32 0.0, %v1121
    %v1123 = vpop.f32.mrb[0].mxu0
    %1124 = vmatprep.mubr.bf16.mxu0 0
    %1125 = vmatmul.mubr.bf16.gmra.mrb[0].mxu0 %v1082
    %v1126 = vpop.f32.mrb[0].mxu0
    %v1127 = vadd.f32 0.0, %v1126
    %v1128 = vpop.f32.mrb[0].mxu0
    %v1129 = vpop.f32.mrb[0].mxu0
    %v1130 = vadd.f32 0.0, %v1129
    %v1131 = vpop.f32.mrb[0].mxu0
    %1132 = vdwg.mxu0
    %1133 = vrot.lane.b32.xlu0 %v606, 80
    %v1134 = vpop.permute.xlu0 %1133
    %1135 = vrot.lane.b32.xlu0 %v607, 80
    %v1136 = vpop.permute.xlu0 %1135
    %1137 = vrot.lane.b32.xlu0 %v606, 16
    %v1138 = vpop.permute.xlu0 %1137
    %1139 = vrot.lane.b32.xlu0 %v607, 16
    %v1140 = vpop.permute.xlu0 %1139
    %v1142 = vsel %vm614, %v1134, 0
    %v1145 = vsel %vm614, %v1136, 0
    %v1148 = vsel %vm614, %v1138, 0
    %v1151 = vsel %vm614, %v1140, 0
    %1153 = vmatprep.subr.bf16.mxu0 0
    %1154 = vmatpush1.bf16.xpose.msra.mxu0 %v1148
    %1155 = vmatprep.subr.bf16.mxu0 0
    %1156 = vmatpush1.bf16.xpose.msra.mxu0 %v1151
    %1157 = vmatprep.subr.bf16.mxu0 0
    %1158 = vmatpush1.bf16.xpose.msra.mxu0 0
    %1159 = vmatprep.subr.bf16.mxu0 0
    %1160 = vmatpush1.bf16.xpose.msra.mxu0 0
    %1161 = vmatprep.subr.bf16.mxu0 0
    %1162 = vmatpush1.bf16.xpose.msra.mxu0 0
    %1163 = vmatprep.subr.bf16.mxu0 0
    %1164 = vmatpush1.bf16.xpose.msra.mxu0 0
    %1165 = vmatprep.subr.bf16.mxu0 0
    %1166 = vmatpush1.bf16.xpose.msra.mxu0 0
    %1167 = vmatprep.subr.bf16.mxu0 0
    %1168 = vmatpush1.bf16.xpose.msra.mxu0 0
    %1169 = vmatprep.subr.bf16.mxu0 0
    %1170 = vmatpush1.bf16.xpose.msra.mxu0 0
    %1171 = vmatprep.subr.bf16.mxu0 0
    %1172 = vmatpush1.bf16.xpose.msra.mxu0 0
    %1173 = vmatprep.subr.bf16.mxu0 0
    %1174 = vmatpush1.bf16.xpose.msra.mxu0 0
    %1175 = vmatprep.subr.bf16.mxu0 0
    %1176 = vmatpush1.bf16.xpose.msra.mxu0 0
    %1177 = vmatprep.subr.bf16.mxu0 0
    %1178 = vmatpush1.bf16.xpose.msra.mxu0 0
    %1179 = vmatprep.subr.bf16.mxu0 0
    %1180 = vmatpush1.bf16.xpose.msra.mxu0 0
    %1181 = vmatprep.subr.bf16.mxu0 0
    %1182 = vmatpush1.bf16.xpose.msra.mxu0 0
    %1183 = vmatprep.subr.bf16.mxu0 0
    %1184 = vmatpush1.bf16.xpose.msra.mxu0 0
    %1185 = vmatprep.mubr.bf16.mxu0 0
    %1186 = vmatmul.mubr.bf16.gmra.mrb[0].mxu0 %v1142
    %v1187 = vpop.f32.mrb[0].mxu0
    %v1188 = vadd.f32 %v304, %v1187
    %v1189 = vpop.f32.mrb[0].mxu0
    %v1190 = vpop.f32.mrb[0].mxu0
    %v1191 = vadd.f32 %v305, %v1190
    %v1192 = vpop.f32.mrb[0].mxu0
    %1193 = vmatprep.mubr.bf16.mxu0 0
    %1194 = vmatmul.mubr.bf16.gmra.mrb[0].mxu0 %v1145
    %v1195 = vpop.f32.mrb[0].mxu0
    %v1196 = vadd.f32 %v306, %v1195
    %v1197 = vpop.f32.mrb[0].mxu0
    %v1198 = vpop.f32.mrb[0].mxu0
    %v1199 = vadd.f32 %v307, %v1198
    %v1200 = vpop.f32.mrb[0].mxu0
    %1201 = vdwg.mxu0
    %v1202 = vsel %vm337, %v1188, -inf
    %1203 = vmax.xlane.f32.xlu0 %v1202
    %v1204 = vpop.xlane.xlu0 %1203
    %v1205 = vsel %vm337, %v1191, -inf
    %1206 = vmax.xlane.f32.xlu0 %v1205
    %v1207 = vpop.xlane.xlu0 %1206
    %v1208 = vsel %vm337, %v1196, -inf
    %1209 = vmax.xlane.f32.xlu0 %v1208
    %v1210 = vpop.xlane.xlu0 %1209
    %v1211 = vsel %vm337, %v1199, -inf
    %1212 = vmax.xlane.f32.xlu0 %v1211
    %v1213 = vpop.xlane.xlu0 %1212
    %v1214 = vsub.f32 %v1188, %v1204
    %v1215 = vsub.f32 %v1191, %v1207
    %v1216 = vsub.f32 %v1196, %v1210
    %v1217 = vsub.f32 %v1199, %v1213
    %v1218 = vmul.f32 %v1214, 1.442695
    %v1219 = vpow.pop %v1218
    %v1220 = vmul.f32 %v1215, 1.442695
    %v1221 = vpow.pop %v1220
    %v1222 = vmul.f32 %v1216, 1.442695
    %v1223 = vpow.pop %v1222
    %v1224 = vmul.f32 %v1217, 1.442695
    %v1225 = vpow.pop %v1224
    %v1226 = vsel %vm337, %v1219, 0.0
    %1227 = vadd.xlane.f32.xlu0 %v1226
    %v1228 = vpop.xlane.xlu0 %1227
    %v1229 = vsel %vm337, %v1221, 0.0
    %1230 = vadd.xlane.f32.xlu0 %v1229
    %v1231 = vpop.xlane.xlu0 %1230
    %v1232 = vsel %vm337, %v1223, 0.0
    %1233 = vadd.xlane.f32.xlu0 %v1232
    %v1234 = vpop.xlane.xlu0 %1233
    %v1235 = vsel %vm337, %v1225, 0.0
    %1236 = vadd.xlane.f32.xlu0 %v1235
    %v1237 = vpop.xlane.xlu0 %1236
    %v1238 = vrcp.pop %v1228
    %v1239 = vrcp.pop %v1231
    %v1240 = vrcp.pop %v1234
    %v1241 = vrcp.pop %v1237
    %v1242 = vmul.f32 %v1219, %v1238
    %v1243 = vmul.f32 %v1221, %v1239
    %v1244 = vmul.f32 %v1223, %v1240
    %v1245 = vmul.f32 %v1225, %v1241
    %v1246 = vpack.c.bf16 %v1243, %v1242
    %v1247 = vpack.c.bf16 %v1245, %v1244
    %1248 = vrot.lane.b32.xlu0 %v722, 80
    %v1249 = vpop.permute.xlu0 %1248
    %1250 = vrot.lane.b32.xlu0 %v723, 80
    %v1251 = vpop.permute.xlu0 %1250
    %v1255 = vsel %vm337, %v1246, 0
    %v1258 = vsel %vm337, %v1247, 0
    %1260 = vmatprep.subr.bf16.mxu0 0
    %1261 = vmatpush1.bf16.msra.mxu0 %v1249
    %1262 = vmatprep.subr.bf16.mxu0 0
    %1263 = vmatpush1.bf16.msra.mxu0 %v1251
    %1264 = vmatprep.subr.bf16.mxu0 0
    %1265 = vmatpush1.bf16.msra.mxu0 0
    %1266 = vmatprep.subr.bf16.mxu0 0
    %1267 = vmatpush1.bf16.msra.mxu0 0
    %1268 = vmatprep.subr.bf16.mxu0 0
    %1269 = vmatpush1.bf16.msra.mxu0 0
    %1270 = vmatprep.subr.bf16.mxu0 0
    %1271 = vmatpush1.bf16.msra.mxu0 0
    %1272 = vmatprep.subr.bf16.mxu0 0
    %1273 = vmatpush1.bf16.msra.mxu0 0
    %1274 = vmatprep.subr.bf16.mxu0 0
    %1275 = vmatpush1.bf16.msra.mxu0 0
    %1276 = vmatprep.subr.bf16.mxu0 0
    %1277 = vmatpush1.bf16.msra.mxu0 0
    %1278 = vmatprep.subr.bf16.mxu0 0
    %1279 = vmatpush1.bf16.msra.mxu0 0
    %1280 = vmatprep.subr.bf16.mxu0 0
    %1281 = vmatpush1.bf16.msra.mxu0 0
    %1282 = vmatprep.subr.bf16.mxu0 0
    %1283 = vmatpush1.bf16.msra.mxu0 0
    %1284 = vmatprep.subr.bf16.mxu0 0
    %1285 = vmatpush1.bf16.msra.mxu0 0
    %1286 = vmatprep.subr.bf16.mxu0 0
    %1287 = vmatpush1.bf16.msra.mxu0 0
    %1288 = vmatprep.subr.bf16.mxu0 0
    %1289 = vmatpush1.bf16.msra.mxu0 0
    %1290 = vmatprep.subr.bf16.mxu0 0
    %1291 = vmatpush1.bf16.msra.mxu0 0
    %1292 = vmatprep.mubr.bf16.mxu0 0
    %1293 = vmatmul.mubr.bf16.gmra.mrb[0].mxu0 %v1255
    %v1294 = vpop.f32.mrb[0].mxu0
    %v1295 = vadd.f32 0.0, %v1294
    %v1296 = vpop.f32.mrb[0].mxu0
    %v1297 = vpop.f32.mrb[0].mxu0
    %v1298 = vadd.f32 0.0, %v1297
    %v1299 = vpop.f32.mrb[0].mxu0
    %1300 = vmatprep.mubr.bf16.mxu0 0
    %1301 = vmatmul.mubr.bf16.gmra.mrb[0].mxu0 %v1258
    %v1302 = vpop.f32.mrb[0].mxu0
    %v1303 = vadd.f32 0.0, %v1302
    %v1304 = vpop.f32.mrb[0].mxu0
    %v1305 = vpop.f32.mrb[0].mxu0
    %v1306 = vadd.f32 0.0, %v1305
    %v1307 = vpop.f32.mrb[0].mxu0
    %1308 = vdwg.mxu0
    %1313 = vrot.lane.b32.xlu0 %v943, 16
    %v1314 = vpop.permute.xlu0 %1313
    %1315 = vrot.lane.b32.xlu0 %v946, 16
    %v1316 = vpop.permute.xlu0 %1315
    %1317 = vrot.lane.b32.xlu0 %v951, 16
    %v1318 = vpop.permute.xlu0 %1317
    %1319 = vrot.lane.b32.xlu0 %v954, 16
    %v1320 = vpop.permute.xlu0 %1319
    %1329 = vrot.lane.b32.xlu0 %v1119, 32
    %v1330 = vpop.permute.xlu0 %1329
    %1331 = vrot.lane.b32.xlu0 %v1122, 32
    %v1332 = vpop.permute.xlu0 %1331
    %1333 = vrot.lane.b32.xlu0 %v1127, 32
    %v1334 = vpop.permute.xlu0 %1333
    %1335 = vrot.lane.b32.xlu0 %v1130, 32
    %v1336 = vpop.permute.xlu0 %1335
    %1345 = vrot.lane.b32.xlu0 %v1295, 48
    %v1346 = vpop.permute.xlu0 %1345
    %1347 = vrot.lane.b32.xlu0 %v1298, 48
    %v1348 = vpop.permute.xlu0 %1347
    %1349 = vrot.lane.b32.xlu0 %v1303, 48
    %v1350 = vpop.permute.xlu0 %1349
    %1351 = vrot.lane.b32.xlu0 %v1306, 48
    %v1352 = vpop.permute.xlu0 %1351
    %v1357 = vsel %vm614, %v765, %v1314
    %v1358 = vsel %vm614, %v768, %v1316
    %v1359 = vsel %vm614, %v773, %v1318
    %v1360 = vsel %vm614, %v776, %v1320
    %v1361 = vsel %vm337, %v1357, %v1330
    %v1362 = vsel %vm337, %v1358, %v1332
    %v1363 = vsel %vm337, %v1359, %v1334
    %v1364 = vsel %vm337, %v1360, %v1336
    %vm1365 = vcmask 392192
    %v1366 = vsel %vm1365, %v1361, %v1346
    %v1367 = vsel %vm1365, %v1362, %v1348
    %v1368 = vsel %vm1365, %v1363, %v1350
    %v1369 = vsel %vm1365, %v1364, %v1352
    %v1370 = vld [vmem:[%s9] sm:$0xf]
    %v1371 = vld [vmem:[%s9 + $0x4] sm:$0xf]
    %v1372 = vld [vmem:[%s9 + $0x8] sm:$0xf]
    %v1373 = vld [vmem:[%s9 + $0xc] sm:$0xf]
    %v1374 = vld [vmem:[%s9 + $0x10] sm:$0xf]
    %v1375 = vld [vmem:[%s9 + $0x14] sm:$0xf]
    %v1376 = vld [vmem:[%s9 + $0x18] sm:$0xf]
    %v1377 = vld [vmem:[%s9 + $0x1c] sm:$0xf]
    %v1378 = vpack.c.bf16 %v1367, %v1366
    %v1379 = vpack.c.bf16 %v1369, %v1368
    %v1388 = vunpack.c.l.b16 %v1370
    %v1389 = vunpack.c.l.b16 %v1371
    %v1390 = vunpack.c.l.b16 %v1372
    %v1391 = vunpack.c.l.b16 %v1373
    %v1392 = vunpack.c.l.b16 %v1374
    %v1393 = vunpack.c.l.b16 %v1375
    %v1394 = vunpack.c.l.b16 %v1376
    %v1395 = vunpack.c.l.b16 %v1377
    %v1396 = vpack.c.b16 %v1389, %v1388
    %v1397 = vpack.c.b16 %v1391, %v1390
    %v1398 = vpack.c.b16 %v1393, %v1392
    %v1399 = vpack.c.b16 %v1395, %v1394
    %v1405 = vsel %vm423, %v1378, 0
    %v1408 = vsel %vm423, %v1379, 0
    %1410 = vmatprep.subr.bf16.mxu0 0
    %1411 = vmatpush1.bf16.msra.mxu0 %v1396
    %1412 = vmatprep.subr.bf16.mxu0 0
    %1413 = vmatpush1.bf16.msra.mxu0 %v1397
    %1414 = vmatprep.subr.bf16.mxu0 0
    %1415 = vmatpush1.bf16.msra.mxu0 %v1398
    %1416 = vmatprep.subr.bf16.mxu0 0
    %1417 = vmatpush1.bf16.msra.mxu0 %v1399
    %1418 = vmatprep.subr.bf16.mxu0 0
    %1419 = vmatpush1.bf16.msra.mxu0 0
    %1420 = vmatprep.subr.bf16.mxu0 0
    %1421 = vmatpush1.bf16.msra.mxu0 0
    %1422 = vmatprep.subr.bf16.mxu0 0
    %1423 = vmatpush1.bf16.msra.mxu0 0
    %1424 = vmatprep.subr.bf16.mxu0 0
    %1425 = vmatpush1.bf16.msra.mxu0 0
    %1426 = vmatprep.subr.bf16.mxu0 0
    %1427 = vmatpush1.bf16.msra.mxu0 0
    %1428 = vmatprep.subr.bf16.mxu0 0
    %1429 = vmatpush1.bf16.msra.mxu0 0
    %1430 = vmatprep.subr.bf16.mxu0 0
    %1431 = vmatpush1.bf16.msra.mxu0 0
    %1432 = vmatprep.subr.bf16.mxu0 0
    %1433 = vmatpush1.bf16.msra.mxu0 0
    %1434 = vmatprep.subr.bf16.mxu0 0
    %1435 = vmatpush1.bf16.msra.mxu0 0
    %1436 = vmatprep.subr.bf16.mxu0 0
    %1437 = vmatpush1.bf16.msra.mxu0 0
    %1438 = vmatprep.subr.bf16.mxu0 0
    %1439 = vmatpush1.bf16.msra.mxu0 0
    %1440 = vmatprep.subr.bf16.mxu0 0
    %1441 = vmatpush1.bf16.msra.mxu0 0
    %1442 = vmatprep.mubr.bf16.mxu0 0
    %1443 = vmatmul.mubr.bf16.gmra.mrb[0].mxu0 %v1405
    %v1444 = vpop.f32.mrb[0].mxu0
    %v1445 = vadd.f32 0.0, %v1444
    %v1446 = vpop.f32.mrb[0].mxu0
    %v1447 = vpop.f32.mrb[0].mxu0
    %v1448 = vadd.f32 0.0, %v1447
    %v1449 = vpop.f32.mrb[0].mxu0
    %1450 = vmatprep.mubr.bf16.mxu0 0
    %1451 = vmatmul.mubr.bf16.gmra.mrb[0].mxu0 %v1408
    %v1452 = vpop.f32.mrb[0].mxu0
    %v1453 = vadd.f32 0.0, %v1452
    %v1454 = vpop.f32.mrb[0].mxu0
    %v1455 = vpop.f32.mrb[0].mxu0
    %v1456 = vadd.f32 0.0, %v1455
    %v1457 = vpop.f32.mrb[0].mxu0
    %1458 = vdwg.mxu0
    %v1459 = vadd.f32 %v417, %v1445
    %v1460 = vadd.f32 %v418, %v1448
    %v1461 = vadd.f32 %v419, %v1453
    %v1462 = vadd.f32 %v420, %v1456
    %v1463 = vld [vmem:[#allocation9] sm:$0x1]
    %v1465 = vlaneseq
    %v1466 = vshrl.u32 %v1465, 7
    %v1467 = vsub.s32 0, %v1466
    %v1468 = vrot.slane %v1463, %v1467
    %v1470 = vadd.f32 %v1459, %v1468
    %v1471 = vadd.f32 %v1460, %v1468
    %v1472 = vadd.f32 %v1461, %v1468
    %v1473 = vadd.f32 %v1462, %v1468
    %v1474 = vld [vmem:[#allocation11] sm:$0x1]
    %v1475 = vld [vmem:[#allocation12] sm:$0x1]
    %v1476 = vsel %vm423, %v1470, 0.0
    %1477 = vadd.xlane.f32.xlu0 %v1476
    %v1478 = vpop.xlane.xlu0 %1477
    %v1479 = vsel %vm423, %v1471, 0.0
    %1480 = vadd.xlane.f32.xlu0 %v1479
    %v1481 = vpop.xlane.xlu0 %1480
    %v1482 = vsel %vm423, %v1472, 0.0
    %1483 = vadd.xlane.f32.xlu0 %v1482
    %v1484 = vpop.xlane.xlu0 %1483
    %v1485 = vsel %vm423, %v1473, 0.0
    %1486 = vadd.xlane.f32.xlu0 %v1485
    %v1487 = vpop.xlane.xlu0 %1486
    %v1488 = vmul.f32 %v1478, %v436
    %v1489 = vmul.f32 %v1481, %v436
    %v1490 = vmul.f32 %v1484, %v436
    %v1491 = vmul.f32 %v1487, %v436
    %v1492 = vsub.f32 %v1470, %v1488
    %v1493 = vsub.f32 %v1471, %v1489
    %v1494 = vsub.f32 %v1472, %v1490
    %v1495 = vsub.f32 %v1473, %v1491
    %v1496 = vmul.f32 %v1492, %v1492
    %v1497 = vmul.f32 %v1493, %v1493
    %v1498 = vmul.f32 %v1494, %v1494
    %v1499 = vmul.f32 %v1495, %v1495
    %v1500 = vsel %vm423, %v1496, 0.0
    %1501 = vadd.xlane.f32.xlu0 %v1500
    %v1502 = vpop.xlane.xlu0 %1501
    %v1503 = vsel %vm423, %v1497, 0.0
    %1504 = vadd.xlane.f32.xlu0 %v1503
    %v1505 = vpop.xlane.xlu0 %1504
    %v1506 = vsel %vm423, %v1498, 0.0
    %1507 = vadd.xlane.f32.xlu0 %v1506
    %v1508 = vpop.xlane.xlu0 %1507
    %v1509 = vsel %vm423, %v1499, 0.0
    %1510 = vadd.xlane.f32.xlu0 %v1509
    %v1511 = vpop.xlane.xlu0 %1510
    %v1512 = vmul.f32 %v1502, %v436
    %v1513 = vmul.f32 %v1505, %v436
    %v1514 = vmul.f32 %v1508, %v436
    %v1515 = vmul.f32 %v1511, %v436
    %v1516 = vadd.f32 %v1512, 1e-05
    %v1517 = vadd.f32 %v1513, 1e-05
    %v1518 = vadd.f32 %v1514, 1e-05
    %v1519 = vadd.f32 %v1515, 1e-05
    %v1520 = vrsqrt.pop %v1516
    %v1521 = vrsqrt.pop %v1517
    %v1522 = vrsqrt.pop %v1518
    %v1523 = vrsqrt.pop %v1519
    %v1524 = vmul.f32 %v1492, %v1520
    %v1525 = vmul.f32 %v1493, %v1521
    %v1526 = vmul.f32 %v1494, %v1522
    %v1527 = vmul.f32 %v1495, %v1523
    %v1529 = vlaneseq
    %v1530 = vshrl.u32 %v1529, 7
    %v1531 = vsub.s32 0, %v1530
    %v1532 = vrot.slane %v1474, %v1531
    %v1534 = vmul.f32 %v1524, %v1532
    %v1535 = vmul.f32 %v1525, %v1532
    %v1536 = vmul.f32 %v1526, %v1532
    %v1537 = vmul.f32 %v1527, %v1532
    %v1539 = vlaneseq
    %v1540 = vshrl.u32 %v1539, 7
    %v1541 = vsub.s32 0, %v1540
    %v1542 = vrot.slane %v1475, %v1541
    %v1544 = vadd.f32 %v1534, %v1542
    %v1545 = vadd.f32 %v1535, %v1542
    %v1546 = vadd.f32 %v1536, %v1542
    %v1547 = vadd.f32 %v1537, %v1542
    %v1548 = vld [vmem:[#allocation14] sm:$0xf]
    %v1549 = vld [vmem:[#allocation14 + $0x4] sm:$0xf]
    %v1550 = vld [vmem:[#allocation14 + $0x8] sm:$0xf]
    %v1551 = vld [vmem:[#allocation14 + $0xc] sm:$0xf]
    %v1552 = vld [vmem:[#allocation14 + $0x10] sm:$0xf]
    %v1553 = vld [vmem:[#allocation14 + $0x14] sm:$0xf]
    %v1554 = vld [vmem:[#allocation14 + $0x18] sm:$0xf]
    %v1555 = vld [vmem:[#allocation14 + $0x1c] sm:$0xf]
    %v1556 = vpack.c.bf16 %v1545, %v1544
    %v1557 = vpack.c.bf16 %v1547, %v1546
    %v1558 = vld [vmem:[#allocation15] sm:$0x1]
    %v1560 = vlaneseq
    %v1561 = vshrl.u32 %v1560, 7
    %v1562 = vsub.s32 0, %v1561
    %v1563 = vrot.slane %v1558, %v1562
    %v1573 = vunpack.c.l.b16 %v1548
    %v1574 = vunpack.c.l.b16 %v1549
    %v1575 = vunpack.c.l.b16 %v1550
    %v1576 = vunpack.c.l.b16 %v1551
    %v1577 = vunpack.c.l.b16 %v1552
    %v1578 = vunpack.c.l.b16 %v1553
    %v1579 = vunpack.c.l.b16 %v1554
    %v1580 = vunpack.c.l.b16 %v1555
    %v1581 = vpack.c.b16 %v1574, %v1573
    %v1582 = vpack.c.b16 %v1576, %v1575
    %v1583 = vpack.c.b16 %v1578, %v1577
    %v1584 = vpack.c.b16 %v1580, %v1579
    %v1590 = vsel %vm423, %v1556, 0
    %v1593 = vsel %vm423, %v1557, 0
    %1595 = vmatprep.subr.bf16.mxu0 0
    %1596 = vmatpush1.bf16.msra.mxu0 %v1581
    %1597 = vmatprep.subr.bf16.mxu0 0
    %1598 = vmatpush1.bf16.msra.mxu0 %v1582
    %1599 = vmatprep.subr.bf16.mxu0 0
    %1600 = vmatpush1.bf16.msra.mxu0 %v1583
    %1601 = vmatprep.subr.bf16.mxu0 0
    %1602 = vmatpush1.bf16.msra.mxu0 %v1584
    %1603 = vmatprep.subr.bf16.mxu0 0
    %1604 = vmatpush1.bf16.msra.mxu0 0
    %1605 = vmatprep.subr.bf16.mxu0 0
    %1606 = vmatpush1.bf16.msra.mxu0 0
    %1607 = vmatprep.subr.bf16.mxu0 0
    %1608 = vmatpush1.bf16.msra.mxu0 0
    %1609 = vmatprep.subr.bf16.mxu0 0
    %1610 = vmatpush1.bf16.msra.mxu0 0
    %1611 = vmatprep.subr.bf16.mxu0 0
    %1612 = vmatpush1.bf16.msra.mxu0 0
    %1613 = vmatprep.subr.bf16.mxu0 0
    %1614 = vmatpush1.bf16.msra.mxu0 0
    %1615 = vmatprep.subr.bf16.mxu0 0
    %1616 = vmatpush1.bf16.msra.mxu0 0
    %1617 = vmatprep.subr.bf16.mxu0 0
    %1618 = vmatpush1.bf16.msra.mxu0 0
    %1619 = vmatprep.subr.bf16.mxu0 0
    %1620 = vmatpush1.bf16.msra.mxu0 0
    %1621 = vmatprep.subr.bf16.mxu0 0
    %1622 = vmatpush1.bf16.msra.mxu0 0
    %1623 = vmatprep.subr.bf16.mxu0 0
    %1624 = vmatpush1.bf16.msra.mxu0 0
    %1625 = vmatprep.subr.bf16.mxu0 0
    %1626 = vmatpush1.bf16.msra.mxu0 0
    %1627 = vmatprep.mubr.bf16.mxu0 0
    %1628 = vmatmul.mubr.bf16.gmra.mrb[0].mxu0 %v1590
    %v1629 = vpop.f32.mrb[0].mxu0
    %v1630 = vadd.f32 %v1563, %v1629
    %v1631 = vpop.f32.mrb[0].mxu0
    %v1632 = vpop.f32.mrb[0].mxu0
    %v1633 = vadd.f32 %v1563, %v1632
    %v1634 = vpop.f32.mrb[0].mxu0
    %1635 = vmatprep.mubr.bf16.mxu0 0
    %1636 = vmatmul.mubr.bf16.gmra.mrb[0].mxu0 %v1593
    %v1637 = vpop.f32.mrb[0].mxu0
    %v1638 = vadd.f32 %v1563, %v1637
    %v1639 = vpop.f32.mrb[0].mxu0
    %v1640 = vpop.f32.mrb[0].mxu0
    %v1641 = vadd.f32 %v1563, %v1640
    %v1642 = vpop.f32.mrb[0].mxu0
    %1643 = vdwg.mxu0
    %v1644 = vmul.f32 %v1630, %v1630
    %v1645 = vmul.f32 %v1633, %v1633
    %v1646 = vmul.f32 %v1638, %v1638
    %v1647 = vmul.f32 %v1641, %v1641
    %v1648 = vmul.f32 %v1630, %v1644
    %v1649 = vmul.f32 %v1633, %v1645
    %v1650 = vmul.f32 %v1638, %v1646
    %v1651 = vmul.f32 %v1641, %v1647
    %v1652 = vmul.f32 %v1648, 0.044715
    %v1653 = vmul.f32 %v1649, 0.044715
    %v1654 = vmul.f32 %v1650, 0.044715
    %v1655 = vmul.f32 %v1651, 0.044715
    %v1656 = vadd.f32 %v1630, %v1652
    %v1657 = vadd.f32 %v1633, %v1653
    %v1658 = vadd.f32 %v1638, %v1654
    %v1659 = vadd.f32 %v1641, %v1655
    %v1660 = vmul.f32 %v1656, 0.7978846
    %v1661 = vmul.f32 %v1657, 0.7978846
    %v1662 = vmul.f32 %v1658, 0.7978846
    %v1663 = vmul.f32 %v1659, 0.7978846
    %v1664 = vtanh.pop %v1660
    %v1665 = vtanh.pop %v1661
    %v1666 = vtanh.pop %v1662
    %v1667 = vtanh.pop %v1663
    %v1668 = vadd.f32 %v1664, 1.0
    %v1669 = vadd.f32 %v1665, 1.0
    %v1670 = vadd.f32 %v1666, 1.0
    %v1671 = vadd.f32 %v1667, 1.0
    %v1672 = vmul.f32 %v1668, 0.5
    %v1673 = vmul.f32 %v1669, 0.5
    %v1674 = vmul.f32 %v1670, 0.5
    %v1675 = vmul.f32 %v1671, 0.5
    %v1676 = vmul.f32 %v1630, %v1672
    %v1677 = vmul.f32 %v1633, %v1673
    %v1678 = vmul.f32 %v1638, %v1674
    %v1679 = vmul.f32 %v1641, %v1675
    %v1680 = vld [vmem:[#allocation17] sm:$0xf]
    %v1681 = vld [vmem:[#allocation17 + $0x4] sm:$0xf]
    %v1682 = vld [vmem:[#allocation17 + $0x8] sm:$0xf]
    %v1683 = vld [vmem:[#allocation17 + $0xc] sm:$0xf]
    %v1684 = vld [vmem:[#allocation17 + $0x10] sm:$0xf]
    %v1685 = vld [vmem:[#allocation17 + $0x14] sm:$0xf]
    %v1686 = vld [vmem:[#allocation17 + $0x18] sm:$0xf]
    %v1687 = vld [vmem:[#allocation17 + $0x1c] sm:$0xf]
    %v1688 = vpack.c.bf16 %v1677, %v1676
    %v1689 = vpack.c.bf16 %v1679, %v1678
    %v1698 = vunpack.c.l.b16 %v1680
    %v1699 = vunpack.c.l.b16 %v1681
    %v1700 = vunpack.c.l.b16 %v1682
    %v1701 = vunpack.c.l.b16 %v1683
    %v1702 = vunpack.c.l.b16 %v1684
    %v1703 = vunpack.c.l.b16 %v1685
    %v1704 = vunpack.c.l.b16 %v1686
    %v1705 = vunpack.c.l.b16 %v1687
    %v1706 = vpack.c.b16 %v1699, %v1698
    %v1707 = vpack.c.b16 %v1701, %v1700
    %v1708 = vpack.c.b16 %v1703, %v1702
    %v1709 = vpack.c.b16 %v1705, %v1704
    %v1715 = vsel %vm423, %v1688, 0
    %v1718 = vsel %vm423, %v1689, 0
    %1720 = vmatprep.subr.bf16.mxu0 0
    %1721 = vmatpush1.bf16.msra.mxu0 %v1706
    %1722 = vmatprep.subr.bf16.mxu0 0
    %1723 = vmatpush1.bf16.msra.mxu0 %v1707
    %1724 = vmatprep.subr.bf16.mxu0 0
    %1725 = vmatpush1.bf16.msra.mxu0 %v1708
    %1726 = vmatprep.subr.bf16.mxu0 0
    %1727 = vmatpush1.bf16.msra.mxu0 %v1709
    %1728 = vmatprep.subr.bf16.mxu0 0
    %1729 = vmatpush1.bf16.msra.mxu0 0
    %1730 = vmatprep.subr.bf16.mxu0 0
    %1731 = vmatpush1.bf16.msra.mxu0 0
    %1732 = vmatprep.subr.bf16.mxu0 0
    %1733 = vmatpush1.bf16.msra.mxu0 0
    %1734 = vmatprep.subr.bf16.mxu0 0
    %1735 = vmatpush1.bf16.msra.mxu0 0
    %1736 = vmatprep.subr.bf16.mxu0 0
    %1737 = vmatpush1.bf16.msra.mxu0 0
    %1738 = vmatprep.subr.bf16.mxu0 0
    %1739 = vmatpush1.bf16.msra.mxu0 0
    %1740 = vmatprep.subr.bf16.mxu0 0
    %1741 = vmatpush1.bf16.msra.mxu0 0
    %1742 = vmatprep.subr.bf16.mxu0 0
    %1743 = vmatpush1.bf16.msra.mxu0 0
    %1744 = vmatprep.subr.bf16.mxu0 0
    %1745 = vmatpush1.bf16.msra.mxu0 0
    %1746 = vmatprep.subr.bf16.mxu0 0
    %1747 = vmatpush1.bf16.msra.mxu0 0
    %1748 = vmatprep.subr.bf16.mxu0 0
    %1749 = vmatpush1.bf16.msra.mxu0 0
    %1750 = vmatprep.subr.bf16.mxu0 0
    %1751 = vmatpush1.bf16.msra.mxu0 0
    %1752 = vmatprep.mubr.bf16.mxu0 0
    %1753 = vmatmul.mubr.bf16.gmra.mrb[0].mxu0 %v1715
    %v1754 = vpop.f32.mrb[0].mxu0
    %v1755 = vadd.f32 0.0, %v1754
    %v1756 = vpop.f32.mrb[0].mxu0
    %v1757 = vpop.f32.mrb[0].mxu0
    %v1758 = vadd.f32 0.0, %v1757
    %v1759 = vpop.f32.mrb[0].mxu0
    %1760 = vmatprep.mubr.bf16.mxu0 0
    %1761 = vmatmul.mubr.bf16.gmra.mrb[0].mxu0 %v1718
    %v1762 = vpop.f32.mrb[0].mxu0
    %v1763 = vadd.f32 0.0, %v1762
    %v1764 = vpop.f32.mrb[0].mxu0
    %v1765 = vpop.f32.mrb[0].mxu0
    %v1766 = vadd.f32 0.0, %v1765
    %v1767 = vpop.f32.mrb[0].mxu0
    %1768 = vdwg.mxu0
    %v1769 = vadd.f32 %v1470, %v1755
    %v1770 = vadd.f32 %v1471, %v1758
    %v1771 = vadd.f32 %v1472, %v1763
    %v1772 = vadd.f32 %v1473, %v1766
    %v1773 = vld [vmem:[#allocation18] sm:$0x1]
    %v1775 = vlaneseq
    %v1776 = vshrl.u32 %v1775, 7
    %v1777 = vsub.s32 0, %v1776
    %v1778 = vrot.slane %v1773, %v1777
    %v1780 = vadd.f32 %v1769, %v1778
    %v1781 = vadd.f32 %v1770, %v1778
    %v1782 = vadd.f32 %v1771, %v1778
    %v1783 = vadd.f32 %v1772, %v1778
    %s1784 = scalar_lea.vmem [#allocation3], 1
    %v1785 = vld [vmem:[%s1784] sm:$0x1]
    %s1786 = scalar_lea.vmem [#allocation6], 1
    %v1787 = vld [vmem:[%s1786] sm:$0x1]
    %v1788 = vsel %vm423, %v1780, 0.0
    %1789 = vadd.xlane.f32.xlu0 %v1788
    %v1790 = vpop.xlane.xlu0 %1789
    %v1791 = vsel %vm423, %v1781, 0.0
    %1792 = vadd.xlane.f32.xlu0 %v1791
    %v1793 = vpop.xlane.xlu0 %1792
    %v1794 = vsel %vm423, %v1782, 0.0
    %1795 = vadd.xlane.f32.xlu0 %v1794
    %v1796 = vpop.xlane.xlu0 %1795
    %v1797 = vsel %vm423, %v1783, 0.0
    %1798 = vadd.xlane.f32.xlu0 %v1797
    %v1799 = vpop.xlane.xlu0 %1798
    %v1800 = vmul.f32 %v1790, %v436
    %v1801 = vmul.f32 %v1793, %v436
    %v1802 = vmul.f32 %v1796, %v436
    %v1803 = vmul.f32 %v1799, %v436
    %v1804 = vsub.f32 %v1780, %v1800
    %v1805 = vsub.f32 %v1781, %v1801
    %v1806 = vsub.f32 %v1782, %v1802
    %v1807 = vsub.f32 %v1783, %v1803
    %v1808 = vmul.f32 %v1804, %v1804
    %v1809 = vmul.f32 %v1805, %v1805
    %v1810 = vmul.f32 %v1806, %v1806
    %v1811 = vmul.f32 %v1807, %v1807
    %v1812 = vsel %vm423, %v1808, 0.0
    %1813 = vadd.xlane.f32.xlu0 %v1812
    %v1814 = vpop.xlane.xlu0 %1813
    %v1815 = vsel %vm423, %v1809, 0.0
    %1816 = vadd.xlane.f32.xlu0 %v1815
    %v1817 = vpop.xlane.xlu0 %1816
    %v1818 = vsel %vm423, %v1810, 0.0
    %1819 = vadd.xlane.f32.xlu0 %v1818
    %v1820 = vpop.xlane.xlu0 %1819
    %v1821 = vsel %vm423, %v1811, 0.0
    %1822 = vadd.xlane.f32.xlu0 %v1821
    %v1823 = vpop.xlane.xlu0 %1822
    %v1824 = vmul.f32 %v1814, %v436
    %v1825 = vmul.f32 %v1817, %v436
    %v1826 = vmul.f32 %v1820, %v436
    %v1827 = vmul.f32 %v1823, %v436
    %v1828 = vadd.f32 %v1824, 1e-05
    %v1829 = vadd.f32 %v1825, 1e-05
    %v1830 = vadd.f32 %v1826, 1e-05
    %v1831 = vadd.f32 %v1827, 1e-05
    %v1832 = vrsqrt.pop %v1828
    %v1833 = vrsqrt.pop %v1829
    %v1834 = vrsqrt.pop %v1830
    %v1835 = vrsqrt.pop %v1831
    %v1836 = vmul.f32 %v1804, %v1832
    %v1837 = vmul.f32 %v1805, %v1833
    %v1838 = vmul.f32 %v1806, %v1834
    %v1839 = vmul.f32 %v1807, %v1835
    %v1841 = vlaneseq
    %v1842 = vshrl.u32 %v1841, 7
    %v1843 = vsub.s32 0, %v1842
    %v1844 = vrot.slane %v1785, %v1843
    %v1846 = vmul.f32 %v1836, %v1844
    %v1847 = vmul.f32 %v1837, %v1844
    %v1848 = vmul.f32 %v1838, %v1844
    %v1849 = vmul.f32 %v1839, %v1844
    %v1851 = vlaneseq
    %v1852 = vshrl.u32 %v1851, 7
    %v1853 = vsub.s32 0, %v1852
    %v1854 = vrot.slane %v1787, %v1853
    %v1856 = vadd.f32 %v1846, %v1854
    %v1857 = vadd.f32 %v1847, %v1854
    %v1858 = vadd.f32 %v1848, %v1854
    %v1859 = vadd.f32 %v1849, %v1854
    %s1860 = scalar_lea.vmem [#allocation8], 64
    %v1861 = vld [vmem:[%s1860] sm:$0xff]
    %v1862 = vld [vmem:[%s1860 + $0x8] sm:$0xff]
    %v1863 = vld [vmem:[%s1860 + $0x10] sm:$0xff]
    %v1864 = vld [vmem:[%s1860 + $0x18] sm:$0xff]
    %v1865 = vld [vmem:[%s1860 + $0x20] sm:$0xff]
    %v1866 = vld [vmem:[%s1860 + $0x28] sm:$0xff]
    %v1867 = vld [vmem:[%s1860 + $0x30] sm:$0xff]
    %v1868 = vld [vmem:[%s1860 + $0x38] sm:$0xff]
    %v1869 = vpack.c.bf16 %v1857, %v1856
    %v1870 = vpack.c.bf16 %v1859, %v1858
    %v1879 = vunpack.c.l.b16 %v1861
    %v1880 = vunpack.c.h.b16 %v1861
    %v1881 = vunpack.c.l.b16 %v1862
    %v1882 = vunpack.c.h.b16 %v1862
    %v1883 = vunpack.c.l.b16 %v1863
    %v1884 = vunpack.c.h.b16 %v1863
    %v1885 = vunpack.c.l.b16 %v1864
    %v1886 = vunpack.c.h.b16 %v1864
    %v1887 = vunpack.c.l.b16 %v1865
    %v1888 = vunpack.c.h.b16 %v1865
    %v1889 = vunpack.c.l.b16 %v1866
    %v1890 = vunpack.c.h.b16 %v1866
    %v1891 = vunpack.c.l.b16 %v1867
    %v1892 = vunpack.c.h.b16 %v1867
    %v1893 = vunpack.c.l.b16 %v1868
    %v1894 = vunpack.c.h.b16 %v1868
    %v1895 = vpack.c.b16 %v1881, %v1879
    %v1896 = vpack.c.b16 %v1882, %v1880
    %v1897 = vpack.c.b16 %v1885, %v1883
    %v1898 = vpack.c.b16 %v1886, %v1884
    %v1899 = vpack.c.b16 %v1889, %v1887
    %v1900 = vpack.c.b16 %v1890, %v1888
    %v1901 = vpack.c.b16 %v1893, %v1891
    %v1902 = vpack.c.b16 %v1894, %v1892
    %v1912 = vsel %vm423, %v1869, 0
    %v1915 = vsel %vm423, %v1870, 0
    %1917 = vmatprep.subr.bf16.mxu0 %v1896
    %1918 = vmatpush1.bf16.msra.mxu0 %v1895
    %1919 = vmatprep.subr.bf16.mxu0 %v1898
    %1920 = vmatpush1.bf16.msra.mxu0 %v1897
    %1921 = vmatprep.subr.bf16.mxu0 %v1900
    %1922 = vmatpush1.bf16.msra.mxu0 %v1899
    %1923 = vmatprep.subr.bf16.mxu0 %v1902
    %1924 = vmatpush1.bf16.msra.mxu0 %v1901
    %1925 = vmatprep.subr.bf16.mxu0 0
    %1926 = vmatpush1.bf16.msra.mxu0 0
    %1927 = vmatprep.subr.bf16.mxu0 0
    %1928 = vmatpush1.bf16.msra.mxu0 0
    %1929 = vmatprep.subr.bf16.mxu0 0
    %1930 = vmatpush1.bf16.msra.mxu0 0
    %1931 = vmatprep.subr.bf16.mxu0 0
    %1932 = vmatpush1.bf16.msra.mxu0 0
    %1933 = vmatprep.subr.bf16.mxu0 0
    %1934 = vmatpush1.bf16.msra.mxu0 0
    %1935 = vmatprep.subr.bf16.mxu0 0
    %1936 = vmatpush1.bf16.msra.mxu0 0
    %1937 = vmatprep.subr.bf16.mxu0 0
    %1938 = vmatpush1.bf16.msra.mxu0 0
    %1939 = vmatprep.subr.bf16.mxu0 0
    %1940 = vmatpush1.bf16.msra.mxu0 0
    %1941 = vmatprep.subr.bf16.mxu0 0
    %1942 = vmatpush1.bf16.msra.mxu0 0
    %1943 = vmatprep.subr.bf16.mxu0 0
    %1944 = vmatpush1.bf16.msra.mxu0 0
    %1945 = vmatprep.subr.bf16.mxu0 0
    %1946 = vmatpush1.bf16.msra.mxu0 0
    %1947 = vmatprep.subr.bf16.mxu0 0
    %1948 = vmatpush1.bf16.msra.mxu0 0
    %1949 = vmatprep.mubr.bf16.mxu0 0
    %1950 = vmatmul.mubr.bf16.gmra.mrb[0].mxu0 %v1912
    %v1951 = vpop.f32.mrb[0].mxu0
    %v1952 = vadd.f32 0.0, %v1951
    %v1953 = vpop.f32.mrb[0].mxu0
    %v1954 = vadd.f32 0.0, %v1953
    %v1955 = vpop.f32.mrb[0].mxu0
    %v1956 = vadd.f32 0.0, %v1955
    %v1957 = vpop.f32.mrb[0].mxu0
    %v1958 = vadd.f32 0.0, %v1957
    %1959 = vmatprep.mubr.bf16.mxu0 0
    %1960 = vmatmul.mubr.bf16.gmra.mrb[0].mxu0 %v1915
    %v1961 = vpop.f32.mrb[0].mxu0
    %v1962 = vadd.f32 0.0, %v1961
    %v1963 = vpop.f32.mrb[0].mxu0
    %v1964 = vadd.f32 0.0, %v1963
    %v1965 = vpop.f32.mrb[0].mxu0
    %v1966 = vadd.f32 0.0, %v1965
    %v1967 = vpop.f32.mrb[0].mxu0
    %v1968 = vadd.f32 0.0, %v1967
    %1969 = vdwg.mxu0
    %v1970 = vpack.c.bf16 %v1956, %v1952
    %v1971 = vpack.c.bf16 %v1966, %v1962
    %1974 = vrot.lane.b32.xlu0 %v1970, 64
    %v1975 = vpop.permute.xlu0 %1974
    %1976 = vrot.lane.b32.xlu0 %v1971, 64
    %v1977 = vpop.permute.xlu0 %1976
    %v1979 = vsel %vm614, %v1970, 0
    %v1982 = vsel %vm614, %v1971, 0
    %v1985 = vsel %vm614, %v1975, 0
    %v1988 = vsel %vm614, %v1977, 0
    %1990 = vmatprep.subr.bf16.mxu0 0
    %1991 = vmatpush1.bf16.xpose.msra.mxu0 %v1985
    %1992 = vmatprep.subr.bf16.mxu0 0
    %1993 = vmatpush1.bf16.xpose.msra.mxu0 %v1988
    %1994 = vmatprep.subr.bf16.mxu0 0
    %1995 = vmatpush1.bf16.xpose.msra.mxu0 0
    %1996 = vmatprep.subr.bf16.mxu0 0
    %1997 = vmatpush1.bf16.xpose.msra.mxu0 0
    %1998 = vmatprep.subr.bf16.mxu0 0
    %1999 = vmatpush1.bf16.xpose.msra.mxu0 0
    %2000 = vmatprep.subr.bf16.mxu0 0
    %2001 = vmatpush1.bf16.xpose.msra.mxu0 0
    %2002 = vmatprep.subr.bf16.mxu0 0
    %2003 = vmatpush1.bf16.xpose.msra.mxu0 0
    %2004 = vmatprep.subr.bf16.mxu0 0
    %2005 = vmatpush1.bf16.xpose.msra.mxu0 0
    %2006 = vmatprep.subr.bf16.mxu0 0
    %2007 = vmatpush1.bf16.xpose.msra.mxu0 0
    %2008 = vmatprep.subr.bf16.mxu0 0
    %2009 = vmatpush1.bf16.xpose.msra.mxu0 0
    %2010 = vmatprep.subr.bf16.mxu0 0
    %2011 = vmatpush1.bf16.xpose.msra.mxu0 0
    %2012 = vmatprep.subr.bf16.mxu0 0
    %2013 = vmatpush1.bf16.xpose.msra.mxu0 0
    %2014 = vmatprep.subr.bf16.mxu0 0
    %2015 = vmatpush1.bf16.xpose.msra.mxu0 0
    %2016 = vmatprep.subr.bf16.mxu0 0
    %2017 = vmatpush1.bf16.xpose.msra.mxu0 0
    %2018 = vmatprep.subr.bf16.mxu0 0
    %2019 = vmatpush1.bf16.xpose.msra.mxu0 0
    %2020 = vmatprep.subr.bf16.mxu0 0
    %2021 = vmatpush1.bf16.xpose.msra.mxu0 0
    %2022 = vmatprep.mubr.bf16.mxu0 0
    %2023 = vmatmul.mubr.bf16.gmra.mrb[0].mxu0 %v1979
    %v2024 = vpop.f32.mrb[0].mxu0
    %v2025 = vadd.f32 %v304, %v2024
    %v2026 = vpop.f32.mrb[0].mxu0
    %v2027 = vpop.f32.mrb[0].mxu0
    %v2028 = vadd.f32 %v305, %v2027
    %v2029 = vpop.f32.mrb[0].mxu0
    %2030 = vmatprep.mubr.bf16.mxu0 0
    %2031 = vmatmul.mubr.bf16.gmra.mrb[0].mxu0 %v1982
    %v2032 = vpop.f32.mrb[0].mxu0
    %v2033 = vadd.f32 %v306, %v2032
    %v2034 = vpop.f32.mrb[0].mxu0
    %v2035 = vpop.f32.mrb[0].mxu0
    %v2036 = vadd.f32 %v307, %v2035
    %v2037 = vpop.f32.mrb[0].mxu0
    %2038 = vdwg.mxu0
    %v2039 = vsel %vm337, %v2025, -inf
    %2040 = vmax.xlane.f32.xlu0 %v2039
    %v2041 = vpop.xlane.xlu0 %2040
    %v2042 = vsel %vm337, %v2028, -inf
    %2043 = vmax.xlane.f32.xlu0 %v2042
    %v2044 = vpop.xlane.xlu0 %2043
    %v2045 = vsel %vm337, %v2033, -inf
    %2046 = vmax.xlane.f32.xlu0 %v2045
    %v2047 = vpop.xlane.xlu0 %2046
    %v2048 = vsel %vm337, %v2036, -inf
    %2049 = vmax.xlane.f32.xlu0 %v2048
    %v2050 = vpop.xlane.xlu0 %2049
    %v2051 = vsub.f32 %v2025, %v2041
    %v2052 = vsub.f32 %v2028, %v2044
    %v2053 = vsub.f32 %v2033, %v2047
    %v2054 = vsub.f32 %v2036, %v2050
    %v2055 = vmul.f32 %v2051, 1.442695
    %v2056 = vpow.pop %v2055
    %v2057 = vmul.f32 %v2052, 1.442695
    %v2058 = vpow.pop %v2057
    %v2059 = vmul.f32 %v2053, 1.442695
    %v2060 = vpow.pop %v2059
    %v2061 = vmul.f32 %v2054, 1.442695
    %v2062 = vpow.pop %v2061
    %v2063 = vsel %vm337, %v2056, 0.0
    %2064 = vadd.xlane.f32.xlu0 %v2063
    %v2065 = vpop.xlane.xlu0 %2064
    %v2066 = vsel %vm337, %v2058, 0.0
    %2067 = vadd.xlane.f32.xlu0 %v2066
    %v2068 = vpop.xlane.xlu0 %2067
    %v2069 = vsel %vm337, %v2060, 0.0
    %2070 = vadd.xlane.f32.xlu0 %v2069
    %v2071 = vpop.xlane.xlu0 %2070
    %v2072 = vsel %vm337, %v2062, 0.0
    %2073 = vadd.xlane.f32.xlu0 %v2072
    %v2074 = vpop.xlane.xlu0 %2073
    %v2075 = vrcp.pop %v2065
    %v2076 = vrcp.pop %v2068
    %v2077 = vrcp.pop %v2071
    %v2078 = vrcp.pop %v2074
    %v2079 = vmul.f32 %v2056, %v2075
    %v2080 = vmul.f32 %v2058, %v2076
    %v2081 = vmul.f32 %v2060, %v2077
    %v2082 = vmul.f32 %v2062, %v2078
    %v2083 = vpack.c.bf16 %v2080, %v2079
    %v2084 = vpack.c.bf16 %v2082, %v2081
    %v2085 = vpack.c.bf16 %v1958, %v1954
    %v2086 = vpack.c.bf16 %v1968, %v1964
    %v2088 = vsel %vm337, %v2083, 0
    %v2091 = vsel %vm337, %v2084, 0
    %2093 = vmatprep.subr.bf16.mxu0 0
    %2094 = vmatpush1.bf16.msra.mxu0 %v2085
    %2095 = vmatprep.subr.bf16.mxu0 0
    %2096 = vmatpush1.bf16.msra.mxu0 %v2086
    %2097 = vmatprep.subr.bf16.mxu0 0
    %2098 = vmatpush1.bf16.msra.mxu0 0
    %2099 = vmatprep.subr.bf16.mxu0 0
    %2100 = vmatpush1.bf16.msra.mxu0 0
    %2101 = vmatprep.subr.bf16.mxu0 0
    %2102 = vmatpush1.bf16.msra.mxu0 0
    %2103 = vmatprep.subr.bf16.mxu0 0
    %2104 = vmatpush1.bf16.msra.mxu0 0
    %2105 = vmatprep.subr.bf16.mxu0 0
    %2106 = vmatpush1.bf16.msra.mxu0 0
    %2107 = vmatprep.subr.bf16.mxu0 0
    %2108 = vmatpush1.bf16.msra.mxu0 0
    %2109 = vmatprep.subr.bf16.mxu0 0
    %2110 = vmatpush1.bf16.msra.mxu0 0
    %2111 = vmatprep.subr.bf16.mxu0 0
    %2112 = vmatpush1.bf16.msra.mxu0 0
    %2113 = vmatprep.subr.bf16.mxu0 0
    %2114 = vmatpush1.bf16.msra.mxu0 0
    %2115 = vmatprep.subr.bf16.mxu0 0
    %2116 = vmatpush1.bf16.msra.mxu0 0
    %2117 = vmatprep.subr.bf16.mxu0 0
    %2118 = vmatpush1.bf16.msra.mxu0 0
    %2119 = vmatprep.subr.bf16.mxu0 0
    %2120 = vmatpush1.bf16.msra.mxu0 0
    %2121 = vmatprep.subr.bf16.mxu0 0
    %2122 = vmatpush1.bf16.msra.mxu0 0
    %2123 = vmatprep.subr.bf16.mxu0 0
    %2124 = vmatpush1.bf16.msra.mxu0 0
    %2125 = vmatprep.mubr.bf16.mxu0 0
    %2126 = vmatmul.mubr.bf16.gmra.mrb[0].mxu0 %v2088
    %v2127 = vpop.f32.mrb[0].mxu0
    %v2128 = vadd.f32 0.0, %v2127
    %v2129 = vpop.f32.mrb[0].mxu0
    %v2130 = vpop.f32.mrb[0].mxu0
    %v2131 = vadd.f32 0.0, %v2130
    %v2132 = vpop.f32.mrb[0].mxu0
    %2133 = vmatprep.mubr.bf16.mxu0 0
    %2134 = vmatmul.mubr.bf16.gmra.mrb[0].mxu0 %v2091
    %v2135 = vpop.f32.mrb[0].mxu0
    %v2136 = vadd.f32 0.0, %v2135
    %v2137 = vpop.f32.mrb[0].mxu0
    %v2138 = vpop.f32.mrb[0].mxu0
    %v2139 = vadd.f32 0.0, %v2138
    %v2140 = vpop.f32.mrb[0].mxu0
    %2141 = vdwg.mxu0
    %2142 = vrot.lane.b32.xlu0 %v1970, 112
    %v2143 = vpop.permute.xlu0 %2142
    %2144 = vrot.lane.b32.xlu0 %v1971, 112
    %v2145 = vpop.permute.xlu0 %2144
    %2146 = vrot.lane.b32.xlu0 %v1970, 48
    %v2147 = vpop.permute.xlu0 %2146
    %2148 = vrot.lane.b32.xlu0 %v1971, 48
    %v2149 = vpop.permute.xlu0 %2148
    %v2151 = vsel %vm614, %v2143, 0
    %v2154 = vsel %vm614, %v2145, 0
    %v2157 = vsel %vm614, %v2147, 0
    %v2160 = vsel %vm614, %v2149, 0
    %2162 = vmatprep.subr.bf16.mxu0 0
    %2163 = vmatpush1.bf16.xpose.msra.mxu0 %v2157
    %2164 = vmatprep.subr.bf16.mxu0 0
    %2165 = vmatpush1.bf16.xpose.msra.mxu0 %v2160
    %2166 = vmatprep.subr.bf16.mxu0 0
    %2167 = vmatpush1.bf16.xpose.msra.mxu0 0
    %2168 = vmatprep.subr.bf16.mxu0 0
    %2169 = vmatpush1.bf16.xpose.msra.mxu0 0
    %2170 = vmatprep.subr.bf16.mxu0 0
    %2171 = vmatpush1.bf16.xpose.msra.mxu0 0
    %2172 = vmatprep.subr.bf16.mxu0 0
    %2173 = vmatpush1.bf16.xpose.msra.mxu0 0
    %2174 = vmatprep.subr.bf16.mxu0 0
    %2175 = vmatpush1.bf16.xpose.msra.mxu0 0
    %2176 = vmatprep.subr.bf16.mxu0 0
    %2177 = vmatpush1.bf16.xpose.msra.mxu0 0
    %2178 = vmatprep.subr.bf16.mxu0 0
    %2179 = vmatpush1.bf16.xpose.msra.mxu0 0
    %2180 = vmatprep.subr.bf16.mxu0 0
    %2181 = vmatpush1.bf16.xpose.msra.mxu0 0
    %2182 = vmatprep.subr.bf16.mxu0 0
    %2183 = vmatpush1.bf16.xpose.msra.mxu0 0
    %2184 = vmatprep.subr.bf16.mxu0 0
    %2185 = vmatpush1.bf16.xpose.msra.mxu0 0
    %2186 = vmatprep.subr.bf16.mxu0 0
    %2187 = vmatpush1.bf16.xpose.msra.mxu0 0
    %2188 = vmatprep.subr.bf16.mxu0 0
    %2189 = vmatpush1.bf16.xpose.msra.mxu0 0
    %2190 = vmatprep.subr.bf16.mxu0 0
    %2191 = vmatpush1.bf16.xpose.msra.mxu0 0
    %2192 = vmatprep.subr.bf16.mxu0 0
    %2193 = vmatpush1.bf16.xpose.msra.mxu0 0
    %2194 = vmatprep.mubr.bf16.mxu0 0
    %2195 = vmatmul.mubr.bf16.gmra.mrb[0].mxu0 %v2151
    %v2196 = vpop.f32.mrb[0].mxu0
    %v2197 = vadd.f32 %v304, %v2196
    %v2198 = vpop.f32.mrb[0].mxu0
    %v2199 = vpop.f32.mrb[0].mxu0
    %v2200 = vadd.f32 %v305, %v2199
    %v2201 = vpop.f32.mrb[0].mxu0
    %2202 = vmatprep.mubr.bf16.mxu0 0
    %2203 = vmatmul.mubr.bf16.gmra.mrb[0].mxu0 %v2154
    %v2204 = vpop.f32.mrb[0].mxu0
    %v2205 = vadd.f32 %v306, %v2204
    %v2206 = vpop.f32.mrb[0].mxu0
    %v2207 = vpop.f32.mrb[0].mxu0
    %v2208 = vadd.f32 %v307, %v2207
    %v2209 = vpop.f32.mrb[0].mxu0
    %2210 = vdwg.mxu0
    %v2211 = vsel %vm337, %v2197, -inf
    %2212 = vmax.xlane.f32.xlu0 %v2211
    %v2213 = vpop.xlane.xlu0 %2212
    %v2214 = vsel %vm337, %v2200, -inf
    %2215 = vmax.xlane.f32.xlu0 %v2214
    %v2216 = vpop.xlane.xlu0 %2215
    %v2217 = vsel %vm337, %v2205, -inf
    %2218 = vmax.xlane.f32.xlu0 %v2217
    %v2219 = vpop.xlane.xlu0 %2218
    %v2220 = vsel %vm337, %v2208, -inf
    %2221 = vmax.xlane.f32.xlu0 %v2220
    %v2222 = vpop.xlane.xlu0 %2221
    %v2223 = vsub.f32 %v2197, %v2213
    %v2224 = vsub.f32 %v2200, %v2216
    %v2225 = vsub.f32 %v2205, %v2219
    %v2226 = vsub.f32 %v2208, %v2222
    %v2227 = vmul.f32 %v2223, 1.442695
    %v2228 = vpow.pop %v2227
    %v2229 = vmul.f32 %v2224, 1.442695
    %v2230 = vpow.pop %v2229
    %v2231 = vmul.f32 %v2225, 1.442695
    %v2232 = vpow.pop %v2231
    %v2233 = vmul.f32 %v2226, 1.442695
    %v2234 = vpow.pop %v2233
    %v2235 = vsel %vm337, %v2228, 0.0
    %2236 = vadd.xlane.f32.xlu0 %v2235
    %v2237 = vpop.xlane.xlu0 %2236
    %v2238 = vsel %vm337, %v2230, 0.0
    %2239 = vadd.xlane.f32.xlu0 %v2238
    %v2240 = vpop.xlane.xlu0 %2239
    %v2241 = vsel %vm337, %v2232, 0.0
    %2242 = vadd.xlane.f32.xlu0 %v2241
    %v2243 = vpop.xlane.xlu0 %2242
    %v2244 = vsel %vm337, %v2234, 0.0
    %2245 = vadd.xlane.f32.xlu0 %v2244
    %v2246 = vpop.xlane.xlu0 %2245
    %v2247 = vrcp.pop %v2237
    %v2248 = vrcp.pop %v2240
    %v2249 = vrcp.pop %v2243
    %v2250 = vrcp.pop %v2246
    %v2251 = vmul.f32 %v2228, %v2247
    %v2252 = vmul.f32 %v2230, %v2248
    %v2253 = vmul.f32 %v2232, %v2249
    %v2254 = vmul.f32 %v2234, %v2250
    %v2255 = vpack.c.bf16 %v2252, %v2251
    %v2256 = vpack.c.bf16 %v2254, %v2253
    %2259 = vrot.lane.b32.xlu0 %v2085, 112
    %v2260 = vpop.permute.xlu0 %2259
    %2261 = vrot.lane.b32.xlu0 %v2086, 112
    %v2262 = vpop.permute.xlu0 %2261
    %v2266 = vsel %vm337, %v2255, 0
    %v2269 = vsel %vm337, %v2256, 0
    %2271 = vmatprep.subr.bf16.mxu0 0
    %2272 = vmatpush1.bf16.msra.mxu0 %v2260
    %2273 = vmatprep.subr.bf16.mxu0 0
    %2274 = vmatpush1.bf16.msra.mxu0 %v2262
    %2275 = vmatprep.subr.bf16.mxu0 0
    %2276 = vmatpush1.bf16.msra.mxu0 0
    %2277 = vmatprep.subr.bf16.mxu0 0
    %2278 = vmatpush1.bf16.msra.mxu0 0
    %2279 = vmatprep.subr.bf16.mxu0 0
    %2280 = vmatpush1.bf16.msra.mxu0 0
    %2281 = vmatprep.subr.bf16.mxu0 0
    %2282 = vmatpush1.bf16.msra.mxu0 0
    %2283 = vmatprep.subr.bf16.mxu0 0
    %2284 = vmatpush1.bf16.msra.mxu0 0
    %2285 = vmatprep.subr.bf16.mxu0 0
    %2286 = vmatpush1.bf16.msra.mxu0 0
    %2287 = vmatprep.subr.bf16.mxu0 0
    %2288 = vmatpush1.bf16.msra.mxu0 0
    %2289 = vmatprep.subr.bf16.mxu0 0
    %2290 = vmatpush1.bf16.msra.mxu0 0
    %2291 = vmatprep.subr.bf16.mxu0 0
    %2292 = vmatpush1.bf16.msra.mxu0 0
    %2293 = vmatprep.subr.bf16.mxu0 0
    %2294 = vmatpush1.bf16.msra.mxu0 0
    %2295 = vmatprep.subr.bf16.mxu0 0
    %2296 = vmatpush1.bf16.msra.mxu0 0
    %2297 = vmatprep.subr.bf16.mxu0 0
    %2298 = vmatpush1.bf16.msra.mxu0 0
    %2299 = vmatprep.subr.bf16.mxu0 0
    %2300 = vmatpush1.bf16.msra.mxu0 0
    %2301 = vmatprep.subr.bf16.mxu0 0
    %2302 = vmatpush1.bf16.msra.mxu0 0
    %2303 = vmatprep.mubr.bf16.mxu0 0
    %2304 = vmatmul.mubr.bf16.gmra.mrb[0].mxu0 %v2266
    %v2305 = vpop.f32.mrb[0].mxu0
    %v2306 = vadd.f32 0.0, %v2305
    %v2307 = vpop.f32.mrb[0].mxu0
    %v2308 = vpop.f32.mrb[0].mxu0
    %v2309 = vadd.f32 0.0, %v2308
    %v2310 = vpop.f32.mrb[0].mxu0
    %2311 = vmatprep.mubr.bf16.mxu0 0
    %2312 = vmatmul.mubr.bf16.gmra.mrb[0].mxu0 %v2269
    %v2313 = vpop.f32.mrb[0].mxu0
    %v2314 = vadd.f32 0.0, %v2313
    %v2315 = vpop.f32.mrb[0].mxu0
    %v2316 = vpop.f32.mrb[0].mxu0
    %v2317 = vadd.f32 0.0, %v2316
    %v2318 = vpop.f32.mrb[0].mxu0
    %2319 = vdwg.mxu0
    %2320 = vrot.lane.b32.xlu0 %v1970, 96
    %v2321 = vpop.permute.xlu0 %2320
    %2322 = vrot.lane.b32.xlu0 %v1971, 96
    %v2323 = vpop.permute.xlu0 %2322
    %2324 = vrot.lane.b32.xlu0 %v1970, 32
    %v2325 = vpop.permute.xlu0 %2324
    %2326 = vrot.lane.b32.xlu0 %v1971, 32
    %v2327 = vpop.permute.xlu0 %2326
    %v2329 = vsel %vm614, %v2321, 0
    %v2332 = vsel %vm614, %v2323, 0
    %v2335 = vsel %vm614, %v2325, 0
    %v2338 = vsel %vm614, %v2327, 0
    %2340 = vmatprep.subr.bf16.mxu0 0
    %2341 = vmatpush1.bf16.xpose.msra.mxu0 %v2335
    %2342 = vmatprep.subr.bf16.mxu0 0
    %2343 = vmatpush1.bf16.xpose.msra.mxu0 %v2338
    %2344 = vmatprep.subr.bf16.mxu0 0
    %2345 = vmatpush1.bf16.xpose.msra.mxu0 0
    %2346 = vmatprep.subr.bf16.mxu0 0
    %2347 = vmatpush1.bf16.xpose.msra.mxu0 0
    %2348 = vmatprep.subr.bf16.mxu0 0
    %2349 = vmatpush1.bf16.xpose.msra.mxu0 0
    %2350 = vmatprep.subr.bf16.mxu0 0
    %2351 = vmatpush1.bf16.xpose.msra.mxu0 0
    %2352 = vmatprep.subr.bf16.mxu0 0
    %2353 = vmatpush1.bf16.xpose.msra.mxu0 0
    %2354 = vmatprep.subr.bf16.mxu0 0
    %2355 = vmatpush1.bf16.xpose.msra.mxu0 0
    %2356 = vmatprep.subr.bf16.mxu0 0
    %2357 = vmatpush1.bf16.xpose.msra.mxu0 0
    %2358 = vmatprep.subr.bf16.mxu0 0
    %2359 = vmatpush1.bf16.xpose.msra.mxu0 0
    %2360 = vmatprep.subr.bf16.mxu0 0
    %2361 = vmatpush1.bf16.xpose.msra.mxu0 0
    %2362 = vmatprep.subr.bf16.mxu0 0
    %2363 = vmatpush1.bf16.xpose.msra.mxu0 0
    %2364 = vmatprep.subr.bf16.mxu0 0
    %2365 = vmatpush1.bf16.xpose.msra.mxu0 0
    %2366 = vmatprep.subr.bf16.mxu0 0
    %2367 = vmatpush1.bf16.xpose.msra.mxu0 0
    %2368 = vmatprep.subr.bf16.mxu0 0
    %2369 = vmatpush1.bf16.xpose.msra.mxu0 0
    %2370 = vmatprep.subr.bf16.mxu0 0
    %2371 = vmatpush1.bf16.xpose.msra.mxu0 0
    %2372 = vmatprep.mubr.bf16.mxu0 0
    %2373 = vmatmul.mubr.bf16.gmra.mrb[0].mxu0 %v2329
    %v2374 = vpop.f32.mrb[0].mxu0
    %v2375 = vadd.f32 %v304, %v2374
    %v2376 = vpop.f32.mrb[0].mxu0
    %v2377 = vpop.f32.mrb[0].mxu0
    %v2378 = vadd.f32 %v305, %v2377
    %v2379 = vpop.f32.mrb[0].mxu0
    %2380 = vmatprep.mubr.bf16.mxu0 0
    %2381 = vmatmul.mubr.bf16.gmra.mrb[0].mxu0 %v2332
    %v2382 = vpop.f32.mrb[0].mxu0
    %v2383 = vadd.f32 %v306, %v2382
    %v2384 = vpop.f32.mrb[0].mxu0
    %v2385 = vpop.f32.mrb[0].mxu0
    %v2386 = vadd.f32 %v307, %v2385
    %v2387 = vpop.f32.mrb[0].mxu0
    %2388 = vdwg.mxu0
    %v2389 = vsel %vm337, %v2375, -inf
    %2390 = vmax.xlane.f32.xlu0 %v2389
    %v2391 = vpop.xlane.xlu0 %2390
    %v2392 = vsel %vm337, %v2378, -inf
    %2393 = vmax.xlane.f32.xlu0 %v2392
    %v2394 = vpop.xlane.xlu0 %2393
    %v2395 = vsel %vm337, %v2383, -inf
    %2396 = vmax.xlane.f32.xlu0 %v2395
    %v2397 = vpop.xlane.xlu0 %2396
    %v2398 = vsel %vm337, %v2386, -inf
    %2399 = vmax.xlane.f32.xlu0 %v2398
    %v2400 = vpop.xlane.xlu0 %2399
    %v2401 = vsub.f32 %v2375, %v2391
    %v2402 = vsub.f32 %v2378, %v2394
    %v2403 = vsub.f32 %v2383, %v2397
    %v2404 = vsub.f32 %v2386, %v2400
    %v2405 = vmul.f32 %v2401, 1.442695
    %v2406 = vpow.pop %v2405
    %v2407 = vmul.f32 %v2402, 1.442695
    %v2408 = vpow.pop %v2407
    %v2409 = vmul.f32 %v2403, 1.442695
    %v2410 = vpow.pop %v2409
    %v2411 = vmul.f32 %v2404, 1.442695
    %v2412 = vpow.pop %v2411
    %v2413 = vsel %vm337, %v2406, 0.0
    %2414 = vadd.xlane.f32.xlu0 %v2413
    %v2415 = vpop.xlane.xlu0 %2414
    %v2416 = vsel %vm337, %v2408, 0.0
    %2417 = vadd.xlane.f32.xlu0 %v2416
    %v2418 = vpop.xlane.xlu0 %2417
    %v2419 = vsel %vm337, %v2410, 0.0
    %2420 = vadd.xlane.f32.xlu0 %v2419
    %v2421 = vpop.xlane.xlu0 %2420
    %v2422 = vsel %vm337, %v2412, 0.0
    %2423 = vadd.xlane.f32.xlu0 %v2422
    %v2424 = vpop.xlane.xlu0 %2423
    %v2425 = vrcp.pop %v2415
    %v2426 = vrcp.pop %v2418
    %v2427 = vrcp.pop %v2421
    %v2428 = vrcp.pop %v2424
    %v2429 = vmul.f32 %v2406, %v2425
    %v2430 = vmul.f32 %v2408, %v2426
    %v2431 = vmul.f32 %v2410, %v2427
    %v2432 = vmul.f32 %v2412, %v2428
    %v2433 = vpack.c.bf16 %v2430, %v2429
    %v2434 = vpack.c.bf16 %v2432, %v2431
    %2435 = vrot.lane.b32.xlu0 %v2085, 96
    %v2436 = vpop.permute.xlu0 %2435
    %2437 = vrot.lane.b32.xlu0 %v2086, 96
    %v2438 = vpop.permute.xlu0 %2437
    %v2442 = vsel %vm337, %v2433, 0
    %v2445 = vsel %vm337, %v2434, 0
    %2447 = vmatprep.subr.bf16.mxu0 0
    %2448 = vmatpush1.bf16.msra.mxu0 %v2436
    %2449 = vmatprep.subr.bf16.mxu0 0
    %2450 = vmatpush1.bf16.msra.mxu0 %v2438
    %2451 = vmatprep.subr.bf16.mxu0 0
    %2452 = vmatpush1.bf16.msra.mxu0 0
    %2453 = vmatprep.subr.bf16.mxu0 0
    %2454 = vmatpush1.bf16.msra.mxu0 0
    %2455 = vmatprep.subr.bf16.mxu0 0
    %2456 = vmatpush1.bf16.msra.mxu0 0
    %2457 = vmatprep.subr.bf16.mxu0 0
    %2458 = vmatpush1.bf16.msra.mxu0 0
    %2459 = vmatprep.subr.bf16.mxu0 0
    %2460 = vmatpush1.bf16.msra.mxu0 0
    %2461 = vmatprep.subr.bf16.mxu0 0
    %2462 = vmatpush1.bf16.msra.mxu0 0
    %2463 = vmatprep.subr.bf16.mxu0 0
    %2464 = vmatpush1.bf16.msra.mxu0 0
    %2465 = vmatprep.subr.bf16.mxu0 0
    %2466 = vmatpush1.bf16.msra.mxu0 0
    %2467 = vmatprep.subr.bf16.mxu0 0
    %2468 = vmatpush1.bf16.msra.mxu0 0
    %2469 = vmatprep.subr.bf16.mxu0 0
    %2470 = vmatpush1.bf16.msra.mxu0 0
    %2471 = vmatprep.subr.bf16.mxu0 0
    %2472 = vmatpush1.bf16.msra.mxu0 0
    %2473 = vmatprep.subr.bf16.mxu0 0
    %2474 = vmatpush1.bf16.msra.mxu0 0
    %2475 = vmatprep.subr.bf16.mxu0 0
    %2476 = vmatpush1.bf16.msra.mxu0 0
    %2477 = vmatprep.subr.bf16.mxu0 0
    %2478 = vmatpush1.bf16.msra.mxu0 0
    %2479 = vmatprep.mubr.bf16.mxu0 0
    %2480 = vmatmul.mubr.bf16.gmra.mrb[0].mxu0 %v2442
    %v2481 = vpop.f32.mrb[0].mxu0
    %v2482 = vadd.f32 0.0, %v2481
    %v2483 = vpop.f32.mrb[0].mxu0
    %v2484 = vpop.f32.mrb[0].mxu0
    %v2485 = vadd.f32 0.0, %v2484
    %v2486 = vpop.f32.mrb[0].mxu0
    %2487 = vmatprep.mubr.bf16.mxu0 0
    %2488 = vmatmul.mubr.bf16.gmra.mrb[0].mxu0 %v2445
    %v2489 = vpop.f32.mrb[0].mxu0
    %v2490 = vadd.f32 0.0, %v2489
    %v2491 = vpop.f32.mrb[0].mxu0
    %v2492 = vpop.f32.mrb[0].mxu0
    %v2493 = vadd.f32 0.0, %v2492
    %v2494 = vpop.f32.mrb[0].mxu0
    %2495 = vdwg.mxu0
    %2496 = vrot.lane.b32.xlu0 %v1970, 80
    %v2497 = vpop.permute.xlu0 %2496
    %2498 = vrot.lane.b32.xlu0 %v1971, 80
    %v2499 = vpop.permute.xlu0 %2498
    %2500 = vrot.lane.b32.xlu0 %v1970, 16
    %v2501 = vpop.permute.xlu0 %2500
    %2502 = vrot.lane.b32.xlu0 %v1971, 16
    %v2503 = vpop.permute.xlu0 %2502
    %v2505 = vsel %vm614, %v2497, 0
    %v2508 = vsel %vm614, %v2499, 0
    %v2511 = vsel %vm614, %v2501, 0
    %v2514 = vsel %vm614, %v2503, 0
    %2516 = vmatprep.subr.bf16.mxu0 0
    %2517 = vmatpush1.bf16.xpose.msra.mxu0 %v2511
    %2518 = vmatprep.subr.bf16.mxu0 0
    %2519 = vmatpush1.bf16.xpose.msra.mxu0 %v2514
    %2520 = vmatprep.subr.bf16.mxu0 0
    %2521 = vmatpush1.bf16.xpose.msra.mxu0 0
    %2522 = vmatprep.subr.bf16.mxu0 0
    %2523 = vmatpush1.bf16.xpose.msra.mxu0 0
    %2524 = vmatprep.subr.bf16.mxu0 0
    %2525 = vmatpush1.bf16.xpose.msra.mxu0 0
    %2526 = vmatprep.subr.bf16.mxu0 0
    %2527 = vmatpush1.bf16.xpose.msra.mxu0 0
    %2528 = vmatprep.subr.bf16.mxu0 0
    %2529 = vmatpush1.bf16.xpose.msra.mxu0 0
    %2530 = vmatprep.subr.bf16.mxu0 0
    %2531 = vmatpush1.bf16.xpose.msra.mxu0 0
    %2532 = vmatprep.subr.bf16.mxu0 0
    %2533 = vmatpush1.bf16.xpose.msra.mxu0 0
    %2534 = vmatprep.subr.bf16.mxu0 0
    %2535 = vmatpush1.bf16.xpose.msra.mxu0 0
    %2536 = vmatprep.subr.bf16.mxu0 0
    %2537 = vmatpush1.bf16.xpose.msra.mxu0 0
    %2538 = vmatprep.subr.bf16.mxu0 0
    %2539 = vmatpush1.bf16.xpose.msra.mxu0 0
    %2540 = vmatprep.subr.bf16.mxu0 0
    %2541 = vmatpush1.bf16.xpose.msra.mxu0 0
    %2542 = vmatprep.subr.bf16.mxu0 0
    %2543 = vmatpush1.bf16.xpose.msra.mxu0 0
    %2544 = vmatprep.subr.bf16.mxu0 0
    %2545 = vmatpush1.bf16.xpose.msra.mxu0 0
    %2546 = vmatprep.subr.bf16.mxu0 0
    %2547 = vmatpush1.bf16.xpose.msra.mxu0 0
    %2548 = vmatprep.mubr.bf16.mxu0 0
    %2549 = vmatmul.mubr.bf16.gmra.mrb[0].mxu0 %v2505
    %v2550 = vpop.f32.mrb[0].mxu0
    %v2551 = vadd.f32 %v304, %v2550
    %v2552 = vpop.f32.mrb[0].mxu0
    %v2553 = vpop.f32.mrb[0].mxu0
    %v2554 = vadd.f32 %v305, %v2553
    %v2555 = vpop.f32.mrb[0].mxu0
    %2556 = vmatprep.mubr.bf16.mxu0 0
    %2557 = vmatmul.mubr.bf16.gmra.mrb[0].mxu0 %v2508
    %v2558 = vpop.f32.mrb[0].mxu0
    %v2559 = vadd.f32 %v306, %v2558
    %v2560 = vpop.f32.mrb[0].mxu0
    %v2561 = vpop.f32.mrb[0].mxu0
    %v2562 = vadd.f32 %v307, %v2561
    %v2563 = vpop.f32.mrb[0].mxu0
    %2564 = vdwg.mxu0
    %v2565 = vsel %vm337, %v2551, -inf
    %2566 = vmax.xlane.f32.xlu0 %v2565
    %v2567 = vpop.xlane.xlu0 %2566
    %v2568 = vsel %vm337, %v2554, -inf
    %2569 = vmax.xlane.f32.xlu0 %v2568
    %v2570 = vpop.xlane.xlu0 %2569
    %v2571 = vsel %vm337, %v2559, -inf
    %2572 = vmax.xlane.f32.xlu0 %v2571
    %v2573 = vpop.xlane.xlu0 %2572
    %v2574 = vsel %vm337, %v2562, -inf
    %2575 = vmax.xlane.f32.xlu0 %v2574
    %v2576 = vpop.xlane.xlu0 %2575
    %v2577 = vsub.f32 %v2551, %v2567
    %v2578 = vsub.f32 %v2554, %v2570
    %v2579 = vsub.f32 %v2559, %v2573
    %v2580 = vsub.f32 %v2562, %v2576
    %v2581 = vmul.f32 %v2577, 1.442695
    %v2582 = vpow.pop %v2581
    %v2583 = vmul.f32 %v2578, 1.442695
    %v2584 = vpow.pop %v2583
    %v2585 = vmul.f32 %v2579, 1.442695
    %v2586 = vpow.pop %v2585
    %v2587 = vmul.f32 %v2580, 1.442695
    %v2588 = vpow.pop %v2587
    %v2589 = vsel %vm337, %v2582, 0.0
    %2590 = vadd.xlane.f32.xlu0 %v2589
    %v2591 = vpop.xlane.xlu0 %2590
    %v2592 = vsel %vm337, %v2584, 0.0
    %2593 = vadd.xlane.f32.xlu0 %v2592
    %v2594 = vpop.xlane.xlu0 %2593
    %v2595 = vsel %vm337, %v2586, 0.0
    %2596 = vadd.xlane.f32.xlu0 %v2595
    %v2597 = vpop.xlane.xlu0 %2596
    %v2598 = vsel %vm337, %v2588, 0.0
    %2599 = vadd.xlane.f32.xlu0 %v2598
    %v2600 = vpop.xlane.xlu0 %2599
    %v2601 = vrcp.pop %v2591
    %v2602 = vrcp.pop %v2594
    %v2603 = vrcp.pop %v2597
    %v2604 = vrcp.pop %v2600
    %v2605 = vmul.f32 %v2582, %v2601
    %v2606 = vmul.f32 %v2584, %v2602
    %v2607 = vmul.f32 %v2586, %v2603
    %v2608 = vmul.f32 %v2588, %v2604
    %v2609 = vpack.c.bf16 %v2606, %v2605
    %v2610 = vpack.c.bf16 %v2608, %v2607
    %2611 = vrot.lane.b32.xlu0 %v2085, 80
    %v2612 = vpop.permute.xlu0 %2611
    %2613 = vrot.lane.b32.xlu0 %v2086, 80
    %v2614 = vpop.permute.xlu0 %2613
    %v2618 = vsel %vm337, %v2609, 0
    %v2621 = vsel %vm337, %v2610, 0
    %2623 = vmatprep.subr.bf16.mxu0 0
    %2624 = vmatpush1.bf16.msra.mxu0 %v2612
    %2625 = vmatprep.subr.bf16.mxu0 0
    %2626 = vmatpush1.bf16.msra.mxu0 %v2614
    %2627 = vmatprep.subr.bf16.mxu0 0
    %2628 = vmatpush1.bf16.msra.mxu0 0
    %2629 = vmatprep.subr.bf16.mxu0 0
    %2630 = vmatpush1.bf16.msra.mxu0 0
    %2631 = vmatprep.subr.bf16.mxu0 0
    %2632 = vmatpush1.bf16.msra.mxu0 0
    %2633 = vmatprep.subr.bf16.mxu0 0
    %2634 = vmatpush1.bf16.msra.mxu0 0
    %2635 = vmatprep.subr.bf16.mxu0 0
    %2636 = vmatpush1.bf16.msra.mxu0 0
    %2637 = vmatprep.subr.bf16.mxu0 0
    %2638 = vmatpush1.bf16.msra.mxu0 0
    %2639 = vmatprep.subr.bf16.mxu0 0
    %2640 = vmatpush1.bf16.msra.mxu0 0
    %2641 = vmatprep.subr.bf16.mxu0 0
    %2642 = vmatpush1.bf16.msra.mxu0 0
    %2643 = vmatprep.subr.bf16.mxu0 0
    %2644 = vmatpush1.bf16.msra.mxu0 0
    %2645 = vmatprep.subr.bf16.mxu0 0
    %2646 = vmatpush1.bf16.msra.mxu0 0
    %2647 = vmatprep.subr.bf16.mxu0 0
    %2648 = vmatpush1.bf16.msra.mxu0 0
    %2649 = vmatprep.subr.bf16.mxu0 0
    %2650 = vmatpush1.bf16.msra.mxu0 0
    %2651 = vmatprep.subr.bf16.mxu0 0
    %2652 = vmatpush1.bf16.msra.mxu0 0
    %2653 = vmatprep.subr.bf16.mxu0 0
    %2654 = vmatpush1.bf16.msra.mxu0 0
    %2655 = vmatprep.mubr.bf16.mxu0 0
    %2656 = vmatmul.mubr.bf16.gmra.mrb[0].mxu0 %v2618
    %v2657 = vpop.f32.mrb[0].mxu0
    %v2658 = vadd.f32 0.0, %v2657
    %v2659 = vpop.f32.mrb[0].mxu0
    %v2660 = vpop.f32.mrb[0].mxu0
    %v2661 = vadd.f32 0.0, %v2660
    %v2662 = vpop.f32.mrb[0].mxu0
    %2663 = vmatprep.mubr.bf16.mxu0 0
    %2664 = vmatmul.mubr.bf16.gmra.mrb[0].mxu0 %v2621
    %v2665 = vpop.f32.mrb[0].mxu0
    %v2666 = vadd.f32 0.0, %v2665
    %v2667 = vpop.f32.mrb[0].mxu0
    %v2668 = vpop.f32.mrb[0].mxu0
    %v2669 = vadd.f32 0.0, %v2668
    %v2670 = vpop.f32.mrb[0].mxu0
    %2671 = vdwg.mxu0
    %2676 = vrot.lane.b32.xlu0 %v2306, 16
    %v2677 = vpop.permute.xlu0 %2676
    %2678 = vrot.lane.b32.xlu0 %v2309, 16
    %v2679 = vpop.permute.xlu0 %2678
    %2680 = vrot.lane.b32.xlu0 %v2314, 16
    %v2681 = vpop.permute.xlu0 %2680
    %2682 = vrot.lane.b32.xlu0 %v2317, 16
    %v2683 = vpop.permute.xlu0 %2682
    %2692 = vrot.lane.b32.xlu0 %v2482, 32
    %v2693 = vpop.permute.xlu0 %2692
    %2694 = vrot.lane.b32.xlu0 %v2485, 32
    %v2695 = vpop.permute.xlu0 %2694
    %2696 = vrot.lane.b32.xlu0 %v2490, 32
    %v2697 = vpop.permute.xlu0 %2696
    %2698 = vrot.lane.b32.xlu0 %v2493, 32
    %v2699 = vpop.permute.xlu0 %2698
    %2708 = vrot.lane.b32.xlu0 %v2658, 48
    %v2709 = vpop.permute.xlu0 %2708
    %2710 = vrot.lane.b32.xlu0 %v2661, 48
    %v2711 = vpop.permute.xlu0 %2710
    %2712 = vrot.lane.b32.xlu0 %v2666, 48
    %v2713 = vpop.permute.xlu0 %2712
    %2714 = vrot.lane.b32.xlu0 %v2669, 48
    %v2715 = vpop.permute.xlu0 %2714
    %v2720 = vsel %vm614, %v2128, %v2677
    %v2721 = vsel %vm614, %v2131, %v2679
    %v2722 = vsel %vm614, %v2136, %v2681
    %v2723 = vsel %vm614, %v2139, %v2683
    %v2724 = vsel %vm337, %v2720, %v2693
    %v2725 = vsel %vm337, %v2721, %v2695
    %v2726 = vsel %vm337, %v2722, %v2697
    %v2727 = vsel %vm337, %v2723, %v2699
    %v2728 = vsel %vm1365, %v2724, %v2709
    %v2729 = vsel %vm1365, %v2725, %v2711
    %v2730 = vsel %vm1365, %v2726, %v2713
    %v2731 = vsel %vm1365, %v2727, %v2715
    %s2732 = scalar_lea.vmem %s9, 32
    %v2733 = vld [vmem:[%s2732] sm:$0xf]
    %v2734 = vld [vmem:[%s2732 + $0x4] sm:$0xf]
    %v2735 = vld [vmem:[%s2732 + $0x8] sm:$0xf]
    %v2736 = vld [vmem:[%s2732 + $0xc] sm:$0xf]
    %v2737 = vld [vmem:[%s2732 + $0x10] sm:$0xf]
    %v2738 = vld [vmem:[%s2732 + $0x14] sm:$0xf]
    %v2739 = vld [vmem:[%s2732 + $0x18] sm:$0xf]
    %v2740 = vld [vmem:[%s2732 + $0x1c] sm:$0xf]
    %v2741 = vpack.c.bf16 %v2729, %v2728
    %v2742 = vpack.c.bf16 %v2731, %v2730
    %v2751 = vunpack.c.l.b16 %v2733
    %v2752 = vunpack.c.l.b16 %v2734
    %v2753 = vunpack.c.l.b16 %v2735
    %v2754 = vunpack.c.l.b16 %v2736
    %v2755 = vunpack.c.l.b16 %v2737
    %v2756 = vunpack.c.l.b16 %v2738
    %v2757 = vunpack.c.l.b16 %v2739
    %v2758 = vunpack.c.l.b16 %v2740
    %v2759 = vpack.c.b16 %v2752, %v2751
    %v2760 = vpack.c.b16 %v2754, %v2753
    %v2761 = vpack.c.b16 %v2756, %v2755
    %v2762 = vpack.c.b16 %v2758, %v2757
    %v2768 = vsel %vm423, %v2741, 0
    %v2771 = vsel %vm423, %v2742, 0
    %2773 = vmatprep.subr.bf16.mxu0 0
    %2774 = vmatpush1.bf16.msra.mxu0 %v2759
    %2775 = vmatprep.subr.bf16.mxu0 0
    %2776 = vmatpush1.bf16.msra.mxu0 %v2760
    %2777 = vmatprep.subr.bf16.mxu0 0
    %2778 = vmatpush1.bf16.msra.mxu0 %v2761
    %2779 = vmatprep.subr.bf16.mxu0 0
    %2780 = vmatpush1.bf16.msra.mxu0 %v2762
    %2781 = vmatprep.subr.bf16.mxu0 0
    %2782 = vmatpush1.bf16.msra.mxu0 0
    %2783 = vmatprep.subr.bf16.mxu0 0
    %2784 = vmatpush1.bf16.msra.mxu0 0
    %2785 = vmatprep.subr.bf16.mxu0 0
    %2786 = vmatpush1.bf16.msra.mxu0 0
    %2787 = vmatprep.subr.bf16.mxu0 0
    %2788 = vmatpush1.bf16.msra.mxu0 0
    %2789 = vmatprep.subr.bf16.mxu0 0
    %2790 = vmatpush1.bf16.msra.mxu0 0
    %2791 = vmatprep.subr.bf16.mxu0 0
    %2792 = vmatpush1.bf16.msra.mxu0 0
    %2793 = vmatprep.subr.bf16.mxu0 0
    %2794 = vmatpush1.bf16.msra.mxu0 0
    %2795 = vmatprep.subr.bf16.mxu0 0
    %2796 = vmatpush1.bf16.msra.mxu0 0
    %2797 = vmatprep.subr.bf16.mxu0 0
    %2798 = vmatpush1.bf16.msra.mxu0 0
    %2799 = vmatprep.subr.bf16.mxu0 0
    %2800 = vmatpush1.bf16.msra.mxu0 0
    %2801 = vmatprep.subr.bf16.mxu0 0
    %2802 = vmatpush1.bf16.msra.mxu0 0
    %2803 = vmatprep.subr.bf16.mxu0 0
    %2804 = vmatpush1.bf16.msra.mxu0 0
    %2805 = vmatprep.mubr.bf16.mxu0 0
    %2806 = vmatmul.mubr.bf16.gmra.mrb[0].mxu0 %v2768
    %v2807 = vpop.f32.mrb[0].mxu0
    %v2808 = vadd.f32 0.0, %v2807
    %v2809 = vpop.f32.mrb[0].mxu0
    %v2810 = vpop.f32.mrb[0].mxu0
    %v2811 = vadd.f32 0.0, %v2810
    %v2812 = vpop.f32.mrb[0].mxu0
    %2813 = vmatprep.mubr.bf16.mxu0 0
    %2814 = vmatmul.mubr.bf16.gmra.mrb[0].mxu0 %v2771
    %v2815 = vpop.f32.mrb[0].mxu0
    %v2816 = vadd.f32 0.0, %v2815
    %v2817 = vpop.f32.mrb[0].mxu0
    %v2818 = vpop.f32.mrb[0].mxu0
    %v2819 = vadd.f32 0.0, %v2818
    %v2820 = vpop.f32.mrb[0].mxu0
    %2821 = vdwg.mxu0
    %v2822 = vadd.f32 %v1780, %v2808
    %v2823 = vadd.f32 %v1781, %v2811
    %v2824 = vadd.f32 %v1782, %v2816
    %v2825 = vadd.f32 %v1783, %v2819
    %s2826 = scalar_lea.vmem [#allocation9], 1
    %v2827 = vld [vmem:[%s2826] sm:$0x1]
    %v2829 = vlaneseq
    %v2830 = vshrl.u32 %v2829, 7
    %v2831 = vsub.s32 0, %v2830
    %v2832 = vrot.slane %v2827, %v2831
    %v2834 = vadd.f32 %v2822, %v2832
    %v2835 = vadd.f32 %v2823, %v2832
    %v2836 = vadd.f32 %v2824, %v2832
    %v2837 = vadd.f32 %v2825, %v2832
    %s2838 = scalar_lea.vmem [#allocation11], 1
    %v2839 = vld [vmem:[%s2838] sm:$0x1]
    %s2840 = scalar_lea.vmem [#allocation12], 1
    %v2841 = vld [vmem:[%s2840] sm:$0x1]
    %v2842 = vsel %vm423, %v2834, 0.0
    %2843 = vadd.xlane.f32.xlu0 %v2842
    %v2844 = vpop.xlane.xlu0 %2843
    %v2845 = vsel %vm423, %v2835, 0.0
    %2846 = vadd.xlane.f32.xlu0 %v2845
    %v2847 = vpop.xlane.xlu0 %2846
    %v2848 = vsel %vm423, %v2836, 0.0
    %2849 = vadd.xlane.f32.xlu0 %v2848
    %v2850 = vpop.xlane.xlu0 %2849
    %v2851 = vsel %vm423, %v2837, 0.0
    %2852 = vadd.xlane.f32.xlu0 %v2851
    %v2853 = vpop.xlane.xlu0 %2852
    %v2854 = vmul.f32 %v2844, %v436
    %v2855 = vmul.f32 %v2847, %v436
    %v2856 = vmul.f32 %v2850, %v436
    %v2857 = vmul.f32 %v2853, %v436
    %v2858 = vsub.f32 %v2834, %v2854
    %v2859 = vsub.f32 %v2835, %v2855
    %v2860 = vsub.f32 %v2836, %v2856
    %v2861 = vsub.f32 %v2837, %v2857
    %v2862 = vmul.f32 %v2858, %v2858
    %v2863 = vmul.f32 %v2859, %v2859
    %v2864 = vmul.f32 %v2860, %v2860
    %v2865 = vmul.f32 %v2861, %v2861
    %v2866 = vsel %vm423, %v2862, 0.0
    %2867 = vadd.xlane.f32.xlu0 %v2866
    %v2868 = vpop.xlane.xlu0 %2867
    %v2869 = vsel %vm423, %v2863, 0.0
    %2870 = vadd.xlane.f32.xlu0 %v2869
    %v2871 = vpop.xlane.xlu0 %2870
    %v2872 = vsel %vm423, %v2864, 0.0
    %2873 = vadd.xlane.f32.xlu0 %v2872
    %v2874 = vpop.xlane.xlu0 %2873
    %v2875 = vsel %vm423, %v2865, 0.0
    %2876 = vadd.xlane.f32.xlu0 %v2875
    %v2877 = vpop.xlane.xlu0 %2876
    %v2878 = vmul.f32 %v2868, %v436
    %v2879 = vmul.f32 %v2871, %v436
    %v2880 = vmul.f32 %v2874, %v436
    %v2881 = vmul.f32 %v2877, %v436
    %v2882 = vadd.f32 %v2878, 1e-05
    %v2883 = vadd.f32 %v2879, 1e-05
    %v2884 = vadd.f32 %v2880, 1e-05
    %v2885 = vadd.f32 %v2881, 1e-05
    %v2886 = vrsqrt.pop %v2882
    %v2887 = vrsqrt.pop %v2883
    %v2888 = vrsqrt.pop %v2884
    %v2889 = vrsqrt.pop %v2885
    %v2890 = vmul.f32 %v2858, %v2886
    %v2891 = vmul.f32 %v2859, %v2887
    %v2892 = vmul.f32 %v2860, %v2888
    %v2893 = vmul.f32 %v2861, %v2889
    %v2895 = vlaneseq
    %v2896 = vshrl.u32 %v2895, 7
    %v2897 = vsub.s32 0, %v2896
    %v2898 = vrot.slane %v2839, %v2897
    %v2900 = vmul.f32 %v2890, %v2898
    %v2901 = vmul.f32 %v2891, %v2898
    %v2902 = vmul.f32 %v2892, %v2898
    %v2903 = vmul.f32 %v2893, %v2898
    %v2905 = vlaneseq
    %v2906 = vshrl.u32 %v2905, 7
    %v2907 = vsub.s32 0, %v2906
    %v2908 = vrot.slane %v2841, %v2907
    %v2910 = vadd.f32 %v2900, %v2908
    %v2911 = vadd.f32 %v2901, %v2908
    %v2912 = vadd.f32 %v2902, %v2908
    %v2913 = vadd.f32 %v2903, %v2908
    %s2914 = scalar_lea.vmem [#allocation14], 32
    %v2915 = vld [vmem:[%s2914] sm:$0xf]
    %v2916 = vld [vmem:[%s2914 + $0x4] sm:$0xf]
    %v2917 = vld [vmem:[%s2914 + $0x8] sm:$0xf]
    %v2918 = vld [vmem:[%s2914 + $0xc] sm:$0xf]
    %v2919 = vld [vmem:[%s2914 + $0x10] sm:$0xf]
    %v2920 = vld [vmem:[%s2914 + $0x14] sm:$0xf]
    %v2921 = vld [vmem:[%s2914 + $0x18] sm:$0xf]
    %v2922 = vld [vmem:[%s2914 + $0x1c] sm:$0xf]
    %v2923 = vpack.c.bf16 %v2911, %v2910
    %v2924 = vpack.c.bf16 %v2913, %v2912
    %s2925 = scalar_lea.vmem [#allocation15], 1
    %v2926 = vld [vmem:[%s2925] sm:$0x1]
    %v2928 = vlaneseq
    %v2929 = vshrl.u32 %v2928, 7
    %v2930 = vsub.s32 0, %v2929
    %v2931 = vrot.slane %v2926, %v2930
    %v2941 = vunpack.c.l.b16 %v2915
    %v2942 = vunpack.c.l.b16 %v2916
    %v2943 = vunpack.c.l.b16 %v2917
    %v2944 = vunpack.c.l.b16 %v2918
    %v2945 = vunpack.c.l.b16 %v2919
    %v2946 = vunpack.c.l.b16 %v2920
    %v2947 = vunpack.c.l.b16 %v2921
    %v2948 = vunpack.c.l.b16 %v2922
    %v2949 = vpack.c.b16 %v2942, %v2941
    %v2950 = vpack.c.b16 %v2944, %v2943
    %v2951 = vpack.c.b16 %v2946, %v2945
    %v2952 = vpack.c.b16 %v2948, %v2947
    %v2958 = vsel %vm423, %v2923, 0
    %v2961 = vsel %vm423, %v2924, 0
    %2963 = vmatprep.subr.bf16.mxu0 0
    %2964 = vmatpush1.bf16.msra.mxu0 %v2949
    %2965 = vmatprep.subr.bf16.mxu0 0
    %2966 = vmatpush1.bf16.msra.mxu0 %v2950
    %2967 = vmatprep.subr.bf16.mxu0 0
    %2968 = vmatpush1.bf16.msra.mxu0 %v2951
    %2969 = vmatprep.subr.bf16.mxu0 0
    %2970 = vmatpush1.bf16.msra.mxu0 %v2952
    %2971 = vmatprep.subr.bf16.mxu0 0
    %2972 = vmatpush1.bf16.msra.mxu0 0
    %2973 = vmatprep.subr.bf16.mxu0 0
    %2974 = vmatpush1.bf16.msra.mxu0 0
    %2975 = vmatprep.subr.bf16.mxu0 0
    %2976 = vmatpush1.bf16.msra.mxu0 0
    %2977 = vmatprep.subr.bf16.mxu0 0
    %2978 = vmatpush1.bf16.msra.mxu0 0
    %2979 = vmatprep.subr.bf16.mxu0 0
    %2980 = vmatpush1.bf16.msra.mxu0 0
    %2981 = vmatprep.subr.bf16.mxu0 0
    %2982 = vmatpush1.bf16.msra.mxu0 0
    %2983 = vmatprep.subr.bf16.mxu0 0
    %2984 = vmatpush1.bf16.msra.mxu0 0
    %2985 = vmatprep.subr.bf16.mxu0 0
    %2986 = vmatpush1.bf16.msra.mxu0 0
    %2987 = vmatprep.subr.bf16.mxu0 0
    %2988 = vmatpush1.bf16.msra.mxu0 0
    %2989 = vmatprep.subr.bf16.mxu0 0
    %2990 = vmatpush1.bf16.msra.mxu0 0
    %2991 = vmatprep.subr.bf16.mxu0 0
    %2992 = vmatpush1.bf16.msra.mxu0 0
    %2993 = vmatprep.subr.bf16.mxu0 0
    %2994 = vmatpush1.bf16.msra.mxu0 0
    %2995 = vmatprep.mubr.bf16.mxu0 0
    %2996 = vmatmul.mubr.bf16.gmra.mrb[0].mxu0 %v2958
    %v2997 = vpop.f32.mrb[0].mxu0
    %v2998 = vadd.f32 %v2931, %v2997
    %v2999 = vpop.f32.mrb[0].mxu0
    %v3000 = vpop.f32.mrb[0].mxu0
    %v3001 = vadd.f32 %v2931, %v3000
    %v3002 = vpop.f32.mrb[0].mxu0
    %3003 = vmatprep.mubr.bf16.mxu0 0
    %3004 = vmatmul.mubr.bf16.gmra.mrb[0].mxu0 %v2961
    %v3005 = vpop.f32.mrb[0].mxu0
    %v3006 = vadd.f32 %v2931, %v3005
    %v3007 = vpop.f32.mrb[0].mxu0
    %v3008 = vpop.f32.mrb[0].mxu0
    %v3009 = vadd.f32 %v2931, %v3008
    %v3010 = vpop.f32.mrb[0].mxu0
    %3011 = vdwg.mxu0
    %v3012 = vmul.f32 %v2998, %v2998
    %v3013 = vmul.f32 %v3001, %v3001
    %v3014 = vmul.f32 %v3006, %v3006
    %v3015 = vmul.f32 %v3009, %v3009
    %v3016 = vmul.f32 %v2998, %v3012
    %v3017 = vmul.f32 %v3001, %v3013
    %v3018 = vmul.f32 %v3006, %v3014
    %v3019 = vmul.f32 %v3009, %v3015
    %v3020 = vmul.f32 %v3016, 0.044715
    %v3021 = vmul.f32 %v3017, 0.044715
    %v3022 = vmul.f32 %v3018, 0.044715
    %v3023 = vmul.f32 %v3019, 0.044715
    %v3024 = vadd.f32 %v2998, %v3020
    %v3025 = vadd.f32 %v3001, %v3021
    %v3026 = vadd.f32 %v3006, %v3022
    %v3027 = vadd.f32 %v3009, %v3023
    %v3028 = vmul.f32 %v3024, 0.7978846
    %v3029 = vmul.f32 %v3025, 0.7978846
    %v3030 = vmul.f32 %v3026, 0.7978846
    %v3031 = vmul.f32 %v3027, 0.7978846
    %v3032 = vtanh.pop %v3028
    %v3033 = vtanh.pop %v3029
    %v3034 = vtanh.pop %v3030
    %v3035 = vtanh.pop %v3031
    %v3036 = vadd.f32 %v3032, 1.0
    %v3037 = vadd.f32 %v3033, 1.0
    %v3038 = vadd.f32 %v3034, 1.0
    %v3039 = vadd.f32 %v3035, 1.0
    %v3040 = vmul.f32 %v3036, 0.5
    %v3041 = vmul.f32 %v3037, 0.5
    %v3042 = vmul.f32 %v3038, 0.5
    %v3043 = vmul.f32 %v3039, 0.5
    %v3044 = vmul.f32 %v2998, %v3040
    %v3045 = vmul.f32 %v3001, %v3041
    %v3046 = vmul.f32 %v3006, %v3042
    %v3047 = vmul.f32 %v3009, %v3043
    %s3048 = scalar_lea.vmem [#allocation17], 32
    %v3049 = vld [vmem:[%s3048] sm:$0xf]
    %v3050 = vld [vmem:[%s3048 + $0x4] sm:$0xf]
    %v3051 = vld [vmem:[%s3048 + $0x8] sm:$0xf]
    %v3052 = vld [vmem:[%s3048 + $0xc] sm:$0xf]
    %v3053 = vld [vmem:[%s3048 + $0x10] sm:$0xf]
    %v3054 = vld [vmem:[%s3048 + $0x14] sm:$0xf]
    %v3055 = vld [vmem:[%s3048 + $0x18] sm:$0xf]
    %v3056 = vld [vmem:[%s3048 + $0x1c] sm:$0xf]
    %v3057 = vpack.c.bf16 %v3045, %v3044
    %v3058 = vpack.c.bf16 %v3047, %v3046
    %v3067 = vunpack.c.l.b16 %v3049
    %v3068 = vunpack.c.l.b16 %v3050
    %v3069 = vunpack.c.l.b16 %v3051
    %v3070 = vunpack.c.l.b16 %v3052
    %v3071 = vunpack.c.l.b16 %v3053
    %v3072 = vunpack.c.l.b16 %v3054
    %v3073 = vunpack.c.l.b16 %v3055
    %v3074 = vunpack.c.l.b16 %v3056
    %v3075 = vpack.c.b16 %v3068, %v3067
    %v3076 = vpack.c.b16 %v3070, %v3069
    %v3077 = vpack.c.b16 %v3072, %v3071
    %v3078 = vpack.c.b16 %v3074, %v3073
    %v3084 = vsel %vm423, %v3057, 0
    %v3087 = vsel %vm423, %v3058, 0
    %3089 = vmatprep.subr.bf16.mxu0 0
    %3090 = vmatpush1.bf16.msra.mxu0 %v3075
    %3091 = vmatprep.subr.bf16.mxu0 0
    %3092 = vmatpush1.bf16.msra.mxu0 %v3076
    %3093 = vmatprep.subr.bf16.mxu0 0
    %3094 = vmatpush1.bf16.msra.mxu0 %v3077
    %3095 = vmatprep.subr.bf16.mxu0 0
    %3096 = vmatpush1.bf16.msra.mxu0 %v3078
    %3097 = vmatprep.subr.bf16.mxu0 0
    %3098 = vmatpush1.bf16.msra.mxu0 0
    %3099 = vmatprep.subr.bf16.mxu0 0
    %3100 = vmatpush1.bf16.msra.mxu0 0
    %3101 = vmatprep.subr.bf16.mxu0 0
    %3102 = vmatpush1.bf16.msra.mxu0 0
    %3103 = vmatprep.subr.bf16.mxu0 0
    %3104 = vmatpush1.bf16.msra.mxu0 0
    %3105 = vmatprep.subr.bf16.mxu0 0
    %3106 = vmatpush1.bf16.msra.mxu0 0
    %3107 = vmatprep.subr.bf16.mxu0 0
    %3108 = vmatpush1.bf16.msra.mxu0 0
    %3109 = vmatprep.subr.bf16.mxu0 0
    %3110 = vmatpush1.bf16.msra.mxu0 0
    %3111 = vmatprep.subr.bf16.mxu0 0
    %3112 = vmatpush1.bf16.msra.mxu0 0
    %3113 = vmatprep.subr.bf16.mxu0 0
    %3114 = vmatpush1.bf16.msra.mxu0 0
    %3115 = vmatprep.subr.bf16.mxu0 0
    %3116 = vmatpush1.bf16.msra.mxu0 0
    %3117 = vmatprep.subr.bf16.mxu0 0
    %3118 = vmatpush1.bf16.msra.mxu0 0
    %3119 = vmatprep.subr.bf16.mxu0 0
    %3120 = vmatpush1.bf16.msra.mxu0 0
    %3121 = vmatprep.mubr.bf16.mxu0 0
    %3122 = vmatmul.mubr.bf16.gmra.mrb[0].mxu0 %v3084
    %v3123 = vpop.f32.mrb[0].mxu0
    %v3124 = vadd.f32 0.0, %v3123
    %v3125 = vpop.f32.mrb[0].mxu0
    %v3126 = vpop.f32.mrb[0].mxu0
    %v3127 = vadd.f32 0.0, %v3126
    %v3128 = vpop.f32.mrb[0].mxu0
    %3129 = vmatprep.mubr.bf16.mxu0 0
    %3130 = vmatmul.mubr.bf16.gmra.mrb[0].mxu0 %v3087
    %v3131 = vpop.f32.mrb[0].mxu0
    %v3132 = vadd.f32 0.0, %v3131
    %v3133 = vpop.f32.mrb[0].mxu0
    %v3134 = vpop.f32.mrb[0].mxu0
    %v3135 = vadd.f32 0.0, %v3134
    %v3136 = vpop.f32.mrb[0].mxu0
    %3137 = vdwg.mxu0
    %v3138 = vadd.f32 %v2834, %v3124
    %v3139 = vadd.f32 %v2835, %v3127
    %v3140 = vadd.f32 %v2836, %v3132
    %v3141 = vadd.f32 %v2837, %v3135
    %s3142 = scalar_lea.vmem [#allocation18], 1
    %v3143 = vld [vmem:[%s3142] sm:$0x1]
    %v3145 = vlaneseq
    %v3146 = vshrl.u32 %v3145, 7
    %v3147 = vsub.s32 0, %v3146
    %v3148 = vrot.slane %v3143, %v3147
    %v3150 = vadd.f32 %v3138, %v3148
    %v3151 = vadd.f32 %v3139, %v3148
    %v3152 = vadd.f32 %v3140, %v3148
    %v3153 = vadd.f32 %v3141, %v3148
    %s3154 = scalar_lea.vmem [#allocation3], 2
    %v3155 = vld [vmem:[%s3154] sm:$0x1]
    %s3156 = scalar_lea.vmem [#allocation6], 2
    %v3157 = vld [vmem:[%s3156] sm:$0x1]
    %v3158 = vsel %vm423, %v3150, 0.0
    %3159 = vadd.xlane.f32.xlu0 %v3158
    %v3160 = vpop.xlane.xlu0 %3159
    %v3161 = vsel %vm423, %v3151, 0.0
    %3162 = vadd.xlane.f32.xlu0 %v3161
    %v3163 = vpop.xlane.xlu0 %3162
    %v3164 = vsel %vm423, %v3152, 0.0
    %3165 = vadd.xlane.f32.xlu0 %v3164
    %v3166 = vpop.xlane.xlu0 %3165
    %v3167 = vsel %vm423, %v3153, 0.0
    %3168 = vadd.xlane.f32.xlu0 %v3167
    %v3169 = vpop.xlane.xlu0 %3168
    %v3170 = vmul.f32 %v3160, %v436
    %v3171 = vmul.f32 %v3163, %v436
    %v3172 = vmul.f32 %v3166, %v436
    %v3173 = vmul.f32 %v3169, %v436
    %v3174 = vsub.f32 %v3150, %v3170
    %v3175 = vsub.f32 %v3151, %v3171
    %v3176 = vsub.f32 %v3152, %v3172
    %v3177 = vsub.f32 %v3153, %v3173
    %v3178 = vmul.f32 %v3174, %v3174
    %v3179 = vmul.f32 %v3175, %v3175
    %v3180 = vmul.f32 %v3176, %v3176
    %v3181 = vmul.f32 %v3177, %v3177
    %v3182 = vsel %vm423, %v3178, 0.0
    %3183 = vadd.xlane.f32.xlu0 %v3182
    %v3184 = vpop.xlane.xlu0 %3183
    %v3185 = vsel %vm423, %v3179, 0.0
    %3186 = vadd.xlane.f32.xlu0 %v3185
    %v3187 = vpop.xlane.xlu0 %3186
    %v3188 = vsel %vm423, %v3180, 0.0
    %3189 = vadd.xlane.f32.xlu0 %v3188
    %v3190 = vpop.xlane.xlu0 %3189
    %v3191 = vsel %vm423, %v3181, 0.0
    %3192 = vadd.xlane.f32.xlu0 %v3191
    %v3193 = vpop.xlane.xlu0 %3192
    %v3194 = vmul.f32 %v3184, %v436
    %v3195 = vmul.f32 %v3187, %v436
    %v3196 = vmul.f32 %v3190, %v436
    %v3197 = vmul.f32 %v3193, %v436
    %v3198 = vadd.f32 %v3194, 1e-05
    %v3199 = vadd.f32 %v3195, 1e-05
    %v3200 = vadd.f32 %v3196, 1e-05
    %v3201 = vadd.f32 %v3197, 1e-05
    %v3202 = vrsqrt.pop %v3198
    %v3203 = vrsqrt.pop %v3199
    %v3204 = vrsqrt.pop %v3200
    %v3205 = vrsqrt.pop %v3201
    %v3206 = vmul.f32 %v3174, %v3202
    %v3207 = vmul.f32 %v3175, %v3203
    %v3208 = vmul.f32 %v3176, %v3204
    %v3209 = vmul.f32 %v3177, %v3205
    %v3211 = vlaneseq
    %v3212 = vshrl.u32 %v3211, 7
    %v3213 = vsub.s32 0, %v3212
    %v3214 = vrot.slane %v3155, %v3213
    %v3216 = vmul.f32 %v3206, %v3214
    %v3217 = vmul.f32 %v3207, %v3214
    %v3218 = vmul.f32 %v3208, %v3214
    %v3219 = vmul.f32 %v3209, %v3214
    %v3221 = vlaneseq
    %v3222 = vshrl.u32 %v3221, 7
    %v3223 = vsub.s32 0, %v3222
    %v3224 = vrot.slane %v3157, %v3223
    %v3226 = vadd.f32 %v3216, %v3224
    %v3227 = vadd.f32 %v3217, %v3224
    %v3228 = vadd.f32 %v3218, %v3224
    %v3229 = vadd.f32 %v3219, %v3224
    %s3230 = scalar_lea.vmem [#allocation8], 128
    %v3231 = vld [vmem:[%s3230] sm:$0xff]
    %v3232 = vld [vmem:[%s3230 + $0x8] sm:$0xff]
    %v3233 = vld [vmem:[%s3230 + $0x10] sm:$0xff]
    %v3234 = vld [vmem:[%s3230 + $0x18] sm:$0xff]
    %v3235 = vld [vmem:[%s3230 + $0x20] sm:$0xff]
    %v3236 = vld [vmem:[%s3230 + $0x28] sm:$0xff]
    %v3237 = vld [vmem:[%s3230 + $0x30] sm:$0xff]
    %v3238 = vld [vmem:[%s3230 + $0x38] sm:$0xff]
    %v3239 = vpack.c.bf16 %v3227, %v3226
    %v3240 = vpack.c.bf16 %v3229, %v3228
    %v3249 = vunpack.c.l.b16 %v3231
    %v3250 = vunpack.c.h.b16 %v3231
    %v3251 = vunpack.c.l.b16 %v3232
    %v3252 = vunpack.c.h.b16 %v3232
    %v3253 = vunpack.c.l.b16 %v3233
    %v3254 = vunpack.c.h.b16 %v3233
    %v3255 = vunpack.c.l.b16 %v3234
    %v3256 = vunpack.c.h.b16 %v3234
    %v3257 = vunpack.c.l.b16 %v3235
    %v3258 = vunpack.c.h.b16 %v3235
    %v3259 = vunpack.c.l.b16 %v3236
    %v3260 = vunpack.c.h.b16 %v3236
    %v3261 = vunpack.c.l.b16 %v3237
    %v3262 = vunpack.c.h.b16 %v3237
    %v3263 = vunpack.c.l.b16 %v3238
    %v3264 = vunpack.c.h.b16 %v3238
    %v3265 = vpack.c.b16 %v3251, %v3249
    %v3266 = vpack.c.b16 %v3252, %v3250
    %v3267 = vpack.c.b16 %v3255, %v3253
    %v3268 = vpack.c.b16 %v3256, %v3254
    %v3269 = vpack.c.b16 %v3259, %v3257
    %v3270 = vpack.c.b16 %v3260, %v3258
    %v3271 = vpack.c.b16 %v3263, %v3261
    %v3272 = vpack.c.b16 %v3264, %v3262
    %v3282 = vsel %vm423, %v3239, 0
    %v3285 = vsel %vm423, %v3240, 0
    %3287 = vmatprep.subr.bf16.mxu0 %v3266
    %3288 = vmatpush1.bf16.msra.mxu0 %v3265
    %3289 = vmatprep.subr.bf16.mxu0 %v3268
    %3290 = vmatpush1.bf16.msra.mxu0 %v3267
    %3291 = vmatprep.subr.bf16.mxu0 %v3270
    %3292 = vmatpush1.bf16.msra.mxu0 %v3269
    %3293 = vmatprep.subr.bf16.mxu0 %v3272
    %3294 = vmatpush1.bf16.msra.mxu0 %v3271
    %3295 = vmatprep.subr.bf16.mxu0 0
    %3296 = vmatpush1.bf16.msra.mxu0 0
    %3297 = vmatprep.subr.bf16.mxu0 0
    %3298 = vmatpush1.bf16.msra.mxu0 0
    %3299 = vmatprep.subr.bf16.mxu0 0
    %3300 = vmatpush1.bf16.msra.mxu0 0
    %3301 = vmatprep.subr.bf16.mxu0 0
    %3302 = vmatpush1.bf16.msra.mxu0 0
    %3303 = vmatprep.subr.bf16.mxu0 0
    %3304 = vmatpush1.bf16.msra.mxu0 0
    %3305 = vmatprep.subr.bf16.mxu0 0
    %3306 = vmatpush1.bf16.msra.mxu0 0
    %3307 = vmatprep.subr.bf16.mxu0 0
    %3308 = vmatpush1.bf16.msra.mxu0 0
    %3309 = vmatprep.subr.bf16.mxu0 0
    %3310 = vmatpush1.bf16.msra.mxu0 0
    %3311 = vmatprep.subr.bf16.mxu0 0
    %3312 = vmatpush1.bf16.msra.mxu0 0
    %3313 = vmatprep.subr.bf16.mxu0 0
    %3314 = vmatpush1.bf16.msra.mxu0 0
    %3315 = vmatprep.subr.bf16.mxu0 0
    %3316 = vmatpush1.bf16.msra.mxu0 0
    %3317 = vmatprep.subr.bf16.mxu0 0
    %3318 = vmatpush1.bf16.msra.mxu0 0
    %3319 = vmatprep.mubr.bf16.mxu0 0
    %3320 = vmatmul.mubr.bf16.gmra.mrb[0].mxu0 %v3282
    %v3321 = vpop.f32.mrb[0].mxu0
    %v3322 = vadd.f32 0.0, %v3321
    %v3323 = vpop.f32.mrb[0].mxu0
    %v3324 = vadd.f32 0.0, %v3323
    %v3325 = vpop.f32.mrb[0].mxu0
    %v3326 = vadd.f32 0.0, %v3325
    %v3327 = vpop.f32.mrb[0].mxu0
    %v3328 = vadd.f32 0.0, %v3327
    %3329 = vmatprep.mubr.bf16.mxu0 0
    %3330 = vmatmul.mubr.bf16.gmra.mrb[0].mxu0 %v3285
    %v3331 = vpop.f32.mrb[0].mxu0
    %v3332 = vadd.f32 0.0, %v3331
    %v3333 = vpop.f32.mrb[0].mxu0
    %v3334 = vadd.f32 0.0, %v3333
    %v3335 = vpop.f32.mrb[0].mxu0
    %v3336 = vadd.f32 0.0, %v3335
    %v3337 = vpop.f32.mrb[0].mxu0
    %v3338 = vadd.f32 0.0, %v3337
    %3339 = vdwg.mxu0
    %v3340 = vpack.c.bf16 %v3326, %v3322
    %v3341 = vpack.c.bf16 %v3336, %v3332
    %3344 = vrot.lane.b32.xlu0 %v3340, 64
    %v3345 = vpop.permute.xlu0 %3344
    %3346 = vrot.lane.b32.xlu0 %v3341, 64
    %v3347 = vpop.permute.xlu0 %3346
    %v3349 = vsel %vm614, %v3340, 0
    %v3352 = vsel %vm614, %v3341, 0
    %v3355 = vsel %vm614, %v3345, 0
    %v3358 = vsel %vm614, %v3347, 0
    %3360 = vmatprep.subr.bf16.mxu0 0
    %3361 = vmatpush1.bf16.xpose.msra.mxu0 %v3355
    %3362 = vmatprep.subr.bf16.mxu0 0
    %3363 = vmatpush1.bf16.xpose.msra.mxu0 %v3358
    %3364 = vmatprep.subr.bf16.mxu0 0
    %3365 = vmatpush1.bf16.xpose.msra.mxu0 0
    %3366 = vmatprep.subr.bf16.mxu0 0
    %3367 = vmatpush1.bf16.xpose.msra.mxu0 0
    %3368 = vmatprep.subr.bf16.mxu0 0
    %3369 = vmatpush1.bf16.xpose.msra.mxu0 0
    %3370 = vmatprep.subr.bf16.mxu0 0
    %3371 = vmatpush1.bf16.xpose.msra.mxu0 0
    %3372 = vmatprep.subr.bf16.mxu0 0
    %3373 = vmatpush1.bf16.xpose.msra.mxu0 0
    %3374 = vmatprep.subr.bf16.mxu0 0
    %3375 = vmatpush1.bf16.xpose.msra.mxu0 0
    %3376 = vmatprep.subr.bf16.mxu0 0
    %3377 = vmatpush1.bf16.xpose.msra.mxu0 0
    %3378 = vmatprep.subr.bf16.mxu0 0
    %3379 = vmatpush1.bf16.xpose.msra.mxu0 0
    %3380 = vmatprep.subr.bf16.mxu0 0
    %3381 = vmatpush1.bf16.xpose.msra.mxu0 0
    %3382 = vmatprep.subr.bf16.mxu0 0
    %3383 = vmatpush1.bf16.xpose.msra.mxu0 0
    %3384 = vmatprep.subr.bf16.mxu0 0
    %3385 = vmatpush1.bf16.xpose.msra.mxu0 0
    %3386 = vmatprep.subr.bf16.mxu0 0
    %3387 = vmatpush1.bf16.xpose.msra.mxu0 0
    %3388 = vmatprep.subr.bf16.mxu0 0
    %3389 = vmatpush1.bf16.xpose.msra.mxu0 0
    %3390 = vmatprep.subr.bf16.mxu0 0
    %3391 = vmatpush1.bf16.xpose.msra.mxu0 0
    %3392 = vmatprep.mubr.bf16.mxu0 0
    %3393 = vmatmul.mubr.bf16.gmra.mrb[0].mxu0 %v3349
    %v3394 = vpop.f32.mrb[0].mxu0
    %v3395 = vadd.f32 %v304, %v3394
    %v3396 = vpop.f32.mrb[0].mxu0
    %v3397 = vpop.f32.mrb[0].mxu0
    %v3398 = vadd.f32 %v305, %v3397
    %v3399 = vpop.f32.mrb[0].mxu0
    %3400 = vmatprep.mubr.bf16.mxu0 0
    %3401 = vmatmul.mubr.bf16.gmra.mrb[0].mxu0 %v3352
    %v3402 = vpop.f32.mrb[0].mxu0
    %v3403 = vadd.f32 %v306, %v3402
    %v3404 = vpop.f32.mrb[0].mxu0
    %v3405 = vpop.f32.mrb[0].mxu0
    %v3406 = vadd.f32 %v307, %v3405
    %v3407 = vpop.f32.mrb[0].mxu0
    %3408 = vdwg.mxu0
    %v3409 = vsel %vm337, %v3395, -inf
    %3410 = vmax.xlane.f32.xlu0 %v3409
    %v3411 = vpop.xlane.xlu0 %3410
    %v3412 = vsel %vm337, %v3398, -inf
    %3413 = vmax.xlane.f32.xlu0 %v3412
    %v3414 = vpop.xlane.xlu0 %3413
    %v3415 = vsel %vm337, %v3403, -inf
    %3416 = vmax.xlane.f32.xlu0 %v3415
    %v3417 = vpop.xlane.xlu0 %3416
    %v3418 = vsel %vm337, %v3406, -inf
    %3419 = vmax.xlane.f32.xlu0 %v3418
    %v3420 = vpop.xlane.xlu0 %3419
    %v3421 = vsub.f32 %v3395, %v3411
    %v3422 = vsub.f32 %v3398, %v3414
    %v3423 = vsub.f32 %v3403, %v3417
    %v3424 = vsub.f32 %v3406, %v3420
    %v3425 = vmul.f32 %v3421, 1.442695
    %v3426 = vpow.pop %v3425
    %v3427 = vmul.f32 %v3422, 1.442695
    %v3428 = vpow.pop %v3427
    %v3429 = vmul.f32 %v3423, 1.442695
    %v3430 = vpow.pop %v3429
    %v3431 = vmul.f32 %v3424, 1.442695
    %v3432 = vpow.pop %v3431
    %v3433 = vsel %vm337, %v3426, 0.0
    %3434 = vadd.xlane.f32.xlu0 %v3433
    %v3435 = vpop.xlane.xlu0 %3434
    %v3436 = vsel %vm337, %v3428, 0.0
    %3437 = vadd.xlane.f32.xlu0 %v3436
    %v3438 = vpop.xlane.xlu0 %3437
    %v3439 = vsel %vm337, %v3430, 0.0
    %3440 = vadd.xlane.f32.xlu0 %v3439
    %v3441 = vpop.xlane.xlu0 %3440
    %v3442 = vsel %vm337, %v3432, 0.0
    %3443 = vadd.xlane.f32.xlu0 %v3442
    %v3444 = vpop.xlane.xlu0 %3443
    %v3445 = vrcp.pop %v3435
    %v3446 = vrcp.pop %v3438
    %v3447 = vrcp.pop %v3441
    %v3448 = vrcp.pop %v3444
    %v3449 = vmul.f32 %v3426, %v3445
    %v3450 = vmul.f32 %v3428, %v3446
    %v3451 = vmul.f32 %v3430, %v3447
    %v3452 = vmul.f32 %v3432, %v3448
    %v3453 = vpack.c.bf16 %v3450, %v3449
    %v3454 = vpack.c.bf16 %v3452, %v3451
    %v3455 = vpack.c.bf16 %v3328, %v3324
    %v3456 = vpack.c.bf16 %v3338, %v3334
    %v3458 = vsel %vm337, %v3453, 0
    %v3461 = vsel %vm337, %v3454, 0
    %3463 = vmatprep.subr.bf16.mxu0 0
    %3464 = vmatpush1.bf16.msra.mxu0 %v3455
    %3465 = vmatprep.subr.bf16.mxu0 0
    %3466 = vmatpush1.bf16.msra.mxu0 %v3456
    %3467 = vmatprep.subr.bf16.mxu0 0
    %3468 = vmatpush1.bf16.msra.mxu0 0
    %3469 = vmatprep.subr.bf16.mxu0 0
    %3470 = vmatpush1.bf16.msra.mxu0 0
    %3471 = vmatprep.subr.bf16.mxu0 0
    %3472 = vmatpush1.bf16.msra.mxu0 0
    %3473 = vmatprep.subr.bf16.mxu0 0
    %3474 = vmatpush1.bf16.msra.mxu0 0
    %3475 = vmatprep.subr.bf16.mxu0 0
    %3476 = vmatpush1.bf16.msra.mxu0 0
    %3477 = vmatprep.subr.bf16.mxu0 0
    %3478 = vmatpush1.bf16.msra.mxu0 0
    %3479 = vmatprep.subr.bf16.mxu0 0
    %3480 = vmatpush1.bf16.msra.mxu0 0
    %3481 = vmatprep.subr.bf16.mxu0 0
    %3482 = vmatpush1.bf16.msra.mxu0 0
    %3483 = vmatprep.subr.bf16.mxu0 0
    %3484 = vmatpush1.bf16.msra.mxu0 0
    %3485 = vmatprep.subr.bf16.mxu0 0
    %3486 = vmatpush1.bf16.msra.mxu0 0
    %3487 = vmatprep.subr.bf16.mxu0 0
    %3488 = vmatpush1.bf16.msra.mxu0 0
    %3489 = vmatprep.subr.bf16.mxu0 0
    %3490 = vmatpush1.bf16.msra.mxu0 0
    %3491 = vmatprep.subr.bf16.mxu0 0
    %3492 = vmatpush1.bf16.msra.mxu0 0
    %3493 = vmatprep.subr.bf16.mxu0 0
    %3494 = vmatpush1.bf16.msra.mxu0 0
    %3495 = vmatprep.mubr.bf16.mxu0 0
    %3496 = vmatmul.mubr.bf16.gmra.mrb[0].mxu0 %v3458
    %v3497 = vpop.f32.mrb[0].mxu0
    %v3498 = vadd.f32 0.0, %v3497
    %v3499 = vpop.f32.mrb[0].mxu0
    %v3500 = vpop.f32.mrb[0].mxu0
    %v3501 = vadd.f32 0.0, %v3500
    %v3502 = vpop.f32.mrb[0].mxu0
    %3503 = vmatprep.mubr.bf16.mxu0 0
    %3504 = vmatmul.mubr.bf16.gmra.mrb[0].mxu0 %v3461
    %v3505 = vpop.f32.mrb[0].mxu0
    %v3506 = vadd.f32 0.0, %v3505
    %v3507 = vpop.f32.mrb[0].mxu0
    %v3508 = vpop.f32.mrb[0].mxu0
    %v3509 = vadd.f32 0.0, %v3508
    %v3510 = vpop.f32.mrb[0].mxu0
    %3511 = vdwg.mxu0
    %3512 = vrot.lane.b32.xlu0 %v3340, 112
    %v3513 = vpop.permute.xlu0 %3512
    %3514 = vrot.lane.b32.xlu0 %v3341, 112
    %v3515 = vpop.permute.xlu0 %3514
    %3516 = vrot.lane.b32.xlu0 %v3340, 48
    %v3517 = vpop.permute.xlu0 %3516
    %3518 = vrot.lane.b32.xlu0 %v3341, 48
    %v3519 = vpop.permute.xlu0 %3518
    %v3521 = vsel %vm614, %v3513, 0
    %v3524 = vsel %vm614, %v3515, 0
    %v3527 = vsel %vm614, %v3517, 0
    %v3530 = vsel %vm614, %v3519, 0
    %3532 = vmatprep.subr.bf16.mxu0 0
    %3533 = vmatpush1.bf16.xpose.msra.mxu0 %v3527
    %3534 = vmatprep.subr.bf16.mxu0 0
    %3535 = vmatpush1.bf16.xpose.msra.mxu0 %v3530
    %3536 = vmatprep.subr.bf16.mxu0 0
    %3537 = vmatpush1.bf16.xpose.msra.mxu0 0
    %3538 = vmatprep.subr.bf16.mxu0 0
    %3539 = vmatpush1.bf16.xpose.msra.mxu0 0
    %3540 = vmatprep.subr.bf16.mxu0 0
    %3541 = vmatpush1.bf16.xpose.msra.mxu0 0
    %3542 = vmatprep.subr.bf16.mxu0 0
    %3543 = vmatpush1.bf16.xpose.msra.mxu0 0
    %3544 = vmatprep.subr.bf16.mxu0 0
    %3545 = vmatpush1.bf16.xpose.msra.mxu0 0
    %3546 = vmatprep.subr.bf16.mxu0 0
    %3547 = vmatpush1.bf16.xpose.msra.mxu0 0
    %3548 = vmatprep.subr.bf16.mxu0 0
    %3549 = vmatpush1.bf16.xpose.msra.mxu0 0
    %3550 = vmatprep.subr.bf16.mxu0 0
    %3551 = vmatpush1.bf16.xpose.msra.mxu0 0
    %3552 = vmatprep.subr.bf16.mxu0 0
    %3553 = vmatpush1.bf16.xpose.msra.mxu0 0
    %3554 = vmatprep.subr.bf16.mxu0 0
    %3555 = vmatpush1.bf16.xpose.msra.mxu0 0
    %3556 = vmatprep.subr.bf16.mxu0 0
    %3557 = vmatpush1.bf16.xpose.msra.mxu0 0
    %3558 = vmatprep.subr.bf16.mxu0 0
    %3559 = vmatpush1.bf16.xpose.msra.mxu0 0
    %3560 = vmatprep.subr.bf16.mxu0 0
    %3561 = vmatpush1.bf16.xpose.msra.mxu0 0
    %3562 = vmatprep.subr.bf16.mxu0 0
    %3563 = vmatpush1.bf16.xpose.msra.mxu0 0
    %3564 = vmatprep.mubr.bf16.mxu0 0
    %3565 = vmatmul.mubr.bf16.gmra.mrb[0].mxu0 %v3521
    %v3566 = vpop.f32.mrb[0].mxu0
    %v3567 = vadd.f32 %v304, %v3566
    %v3568 = vpop.f32.mrb[0].mxu0
    %v3569 = vpop.f32.mrb[0].mxu0
    %v3570 = vadd.f32 %v305, %v3569
    %v3571 = vpop.f32.mrb[0].mxu0
    %3572 = vmatprep.mubr.bf16.mxu0 0
    %3573 = vmatmul.mubr.bf16.gmra.mrb[0].mxu0 %v3524
    %v3574 = vpop.f32.mrb[0].mxu0
    %v3575 = vadd.f32 %v306, %v3574
    %v3576 = vpop.f32.mrb[0].mxu0
    %v3577 = vpop.f32.mrb[0].mxu0
    %v3578 = vadd.f32 %v307, %v3577
    %v3579 = vpop.f32.mrb[0].mxu0
    %3580 = vdwg.mxu0
    %v3581 = vsel %vm337, %v3567, -inf
    %3582 = vmax.xlane.f32.xlu0 %v3581
    %v3583 = vpop.xlane.xlu0 %3582
    %v3584 = vsel %vm337, %v3570, -inf
    %3585 = vmax.xlane.f32.xlu0 %v3584
    %v3586 = vpop.xlane.xlu0 %3585
    %v3587 = vsel %vm337, %v3575, -inf
    %3588 = vmax.xlane.f32.xlu0 %v3587
    %v3589 = vpop.xlane.xlu0 %3588
    %v3590 = vsel %vm337, %v3578, -inf
    %3591 = vmax.xlane.f32.xlu0 %v3590
    %v3592 = vpop.xlane.xlu0 %3591
    %v3593 = vsub.f32 %v3567, %v3583
    %v3594 = vsub.f32 %v3570, %v3586
    %v3595 = vsub.f32 %v3575, %v3589
    %v3596 = vsub.f32 %v3578, %v3592
    %v3597 = vmul.f32 %v3593, 1.442695
    %v3598 = vpow.pop %v3597
    %v3599 = vmul.f32 %v3594, 1.442695
    %v3600 = vpow.pop %v3599
    %v3601 = vmul.f32 %v3595, 1.442695
    %v3602 = vpow.pop %v3601
    %v3603 = vmul.f32 %v3596, 1.442695
    %v3604 = vpow.pop %v3603
    %v3605 = vsel %vm337, %v3598, 0.0
    %3606 = vadd.xlane.f32.xlu0 %v3605
    %v3607 = vpop.xlane.xlu0 %3606
    %v3608 = vsel %vm337, %v3600, 0.0
    %3609 = vadd.xlane.f32.xlu0 %v3608
    %v3610 = vpop.xlane.xlu0 %3609
    %v3611 = vsel %vm337, %v3602, 0.0
    %3612 = vadd.xlane.f32.xlu0 %v3611
    %v3613 = vpop.xlane.xlu0 %3612
    %v3614 = vsel %vm337, %v3604, 0.0
    %3615 = vadd.xlane.f32.xlu0 %v3614
    %v3616 = vpop.xlane.xlu0 %3615
    %v3617 = vrcp.pop %v3607
    %v3618 = vrcp.pop %v3610
    %v3619 = vrcp.pop %v3613
    %v3620 = vrcp.pop %v3616
    %v3621 = vmul.f32 %v3598, %v3617
    %v3622 = vmul.f32 %v3600, %v3618
    %v3623 = vmul.f32 %v3602, %v3619
    %v3624 = vmul.f32 %v3604, %v3620
    %v3625 = vpack.c.bf16 %v3622, %v3621
    %v3626 = vpack.c.bf16 %v3624, %v3623
    %3629 = vrot.lane.b32.xlu0 %v3455, 112
    %v3630 = vpop.permute.xlu0 %3629
    %3631 = vrot.lane.b32.xlu0 %v3456, 112
    %v3632 = vpop.permute.xlu0 %3631
    %v3636 = vsel %vm337, %v3625, 0
    %v3639 = vsel %vm337, %v3626, 0
    %3641 = vmatprep.subr.bf16.mxu0 0
    %3642 = vmatpush1.bf16.msra.mxu0 %v3630
    %3643 = vmatprep.subr.bf16.mxu0 0
    %3644 = vmatpush1.bf16.msra.mxu0 %v3632
    %3645 = vmatprep.subr.bf16.mxu0 0
    %3646 = vmatpush1.bf16.msra.mxu0 0
    %3647 = vmatprep.subr.bf16.mxu0 0
    %3648 = vmatpush1.bf16.msra.mxu0 0
    %3649 = vmatprep.subr.bf16.mxu0 0
    %3650 = vmatpush1.bf16.msra.mxu0 0
    %3651 = vmatprep.subr.bf16.mxu0 0
    %3652 = vmatpush1.bf16.msra.mxu0 0
    %3653 = vmatprep.subr.bf16.mxu0 0
    %3654 = vmatpush1.bf16.msra.mxu0 0
    %3655 = vmatprep.subr.bf16.mxu0 0
    %3656 = vmatpush1.bf16.msra.mxu0 0
    %3657 = vmatprep.subr.bf16.mxu0 0
    %3658 = vmatpush1.bf16.msra.mxu0 0
    %3659 = vmatprep.subr.bf16.mxu0 0
    %3660 = vmatpush1.bf16.msra.mxu0 0
    %3661 = vmatprep.subr.bf16.mxu0 0
    %3662 = vmatpush1.bf16.msra.mxu0 0
    %3663 = vmatprep.subr.bf16.mxu0 0
    %3664 = vmatpush1.bf16.msra.mxu0 0
    %3665 = vmatprep.subr.bf16.mxu0 0
    %3666 = vmatpush1.bf16.msra.mxu0 0
    %3667 = vmatprep.subr.bf16.mxu0 0
    %3668 = vmatpush1.bf16.msra.mxu0 0
    %3669 = vmatprep.subr.bf16.mxu0 0
    %3670 = vmatpush1.bf16.msra.mxu0 0
    %3671 = vmatprep.subr.bf16.mxu0 0
    %3672 = vmatpush1.bf16.msra.mxu0 0
    %3673 = vmatprep.mubr.bf16.mxu0 0
    %3674 = vmatmul.mubr.bf16.gmra.mrb[0].mxu0 %v3636
    %v3675 = vpop.f32.mrb[0].mxu0
    %v3676 = vadd.f32 0.0, %v3675
    %v3677 = vpop.f32.mrb[0].mxu0
    %v3678 = vpop.f32.mrb[0].mxu0
    %v3679 = vadd.f32 0.0, %v3678
    %v3680 = vpop.f32.mrb[0].mxu0
    %3681 = vmatprep.mubr.bf16.mxu0 0
    %3682 = vmatmul.mubr.bf16.gmra.mrb[0].mxu0 %v3639
    %v3683 = vpop.f32.mrb[0].mxu0
    %v3684 = vadd.f32 0.0, %v3683
    %v3685 = vpop.f32.mrb[0].mxu0
    %v3686 = vpop.f32.mrb[0].mxu0
    %v3687 = vadd.f32 0.0, %v3686
    %v3688 = vpop.f32.mrb[0].mxu0
    %3689 = vdwg.mxu0
    %3690 = vrot.lane.b32.xlu0 %v3340, 96
    %v3691 = vpop.permute.xlu0 %3690
    %3692 = vrot.lane.b32.xlu0 %v3341, 96
    %v3693 = vpop.permute.xlu0 %3692
    %3694 = vrot.lane.b32.xlu0 %v3340, 32
    %v3695 = vpop.permute.xlu0 %3694
    %3696 = vrot.lane.b32.xlu0 %v3341, 32
    %v3697 = vpop.permute.xlu0 %3696
    %v3699 = vsel %vm614, %v3691, 0
    %v3702 = vsel %vm614, %v3693, 0
    %v3705 = vsel %vm614, %v3695, 0
    %v3708 = vsel %vm614, %v3697, 0
    %3710 = vmatprep.subr.bf16.mxu0 0
    %3711 = vmatpush1.bf16.xpose.msra.mxu0 %v3705
    %3712 = vmatprep.subr.bf16.mxu0 0
    %3713 = vmatpush1.bf16.xpose.msra.mxu0 %v3708
    %3714 = vmatprep.subr.bf16.mxu0 0
    %3715 = vmatpush1.bf16.xpose.msra.mxu0 0
    %3716 = vmatprep.subr.bf16.mxu0 0
    %3717 = vmatpush1.bf16.xpose.msra.mxu0 0
    %3718 = vmatprep.subr.bf16.mxu0 0
    %3719 = vmatpush1.bf16.xpose.msra.mxu0 0
    %3720 = vmatprep.subr.bf16.mxu0 0
    %3721 = vmatpush1.bf16.xpose.msra.mxu0 0
    %3722 = vmatprep.subr.bf16.mxu0 0
    %3723 = vmatpush1.bf16.xpose.msra.mxu0 0
    %3724 = vmatprep.subr.bf16.mxu0 0
    %3725 = vmatpush1.bf16.xpose.msra.mxu0 0
    %3726 = vmatprep.subr.bf16.mxu0 0
    %3727 = vmatpush1.bf16.xpose.msra.mxu0 0
    %3728 = vmatprep.subr.bf16.mxu0 0
    %3729 = vmatpush1.bf16.xpose.msra.mxu0 0
    %3730 = vmatprep.subr.bf16.mxu0 0
    %3731 = vmatpush1.bf16.xpose.msra.mxu0 0
    %3732 = vmatprep.subr.bf16.mxu0 0
    %3733 = vmatpush1.bf16.xpose.msra.mxu0 0
    %3734 = vmatprep.subr.bf16.mxu0 0
    %3735 = vmatpush1.bf16.xpose.msra.mxu0 0
    %3736 = vmatprep.subr.bf16.mxu0 0
    %3737 = vmatpush1.bf16.xpose.msra.mxu0 0
    %3738 = vmatprep.subr.bf16.mxu0 0
    %3739 = vmatpush1.bf16.xpose.msra.mxu0 0
    %3740 = vmatprep.subr.bf16.mxu0 0
    %3741 = vmatpush1.bf16.xpose.msra.mxu0 0
    %3742 = vmatprep.mubr.bf16.mxu0 0
    %3743 = vmatmul.mubr.bf16.gmra.mrb[0].mxu0 %v3699
    %v3744 = vpop.f32.mrb[0].mxu0
    %v3745 = vadd.f32 %v304, %v3744
    %v3746 = vpop.f32.mrb[0].mxu0
    %v3747 = vpop.f32.mrb[0].mxu0
    %v3748 = vadd.f32 %v305, %v3747
    %v3749 = vpop.f32.mrb[0].mxu0
    %3750 = vmatprep.mubr.bf16.mxu0 0
    %3751 = vmatmul.mubr.bf16.gmra.mrb[0].mxu0 %v3702
    %v3752 = vpop.f32.mrb[0].mxu0
    %v3753 = vadd.f32 %v306, %v3752
    %v3754 = vpop.f32.mrb[0].mxu0
    %v3755 = vpop.f32.mrb[0].mxu0
    %v3756 = vadd.f32 %v307, %v3755
    %v3757 = vpop.f32.mrb[0].mxu0
    %3758 = vdwg.mxu0
    %v3759 = vsel %vm337, %v3745, -inf
    %3760 = vmax.xlane.f32.xlu0 %v3759
    %v3761 = vpop.xlane.xlu0 %3760
    %v3762 = vsel %vm337, %v3748, -inf
    %3763 = vmax.xlane.f32.xlu0 %v3762
    %v3764 = vpop.xlane.xlu0 %3763
    %v3765 = vsel %vm337, %v3753, -inf
    %3766 = vmax.xlane.f32.xlu0 %v3765
    %v3767 = vpop.xlane.xlu0 %3766
    %v3768 = vsel %vm337, %v3756, -inf
    %3769 = vmax.xlane.f32.xlu0 %v3768
    %v3770 = vpop.xlane.xlu0 %3769
    %v3771 = vsub.f32 %v3745, %v3761
    %v3772 = vsub.f32 %v3748, %v3764
    %v3773 = vsub.f32 %v3753, %v3767
    %v3774 = vsub.f32 %v3756, %v3770
    %v3775 = vmul.f32 %v3771, 1.442695
    %v3776 = vpow.pop %v3775
    %v3777 = vmul.f32 %v3772, 1.442695
    %v3778 = vpow.pop %v3777
    %v3779 = vmul.f32 %v3773, 1.442695
    %v3780 = vpow.pop %v3779
    %v3781 = vmul.f32 %v3774, 1.442695
    %v3782 = vpow.pop %v3781
    %v3783 = vsel %vm337, %v3776, 0.0
    %3784 = vadd.xlane.f32.xlu0 %v3783
    %v3785 = vpop.xlane.xlu0 %3784
    %v3786 = vsel %vm337, %v3778, 0.0
    %3787 = vadd.xlane.f32.xlu0 %v3786
    %v3788 = vpop.xlane.xlu0 %3787
    %v3789 = vsel %vm337, %v3780, 0.0
    %3790 = vadd.xlane.f32.xlu0 %v3789
    %v3791 = vpop.xlane.xlu0 %3790
    %v3792 = vsel %vm337, %v3782, 0.0
    %3793 = vadd.xlane.f32.xlu0 %v3792
    %v3794 = vpop.xlane.xlu0 %3793
    %v3795 = vrcp.pop %v3785
    %v3796 = vrcp.pop %v3788
    %v3797 = vrcp.pop %v3791
    %v3798 = vrcp.pop %v3794
    %v3799 = vmul.f32 %v3776, %v3795
    %v3800 = vmul.f32 %v3778, %v3796
    %v3801 = vmul.f32 %v3780, %v3797
    %v3802 = vmul.f32 %v3782, %v3798
    %v3803 = vpack.c.bf16 %v3800, %v3799
    %v3804 = vpack.c.bf16 %v3802, %v3801
    %3805 = vrot.lane.b32.xlu0 %v3455, 96
    %v3806 = vpop.permute.xlu0 %3805
    %3807 = vrot.lane.b32.xlu0 %v3456, 96
    %v3808 = vpop.permute.xlu0 %3807
    %v3812 = vsel %vm337, %v3803, 0
    %v3815 = vsel %vm337, %v3804, 0
    %3817 = vmatprep.subr.bf16.mxu0 0
    %3818 = vmatpush1.bf16.msra.mxu0 %v3806
    %3819 = vmatprep.subr.bf16.mxu0 0
    %3820 = vmatpush1.bf16.msra.mxu0 %v3808
    %3821 = vmatprep.subr.bf16.mxu0 0
    %3822 = vmatpush1.bf16.msra.mxu0 0
    %3823 = vmatprep.subr.bf16.mxu0 0
    %3824 = vmatpush1.bf16.msra.mxu0 0
    %3825 = vmatprep.subr.bf16.mxu0 0
    %3826 = vmatpush1.bf16.msra.mxu0 0
    %3827 = vmatprep.subr.bf16.mxu0 0
    %3828 = vmatpush1.bf16.msra.mxu0 0
    %3829 = vmatprep.subr.bf16.mxu0 0
    %3830 = vmatpush1.bf16.msra.mxu0 0
    %3831 = vmatprep.subr.bf16.mxu0 0
    %3832 = vmatpush1.bf16.msra.mxu0 0
    %3833 = vmatprep.subr.bf16.mxu0 0
    %3834 = vmatpush1.bf16.msra.mxu0 0
    %3835 = vmatprep.subr.bf16.mxu0 0
    %3836 = vmatpush1.bf16.msra.mxu0 0
    %3837 = vmatprep.subr.bf16.mxu0 0
    %3838 = vmatpush1.bf16.msra.mxu0 0
    %3839 = vmatprep.subr.bf16.mxu0 0
    %3840 = vmatpush1.bf16.msra.mxu0 0
    %3841 = vmatprep.subr.bf16.mxu0 0
    %3842 = vmatpush1.bf16.msra.mxu0 0
    %3843 = vmatprep.subr.bf16.mxu0 0
    %3844 = vmatpush1.bf16.msra.mxu0 0
    %3845 = vmatprep.subr.bf16.mxu0 0
    %3846 = vmatpush1.bf16.msra.mxu0 0
    %3847 = vmatprep.subr.bf16.mxu0 0
    %3848 = vmatpush1.bf16.msra.mxu0 0
    %3849 = vmatprep.mubr.bf16.mxu0 0
    %3850 = vmatmul.mubr.bf16.gmra.mrb[0].mxu0 %v3812
    %v3851 = vpop.f32.mrb[0].mxu0
    %v3852 = vadd.f32 0.0, %v3851
    %v3853 = vpop.f32.mrb[0].mxu0
    %v3854 = vpop.f32.mrb[0].mxu0
    %v3855 = vadd.f32 0.0, %v3854
    %v3856 = vpop.f32.mrb[0].mxu0
    %3857 = vmatprep.mubr.bf16.mxu0 0
    %3858 = vmatmul.mubr.bf16.gmra.mrb[0].mxu0 %v3815
    %v3859 = vpop.f32.mrb[0].mxu0
    %v3860 = vadd.f32 0.0, %v3859
    %v3861 = vpop.f32.mrb[0].mxu0
    %v3862 = vpop.f32.mrb[0].mxu0
    %v3863 = vadd.f32 0.0, %v3862
    %v3864 = vpop.f32.mrb[0].mxu0
    %3865 = vdwg.mxu0
    %3866 = vrot.lane.b32.xlu0 %v3340, 80
    %v3867 = vpop.permute.xlu0 %3866
    %3868 = vrot.lane.b32.xlu0 %v3341, 80
    %v3869 = vpop.permute.xlu0 %3868
    %3870 = vrot.lane.b32.xlu0 %v3340, 16
    %v3871 = vpop.permute.xlu0 %3870
    %3872 = vrot.lane.b32.xlu0 %v3341, 16
    %v3873 = vpop.permute.xlu0 %3872
    %v3875 = vsel %vm614, %v3867, 0
    %v3878 = vsel %vm614, %v3869, 0
    %v3881 = vsel %vm614, %v3871, 0
    %v3884 = vsel %vm614, %v3873, 0
    %3886 = vmatprep.subr.bf16.mxu0 0
    %3887 = vmatpush1.bf16.xpose.msra.mxu0 %v3881
    %3888 = vmatprep.subr.bf16.mxu0 0
    %3889 = vmatpush1.bf16.xpose.msra.mxu0 %v3884
    %3890 = vmatprep.subr.bf16.mxu0 0
    %3891 = vmatpush1.bf16.xpose.msra.mxu0 0
    %3892 = vmatprep.subr.bf16.mxu0 0
    %3893 = vmatpush1.bf16.xpose.msra.mxu0 0
    %3894 = vmatprep.subr.bf16.mxu0 0
    %3895 = vmatpush1.bf16.xpose.msra.mxu0 0
    %3896 = vmatprep.subr.bf16.mxu0 0
    %3897 = vmatpush1.bf16.xpose.msra.mxu0 0
    %3898 = vmatprep.subr.bf16.mxu0 0
    %3899 = vmatpush1.bf16.xpose.msra.mxu0 0
    %3900 = vmatprep.subr.bf16.mxu0 0
    %3901 = vmatpush1.bf16.xpose.msra.mxu0 0
    %3902 = vmatprep.subr.bf16.mxu0 0
    %3903 = vmatpush1.bf16.xpose.msra.mxu0 0
    %3904 = vmatprep.subr.bf16.mxu0 0
    %3905 = vmatpush1.bf16.xpose.msra.mxu0 0
    %3906 = vmatprep.subr.bf16.mxu0 0
    %3907 = vmatpush1.bf16.xpose.msra.mxu0 0
    %3908 = vmatprep.subr.bf16.mxu0 0
    %3909 = vmatpush1.bf16.xpose.msra.mxu0 0
    %3910 = vmatprep.subr.bf16.mxu0 0
    %3911 = vmatpush1.bf16.xpose.msra.mxu0 0
    %3912 = vmatprep.subr.bf16.mxu0 0
    %3913 = vmatpush1.bf16.xpose.msra.mxu0 0
    %3914 = vmatprep.subr.bf16.mxu0 0
    %3915 = vmatpush1.bf16.xpose.msra.mxu0 0
    %3916 = vmatprep.subr.bf16.mxu0 0
    %3917 = vmatpush1.bf16.xpose.msra.mxu0 0
    %3918 = vmatprep.mubr.bf16.mxu0 0
    %3919 = vmatmul.mubr.bf16.gmra.mrb[0].mxu0 %v3875
    %v3920 = vpop.f32.mrb[0].mxu0
    %v3921 = vadd.f32 %v304, %v3920
    %v3922 = vpop.f32.mrb[0].mxu0
    %v3923 = vpop.f32.mrb[0].mxu0
    %v3924 = vadd.f32 %v305, %v3923
    %v3925 = vpop.f32.mrb[0].mxu0
    %3926 = vmatprep.mubr.bf16.mxu0 0
    %3927 = vmatmul.mubr.bf16.gmra.mrb[0].mxu0 %v3878
    %v3928 = vpop.f32.mrb[0].mxu0
    %v3929 = vadd.f32 %v306, %v3928
    %v3930 = vpop.f32.mrb[0].mxu0
    %v3931 = vpop.f32.mrb[0].mxu0
    %v3932 = vadd.f32 %v307, %v3931
    %v3933 = vpop.f32.mrb[0].mxu0
    %3934 = vdwg.mxu0
    %v3935 = vsel %vm337, %v3921, -inf
    %3936 = vmax.xlane.f32.xlu0 %v3935
    %v3937 = vpop.xlane.xlu0 %3936
    %v3938 = vsel %vm337, %v3924, -inf
    %3939 = vmax.xlane.f32.xlu0 %v3938
    %v3940 = vpop.xlane.xlu0 %3939
    %v3941 = vsel %vm337, %v3929, -inf
    %3942 = vmax.xlane.f32.xlu0 %v3941
    %v3943 = vpop.xlane.xlu0 %3942
    %v3944 = vsel %vm337, %v3932, -inf
    %3945 = vmax.xlane.f32.xlu0 %v3944
    %v3946 = vpop.xlane.xlu0 %3945
    %v3947 = vsub.f32 %v3921, %v3937
    %v3948 = vsub.f32 %v3924, %v3940
    %v3949 = vsub.f32 %v3929, %v3943
    %v3950 = vsub.f32 %v3932, %v3946
    %v3951 = vmul.f32 %v3947, 1.442695
    %v3952 = vpow.pop %v3951
    %v3953 = vmul.f32 %v3948, 1.442695
    %v3954 = vpow.pop %v3953
    %v3955 = vmul.f32 %v3949, 1.442695
    %v3956 = vpow.pop %v3955
    %v3957 = vmul.f32 %v3950, 1.442695
    %v3958 = vpow.pop %v3957
    %v3959 = vsel %vm337, %v3952, 0.0
    %3960 = vadd.xlane.f32.xlu0 %v3959
    %v3961 = vpop.xlane.xlu0 %3960
    %v3962 = vsel %vm337, %v3954, 0.0
    %3963 = vadd.xlane.f32.xlu0 %v3962
    %v3964 = vpop.xlane.xlu0 %3963
    %v3965 = vsel %vm337, %v3956, 0.0
    %3966 = vadd.xlane.f32.xlu0 %v3965
    %v3967 = vpop.xlane.xlu0 %3966
    %v3968 = vsel %vm337, %v3958, 0.0
    %3969 = vadd.xlane.f32.xlu0 %v3968
    %v3970 = vpop.xlane.xlu0 %3969
    %v3971 = vrcp.pop %v3961
    %v3972 = vrcp.pop %v3964
    %v3973 = vrcp.pop %v3967
    %v3974 = vrcp.pop %v3970
    %v3975 = vmul.f32 %v3952, %v3971
    %v3976 = vmul.f32 %v3954, %v3972
    %v3977 = vmul.f32 %v3956, %v3973
    %v3978 = vmul.f32 %v3958, %v3974
    %v3979 = vpack.c.bf16 %v3976, %v3975
    %v3980 = vpack.c.bf16 %v3978, %v3977
    %3981 = vrot.lane.b32.xlu0 %v3455, 80
    %v3982 = vpop.permute.xlu0 %3981
    %3983 = vrot.lane.b32.xlu0 %v3456, 80
    %v3984 = vpop.permute.xlu0 %3983
    %v3988 = vsel %vm337, %v3979, 0
    %v3991 = vsel %vm337, %v3980, 0
    %3993 = vmatprep.subr.bf16.mxu0 0
    %3994 = vmatpush1.bf16.msra.mxu0 %v3982
    %3995 = vmatprep.subr.bf16.mxu0 0
    %3996 = vmatpush1.bf16.msra.mxu0 %v3984
    %3997 = vmatprep.subr.bf16.mxu0 0
    %3998 = vmatpush1.bf16.msra.mxu0 0
    %3999 = vmatprep.subr.bf16.mxu0 0
    %4000 = vmatpush1.bf16.msra.mxu0 0
    %4001 = vmatprep.subr.bf16.mxu0 0
    %4002 = vmatpush1.bf16.msra.mxu0 0
    %4003 = vmatprep.subr.bf16.mxu0 0
    %4004 = vmatpush1.bf16.msra.mxu0 0
    %4005 = vmatprep.subr.bf16.mxu0 0
    %4006 = vmatpush1.bf16.msra.mxu0 0
    %4007 = vmatprep.subr.bf16.mxu0 0
    %4008 = vmatpush1.bf16.msra.mxu0 0
    %4009 = vmatprep.subr.bf16.mxu0 0
    %4010 = vmatpush1.bf16.msra.mxu0 0
    %4011 = vmatprep.subr.bf16.mxu0 0
    %4012 = vmatpush1.bf16.msra.mxu0 0
    %4013 = vmatprep.subr.bf16.mxu0 0
    %4014 = vmatpush1.bf16.msra.mxu0 0
    %4015 = vmatprep.subr.bf16.mxu0 0
    %4016 = vmatpush1.bf16.msra.mxu0 0
    %4017 = vmatprep.subr.bf16.mxu0 0
    %4018 = vmatpush1.bf16.msra.mxu0 0
    %4019 = vmatprep.subr.bf16.mxu0 0
    %4020 = vmatpush1.bf16.msra.mxu0 0
    %4021 = vmatprep.subr.bf16.mxu0 0
    %4022 = vmatpush1.bf16.msra.mxu0 0
    %4023 = vmatprep.subr.bf16.mxu0 0
    %4024 = vmatpush1.bf16.msra.mxu0 0
    %4025 = vmatprep.mubr.bf16.mxu0 0
    %4026 = vmatmul.mubr.bf16.gmra.mrb[0].mxu0 %v3988
    %v4027 = vpop.f32.mrb[0].mxu0
    %v4028 = vadd.f32 0.0, %v4027
    %v4029 = vpop.f32.mrb[0].mxu0
    %v4030 = vpop.f32.mrb[0].mxu0
    %v4031 = vadd.f32 0.0, %v4030
    %v4032 = vpop.f32.mrb[0].mxu0
    %4033 = vmatprep.mubr.bf16.mxu0 0
    %4034 = vmatmul.mubr.bf16.gmra.mrb[0].mxu0 %v3991
    %v4035 = vpop.f32.mrb[0].mxu0
    %v4036 = vadd.f32 0.0, %v4035
    %v4037 = vpop.f32.mrb[0].mxu0
    %v4038 = vpop.f32.mrb[0].mxu0
    %v4039 = vadd.f32 0.0, %v4038
    %v4040 = vpop.f32.mrb[0].mxu0
    %4041 = vdwg.mxu0
    %4046 = vrot.lane.b32.xlu0 %v3676, 16
    %v4047 = vpop.permute.xlu0 %4046
    %4048 = vrot.lane.b32.xlu0 %v3679, 16
    %v4049 = vpop.permute.xlu0 %4048
    %4050 = vrot.lane.b32.xlu0 %v3684, 16
    %v4051 = vpop.permute.xlu0 %4050
    %4052 = vrot.lane.b32.xlu0 %v3687, 16
    %v4053 = vpop.permute.xlu0 %4052
    %4062 = vrot.lane.b32.xlu0 %v3852, 32
    %v4063 = vpop.permute.xlu0 %4062
    %4064 = vrot.lane.b32.xlu0 %v3855, 32
    %v4065 = vpop.permute.xlu0 %4064
    %4066 = vrot.lane.b32.xlu0 %v3860, 32
    %v4067 = vpop.permute.xlu0 %4066
    %4068 = vrot.lane.b32.xlu0 %v3863, 32
    %v4069 = vpop.permute.xlu0 %4068
    %4078 = vrot.lane.b32.xlu0 %v4028, 48
    %v4079 = vpop.permute.xlu0 %4078
    %4080 = vrot.lane.b32.xlu0 %v4031, 48
    %v4081 = vpop.permute.xlu0 %4080
    %4082 = vrot.lane.b32.xlu0 %v4036, 48
    %v4083 = vpop.permute.xlu0 %4082
    %4084 = vrot.lane.b32.xlu0 %v4039, 48
    %v4085 = vpop.permute.xlu0 %4084
    %v4090 = vsel %vm614, %v3498, %v4047
    %v4091 = vsel %vm614, %v3501, %v4049
    %v4092 = vsel %vm614, %v3506, %v4051
    %v4093 = vsel %vm614, %v3509, %v4053
    %v4094 = vsel %vm337, %v4090, %v4063
    %v4095 = vsel %vm337, %v4091, %v4065
    %v4096 = vsel %vm337, %v4092, %v4067
    %v4097 = vsel %vm337, %v4093, %v4069
    %v4098 = vsel %vm1365, %v4094, %v4079
    %v4099 = vsel %vm1365, %v4095, %v4081
    %v4100 = vsel %vm1365, %v4096, %v4083
    %v4101 = vsel %vm1365, %v4097, %v4085
    %s4102 = scalar_lea.vmem %s9, 64
    %v4103 = vld [vmem:[%s4102] sm:$0xf]
    %v4104 = vld [vmem:[%s4102 + $0x4] sm:$0xf]
    %v4105 = vld [vmem:[%s4102 + $0x8] sm:$0xf]
    %v4106 = vld [vmem:[%s4102 + $0xc] sm:$0xf]
    %v4107 = vld [vmem:[%s4102 + $0x10] sm:$0xf]
    %v4108 = vld [vmem:[%s4102 + $0x14] sm:$0xf]
    %v4109 = vld [vmem:[%s4102 + $0x18] sm:$0xf]
    %v4110 = vld [vmem:[%s4102 + $0x1c] sm:$0xf]
    %v4111 = vpack.c.bf16 %v4099, %v4098
    %v4112 = vpack.c.bf16 %v4101, %v4100
    %v4121 = vunpack.c.l.b16 %v4103
    %v4122 = vunpack.c.l.b16 %v4104
    %v4123 = vunpack.c.l.b16 %v4105
    %v4124 = vunpack.c.l.b16 %v4106
    %v4125 = vunpack.c.l.b16 %v4107
    %v4126 = vunpack.c.l.b16 %v4108
    %v4127 = vunpack.c.l.b16 %v4109
    %v4128 = vunpack.c.l.b16 %v4110
    %v4129 = vpack.c.b16 %v4122, %v4121
    %v4130 = vpack.c.b16 %v4124, %v4123
    %v4131 = vpack.c.b16 %v4126, %v4125
    %v4132 = vpack.c.b16 %v4128, %v4127
    %v4138 = vsel %vm423, %v4111, 0
    %v4141 = vsel %vm423, %v4112, 0
    %4143 = vmatprep.subr.bf16.mxu0 0
    %4144 = vmatpush1.bf16.msra.mxu0 %v4129
    %4145 = vmatprep.subr.bf16.mxu0 0
    %4146 = vmatpush1.bf16.msra.mxu0 %v4130
    %4147 = vmatprep.subr.bf16.mxu0 0
    %4148 = vmatpush1.bf16.msra.mxu0 %v4131
    %4149 = vmatprep.subr.bf16.mxu0 0
    %4150 = vmatpush1.bf16.msra.mxu0 %v4132
    %4151 = vmatprep.subr.bf16.mxu0 0
    %4152 = vmatpush1.bf16.msra.mxu0 0
    %4153 = vmatprep.subr.bf16.mxu0 0
    %4154 = vmatpush1.bf16.msra.mxu0 0
    %4155 = vmatprep.subr.bf16.mxu0 0
    %4156 = vmatpush1.bf16.msra.mxu0 0
    %4157 = vmatprep.subr.bf16.mxu0 0
    %4158 = vmatpush1.bf16.msra.mxu0 0
    %4159 = vmatprep.subr.bf16.mxu0 0
    %4160 = vmatpush1.bf16.msra.mxu0 0
    %4161 = vmatprep.subr.bf16.mxu0 0
    %4162 = vmatpush1.bf16.msra.mxu0 0
    %4163 = vmatprep.subr.bf16.mxu0 0
    %4164 = vmatpush1.bf16.msra.mxu0 0
    %4165 = vmatprep.subr.bf16.mxu0 0
    %4166 = vmatpush1.bf16.msra.mxu0 0
    %4167 = vmatprep.subr.bf16.mxu0 0
    %4168 = vmatpush1.bf16.msra.mxu0 0
    %4169 = vmatprep.subr.bf16.mxu0 0
    %4170 = vmatpush1.bf16.msra.mxu0 0
    %4171 = vmatprep.subr.bf16.mxu0 0
    %4172 = vmatpush1.bf16.msra.mxu0 0
    %4173 = vmatprep.subr.bf16.mxu0 0
    %4174 = vmatpush1.bf16.msra.mxu0 0
    %4175 = vmatprep.mubr.bf16.mxu0 0
    %4176 = vmatmul.mubr.bf16.gmra.mrb[0].mxu0 %v4138
    %v4177 = vpop.f32.mrb[0].mxu0
    %v4178 = vadd.f32 0.0, %v4177
    %v4179 = vpop.f32.mrb[0].mxu0
    %v4180 = vpop.f32.mrb[0].mxu0
    %v4181 = vadd.f32 0.0, %v4180
    %v4182 = vpop.f32.mrb[0].mxu0
    %4183 = vmatprep.mubr.bf16.mxu0 0
    %4184 = vmatmul.mubr.bf16.gmra.mrb[0].mxu0 %v4141
    %v4185 = vpop.f32.mrb[0].mxu0
    %v4186 = vadd.f32 0.0, %v4185
    %v4187 = vpop.f32.mrb[0].mxu0
    %v4188 = vpop.f32.mrb[0].mxu0
    %v4189 = vadd.f32 0.0, %v4188
    %v4190 = vpop.f32.mrb[0].mxu0
    %4191 = vdwg.mxu0
    %v4192 = vadd.f32 %v3150, %v4178
    %v4193 = vadd.f32 %v3151, %v4181
    %v4194 = vadd.f32 %v3152, %v4186
    %v4195 = vadd.f32 %v3153, %v4189
    %s4196 = scalar_lea.vmem [#allocation9], 2
    %v4197 = vld [vmem:[%s4196] sm:$0x1]
    %v4199 = vlaneseq
    %v4200 = vshrl.u32 %v4199, 7
    %v4201 = vsub.s32 0, %v4200
    %v4202 = vrot.slane %v4197, %v4201
    %v4204 = vadd.f32 %v4192, %v4202
    %v4205 = vadd.f32 %v4193, %v4202
    %v4206 = vadd.f32 %v4194, %v4202
    %v4207 = vadd.f32 %v4195, %v4202
    %s4208 = scalar_lea.vmem [#allocation11], 2
    %v4209 = vld [vmem:[%s4208] sm:$0x1]
    %s4210 = scalar_lea.vmem [#allocation12], 2
    %v4211 = vld [vmem:[%s4210] sm:$0x1]
    %v4212 = vsel %vm423, %v4204, 0.0
    %4213 = vadd.xlane.f32.xlu0 %v4212
    %v4214 = vpop.xlane.xlu0 %4213
    %v4215 = vsel %vm423, %v4205, 0.0
    %4216 = vadd.xlane.f32.xlu0 %v4215
    %v4217 = vpop.xlane.xlu0 %4216
    %v4218 = vsel %vm423, %v4206, 0.0
    %4219 = vadd.xlane.f32.xlu0 %v4218
    %v4220 = vpop.xlane.xlu0 %4219
    %v4221 = vsel %vm423, %v4207, 0.0
    %4222 = vadd.xlane.f32.xlu0 %v4221
    %v4223 = vpop.xlane.xlu0 %4222
    %v4224 = vmul.f32 %v4214, %v436
    %v4225 = vmul.f32 %v4217, %v436
    %v4226 = vmul.f32 %v4220, %v436
    %v4227 = vmul.f32 %v4223, %v436
    %v4228 = vsub.f32 %v4204, %v4224
    %v4229 = vsub.f32 %v4205, %v4225
    %v4230 = vsub.f32 %v4206, %v4226
    %v4231 = vsub.f32 %v4207, %v4227
    %v4232 = vmul.f32 %v4228, %v4228
    %v4233 = vmul.f32 %v4229, %v4229
    %v4234 = vmul.f32 %v4230, %v4230
    %v4235 = vmul.f32 %v4231, %v4231
    %v4236 = vsel %vm423, %v4232, 0.0
    %4237 = vadd.xlane.f32.xlu0 %v4236
    %v4238 = vpop.xlane.xlu0 %4237
    %v4239 = vsel %vm423, %v4233, 0.0
    %4240 = vadd.xlane.f32.xlu0 %v4239
    %v4241 = vpop.xlane.xlu0 %4240
    %v4242 = vsel %vm423, %v4234, 0.0
    %4243 = vadd.xlane.f32.xlu0 %v4242
    %v4244 = vpop.xlane.xlu0 %4243
    %v4245 = vsel %vm423, %v4235, 0.0
    %4246 = vadd.xlane.f32.xlu0 %v4245
    %v4247 = vpop.xlane.xlu0 %4246
    %v4248 = vmul.f32 %v4238, %v436
    %v4249 = vmul.f32 %v4241, %v436
    %v4250 = vmul.f32 %v4244, %v436
    %v4251 = vmul.f32 %v4247, %v436
    %v4252 = vadd.f32 %v4248, 1e-05
    %v4253 = vadd.f32 %v4249, 1e-05
    %v4254 = vadd.f32 %v4250, 1e-05
    %v4255 = vadd.f32 %v4251, 1e-05
    %v4256 = vrsqrt.pop %v4252
    %v4257 = vrsqrt.pop %v4253
    %v4258 = vrsqrt.pop %v4254
    %v4259 = vrsqrt.pop %v4255
    %v4260 = vmul.f32 %v4228, %v4256
    %v4261 = vmul.f32 %v4229, %v4257
    %v4262 = vmul.f32 %v4230, %v4258
    %v4263 = vmul.f32 %v4231, %v4259
    %v4265 = vlaneseq
    %v4266 = vshrl.u32 %v4265, 7
    %v4267 = vsub.s32 0, %v4266
    %v4268 = vrot.slane %v4209, %v4267
    %v4270 = vmul.f32 %v4260, %v4268
    %v4271 = vmul.f32 %v4261, %v4268
    %v4272 = vmul.f32 %v4262, %v4268
    %v4273 = vmul.f32 %v4263, %v4268
    %v4275 = vlaneseq
    %v4276 = vshrl.u32 %v4275, 7
    %v4277 = vsub.s32 0, %v4276
    %v4278 = vrot.slane %v4211, %v4277
    %v4280 = vadd.f32 %v4270, %v4278
    %v4281 = vadd.f32 %v4271, %v4278
    %v4282 = vadd.f32 %v4272, %v4278
    %v4283 = vadd.f32 %v4273, %v4278
    %s4284 = scalar_lea.vmem [#allocation14], 64
    %v4285 = vld [vmem:[%s4284] sm:$0xf]
    %v4286 = vld [vmem:[%s4284 + $0x4] sm:$0xf]
    %v4287 = vld [vmem:[%s4284 + $0x8] sm:$0xf]
    %v4288 = vld [vmem:[%s4284 + $0xc] sm:$0xf]
    %v4289 = vld [vmem:[%s4284 + $0x10] sm:$0xf]
    %v4290 = vld [vmem:[%s4284 + $0x14] sm:$0xf]
    %v4291 = vld [vmem:[%s4284 + $0x18] sm:$0xf]
    %v4292 = vld [vmem:[%s4284 + $0x1c] sm:$0xf]
    %v4293 = vpack.c.bf16 %v4281, %v4280
    %v4294 = vpack.c.bf16 %v4283, %v4282
    %s4295 = scalar_lea.vmem [#allocation15], 2
    %v4296 = vld [vmem:[%s4295] sm:$0x1]
    %v4298 = vlaneseq
    %v4299 = vshrl.u32 %v4298, 7
    %v4300 = vsub.s32 0, %v4299
    %v4301 = vrot.slane %v4296, %v4300
    %v4311 = vunpack.c.l.b16 %v4285
    %v4312 = vunpack.c.l.b16 %v4286
    %v4313 = vunpack.c.l.b16 %v4287
    %v4314 = vunpack.c.l.b16 %v4288
    %v4315 = vunpack.c.l.b16 %v4289
    %v4316 = vunpack.c.l.b16 %v4290
    %v4317 = vunpack.c.l.b16 %v4291
    %v4318 = vunpack.c.l.b16 %v4292
    %v4319 = vpack.c.b16 %v4312, %v4311
    %v4320 = vpack.c.b16 %v4314, %v4313
    %v4321 = vpack.c.b16 %v4316, %v4315
    %v4322 = vpack.c.b16 %v4318, %v4317
    %v4328 = vsel %vm423, %v4293, 0
    %v4331 = vsel %vm423, %v4294, 0
    %4333 = vmatprep.subr.bf16.mxu0 0
    %4334 = vmatpush1.bf16.msra.mxu0 %v4319
    %4335 = vmatprep.subr.bf16.mxu0 0
    %4336 = vmatpush1.bf16.msra.mxu0 %v4320
    %4337 = vmatprep.subr.bf16.mxu0 0
    %4338 = vmatpush1.bf16.msra.mxu0 %v4321
    %4339 = vmatprep.subr.bf16.mxu0 0
    %4340 = vmatpush1.bf16.msra.mxu0 %v4322
    %4341 = vmatprep.subr.bf16.mxu0 0
    %4342 = vmatpush1.bf16.msra.mxu0 0
    %4343 = vmatprep.subr.bf16.mxu0 0
    %4344 = vmatpush1.bf16.msra.mxu0 0
    %4345 = vmatprep.subr.bf16.mxu0 0
    %4346 = vmatpush1.bf16.msra.mxu0 0
    %4347 = vmatprep.subr.bf16.mxu0 0
    %4348 = vmatpush1.bf16.msra.mxu0 0
    %4349 = vmatprep.subr.bf16.mxu0 0
    %4350 = vmatpush1.bf16.msra.mxu0 0
    %4351 = vmatprep.subr.bf16.mxu0 0
    %4352 = vmatpush1.bf16.msra.mxu0 0
    %4353 = vmatprep.subr.bf16.mxu0 0
    %4354 = vmatpush1.bf16.msra.mxu0 0
    %4355 = vmatprep.subr.bf16.mxu0 0
    %4356 = vmatpush1.bf16.msra.mxu0 0
    %4357 = vmatprep.subr.bf16.mxu0 0
    %4358 = vmatpush1.bf16.msra.mxu0 0
    %4359 = vmatprep.subr.bf16.mxu0 0
    %4360 = vmatpush1.bf16.msra.mxu0 0
    %4361 = vmatprep.subr.bf16.mxu0 0
    %4362 = vmatpush1.bf16.msra.mxu0 0
    %4363 = vmatprep.subr.bf16.mxu0 0
    %4364 = vmatpush1.bf16.msra.mxu0 0
    %4365 = vmatprep.mubr.bf16.mxu0 0
    %4366 = vmatmul.mubr.bf16.gmra.mrb[0].mxu0 %v4328
    %v4367 = vpop.f32.mrb[0].mxu0
    %v4368 = vadd.f32 %v4301, %v4367
    %v4369 = vpop.f32.mrb[0].mxu0
    %v4370 = vpop.f32.mrb[0].mxu0
    %v4371 = vadd.f32 %v4301, %v4370
    %v4372 = vpop.f32.mrb[0].mxu0
    %4373 = vmatprep.mubr.bf16.mxu0 0
    %4374 = vmatmul.mubr.bf16.gmra.mrb[0].mxu0 %v4331
    %v4375 = vpop.f32.mrb[0].mxu0
    %v4376 = vadd.f32 %v4301, %v4375
    %v4377 = vpop.f32.mrb[0].mxu0
    %v4378 = vpop.f32.mrb[0].mxu0
    %v4379 = vadd.f32 %v4301, %v4378
    %v4380 = vpop.f32.mrb[0].mxu0
    %4381 = vdwg.mxu0
    %v4382 = vmul.f32 %v4368, %v4368
    %v4383 = vmul.f32 %v4371, %v4371
    %v4384 = vmul.f32 %v4376, %v4376
    %v4385 = vmul.f32 %v4379, %v4379
    %v4386 = vmul.f32 %v4368, %v4382
    %v4387 = vmul.f32 %v4371, %v4383
    %v4388 = vmul.f32 %v4376, %v4384
    %v4389 = vmul.f32 %v4379, %v4385
    %v4390 = vmul.f32 %v4386, 0.044715
    %v4391 = vmul.f32 %v4387, 0.044715
    %v4392 = vmul.f32 %v4388, 0.044715
    %v4393 = vmul.f32 %v4389, 0.044715
    %v4394 = vadd.f32 %v4368, %v4390
    %v4395 = vadd.f32 %v4371, %v4391
    %v4396 = vadd.f32 %v4376, %v4392
    %v4397 = vadd.f32 %v4379, %v4393
    %v4398 = vmul.f32 %v4394, 0.7978846
    %v4399 = vmul.f32 %v4395, 0.7978846
    %v4400 = vmul.f32 %v4396, 0.7978846
    %v4401 = vmul.f32 %v4397, 0.7978846
    %v4402 = vtanh.pop %v4398
    %v4403 = vtanh.pop %v4399
    %v4404 = vtanh.pop %v4400
    %v4405 = vtanh.pop %v4401
    %v4406 = vadd.f32 %v4402, 1.0
    %v4407 = vadd.f32 %v4403, 1.0
    %v4408 = vadd.f32 %v4404, 1.0
    %v4409 = vadd.f32 %v4405, 1.0
    %v4410 = vmul.f32 %v4406, 0.5
    %v4411 = vmul.f32 %v4407, 0.5
    %v4412 = vmul.f32 %v4408, 0.5
    %v4413 = vmul.f32 %v4409, 0.5
    %v4414 = vmul.f32 %v4368, %v4410
    %v4415 = vmul.f32 %v4371, %v4411
    %v4416 = vmul.f32 %v4376, %v4412
    %v4417 = vmul.f32 %v4379, %v4413
    %s4418 = scalar_lea.vmem [#allocation17], 64
    %v4419 = vld [vmem:[%s4418] sm:$0xf]
    %v4420 = vld [vmem:[%s4418 + $0x4] sm:$0xf]
    %v4421 = vld [vmem:[%s4418 + $0x8] sm:$0xf]
    %v4422 = vld [vmem:[%s4418 + $0xc] sm:$0xf]
    %v4423 = vld [vmem:[%s4418 + $0x10] sm:$0xf]
    %v4424 = vld [vmem:[%s4418 + $0x14] sm:$0xf]
    %v4425 = vld [vmem:[%s4418 + $0x18] sm:$0xf]
    %v4426 = vld [vmem:[%s4418 + $0x1c] sm:$0xf]
    %v4427 = vpack.c.bf16 %v4415, %v4414
    %v4428 = vpack.c.bf16 %v4417, %v4416
    %v4437 = vunpack.c.l.b16 %v4419
    %v4438 = vunpack.c.l.b16 %v4420
    %v4439 = vunpack.c.l.b16 %v4421
    %v4440 = vunpack.c.l.b16 %v4422
    %v4441 = vunpack.c.l.b16 %v4423
    %v4442 = vunpack.c.l.b16 %v4424
    %v4443 = vunpack.c.l.b16 %v4425
    %v4444 = vunpack.c.l.b16 %v4426
    %v4445 = vpack.c.b16 %v4438, %v4437
    %v4446 = vpack.c.b16 %v4440, %v4439
    %v4447 = vpack.c.b16 %v4442, %v4441
    %v4448 = vpack.c.b16 %v4444, %v4443
    %v4454 = vsel %vm423, %v4427, 0
    %v4457 = vsel %vm423, %v4428, 0
    %4459 = vmatprep.subr.bf16.mxu0 0
    %4460 = vmatpush1.bf16.msra.mxu0 %v4445
    %4461 = vmatprep.subr.bf16.mxu0 0
    %4462 = vmatpush1.bf16.msra.mxu0 %v4446
    %4463 = vmatprep.subr.bf16.mxu0 0
    %4464 = vmatpush1.bf16.msra.mxu0 %v4447
    %4465 = vmatprep.subr.bf16.mxu0 0
    %4466 = vmatpush1.bf16.msra.mxu0 %v4448
    %4467 = vmatprep.subr.bf16.mxu0 0
    %4468 = vmatpush1.bf16.msra.mxu0 0
    %4469 = vmatprep.subr.bf16.mxu0 0
    %4470 = vmatpush1.bf16.msra.mxu0 0
    %4471 = vmatprep.subr.bf16.mxu0 0
    %4472 = vmatpush1.bf16.msra.mxu0 0
    %4473 = vmatprep.subr.bf16.mxu0 0
    %4474 = vmatpush1.bf16.msra.mxu0 0
    %4475 = vmatprep.subr.bf16.mxu0 0
    %4476 = vmatpush1.bf16.msra.mxu0 0
    %4477 = vmatprep.subr.bf16.mxu0 0
    %4478 = vmatpush1.bf16.msra.mxu0 0
    %4479 = vmatprep.subr.bf16.mxu0 0
    %4480 = vmatpush1.bf16.msra.mxu0 0
    %4481 = vmatprep.subr.bf16.mxu0 0
    %4482 = vmatpush1.bf16.msra.mxu0 0
    %4483 = vmatprep.subr.bf16.mxu0 0
    %4484 = vmatpush1.bf16.msra.mxu0 0
    %4485 = vmatprep.subr.bf16.mxu0 0
    %4486 = vmatpush1.bf16.msra.mxu0 0
    %4487 = vmatprep.subr.bf16.mxu0 0
    %4488 = vmatpush1.bf16.msra.mxu0 0
    %4489 = vmatprep.subr.bf16.mxu0 0
    %4490 = vmatpush1.bf16.msra.mxu0 0
    %4491 = vmatprep.mubr.bf16.mxu0 0
    %4492 = vmatmul.mubr.bf16.gmra.mrb[0].mxu0 %v4454
    %v4493 = vpop.f32.mrb[0].mxu0
    %v4494 = vadd.f32 0.0, %v4493
    %v4495 = vpop.f32.mrb[0].mxu0
    %v4496 = vpop.f32.mrb[0].mxu0
    %v4497 = vadd.f32 0.0, %v4496
    %v4498 = vpop.f32.mrb[0].mxu0
    %4499 = vmatprep.mubr.bf16.mxu0 0
    %4500 = vmatmul.mubr.bf16.gmra.mrb[0].mxu0 %v4457
    %v4501 = vpop.f32.mrb[0].mxu0
    %v4502 = vadd.f32 0.0, %v4501
    %v4503 = vpop.f32.mrb[0].mxu0
    %v4504 = vpop.f32.mrb[0].mxu0
    %v4505 = vadd.f32 0.0, %v4504
    %v4506 = vpop.f32.mrb[0].mxu0
    %4507 = vdwg.mxu0
    %v4508 = vadd.f32 %v4204, %v4494
    %v4509 = vadd.f32 %v4205, %v4497
    %v4510 = vadd.f32 %v4206, %v4502
    %v4511 = vadd.f32 %v4207, %v4505
    %s4512 = scalar_lea.vmem [#allocation18], 2
    %v4513 = vld [vmem:[%s4512] sm:$0x1]
    %v4515 = vlaneseq
    %v4516 = vshrl.u32 %v4515, 7
    %v4517 = vsub.s32 0, %v4516
    %v4518 = vrot.slane %v4513, %v4517
    %v4520 = vadd.f32 %v4508, %v4518
    %v4521 = vadd.f32 %v4509, %v4518
    %v4522 = vadd.f32 %v4510, %v4518
    %v4523 = vadd.f32 %v4511, %v4518
    %s4524 = scalar_lea.vmem [#allocation3], 3
    %v4525 = vld [vmem:[%s4524] sm:$0x1]
    %s4526 = scalar_lea.vmem [#allocation6], 3
    %v4527 = vld [vmem:[%s4526] sm:$0x1]
    %v4528 = vsel %vm423, %v4520, 0.0
    %4529 = vadd.xlane.f32.xlu0 %v4528
    %v4530 = vpop.xlane.xlu0 %4529
    %v4531 = vsel %vm423, %v4521, 0.0
    %4532 = vadd.xlane.f32.xlu0 %v4531
    %v4533 = vpop.xlane.xlu0 %4532
    %v4534 = vsel %vm423, %v4522, 0.0
    %4535 = vadd.xlane.f32.xlu0 %v4534
    %v4536 = vpop.xlane.xlu0 %4535
    %v4537 = vsel %vm423, %v4523, 0.0
    %4538 = vadd.xlane.f32.xlu0 %v4537
    %v4539 = vpop.xlane.xlu0 %4538
    %v4540 = vmul.f32 %v4530, %v436
    %v4541 = vmul.f32 %v4533, %v436
    %v4542 = vmul.f32 %v4536, %v436
    %v4543 = vmul.f32 %v4539, %v436
    %v4544 = vsub.f32 %v4520, %v4540
    %v4545 = vsub.f32 %v4521, %v4541
    %v4546 = vsub.f32 %v4522, %v4542
    %v4547 = vsub.f32 %v4523, %v4543
    %v4548 = vmul.f32 %v4544, %v4544
    %v4549 = vmul.f32 %v4545, %v4545
    %v4550 = vmul.f32 %v4546, %v4546
    %v4551 = vmul.f32 %v4547, %v4547
    %v4552 = vsel %vm423, %v4548, 0.0
    %4553 = vadd.xlane.f32.xlu0 %v4552
    %v4554 = vpop.xlane.xlu0 %4553
    %v4555 = vsel %vm423, %v4549, 0.0
    %4556 = vadd.xlane.f32.xlu0 %v4555
    %v4557 = vpop.xlane.xlu0 %4556
    %v4558 = vsel %vm423, %v4550, 0.0
    %4559 = vadd.xlane.f32.xlu0 %v4558
    %v4560 = vpop.xlane.xlu0 %4559
    %v4561 = vsel %vm423, %v4551, 0.0
    %4562 = vadd.xlane.f32.xlu0 %v4561
    %v4563 = vpop.xlane.xlu0 %4562
    %v4564 = vmul.f32 %v4554, %v436
    %v4565 = vmul.f32 %v4557, %v436
    %v4566 = vmul.f32 %v4560, %v436
    %v4567 = vmul.f32 %v4563, %v436
    %v4568 = vadd.f32 %v4564, 1e-05
    %v4569 = vadd.f32 %v4565, 1e-05
    %v4570 = vadd.f32 %v4566, 1e-05
    %v4571 = vadd.f32 %v4567, 1e-05
    %v4572 = vrsqrt.pop %v4568
    %v4573 = vrsqrt.pop %v4569
    %v4574 = vrsqrt.pop %v4570
    %v4575 = vrsqrt.pop %v4571
    %v4576 = vmul.f32 %v4544, %v4572
    %v4577 = vmul.f32 %v4545, %v4573
    %v4578 = vmul.f32 %v4546, %v4574
    %v4579 = vmul.f32 %v4547, %v4575
    %v4581 = vlaneseq
    %v4582 = vshrl.u32 %v4581, 7
    %v4583 = vsub.s32 0, %v4582
    %v4584 = vrot.slane %v4525, %v4583
    %v4586 = vmul.f32 %v4576, %v4584
    %v4587 = vmul.f32 %v4577, %v4584
    %v4588 = vmul.f32 %v4578, %v4584
    %v4589 = vmul.f32 %v4579, %v4584
    %v4591 = vlaneseq
    %v4592 = vshrl.u32 %v4591, 7
    %v4593 = vsub.s32 0, %v4592
    %v4594 = vrot.slane %v4527, %v4593
    %v4596 = vadd.f32 %v4586, %v4594
    %v4597 = vadd.f32 %v4587, %v4594
    %v4598 = vadd.f32 %v4588, %v4594
    %v4599 = vadd.f32 %v4589, %v4594
    %s4600 = scalar_lea.vmem [#allocation8], 192
    %v4601 = vld [vmem:[%s4600] sm:$0xff]
    %v4602 = vld [vmem:[%s4600 + $0x8] sm:$0xff]
    %v4603 = vld [vmem:[%s4600 + $0x10] sm:$0xff]
    %v4604 = vld [vmem:[%s4600 + $0x18] sm:$0xff]
    %v4605 = vld [vmem:[%s4600 + $0x20] sm:$0xff]
    %v4606 = vld [vmem:[%s4600 + $0x28] sm:$0xff]
    %v4607 = vld [vmem:[%s4600 + $0x30] sm:$0xff]
    %v4608 = vld [vmem:[%s4600 + $0x38] sm:$0xff]
    %v4609 = vpack.c.bf16 %v4597, %v4596
    %v4610 = vpack.c.bf16 %v4599, %v4598
    %v4619 = vunpack.c.l.b16 %v4601
    %v4620 = vunpack.c.h.b16 %v4601
    %v4621 = vunpack.c.l.b16 %v4602
    %v4622 = vunpack.c.h.b16 %v4602
    %v4623 = vunpack.c.l.b16 %v4603
    %v4624 = vunpack.c.h.b16 %v4603
    %v4625 = vunpack.c.l.b16 %v4604
    %v4626 = vunpack.c.h.b16 %v4604
    %v4627 = vunpack.c.l.b16 %v4605
    %v4628 = vunpack.c.h.b16 %v4605
    %v4629 = vunpack.c.l.b16 %v4606
    %v4630 = vunpack.c.h.b16 %v4606
    %v4631 = vunpack.c.l.b16 %v4607
    %v4632 = vunpack.c.h.b16 %v4607
    %v4633 = vunpack.c.l.b16 %v4608
    %v4634 = vunpack.c.h.b16 %v4608
    %v4635 = vpack.c.b16 %v4621, %v4619
    %v4636 = vpack.c.b16 %v4622, %v4620
    %v4637 = vpack.c.b16 %v4625, %v4623
    %v4638 = vpack.c.b16 %v4626, %v4624
    %v4639 = vpack.c.b16 %v4629, %v4627
    %v4640 = vpack.c.b16 %v4630, %v4628
    %v4641 = vpack.c.b16 %v4633, %v4631
    %v4642 = vpack.c.b16 %v4634, %v4632
    %v4652 = vsel %vm423, %v4609, 0
    %v4655 = vsel %vm423, %v4610, 0
    %4657 = vmatprep.subr.bf16.mxu0 %v4636
    %4658 = vmatpush1.bf16.msra.mxu0 %v4635
    %4659 = vmatprep.subr.bf16.mxu0 %v4638
    %4660 = vmatpush1.bf16.msra.mxu0 %v4637
    %4661 = vmatprep.subr.bf16.mxu0 %v4640
    %4662 = vmatpush1.bf16.msra.mxu0 %v4639
    %4663 = vmatprep.subr.bf16.mxu0 %v4642
    %4664 = vmatpush1.bf16.msra.mxu0 %v4641
    %4665 = vmatprep.subr.bf16.mxu0 0
    %4666 = vmatpush1.bf16.msra.mxu0 0
    %4667 = vmatprep.subr.bf16.mxu0 0
    %4668 = vmatpush1.bf16.msra.mxu0 0
    %4669 = vmatprep.subr.bf16.mxu0 0
    %4670 = vmatpush1.bf16.msra.mxu0 0
    %4671 = vmatprep.subr.bf16.mxu0 0
    %4672 = vmatpush1.bf16.msra.mxu0 0
    %4673 = vmatprep.subr.bf16.mxu0 0
    %4674 = vmatpush1.bf16.msra.mxu0 0
    %4675 = vmatprep.subr.bf16.mxu0 0
    %4676 = vmatpush1.bf16.msra.mxu0 0
    %4677 = vmatprep.subr.bf16.mxu0 0
    %4678 = vmatpush1.bf16.msra.mxu0 0
    %4679 = vmatprep.subr.bf16.mxu0 0
    %4680 = vmatpush1.bf16.msra.mxu0 0
    %4681 = vmatprep.subr.bf16.mxu0 0
    %4682 = vmatpush1.bf16.msra.mxu0 0
    %4683 = vmatprep.subr.bf16.mxu0 0
    %4684 = vmatpush1.bf16.msra.mxu0 0
    %4685 = vmatprep.subr.bf16.mxu0 0
    %4686 = vmatpush1.bf16.msra.mxu0 0
    %4687 = vmatprep.subr.bf16.mxu0 0
    %4688 = vmatpush1.bf16.msra.mxu0 0
    %4689 = vmatprep.mubr.bf16.mxu0 0
    %4690 = vmatmul.mubr.bf16.gmra.mrb[0].mxu0 %v4652
    %v4691 = vpop.f32.mrb[0].mxu0
    %v4692 = vadd.f32 0.0, %v4691
    %v4693 = vpop.f32.mrb[0].mxu0
    %v4694 = vadd.f32 0.0, %v4693
    %v4695 = vpop.f32.mrb[0].mxu0
    %v4696 = vadd.f32 0.0, %v4695
    %v4697 = vpop.f32.mrb[0].mxu0
    %v4698 = vadd.f32 0.0, %v4697
    %4699 = vmatprep.mubr.bf16.mxu0 0
    %4700 = vmatmul.mubr.bf16.gmra.mrb[0].mxu0 %v4655
    %v4701 = vpop.f32.mrb[0].mxu0
    %v4702 = vadd.f32 0.0, %v4701
    %v4703 = vpop.f32.mrb[0].mxu0
    %v4704 = vadd.f32 0.0, %v4703
    %v4705 = vpop.f32.mrb[0].mxu0
    %v4706 = vadd.f32 0.0, %v4705
    %v4707 = vpop.f32.mrb[0].mxu0
    %v4708 = vadd.f32 0.0, %v4707
    %4709 = vdwg.mxu0
    %v4710 = vpack.c.bf16 %v4696, %v4692
    %v4711 = vpack.c.bf16 %v4706, %v4702
    %4714 = vrot.lane.b32.xlu0 %v4710, 64
    %v4715 = vpop.permute.xlu0 %4714
    %4716 = vrot.lane.b32.xlu0 %v4711, 64
    %v4717 = vpop.permute.xlu0 %4716
    %v4719 = vsel %vm614, %v4710, 0
    %v4722 = vsel %vm614, %v4711, 0
    %v4725 = vsel %vm614, %v4715, 0
    %v4728 = vsel %vm614, %v4717, 0
    %4730 = vmatprep.subr.bf16.mxu0 0
    %4731 = vmatpush1.bf16.xpose.msra.mxu0 %v4725
    %4732 = vmatprep.subr.bf16.mxu0 0
    %4733 = vmatpush1.bf16.xpose.msra.mxu0 %v4728
    %4734 = vmatprep.subr.bf16.mxu0 0
    %4735 = vmatpush1.bf16.xpose.msra.mxu0 0
    %4736 = vmatprep.subr.bf16.mxu0 0
    %4737 = vmatpush1.bf16.xpose.msra.mxu0 0
    %4738 = vmatprep.subr.bf16.mxu0 0
    %4739 = vmatpush1.bf16.xpose.msra.mxu0 0
    %4740 = vmatprep.subr.bf16.mxu0 0
    %4741 = vmatpush1.bf16.xpose.msra.mxu0 0
    %4742 = vmatprep.subr.bf16.mxu0 0
    %4743 = vmatpush1.bf16.xpose.msra.mxu0 0
    %4744 = vmatprep.subr.bf16.mxu0 0
    %4745 = vmatpush1.bf16.xpose.msra.mxu0 0
    %4746 = vmatprep.subr.bf16.mxu0 0
    %4747 = vmatpush1.bf16.xpose.msra.mxu0 0
    %4748 = vmatprep.subr.bf16.mxu0 0
    %4749 = vmatpush1.bf16.xpose.msra.mxu0 0
    %4750 = vmatprep.subr.bf16.mxu0 0
    %4751 = vmatpush1.bf16.xpose.msra.mxu0 0
    %4752 = vmatprep.subr.bf16.mxu0 0
    %4753 = vmatpush1.bf16.xpose.msra.mxu0 0
    %4754 = vmatprep.subr.bf16.mxu0 0
    %4755 = vmatpush1.bf16.xpose.msra.mxu0 0
    %4756 = vmatprep.subr.bf16.mxu0 0
    %4757 = vmatpush1.bf16.xpose.msra.mxu0 0
    %4758 = vmatprep.subr.bf16.mxu0 0
    %4759 = vmatpush1.bf16.xpose.msra.mxu0 0
    %4760 = vmatprep.subr.bf16.mxu0 0
    %4761 = vmatpush1.bf16.xpose.msra.mxu0 0
    %4762 = vmatprep.mubr.bf16.mxu0 0
    %4763 = vmatmul.mubr.bf16.gmra.mrb[0].mxu0 %v4719
    %v4764 = vpop.f32.mrb[0].mxu0
    %v4765 = vadd.f32 %v304, %v4764
    %v4766 = vpop.f32.mrb[0].mxu0
    %v4767 = vpop.f32.mrb[0].mxu0
    %v4768 = vadd.f32 %v305, %v4767
    %v4769 = vpop.f32.mrb[0].mxu0
    %4770 = vmatprep.mubr.bf16.mxu0 0
    %4771 = vmatmul.mubr.bf16.gmra.mrb[0].mxu0 %v4722
    %v4772 = vpop.f32.mrb[0].mxu0
    %v4773 = vadd.f32 %v306, %v4772
    %v4774 = vpop.f32.mrb[0].mxu0
    %v4775 = vpop.f32.mrb[0].mxu0
    %v4776 = vadd.f32 %v307, %v4775
    %v4777 = vpop.f32.mrb[0].mxu0
    %4778 = vdwg.mxu0
    %v4779 = vsel %vm337, %v4765, -inf
    %4780 = vmax.xlane.f32.xlu0 %v4779
    %v4781 = vpop.xlane.xlu0 %4780
    %v4782 = vsel %vm337, %v4768, -inf
    %4783 = vmax.xlane.f32.xlu0 %v4782
    %v4784 = vpop.xlane.xlu0 %4783
    %v4785 = vsel %vm337, %v4773, -inf
    %4786 = vmax.xlane.f32.xlu0 %v4785
    %v4787 = vpop.xlane.xlu0 %4786
    %v4788 = vsel %vm337, %v4776, -inf
    %4789 = vmax.xlane.f32.xlu0 %v4788
    %v4790 = vpop.xlane.xlu0 %4789
    %v4791 = vsub.f32 %v4765, %v4781
    %v4792 = vsub.f32 %v4768, %v4784
    %v4793 = vsub.f32 %v4773, %v4787
    %v4794 = vsub.f32 %v4776, %v4790
    %v4795 = vmul.f32 %v4791, 1.442695
    %v4796 = vpow.pop %v4795
    %v4797 = vmul.f32 %v4792, 1.442695
    %v4798 = vpow.pop %v4797
    %v4799 = vmul.f32 %v4793, 1.442695
    %v4800 = vpow.pop %v4799
    %v4801 = vmul.f32 %v4794, 1.442695
    %v4802 = vpow.pop %v4801
    %v4803 = vsel %vm337, %v4796, 0.0
    %4804 = vadd.xlane.f32.xlu0 %v4803
    %v4805 = vpop.xlane.xlu0 %4804
    %v4806 = vsel %vm337, %v4798, 0.0
    %4807 = vadd.xlane.f32.xlu0 %v4806
    %v4808 = vpop.xlane.xlu0 %4807
    %v4809 = vsel %vm337, %v4800, 0.0
    %4810 = vadd.xlane.f32.xlu0 %v4809
    %v4811 = vpop.xlane.xlu0 %4810
    %v4812 = vsel %vm337, %v4802, 0.0
    %4813 = vadd.xlane.f32.xlu0 %v4812
    %v4814 = vpop.xlane.xlu0 %4813
    %v4815 = vrcp.pop %v4805
    %v4816 = vrcp.pop %v4808
    %v4817 = vrcp.pop %v4811
    %v4818 = vrcp.pop %v4814
    %v4819 = vmul.f32 %v4796, %v4815
    %v4820 = vmul.f32 %v4798, %v4816
    %v4821 = vmul.f32 %v4800, %v4817
    %v4822 = vmul.f32 %v4802, %v4818
    %v4823 = vpack.c.bf16 %v4820, %v4819
    %v4824 = vpack.c.bf16 %v4822, %v4821
    %v4825 = vpack.c.bf16 %v4698, %v4694
    %v4826 = vpack.c.bf16 %v4708, %v4704
    %v4828 = vsel %vm337, %v4823, 0
    %v4831 = vsel %vm337, %v4824, 0
    %4833 = vmatprep.subr.bf16.mxu0 0
    %4834 = vmatpush1.bf16.msra.mxu0 %v4825
    %4835 = vmatprep.subr.bf16.mxu0 0
    %4836 = vmatpush1.bf16.msra.mxu0 %v4826
    %4837 = vmatprep.subr.bf16.mxu0 0
    %4838 = vmatpush1.bf16.msra.mxu0 0
    %4839 = vmatprep.subr.bf16.mxu0 0
    %4840 = vmatpush1.bf16.msra.mxu0 0
    %4841 = vmatprep.subr.bf16.mxu0 0
    %4842 = vmatpush1.bf16.msra.mxu0 0
    %4843 = vmatprep.subr.bf16.mxu0 0
    %4844 = vmatpush1.bf16.msra.mxu0 0
    %4845 = vmatprep.subr.bf16.mxu0 0
    %4846 = vmatpush1.bf16.msra.mxu0 0
    %4847 = vmatprep.subr.bf16.mxu0 0
    %4848 = vmatpush1.bf16.msra.mxu0 0
    %4849 = vmatprep.subr.bf16.mxu0 0
    %4850 = vmatpush1.bf16.msra.mxu0 0
    %4851 = vmatprep.subr.bf16.mxu0 0
    %4852 = vmatpush1.bf16.msra.mxu0 0
    %4853 = vmatprep.subr.bf16.mxu0 0
    %4854 = vmatpush1.bf16.msra.mxu0 0
    %4855 = vmatprep.subr.bf16.mxu0 0
    %4856 = vmatpush1.bf16.msra.mxu0 0
    %4857 = vmatprep.subr.bf16.mxu0 0
    %4858 = vmatpush1.bf16.msra.mxu0 0
    %4859 = vmatprep.subr.bf16.mxu0 0
    %4860 = vmatpush1.bf16.msra.mxu0 0
    %4861 = vmatprep.subr.bf16.mxu0 0
    %4862 = vmatpush1.bf16.msra.mxu0 0
    %4863 = vmatprep.subr.bf16.mxu0 0
    %4864 = vmatpush1.bf16.msra.mxu0 0
    %4865 = vmatprep.mubr.bf16.mxu0 0
    %4866 = vmatmul.mubr.bf16.gmra.mrb[0].mxu0 %v4828
    %v4867 = vpop.f32.mrb[0].mxu0
    %v4868 = vadd.f32 0.0, %v4867
    %v4869 = vpop.f32.mrb[0].mxu0
    %v4870 = vpop.f32.mrb[0].mxu0
    %v4871 = vadd.f32 0.0, %v4870
    %v4872 = vpop.f32.mrb[0].mxu0
    %4873 = vmatprep.mubr.bf16.mxu0 0
    %4874 = vmatmul.mubr.bf16.gmra.mrb[0].mxu0 %v4831
    %v4875 = vpop.f32.mrb[0].mxu0
    %v4876 = vadd.f32 0.0, %v4875
    %v4877 = vpop.f32.mrb[0].mxu0
    %v4878 = vpop.f32.mrb[0].mxu0
    %v4879 = vadd.f32 0.0, %v4878
    %v4880 = vpop.f32.mrb[0].mxu0
    %4881 = vdwg.mxu0
    %4882 = vrot.lane.b32.xlu0 %v4710, 112
    %v4883 = vpop.permute.xlu0 %4882
    %4884 = vrot.lane.b32.xlu0 %v4711, 112
    %v4885 = vpop.permute.xlu0 %4884
    %4886 = vrot.lane.b32.xlu0 %v4710, 48
    %v4887 = vpop.permute.xlu0 %4886
    %4888 = vrot.lane.b32.xlu0 %v4711, 48
    %v4889 = vpop.permute.xlu0 %4888
    %v4891 = vsel %vm614, %v4883, 0
    %v4894 = vsel %vm614, %v4885, 0
    %v4897 = vsel %vm614, %v4887, 0
    %v4900 = vsel %vm614, %v4889, 0
    %4902 = vmatprep.subr.bf16.mxu0 0
    %4903 = vmatpush1.bf16.xpose.msra.mxu0 %v4897
    %4904 = vmatprep.subr.bf16.mxu0 0
    %4905 = vmatpush1.bf16.xpose.msra.mxu0 %v4900
    %4906 = vmatprep.subr.bf16.mxu0 0
    %4907 = vmatpush1.bf16.xpose.msra.mxu0 0
    %4908 = vmatprep.subr.bf16.mxu0 0
    %4909 = vmatpush1.bf16.xpose.msra.mxu0 0
    %4910 = vmatprep.subr.bf16.mxu0 0
    %4911 = vmatpush1.bf16.xpose.msra.mxu0 0
    %4912 = vmatprep.subr.bf16.mxu0 0
    %4913 = vmatpush1.bf16.xpose.msra.mxu0 0
    %4914 = vmatprep.subr.bf16.mxu0 0
    %4915 = vmatpush1.bf16.xpose.msra.mxu0 0
    %4916 = vmatprep.subr.bf16.mxu0 0
    %4917 = vmatpush1.bf16.xpose.msra.mxu0 0
    %4918 = vmatprep.subr.bf16.mxu0 0
    %4919 = vmatpush1.bf16.xpose.msra.mxu0 0
    %4920 = vmatprep.subr.bf16.mxu0 0
    %4921 = vmatpush1.bf16.xpose.msra.mxu0 0
    %4922 = vmatprep.subr.bf16.mxu0 0
    %4923 = vmatpush1.bf16.xpose.msra.mxu0 0
    %4924 = vmatprep.subr.bf16.mxu0 0
    %4925 = vmatpush1.bf16.xpose.msra.mxu0 0
    %4926 = vmatprep.subr.bf16.mxu0 0
    %4927 = vmatpush1.bf16.xpose.msra.mxu0 0
    %4928 = vmatprep.subr.bf16.mxu0 0
    %4929 = vmatpush1.bf16.xpose.msra.mxu0 0
    %4930 = vmatprep.subr.bf16.mxu0 0
    %4931 = vmatpush1.bf16.xpose.msra.mxu0 0
    %4932 = vmatprep.subr.bf16.mxu0 0
    %4933 = vmatpush1.bf16.xpose.msra.mxu0 0
    %4934 = vmatprep.mubr.bf16.mxu0 0
    %4935 = vmatmul.mubr.bf16.gmra.mrb[0].mxu0 %v4891
    %v4936 = vpop.f32.mrb[0].mxu0
    %v4937 = vadd.f32 %v304, %v4936
    %v4938 = vpop.f32.mrb[0].mxu0
    %v4939 = vpop.f32.mrb[0].mxu0
    %v4940 = vadd.f32 %v305, %v4939
    %v4941 = vpop.f32.mrb[0].mxu0
    %4942 = vmatprep.mubr.bf16.mxu0 0
    %4943 = vmatmul.mubr.bf16.gmra.mrb[0].mxu0 %v4894
    %v4944 = vpop.f32.mrb[0].mxu0
    %v4945 = vadd.f32 %v306, %v4944
    %v4946 = vpop.f32.mrb[0].mxu0
    %v4947 = vpop.f32.mrb[0].mxu0
    %v4948 = vadd.f32 %v307, %v4947
    %v4949 = vpop.f32.mrb[0].mxu0
    %4950 = vdwg.mxu0
    %v4951 = vsel %vm337, %v4937, -inf
    %4952 = vmax.xlane.f32.xlu0 %v4951
    %v4953 = vpop.xlane.xlu0 %4952
    %v4954 = vsel %vm337, %v4940, -inf
    %4955 = vmax.xlane.f32.xlu0 %v4954
    %v4956 = vpop.xlane.xlu0 %4955
    %v4957 = vsel %vm337, %v4945, -inf
    %4958 = vmax.xlane.f32.xlu0 %v4957
    %v4959 = vpop.xlane.xlu0 %4958
    %v4960 = vsel %vm337, %v4948, -inf
    %4961 = vmax.xlane.f32.xlu0 %v4960
    %v4962 = vpop.xlane.xlu0 %4961
    %v4963 = vsub.f32 %v4937, %v4953
    %v4964 = vsub.f32 %v4940, %v4956
    %v4965 = vsub.f32 %v4945, %v4959
    %v4966 = vsub.f32 %v4948, %v4962
    %v4967 = vmul.f32 %v4963, 1.442695
    %v4968 = vpow.pop %v4967
    %v4969 = vmul.f32 %v4964, 1.442695
    %v4970 = vpow.pop %v4969
    %v4971 = vmul.f32 %v4965, 1.442695
    %v4972 = vpow.pop %v4971
    %v4973 = vmul.f32 %v4966, 1.442695
    %v4974 = vpow.pop %v4973
    %v4975 = vsel %vm337, %v4968, 0.0
    %4976 = vadd.xlane.f32.xlu0 %v4975
    %v4977 = vpop.xlane.xlu0 %4976
    %v4978 = vsel %vm337, %v4970, 0.0
    %4979 = vadd.xlane.f32.xlu0 %v4978
    %v4980 = vpop.xlane.xlu0 %4979
    %v4981 = vsel %vm337, %v4972, 0.0
    %4982 = vadd.xlane.f32.xlu0 %v4981
    %v4983 = vpop.xlane.xlu0 %4982
    %v4984 = vsel %vm337, %v4974, 0.0
    %4985 = vadd.xlane.f32.xlu0 %v4984
    %v4986 = vpop.xlane.xlu0 %4985
    %v4987 = vrcp.pop %v4977
    %v4988 = vrcp.pop %v4980
    %v4989 = vrcp.pop %v4983
    %v4990 = vrcp.pop %v4986
    %v4991 = vmul.f32 %v4968, %v4987
    %v4992 = vmul.f32 %v4970, %v4988
    %v4993 = vmul.f32 %v4972, %v4989
    %v4994 = vmul.f32 %v4974, %v4990
    %v4995 = vpack.c.bf16 %v4992, %v4991
    %v4996 = vpack.c.bf16 %v4994, %v4993
    %4999 = vrot.lane.b32.xlu0 %v4825, 112
    %v5000 = vpop.permute.xlu0 %4999
    %5001 = vrot.lane.b32.xlu0 %v4826, 112
    %v5002 = vpop.permute.xlu0 %5001
    %v5006 = vsel %vm337, %v4995, 0
    %v5009 = vsel %vm337, %v4996, 0
    %5011 = vmatprep.subr.bf16.mxu0 0
    %5012 = vmatpush1.bf16.msra.mxu0 %v5000
    %5013 = vmatprep.subr.bf16.mxu0 0
    %5014 = vmatpush1.bf16.msra.mxu0 %v5002
    %5015 = vmatprep.subr.bf16.mxu0 0
    %5016 = vmatpush1.bf16.msra.mxu0 0
    %5017 = vmatprep.subr.bf16.mxu0 0
    %5018 = vmatpush1.bf16.msra.mxu0 0
    %5019 = vmatprep.subr.bf16.mxu0 0
    %5020 = vmatpush1.bf16.msra.mxu0 0
    %5021 = vmatprep.subr.bf16.mxu0 0
    %5022 = vmatpush1.bf16.msra.mxu0 0
    %5023 = vmatprep.subr.bf16.mxu0 0
    %5024 = vmatpush1.bf16.msra.mxu0 0
    %5025 = vmatprep.subr.bf16.mxu0 0
    %5026 = vmatpush1.bf16.msra.mxu0 0
    %5027 = vmatprep.subr.bf16.mxu0 0
    %5028 = vmatpush1.bf16.msra.mxu0 0
    %5029 = vmatprep.subr.bf16.mxu0 0
    %5030 = vmatpush1.bf16.msra.mxu0 0
    %5031 = vmatprep.subr.bf16.mxu0 0
    %5032 = vmatpush1.bf16.msra.mxu0 0
    %5033 = vmatprep.subr.bf16.mxu0 0
    %5034 = vmatpush1.bf16.msra.mxu0 0
    %5035 = vmatprep.subr.bf16.mxu0 0
    %5036 = vmatpush1.bf16.msra.mxu0 0
    %5037 = vmatprep.subr.bf16.mxu0 0
    %5038 = vmatpush1.bf16.msra.mxu0 0
    %5039 = vmatprep.subr.bf16.mxu0 0
    %5040 = vmatpush1.bf16.msra.mxu0 0
    %5041 = vmatprep.subr.bf16.mxu0 0
    %5042 = vmatpush1.bf16.msra.mxu0 0
    %5043 = vmatprep.mubr.bf16.mxu0 0
    %5044 = vmatmul.mubr.bf16.gmra.mrb[0].mxu0 %v5006
    %v5045 = vpop.f32.mrb[0].mxu0
    %v5046 = vadd.f32 0.0, %v5045
    %v5047 = vpop.f32.mrb[0].mxu0
    %v5048 = vpop.f32.mrb[0].mxu0
    %v5049 = vadd.f32 0.0, %v5048
    %v5050 = vpop.f32.mrb[0].mxu0
    %5051 = vmatprep.mubr.bf16.mxu0 0
    %5052 = vmatmul.mubr.bf16.gmra.mrb[0].mxu0 %v5009
    %v5053 = vpop.f32.mrb[0].mxu0
    %v5054 = vadd.f32 0.0, %v5053
    %v5055 = vpop.f32.mrb[0].mxu0
    %v5056 = vpop.f32.mrb[0].mxu0
    %v5057 = vadd.f32 0.0, %v5056
    %v5058 = vpop.f32.mrb[0].mxu0
    %5059 = vdwg.mxu0
    %5060 = vrot.lane.b32.xlu0 %v4710, 96
    %v5061 = vpop.permute.xlu0 %5060
    %5062 = vrot.lane.b32.xlu0 %v4711, 96
    %v5063 = vpop.permute.xlu0 %5062
    %5064 = vrot.lane.b32.xlu0 %v4710, 32
    %v5065 = vpop.permute.xlu0 %5064
    %5066 = vrot.lane.b32.xlu0 %v4711, 32
    %v5067 = vpop.permute.xlu0 %5066
    %v5069 = vsel %vm614, %v5061, 0
    %v5072 = vsel %vm614, %v5063, 0
    %v5075 = vsel %vm614, %v5065, 0
    %v5078 = vsel %vm614, %v5067, 0
    %5080 = vmatprep.subr.bf16.mxu0 0
    %5081 = vmatpush1.bf16.xpose.msra.mxu0 %v5075
    %5082 = vmatprep.subr.bf16.mxu0 0
    %5083 = vmatpush1.bf16.xpose.msra.mxu0 %v5078
    %5084 = vmatprep.subr.bf16.mxu0 0
    %5085 = vmatpush1.bf16.xpose.msra.mxu0 0
    %5086 = vmatprep.subr.bf16.mxu0 0
    %5087 = vmatpush1.bf16.xpose.msra.mxu0 0
    %5088 = vmatprep.subr.bf16.mxu0 0
    %5089 = vmatpush1.bf16.xpose.msra.mxu0 0
    %5090 = vmatprep.subr.bf16.mxu0 0
    %5091 = vmatpush1.bf16.xpose.msra.mxu0 0
    %5092 = vmatprep.subr.bf16.mxu0 0
    %5093 = vmatpush1.bf16.xpose.msra.mxu0 0
    %5094 = vmatprep.subr.bf16.mxu0 0
    %5095 = vmatpush1.bf16.xpose.msra.mxu0 0
    %5096 = vmatprep.subr.bf16.mxu0 0
    %5097 = vmatpush1.bf16.xpose.msra.mxu0 0
    %5098 = vmatprep.subr.bf16.mxu0 0
    %5099 = vmatpush1.bf16.xpose.msra.mxu0 0
    %5100 = vmatprep.subr.bf16.mxu0 0
    %5101 = vmatpush1.bf16.xpose.msra.mxu0 0
    %5102 = vmatprep.subr.bf16.mxu0 0
    %5103 = vmatpush1.bf16.xpose.msra.mxu0 0
    %5104 = vmatprep.subr.bf16.mxu0 0
    %5105 = vmatpush1.bf16.xpose.msra.mxu0 0
    %5106 = vmatprep.subr.bf16.mxu0 0
    %5107 = vmatpush1.bf16.xpose.msra.mxu0 0
    %5108 = vmatprep.subr.bf16.mxu0 0
    %5109 = vmatpush1.bf16.xpose.msra.mxu0 0
    %5110 = vmatprep.subr.bf16.mxu0 0
    %5111 = vmatpush1.bf16.xpose.msra.mxu0 0
    %5112 = vmatprep.mubr.bf16.mxu0 0
    %5113 = vmatmul.mubr.bf16.gmra.mrb[0].mxu0 %v5069
    %v5114 = vpop.f32.mrb[0].mxu0
    %v5115 = vadd.f32 %v304, %v5114
    %v5116 = vpop.f32.mrb[0].mxu0
    %v5117 = vpop.f32.mrb[0].mxu0
    %v5118 = vadd.f32 %v305, %v5117
    %v5119 = vpop.f32.mrb[0].mxu0
    %5120 = vmatprep.mubr.bf16.mxu0 0
    %5121 = vmatmul.mubr.bf16.gmra.mrb[0].mxu0 %v5072
    %v5122 = vpop.f32.mrb[0].mxu0
    %v5123 = vadd.f32 %v306, %v5122
    %v5124 = vpop.f32.mrb[0].mxu0
    %v5125 = vpop.f32.mrb[0].mxu0
    %v5126 = vadd.f32 %v307, %v5125
    %v5127 = vpop.f32.mrb[0].mxu0
    %5128 = vdwg.mxu0
    %v5129 = vsel %vm337, %v5115, -inf
    %5130 = vmax.xlane.f32.xlu0 %v5129
    %v5131 = vpop.xlane.xlu0 %5130
    %v5132 = vsel %vm337, %v5118, -inf
    %5133 = vmax.xlane.f32.xlu0 %v5132
    %v5134 = vpop.xlane.xlu0 %5133
    %v5135 = vsel %vm337, %v5123, -inf
    %5136 = vmax.xlane.f32.xlu0 %v5135
    %v5137 = vpop.xlane.xlu0 %5136
    %v5138 = vsel %vm337, %v5126, -inf
    %5139 = vmax.xlane.f32.xlu0 %v5138
    %v5140 = vpop.xlane.xlu0 %5139
    %v5141 = vsub.f32 %v5115, %v5131
    %v5142 = vsub.f32 %v5118, %v5134
    %v5143 = vsub.f32 %v5123, %v5137
    %v5144 = vsub.f32 %v5126, %v5140
    %v5145 = vmul.f32 %v5141, 1.442695
    %v5146 = vpow.pop %v5145
    %v5147 = vmul.f32 %v5142, 1.442695
    %v5148 = vpow.pop %v5147
    %v5149 = vmul.f32 %v5143, 1.442695
    %v5150 = vpow.pop %v5149
    %v5151 = vmul.f32 %v5144, 1.442695
    %v5152 = vpow.pop %v5151
    %v5153 = vsel %vm337, %v5146, 0.0
    %5154 = vadd.xlane.f32.xlu0 %v5153
    %v5155 = vpop.xlane.xlu0 %5154
    %v5156 = vsel %vm337, %v5148, 0.0
    %5157 = vadd.xlane.f32.xlu0 %v5156
    %v5158 = vpop.xlane.xlu0 %5157
    %v5159 = vsel %vm337, %v5150, 0.0
    %5160 = vadd.xlane.f32.xlu0 %v5159
    %v5161 = vpop.xlane.xlu0 %5160
    %v5162 = vsel %vm337, %v5152, 0.0
    %5163 = vadd.xlane.f32.xlu0 %v5162
    %v5164 = vpop.xlane.xlu0 %5163
    %v5165 = vrcp.pop %v5155
    %v5166 = vrcp.pop %v5158
    %v5167 = vrcp.pop %v5161
    %v5168 = vrcp.pop %v5164
    %v5169 = vmul.f32 %v5146, %v5165
    %v5170 = vmul.f32 %v5148, %v5166
    %v5171 = vmul.f32 %v5150, %v5167
    %v5172 = vmul.f32 %v5152, %v5168
    %v5173 = vpack.c.bf16 %v5170, %v5169
    %v5174 = vpack.c.bf16 %v5172, %v5171
    %5175 = vrot.lane.b32.xlu0 %v4825, 96
    %v5176 = vpop.permute.xlu0 %5175
    %5177 = vrot.lane.b32.xlu0 %v4826, 96
    %v5178 = vpop.permute.xlu0 %5177
    %v5182 = vsel %vm337, %v5173, 0
    %v5185 = vsel %vm337, %v5174, 0
    %5187 = vmatprep.subr.bf16.mxu0 0
    %5188 = vmatpush1.bf16.msra.mxu0 %v5176
    %5189 = vmatprep.subr.bf16.mxu0 0
    %5190 = vmatpush1.bf16.msra.mxu0 %v5178
    %5191 = vmatprep.subr.bf16.mxu0 0
    %5192 = vmatpush1.bf16.msra.mxu0 0
    %5193 = vmatprep.subr.bf16.mxu0 0
    %5194 = vmatpush1.bf16.msra.mxu0 0
    %5195 = vmatprep.subr.bf16.mxu0 0
    %5196 = vmatpush1.bf16.msra.mxu0 0
    %5197 = vmatprep.subr.bf16.mxu0 0
    %5198 = vmatpush1.bf16.msra.mxu0 0
    %5199 = vmatprep.subr.bf16.mxu0 0
    %5200 = vmatpush1.bf16.msra.mxu0 0
    %5201 = vmatprep.subr.bf16.mxu0 0
    %5202 = vmatpush1.bf16.msra.mxu0 0
    %5203 = vmatprep.subr.bf16.mxu0 0
    %5204 = vmatpush1.bf16.msra.mxu0 0
    %5205 = vmatprep.subr.bf16.mxu0 0
    %5206 = vmatpush1.bf16.msra.mxu0 0
    %5207 = vmatprep.subr.bf16.mxu0 0
    %5208 = vmatpush1.bf16.msra.mxu0 0
    %5209 = vmatprep.subr.bf16.mxu0 0
    %5210 = vmatpush1.bf16.msra.mxu0 0
    %5211 = vmatprep.subr.bf16.mxu0 0
    %5212 = vmatpush1.bf16.msra.mxu0 0
    %5213 = vmatprep.subr.bf16.mxu0 0
    %5214 = vmatpush1.bf16.msra.mxu0 0
    %5215 = vmatprep.subr.bf16.mxu0 0
    %5216 = vmatpush1.bf16.msra.mxu0 0
    %5217 = vmatprep.subr.bf16.mxu0 0
    %5218 = vmatpush1.bf16.msra.mxu0 0
    %5219 = vmatprep.mubr.bf16.mxu0 0
    %5220 = vmatmul.mubr.bf16.gmra.mrb[0].mxu0 %v5182
    %v5221 = vpop.f32.mrb[0].mxu0
    %v5222 = vadd.f32 0.0, %v5221
    %v5223 = vpop.f32.mrb[0].mxu0
    %v5224 = vpop.f32.mrb[0].mxu0
    %v5225 = vadd.f32 0.0, %v5224
    %v5226 = vpop.f32.mrb[0].mxu0
    %5227 = vmatprep.mubr.bf16.mxu0 0
    %5228 = vmatmul.mubr.bf16.gmra.mrb[0].mxu0 %v5185
    %v5229 = vpop.f32.mrb[0].mxu0
    %v5230 = vadd.f32 0.0, %v5229
    %v5231 = vpop.f32.mrb[0].mxu0
    %v5232 = vpop.f32.mrb[0].mxu0
    %v5233 = vadd.f32 0.0, %v5232
    %v5234 = vpop.f32.mrb[0].mxu0
    %5235 = vdwg.mxu0
    %5236 = vrot.lane.b32.xlu0 %v4710, 80
    %v5237 = vpop.permute.xlu0 %5236
    %5238 = vrot.lane.b32.xlu0 %v4711, 80
    %v5239 = vpop.permute.xlu0 %5238
    %5240 = vrot.lane.b32.xlu0 %v4710, 16
    %v5241 = vpop.permute.xlu0 %5240
    %5242 = vrot.lane.b32.xlu0 %v4711, 16
    %v5243 = vpop.permute.xlu0 %5242
    %v5245 = vsel %vm614, %v5237, 0
    %v5248 = vsel %vm614, %v5239, 0
    %v5251 = vsel %vm614, %v5241, 0
    %v5254 = vsel %vm614, %v5243, 0
    %5256 = vmatprep.subr.bf16.mxu0 0
    %5257 = vmatpush1.bf16.xpose.msra.mxu0 %v5251
    %5258 = vmatprep.subr.bf16.mxu0 0
    %5259 = vmatpush1.bf16.xpose.msra.mxu0 %v5254
    %5260 = vmatprep.subr.bf16.mxu0 0
    %5261 = vmatpush1.bf16.xpose.msra.mxu0 0
    %5262 = vmatprep.subr.bf16.mxu0 0
    %5263 = vmatpush1.bf16.xpose.msra.mxu0 0
    %5264 = vmatprep.subr.bf16.mxu0 0
    %5265 = vmatpush1.bf16.xpose.msra.mxu0 0
    %5266 = vmatprep.subr.bf16.mxu0 0
    %5267 = vmatpush1.bf16.xpose.msra.mxu0 0
    %5268 = vmatprep.subr.bf16.mxu0 0
    %5269 = vmatpush1.bf16.xpose.msra.mxu0 0
    %5270 = vmatprep.subr.bf16.mxu0 0
    %5271 = vmatpush1.bf16.xpose.msra.mxu0 0
    %5272 = vmatprep.subr.bf16.mxu0 0
    %5273 = vmatpush1.bf16.xpose.msra.mxu0 0
    %5274 = vmatprep.subr.bf16.mxu0 0
    %5275 = vmatpush1.bf16.xpose.msra.mxu0 0
    %5276 = vmatprep.subr.bf16.mxu0 0
    %5277 = vmatpush1.bf16.xpose.msra.mxu0 0
    %5278 = vmatprep.subr.bf16.mxu0 0
    %5279 = vmatpush1.bf16.xpose.msra.mxu0 0
    %5280 = vmatprep.subr.bf16.mxu0 0
    %5281 = vmatpush1.bf16.xpose.msra.mxu0 0
    %5282 = vmatprep.subr.bf16.mxu0 0
    %5283 = vmatpush1.bf16.xpose.msra.mxu0 0
    %5284 = vmatprep.subr.bf16.mxu0 0
    %5285 = vmatpush1.bf16.xpose.msra.mxu0 0
    %5286 = vmatprep.subr.bf16.mxu0 0
    %5287 = vmatpush1.bf16.xpose.msra.mxu0 0
    %5288 = vmatprep.mubr.bf16.mxu0 0
    %5289 = vmatmul.mubr.bf16.gmra.mrb[0].mxu0 %v5245
    %v5290 = vpop.f32.mrb[0].mxu0
    %v5291 = vadd.f32 %v304, %v5290
    %v5292 = vpop.f32.mrb[0].mxu0
    %v5293 = vpop.f32.mrb[0].mxu0
    %v5294 = vadd.f32 %v305, %v5293
    %v5295 = vpop.f32.mrb[0].mxu0
    %5296 = vmatprep.mubr.bf16.mxu0 0
    %5297 = vmatmul.mubr.bf16.gmra.mrb[0].mxu0 %v5248
    %v5298 = vpop.f32.mrb[0].mxu0
    %v5299 = vadd.f32 %v306, %v5298
    %v5300 = vpop.f32.mrb[0].mxu0
    %v5301 = vpop.f32.mrb[0].mxu0
    %v5302 = vadd.f32 %v307, %v5301
    %v5303 = vpop.f32.mrb[0].mxu0
    %5304 = vdwg.mxu0
    %v5305 = vsel %vm337, %v5291, -inf
    %5306 = vmax.xlane.f32.xlu0 %v5305
    %v5307 = vpop.xlane.xlu0 %5306
    %v5308 = vsel %vm337, %v5294, -inf
    %5309 = vmax.xlane.f32.xlu0 %v5308
    %v5310 = vpop.xlane.xlu0 %5309
    %v5311 = vsel %vm337, %v5299, -inf
    %5312 = vmax.xlane.f32.xlu0 %v5311
    %v5313 = vpop.xlane.xlu0 %5312
    %v5314 = vsel %vm337, %v5302, -inf
    %5315 = vmax.xlane.f32.xlu0 %v5314
    %v5316 = vpop.xlane.xlu0 %5315
    %v5317 = vsub.f32 %v5291, %v5307
    %v5318 = vsub.f32 %v5294, %v5310
    %v5319 = vsub.f32 %v5299, %v5313
    %v5320 = vsub.f32 %v5302, %v5316
    %v5321 = vmul.f32 %v5317, 1.442695
    %v5322 = vpow.pop %v5321
    %v5323 = vmul.f32 %v5318, 1.442695
    %v5324 = vpow.pop %v5323
    %v5325 = vmul.f32 %v5319, 1.442695
    %v5326 = vpow.pop %v5325
    %v5327 = vmul.f32 %v5320, 1.442695
    %v5328 = vpow.pop %v5327
    %v5329 = vsel %vm337, %v5322, 0.0
    %5330 = vadd.xlane.f32.xlu0 %v5329
    %v5331 = vpop.xlane.xlu0 %5330
    %v5332 = vsel %vm337, %v5324, 0.0
    %5333 = vadd.xlane.f32.xlu0 %v5332
    %v5334 = vpop.xlane.xlu0 %5333
    %v5335 = vsel %vm337, %v5326, 0.0
    %5336 = vadd.xlane.f32.xlu0 %v5335
    %v5337 = vpop.xlane.xlu0 %5336
    %v5338 = vsel %vm337, %v5328, 0.0
    %5339 = vadd.xlane.f32.xlu0 %v5338
    %v5340 = vpop.xlane.xlu0 %5339
    %v5341 = vrcp.pop %v5331
    %v5342 = vrcp.pop %v5334
    %v5343 = vrcp.pop %v5337
    %v5344 = vrcp.pop %v5340
    %v5345 = vmul.f32 %v5322, %v5341
    %v5346 = vmul.f32 %v5324, %v5342
    %v5347 = vmul.f32 %v5326, %v5343
    %v5348 = vmul.f32 %v5328, %v5344
    %v5349 = vpack.c.bf16 %v5346, %v5345
    %v5350 = vpack.c.bf16 %v5348, %v5347
    %5351 = vrot.lane.b32.xlu0 %v4825, 80
    %v5352 = vpop.permute.xlu0 %5351
    %5353 = vrot.lane.b32.xlu0 %v4826, 80
    %v5354 = vpop.permute.xlu0 %5353
    %v5358 = vsel %vm337, %v5349, 0
    %v5361 = vsel %vm337, %v5350, 0
    %5363 = vmatprep.subr.bf16.mxu0 0
    %5364 = vmatpush1.bf16.msra.mxu0 %v5352
    %5365 = vmatprep.subr.bf16.mxu0 0
    %5366 = vmatpush1.bf16.msra.mxu0 %v5354
    %5367 = vmatprep.subr.bf16.mxu0 0
    %5368 = vmatpush1.bf16.msra.mxu0 0
    %5369 = vmatprep.subr.bf16.mxu0 0
    %5370 = vmatpush1.bf16.msra.mxu0 0
    %5371 = vmatprep.subr.bf16.mxu0 0
    %5372 = vmatpush1.bf16.msra.mxu0 0
    %5373 = vmatprep.subr.bf16.mxu0 0
    %5374 = vmatpush1.bf16.msra.mxu0 0
    %5375 = vmatprep.subr.bf16.mxu0 0
    %5376 = vmatpush1.bf16.msra.mxu0 0
    %5377 = vmatprep.subr.bf16.mxu0 0
    %5378 = vmatpush1.bf16.msra.mxu0 0
    %5379 = vmatprep.subr.bf16.mxu0 0
    %5380 = vmatpush1.bf16.msra.mxu0 0
    %5381 = vmatprep.subr.bf16.mxu0 0
    %5382 = vmatpush1.bf16.msra.mxu0 0
    %5383 = vmatprep.subr.bf16.mxu0 0
    %5384 = vmatpush1.bf16.msra.mxu0 0
    %5385 = vmatprep.subr.bf16.mxu0 0
    %5386 = vmatpush1.bf16.msra.mxu0 0
    %5387 = vmatprep.subr.bf16.mxu0 0
    %5388 = vmatpush1.bf16.msra.mxu0 0
    %5389 = vmatprep.subr.bf16.mxu0 0
    %5390 = vmatpush1.bf16.msra.mxu0 0
    %5391 = vmatprep.subr.bf16.mxu0 0
    %5392 = vmatpush1.bf16.msra.mxu0 0
    %5393 = vmatprep.subr.bf16.mxu0 0
    %5394 = vmatpush1.bf16.msra.mxu0 0
    %5395 = vmatprep.mubr.bf16.mxu0 0
    %5396 = vmatmul.mubr.bf16.gmra.mrb[0].mxu0 %v5358
    %v5397 = vpop.f32.mrb[0].mxu0
    %v5398 = vadd.f32 0.0, %v5397
    %v5399 = vpop.f32.mrb[0].mxu0
    %v5400 = vpop.f32.mrb[0].mxu0
    %v5401 = vadd.f32 0.0, %v5400
    %v5402 = vpop.f32.mrb[0].mxu0
    %5403 = vmatprep.mubr.bf16.mxu0 0
    %5404 = vmatmul.mubr.bf16.gmra.mrb[0].mxu0 %v5361
    %v5405 = vpop.f32.mrb[0].mxu0
    %v5406 = vadd.f32 0.0, %v5405
    %v5407 = vpop.f32.mrb[0].mxu0
    %v5408 = vpop.f32.mrb[0].mxu0
    %v5409 = vadd.f32 0.0, %v5408
    %v5410 = vpop.f32.mrb[0].mxu0
    %5411 = vdwg.mxu0
    %5416 = vrot.lane.b32.xlu0 %v5046, 16
    %v5417 = vpop.permute.xlu0 %5416
    %5418 = vrot.lane.b32.xlu0 %v5049, 16
    %v5419 = vpop.permute.xlu0 %5418
    %5420 = vrot.lane.b32.xlu0 %v5054, 16
    %v5421 = vpop.permute.xlu0 %5420
    %5422 = vrot.lane.b32.xlu0 %v5057, 16
    %v5423 = vpop.permute.xlu0 %5422
    %5432 = vrot.lane.b32.xlu0 %v5222, 32
    %v5433 = vpop.permute.xlu0 %5432
    %5434 = vrot.lane.b32.xlu0 %v5225, 32
    %v5435 = vpop.permute.xlu0 %5434
    %5436 = vrot.lane.b32.xlu0 %v5230, 32
    %v5437 = vpop.permute.xlu0 %5436
    %5438 = vrot.lane.b32.xlu0 %v5233, 32
    %v5439 = vpop.permute.xlu0 %5438
    %5448 = vrot.lane.b32.xlu0 %v5398, 48
    %v5449 = vpop.permute.xlu0 %5448
    %5450 = vrot.lane.b32.xlu0 %v5401, 48
    %v5451 = vpop.permute.xlu0 %5450
    %5452 = vrot.lane.b32.xlu0 %v5406, 48
    %v5453 = vpop.permute.xlu0 %5452
    %5454 = vrot.lane.b32.xlu0 %v5409, 48
    %v5455 = vpop.permute.xlu0 %5454
    %v5460 = vsel %vm614, %v4868, %v5417
    %v5461 = vsel %vm614, %v4871, %v5419
    %v5462 = vsel %vm614, %v4876, %v5421
    %v5463 = vsel %vm614, %v4879, %v5423
    %v5464 = vsel %vm337, %v5460, %v5433
    %v5465 = vsel %vm337, %v5461, %v5435
    %v5466 = vsel %vm337, %v5462, %v5437
    %v5467 = vsel %vm337, %v5463, %v5439
    %v5468 = vsel %vm1365, %v5464, %v5449
    %v5469 = vsel %vm1365, %v5465, %v5451
    %v5470 = vsel %vm1365, %v5466, %v5453
    %v5471 = vsel %vm1365, %v5467, %v5455
    %s5472 = scalar_lea.vmem %s9, 96
    %v5473 = vld [vmem:[%s5472] sm:$0xf]
    %v5474 = vld [vmem:[%s5472 + $0x4] sm:$0xf]
    %v5475 = vld [vmem:[%s5472 + $0x8] sm:$0xf]
    %v5476 = vld [vmem:[%s5472 + $0xc] sm:$0xf]
    %v5477 = vld [vmem:[%s5472 + $0x10] sm:$0xf]
    %v5478 = vld [vmem:[%s5472 + $0x14] sm:$0xf]
    %v5479 = vld [vmem:[%s5472 + $0x18] sm:$0xf]
    %v5480 = vld [vmem:[%s5472 + $0x1c] sm:$0xf]
    %v5481 = vpack.c.bf16 %v5469, %v5468
    %v5482 = vpack.c.bf16 %v5471, %v5470
    %v5491 = vunpack.c.l.b16 %v5473
    %v5492 = vunpack.c.l.b16 %v5474
    %v5493 = vunpack.c.l.b16 %v5475
    %v5494 = vunpack.c.l.b16 %v5476
    %v5495 = vunpack.c.l.b16 %v5477
    %v5496 = vunpack.c.l.b16 %v5478
    %v5497 = vunpack.c.l.b16 %v5479
    %v5498 = vunpack.c.l.b16 %v5480
    %v5499 = vpack.c.b16 %v5492, %v5491
    %v5500 = vpack.c.b16 %v5494, %v5493
    %v5501 = vpack.c.b16 %v5496, %v5495
    %v5502 = vpack.c.b16 %v5498, %v5497
    %v5508 = vsel %vm423, %v5481, 0
    %v5511 = vsel %vm423, %v5482, 0
    %5513 = vmatprep.subr.bf16.mxu0 0
    %5514 = vmatpush1.bf16.msra.mxu0 %v5499
    %5515 = vmatprep.subr.bf16.mxu0 0
    %5516 = vmatpush1.bf16.msra.mxu0 %v5500
    %5517 = vmatprep.subr.bf16.mxu0 0
    %5518 = vmatpush1.bf16.msra.mxu0 %v5501
    %5519 = vmatprep.subr.bf16.mxu0 0
    %5520 = vmatpush1.bf16.msra.mxu0 %v5502
    %5521 = vmatprep.subr.bf16.mxu0 0
    %5522 = vmatpush1.bf16.msra.mxu0 0
    %5523 = vmatprep.subr.bf16.mxu0 0
    %5524 = vmatpush1.bf16.msra.mxu0 0
    %5525 = vmatprep.subr.bf16.mxu0 0
    %5526 = vmatpush1.bf16.msra.mxu0 0
    %5527 = vmatprep.subr.bf16.mxu0 0
    %5528 = vmatpush1.bf16.msra.mxu0 0
    %5529 = vmatprep.subr.bf16.mxu0 0
    %5530 = vmatpush1.bf16.msra.mxu0 0
    %5531 = vmatprep.subr.bf16.mxu0 0
    %5532 = vmatpush1.bf16.msra.mxu0 0
    %5533 = vmatprep.subr.bf16.mxu0 0
    %5534 = vmatpush1.bf16.msra.mxu0 0
    %5535 = vmatprep.subr.bf16.mxu0 0
    %5536 = vmatpush1.bf16.msra.mxu0 0
    %5537 = vmatprep.subr.bf16.mxu0 0
    %5538 = vmatpush1.bf16.msra.mxu0 0
    %5539 = vmatprep.subr.bf16.mxu0 0
    %5540 = vmatpush1.bf16.msra.mxu0 0
    %5541 = vmatprep.subr.bf16.mxu0 0
    %5542 = vmatpush1.bf16.msra.mxu0 0
    %5543 = vmatprep.subr.bf16.mxu0 0
    %5544 = vmatpush1.bf16.msra.mxu0 0
    %5545 = vmatprep.mubr.bf16.mxu0 0
    %5546 = vmatmul.mubr.bf16.gmra.mrb[0].mxu0 %v5508
    %v5547 = vpop.f32.mrb[0].mxu0
    %v5548 = vadd.f32 0.0, %v5547
    %v5549 = vpop.f32.mrb[0].mxu0
    %v5550 = vpop.f32.mrb[0].mxu0
    %v5551 = vadd.f32 0.0, %v5550
    %v5552 = vpop.f32.mrb[0].mxu0
    %5553 = vmatprep.mubr.bf16.mxu0 0
    %5554 = vmatmul.mubr.bf16.gmra.mrb[0].mxu0 %v5511
    %v5555 = vpop.f32.mrb[0].mxu0
    %v5556 = vadd.f32 0.0, %v5555
    %v5557 = vpop.f32.mrb[0].mxu0
    %v5558 = vpop.f32.mrb[0].mxu0
    %v5559 = vadd.f32 0.0, %v5558
    %v5560 = vpop.f32.mrb[0].mxu0
    %5561 = vdwg.mxu0
    %v5562 = vadd.f32 %v4520, %v5548
    %v5563 = vadd.f32 %v4521, %v5551
    %v5564 = vadd.f32 %v4522, %v5556
    %v5565 = vadd.f32 %v4523, %v5559
    %s5566 = scalar_lea.vmem [#allocation9], 3
    %v5567 = vld [vmem:[%s5566] sm:$0x1]
    %v5569 = vlaneseq
    %v5570 = vshrl.u32 %v5569, 7
    %v5571 = vsub.s32 0, %v5570
    %v5572 = vrot.slane %v5567, %v5571
    %v5574 = vadd.f32 %v5562, %v5572
    %v5575 = vadd.f32 %v5563, %v5572
    %v5576 = vadd.f32 %v5564, %v5572
    %v5577 = vadd.f32 %v5565, %v5572
    %s5578 = scalar_lea.vmem [#allocation11], 3
    %v5579 = vld [vmem:[%s5578] sm:$0x1]
    %s5580 = scalar_lea.vmem [#allocation12], 3
    %v5581 = vld [vmem:[%s5580] sm:$0x1]
    %v5582 = vsel %vm423, %v5574, 0.0
    %5583 = vadd.xlane.f32.xlu0 %v5582
    %v5584 = vpop.xlane.xlu0 %5583
    %v5585 = vsel %vm423, %v5575, 0.0
    %5586 = vadd.xlane.f32.xlu0 %v5585
    %v5587 = vpop.xlane.xlu0 %5586
    %v5588 = vsel %vm423, %v5576, 0.0
    %5589 = vadd.xlane.f32.xlu0 %v5588
    %v5590 = vpop.xlane.xlu0 %5589
    %v5591 = vsel %vm423, %v5577, 0.0
    %5592 = vadd.xlane.f32.xlu0 %v5591
    %v5593 = vpop.xlane.xlu0 %5592
    %v5594 = vmul.f32 %v5584, %v436
    %v5595 = vmul.f32 %v5587, %v436
    %v5596 = vmul.f32 %v5590, %v436
    %v5597 = vmul.f32 %v5593, %v436
    %v5598 = vsub.f32 %v5574, %v5594
    %v5599 = vsub.f32 %v5575, %v5595
    %v5600 = vsub.f32 %v5576, %v5596
    %v5601 = vsub.f32 %v5577, %v5597
    %v5602 = vmul.f32 %v5598, %v5598
    %v5603 = vmul.f32 %v5599, %v5599
    %v5604 = vmul.f32 %v5600, %v5600
    %v5605 = vmul.f32 %v5601, %v5601
    %v5606 = vsel %vm423, %v5602, 0.0
    %5607 = vadd.xlane.f32.xlu0 %v5606
    %v5608 = vpop.xlane.xlu0 %5607
    %v5609 = vsel %vm423, %v5603, 0.0
    %5610 = vadd.xlane.f32.xlu0 %v5609
    %v5611 = vpop.xlane.xlu0 %5610
    %v5612 = vsel %vm423, %v5604, 0.0
    %5613 = vadd.xlane.f32.xlu0 %v5612
    %v5614 = vpop.xlane.xlu0 %5613
    %v5615 = vsel %vm423, %v5605, 0.0
    %5616 = vadd.xlane.f32.xlu0 %v5615
    %v5617 = vpop.xlane.xlu0 %5616
    %v5618 = vmul.f32 %v5608, %v436
    %v5619 = vmul.f32 %v5611, %v436
    %v5620 = vmul.f32 %v5614, %v436
    %v5621 = vmul.f32 %v5617, %v436
    %v5622 = vadd.f32 %v5618, 1e-05
    %v5623 = vadd.f32 %v5619, 1e-05
    %v5624 = vadd.f32 %v5620, 1e-05
    %v5625 = vadd.f32 %v5621, 1e-05
    %v5626 = vrsqrt.pop %v5622
    %v5627 = vrsqrt.pop %v5623
    %v5628 = vrsqrt.pop %v5624
    %v5629 = vrsqrt.pop %v5625
    %v5630 = vmul.f32 %v5598, %v5626
    %v5631 = vmul.f32 %v5599, %v5627
    %v5632 = vmul.f32 %v5600, %v5628
    %v5633 = vmul.f32 %v5601, %v5629
    %v5635 = vlaneseq
    %v5636 = vshrl.u32 %v5635, 7
    %v5637 = vsub.s32 0, %v5636
    %v5638 = vrot.slane %v5579, %v5637
    %v5640 = vmul.f32 %v5630, %v5638
    %v5641 = vmul.f32 %v5631, %v5638
    %v5642 = vmul.f32 %v5632, %v5638
    %v5643 = vmul.f32 %v5633, %v5638
    %v5645 = vlaneseq
    %v5646 = vshrl.u32 %v5645, 7
    %v5647 = vsub.s32 0, %v5646
    %v5648 = vrot.slane %v5581, %v5647
    %v5650 = vadd.f32 %v5640, %v5648
    %v5651 = vadd.f32 %v5641, %v5648
    %v5652 = vadd.f32 %v5642, %v5648
    %v5653 = vadd.f32 %v5643, %v5648
    %s5654 = scalar_lea.vmem [#allocation14], 96
    %v5655 = vld [vmem:[%s5654] sm:$0xf]
    %v5656 = vld [vmem:[%s5654 + $0x4] sm:$0xf]
    %v5657 = vld [vmem:[%s5654 + $0x8] sm:$0xf]
    %v5658 = vld [vmem:[%s5654 + $0xc] sm:$0xf]
    %v5659 = vld [vmem:[%s5654 + $0x10] sm:$0xf]
    %v5660 = vld [vmem:[%s5654 + $0x14] sm:$0xf]
    %v5661 = vld [vmem:[%s5654 + $0x18] sm:$0xf]
    %v5662 = vld [vmem:[%s5654 + $0x1c] sm:$0xf]
    %v5663 = vpack.c.bf16 %v5651, %v5650
    %v5664 = vpack.c.bf16 %v5653, %v5652
    %s5665 = scalar_lea.vmem [#allocation15], 3
    %v5666 = vld [vmem:[%s5665] sm:$0x1]
    %v5668 = vlaneseq
    %v5669 = vshrl.u32 %v5668, 7
    %v5670 = vsub.s32 0, %v5669
    %v5671 = vrot.slane %v5666, %v5670
    %v5681 = vunpack.c.l.b16 %v5655
    %v5682 = vunpack.c.l.b16 %v5656
    %v5683 = vunpack.c.l.b16 %v5657
    %v5684 = vunpack.c.l.b16 %v5658
    %v5685 = vunpack.c.l.b16 %v5659
    %v5686 = vunpack.c.l.b16 %v5660
    %v5687 = vunpack.c.l.b16 %v5661
    %v5688 = vunpack.c.l.b16 %v5662
    %v5689 = vpack.c.b16 %v5682, %v5681
    %v5690 = vpack.c.b16 %v5684, %v5683
    %v5691 = vpack.c.b16 %v5686, %v5685
    %v5692 = vpack.c.b16 %v5688, %v5687
    %v5698 = vsel %vm423, %v5663, 0
    %v5701 = vsel %vm423, %v5664, 0
    %5703 = vmatprep.subr.bf16.mxu0 0
    %5704 = vmatpush1.bf16.msra.mxu0 %v5689
    %5705 = vmatprep.subr.bf16.mxu0 0
    %5706 = vmatpush1.bf16.msra.mxu0 %v5690
    %5707 = vmatprep.subr.bf16.mxu0 0
    %5708 = vmatpush1.bf16.msra.mxu0 %v5691
    %5709 = vmatprep.subr.bf16.mxu0 0
    %5710 = vmatpush1.bf16.msra.mxu0 %v5692
    %5711 = vmatprep.subr.bf16.mxu0 0
    %5712 = vmatpush1.bf16.msra.mxu0 0
    %5713 = vmatprep.subr.bf16.mxu0 0
    %5714 = vmatpush1.bf16.msra.mxu0 0
    %5715 = vmatprep.subr.bf16.mxu0 0
    %5716 = vmatpush1.bf16.msra.mxu0 0
    %5717 = vmatprep.subr.bf16.mxu0 0
    %5718 = vmatpush1.bf16.msra.mxu0 0
    %5719 = vmatprep.subr.bf16.mxu0 0
    %5720 = vmatpush1.bf16.msra.mxu0 0
    %5721 = vmatprep.subr.bf16.mxu0 0
    %5722 = vmatpush1.bf16.msra.mxu0 0
    %5723 = vmatprep.subr.bf16.mxu0 0
    %5724 = vmatpush1.bf16.msra.mxu0 0
    %5725 = vmatprep.subr.bf16.mxu0 0
    %5726 = vmatpush1.bf16.msra.mxu0 0
    %5727 = vmatprep.subr.bf16.mxu0 0
    %5728 = vmatpush1.bf16.msra.mxu0 0
    %5729 = vmatprep.subr.bf16.mxu0 0
    %5730 = vmatpush1.bf16.msra.mxu0 0
    %5731 = vmatprep.subr.bf16.mxu0 0
    %5732 = vmatpush1.bf16.msra.mxu0 0
    %5733 = vmatprep.subr.bf16.mxu0 0
    %5734 = vmatpush1.bf16.msra.mxu0 0
    %5735 = vmatprep.mubr.bf16.mxu0 0
    %5736 = vmatmul.mubr.bf16.gmra.mrb[0].mxu0 %v5698
    %v5737 = vpop.f32.mrb[0].mxu0
    %v5738 = vadd.f32 %v5671, %v5737
    %v5739 = vpop.f32.mrb[0].mxu0
    %v5740 = vpop.f32.mrb[0].mxu0
    %v5741 = vadd.f32 %v5671, %v5740
    %v5742 = vpop.f32.mrb[0].mxu0
    %5743 = vmatprep.mubr.bf16.mxu0 0
    %5744 = vmatmul.mubr.bf16.gmra.mrb[0].mxu0 %v5701
    %v5745 = vpop.f32.mrb[0].mxu0
    %v5746 = vadd.f32 %v5671, %v5745
    %v5747 = vpop.f32.mrb[0].mxu0
    %v5748 = vpop.f32.mrb[0].mxu0
    %v5749 = vadd.f32 %v5671, %v5748
    %v5750 = vpop.f32.mrb[0].mxu0
    %5751 = vdwg.mxu0
    %v5752 = vmul.f32 %v5738, %v5738
    %v5753 = vmul.f32 %v5741, %v5741
    %v5754 = vmul.f32 %v5746, %v5746
    %v5755 = vmul.f32 %v5749, %v5749
    %v5756 = vmul.f32 %v5738, %v5752
    %v5757 = vmul.f32 %v5741, %v5753
    %v5758 = vmul.f32 %v5746, %v5754
    %v5759 = vmul.f32 %v5749, %v5755
    %v5760 = vmul.f32 %v5756, 0.044715
    %v5761 = vmul.f32 %v5757, 0.044715
    %v5762 = vmul.f32 %v5758, 0.044715
    %v5763 = vmul.f32 %v5759, 0.044715
    %v5764 = vadd.f32 %v5738, %v5760
    %v5765 = vadd.f32 %v5741, %v5761
    %v5766 = vadd.f32 %v5746, %v5762
    %v5767 = vadd.f32 %v5749, %v5763
    %v5768 = vmul.f32 %v5764, 0.7978846
    %v5769 = vmul.f32 %v5765, 0.7978846
    %v5770 = vmul.f32 %v5766, 0.7978846
    %v5771 = vmul.f32 %v5767, 0.7978846
    %v5772 = vtanh.pop %v5768
    %v5773 = vtanh.pop %v5769
    %v5774 = vtanh.pop %v5770
    %v5775 = vtanh.pop %v5771
    %v5776 = vadd.f32 %v5772, 1.0
    %v5777 = vadd.f32 %v5773, 1.0
    %v5778 = vadd.f32 %v5774, 1.0
    %v5779 = vadd.f32 %v5775, 1.0
    %v5780 = vmul.f32 %v5776, 0.5
    %v5781 = vmul.f32 %v5777, 0.5
    %v5782 = vmul.f32 %v5778, 0.5
    %v5783 = vmul.f32 %v5779, 0.5
    %v5784 = vmul.f32 %v5738, %v5780
    %v5785 = vmul.f32 %v5741, %v5781
    %v5786 = vmul.f32 %v5746, %v5782
    %v5787 = vmul.f32 %v5749, %v5783
    %s5788 = scalar_lea.vmem [#allocation17], 96
    %v5789 = vld [vmem:[%s5788] sm:$0xf]
    %v5790 = vld [vmem:[%s5788 + $0x4] sm:$0xf]
    %v5791 = vld [vmem:[%s5788 + $0x8] sm:$0xf]
    %v5792 = vld [vmem:[%s5788 + $0xc] sm:$0xf]
    %v5793 = vld [vmem:[%s5788 + $0x10] sm:$0xf]
    %v5794 = vld [vmem:[%s5788 + $0x14] sm:$0xf]
    %v5795 = vld [vmem:[%s5788 + $0x18] sm:$0xf]
    %v5796 = vld [vmem:[%s5788 + $0x1c] sm:$0xf]
    %v5797 = vpack.c.bf16 %v5785, %v5784
    %v5798 = vpack.c.bf16 %v5787, %v5786
    %v5807 = vunpack.c.l.b16 %v5789
    %v5808 = vunpack.c.l.b16 %v5790
    %v5809 = vunpack.c.l.b16 %v5791
    %v5810 = vunpack.c.l.b16 %v5792
    %v5811 = vunpack.c.l.b16 %v5793
    %v5812 = vunpack.c.l.b16 %v5794
    %v5813 = vunpack.c.l.b16 %v5795
    %v5814 = vunpack.c.l.b16 %v5796
    %v5815 = vpack.c.b16 %v5808, %v5807
    %v5816 = vpack.c.b16 %v5810, %v5809
    %v5817 = vpack.c.b16 %v5812, %v5811
    %v5818 = vpack.c.b16 %v5814, %v5813
    %v5824 = vsel %vm423, %v5797, 0
    %v5827 = vsel %vm423, %v5798, 0
    %5829 = vmatprep.subr.bf16.mxu0 0
    %5830 = vmatpush1.bf16.msra.mxu0 %v5815
    %5831 = vmatprep.subr.bf16.mxu0 0
    %5832 = vmatpush1.bf16.msra.mxu0 %v5816
    %5833 = vmatprep.subr.bf16.mxu0 0
    %5834 = vmatpush1.bf16.msra.mxu0 %v5817
    %5835 = vmatprep.subr.bf16.mxu0 0
    %5836 = vmatpush1.bf16.msra.mxu0 %v5818
    %5837 = vmatprep.subr.bf16.mxu0 0
    %5838 = vmatpush1.bf16.msra.mxu0 0
    %5839 = vmatprep.subr.bf16.mxu0 0
    %5840 = vmatpush1.bf16.msra.mxu0 0
    %5841 = vmatprep.subr.bf16.mxu0 0
    %5842 = vmatpush1.bf16.msra.mxu0 0
    %5843 = vmatprep.subr.bf16.mxu0 0
    %5844 = vmatpush1.bf16.msra.mxu0 0
    %5845 = vmatprep.subr.bf16.mxu0 0
    %5846 = vmatpush1.bf16.msra.mxu0 0
    %5847 = vmatprep.subr.bf16.mxu0 0
    %5848 = vmatpush1.bf16.msra.mxu0 0
    %5849 = vmatprep.subr.bf16.mxu0 0
    %5850 = vmatpush1.bf16.msra.mxu0 0
    %5851 = vmatprep.subr.bf16.mxu0 0
    %5852 = vmatpush1.bf16.msra.mxu0 0
    %5853 = vmatprep.subr.bf16.mxu0 0
    %5854 = vmatpush1.bf16.msra.mxu0 0
    %5855 = vmatprep.subr.bf16.mxu0 0
    %5856 = vmatpush1.bf16.msra.mxu0 0
    %5857 = vmatprep.subr.bf16.mxu0 0
    %5858 = vmatpush1.bf16.msra.mxu0 0
    %5859 = vmatprep.subr.bf16.mxu0 0
    %5860 = vmatpush1.bf16.msra.mxu0 0
    %5861 = vmatprep.mubr.bf16.mxu0 0
    %5862 = vmatmul.mubr.bf16.gmra.mrb[0].mxu0 %v5824
    %v5863 = vpop.f32.mrb[0].mxu0
    %v5864 = vadd.f32 0.0, %v5863
    %v5865 = vpop.f32.mrb[0].mxu0
    %v5866 = vpop.f32.mrb[0].mxu0
    %v5867 = vpop.f32.mrb[0].mxu0
    %5868 = vmatprep.mubr.bf16.mxu0 0
    %5869 = vmatmul.mubr.bf16.gmra.mrb[0].mxu0 %v5827
    %v5870 = vpop.f32.mrb[0].mxu0
    %v5871 = vadd.f32 0.0, %v5870
    %v5872 = vpop.f32.mrb[0].mxu0
    %v5873 = vpop.f32.mrb[0].mxu0
    %v5874 = vpop.f32.mrb[0].mxu0
    %5875 = vdwg.mxu0
    %v5876 = vadd.f32 %v5574, %v5864
    %v5877 = vadd.f32 %v5576, %v5871
    %s5878 = scalar_lea.vmem [#allocation18], 3
    %v5879 = vld [vmem:[%s5878] sm:$0x1]
    %v5881 = vlaneseq
    %v5882 = vshrl.u32 %v5881, 7
    %v5883 = vsub.s32 0, %v5882
    %v5884 = vrot.slane %v5879, %v5883
    %v5886 = vadd.f32 %v5876, %v5884
    %v5887 = vadd.f32 %v5877, %v5884
    %v5889 = vrot.slane %v5887, 7
    %vm5891 = vcmask 1040384
    %v5892 = vsel %vm5891, %v5886, %v5889
    %v5893 = vld [vmem:[%s17] sm:$0xf]
    %v5894 = vld [vmem:[%s17 + $0x4] sm:$0xf]
    %v5895 = vld [vmem:[%s17 + $0x8] sm:$0xf]
    %v5896 = vld [vmem:[%s17 + $0xc] sm:$0xf]
    %v5897 = vld [vmem:[%s17 + $0x10] sm:$0xf]
    %v5898 = vld [vmem:[%s17 + $0x14] sm:$0xf]
    %v5899 = vld [vmem:[%s17 + $0x18] sm:$0xf]
    %v5900 = vld [vmem:[%s17 + $0x1c] sm:$0xf]
    %v5901 = vpack.c.bf16 %v5892, %v5892
    %v5902 = vld [vmem:[#allocation20] sm:$0x1]
    %v5904 = vlaneseq
    %v5905 = vshrl.u32 %v5904, 7
    %v5906 = vsub.s32 0, %v5905
    %v5907 = vrot.slane %v5902, %v5906
    %v5917 = vunpack.c.l.b16 %v5893
    %v5918 = vunpack.c.l.b16 %v5894
    %v5919 = vunpack.c.l.b16 %v5895
    %v5920 = vunpack.c.l.b16 %v5896
    %v5921 = vunpack.c.l.b16 %v5897
    %v5922 = vunpack.c.l.b16 %v5898
    %v5923 = vunpack.c.l.b16 %v5899
    %v5924 = vunpack.c.l.b16 %v5900
    %v5925 = vpack.c.b16 %v5918, %v5917
    %v5926 = vpack.c.b16 %v5920, %v5919
    %v5927 = vpack.c.b16 %v5922, %v5921
    %v5928 = vpack.c.b16 %v5924, %v5923
    %v5934 = vsel %vm423, %v5901, 0
    %5936 = vmatprep.subr.bf16.mxu0 0
    %5937 = vmatpush1.bf16.msra.mxu0 %v5925
    %5938 = vmatprep.subr.bf16.mxu0 0
    %5939 = vmatpush1.bf16.msra.mxu0 %v5926
    %5940 = vmatprep.subr.bf16.mxu0 0
    %5941 = vmatpush1.bf16.msra.mxu0 %v5927
    %5942 = vmatprep.subr.bf16.mxu0 0
    %5943 = vmatpush1.bf16.msra.mxu0 %v5928
    %5944 = vmatprep.subr.bf16.mxu0 0
    %5945 = vmatpush1.bf16.msra.mxu0 0
    %5946 = vmatprep.subr.bf16.mxu0 0
    %5947 = vmatpush1.bf16.msra.mxu0 0
    %5948 = vmatprep.subr.bf16.mxu0 0
    %5949 = vmatpush1.bf16.msra.mxu0 0
    %5950 = vmatprep.subr.bf16.mxu0 0
    %5951 = vmatpush1.bf16.msra.mxu0 0
    %5952 = vmatprep.subr.bf16.mxu0 0
    %5953 = vmatpush1.bf16.msra.mxu0 0
    %5954 = vmatprep.subr.bf16.mxu0 0
    %5955 = vmatpush1.bf16.msra.mxu0 0
    %5956 = vmatprep.subr.bf16.mxu0 0
    %5957 = vmatpush1.bf16.msra.mxu0 0
    %5958 = vmatprep.subr.bf16.mxu0 0
    %5959 = vmatpush1.bf16.msra.mxu0 0
    %5960 = vmatprep.subr.bf16.mxu0 0
    %5961 = vmatpush1.bf16.msra.mxu0 0
    %5962 = vmatprep.subr.bf16.mxu0 0
    %5963 = vmatpush1.bf16.msra.mxu0 0
    %5964 = vmatprep.subr.bf16.mxu0 0
    %5965 = vmatpush1.bf16.msra.mxu0 0
    %5966 = vmatprep.subr.bf16.mxu0 0
    %5967 = vmatpush1.bf16.msra.mxu0 0
    %5968 = vmatprep.mubr.bf16.mxu0 0
    %5969 = vmatmul.mubr.bf16.gmra.mrb[0].mxu0 %v5934
    %v5970 = vpop.f32.mrb[0].mxu0
    %v5971 = vadd.f32 %v5907, %v5970
    %v5972 = vpop.f32.mrb[0].mxu0
    %v5973 = vpop.f32.mrb[0].mxu0
    %v5974 = vpop.f32.mrb[0].mxu0
    %5975 = vdwg.mxu0
    %s5976 = sadd.s32 %s279, 1
    %s5977 = smul.u32 %s5976, 2
    %s5978 = scalar_lea.vmem %s2, %s5977
    %v5979 = vld [vmem:[%s5978] sm:$0x3]
    %v5981 = vsel %vm337, %v5979, 0
    %v5984 = vsel %vm337, %v5971, 0
    %5986 = vmatprep.subr.mxu0 0.0
    %5987 = vmatpush1.xpose.msra.mxu0 %v5984
    %5988 = vmatprep.subr.mxu0 0.0
    %5989 = vmatpush1.xpose.msra.mxu0 0.0
    %5990 = vmatprep.subr.mxu0 0.0
    %5991 = vmatpush1.xpose.msra.mxu0 0.0
    %5992 = vmatprep.subr.mxu0 0.0
    %5993 = vmatpush1.xpose.msra.mxu0 0.0
    %5994 = vmatprep.subr.mxu0 0.0
    %5995 = vmatpush1.xpose.msra.mxu0 0.0
    %5996 = vmatprep.subr.mxu0 0.0
    %5997 = vmatpush1.xpose.msra.mxu0 0.0
    %5998 = vmatprep.subr.mxu0 0.0
    %5999 = vmatpush1.xpose.msra.mxu0 0.0
    %6000 = vmatprep.subr.mxu0 0.0
    %6001 = vmatpush1.xpose.msra.mxu0 0.0
    %6002 = vmatprep.subr.mxu0 0.0
    %6003 = vmatpush1.xpose.msra.mxu0 0.0
    %6004 = vmatprep.subr.mxu0 0.0
    %6005 = vmatpush1.xpose.msra.mxu0 0.0
    %6006 = vmatprep.subr.mxu0 0.0
    %6007 = vmatpush1.xpose.msra.mxu0 0.0
    %6008 = vmatprep.subr.mxu0 0.0
    %6009 = vmatpush1.xpose.msra.mxu0 0.0
    %6010 = vmatprep.subr.mxu0 0.0
    %6011 = vmatpush1.xpose.msra.mxu0 0.0
    %6012 = vmatprep.subr.mxu0 0.0
    %6013 = vmatpush1.xpose.msra.mxu0 0.0
    %6014 = vmatprep.subr.mxu0 0.0
    %6015 = vmatpush1.xpose.msra.mxu0 0.0
    %6016 = vmatprep.subr.mxu0 0.0
    %6017 = vmatpush1.xpose.msra.mxu0 0.0
    %6018 = vmatprep.subr.mxu0 0.0
    %6019 = vmatpush1.xpose.msra.mxu0 0.0
    %6020 = vmatprep.subr.mxu0 0.0
    %6021 = vmatpush1.xpose.msra.mxu0 0.0
    %6022 = vmatprep.subr.mxu0 0.0
    %6023 = vmatpush1.xpose.msra.mxu0 0.0
    %6024 = vmatprep.subr.mxu0 0.0
    %6025 = vmatpush1.xpose.msra.mxu0 0.0
    %6026 = vmatprep.subr.mxu0 0.0
    %6027 = vmatpush1.xpose.msra.mxu0 0.0
    %6028 = vmatprep.subr.mxu0 0.0
    %6029 = vmatpush1.xpose.msra.mxu0 0.0
    %6030 = vmatprep.subr.mxu0 0.0
    %6031 = vmatpush1.xpose.msra.mxu0 0.0
    %6032 = vmatprep.subr.mxu0 0.0
    %6033 = vmatpush1.xpose.msra.mxu0 0.0
    %6034 = vmatprep.subr.mxu0 0.0
    %6035 = vmatpush1.xpose.msra.mxu0 0.0
    %6036 = vmatprep.subr.mxu0 0.0
    %6037 = vmatpush1.xpose.msra.mxu0 0.0
    %6038 = vmatprep.subr.mxu0 0.0
    %6039 = vmatpush1.xpose.msra.mxu0 0.0
    %6040 = vmatprep.subr.mxu0 0.0
    %6041 = vmatpush1.xpose.msra.mxu0 0.0
    %6042 = vmatprep.subr.mxu0 0.0
    %6043 = vmatpush1.xpose.msra.mxu0 0.0
    %6044 = vmatprep.subr.mxu0 0.0
    %6045 = vmatpush1.xpose.msra.mxu0 0.0
    %6046 = vmatprep.subr.mxu0 0.0
    %6047 = vmatpush1.xpose.msra.mxu0 0.0
    %6048 = vmatprep.subr.mxu0 0.0
    %6049 = vmatpush1.xpose.msra.mxu0 0.0
    %6050 = vmatprep.mubr.f32.mxu0 0.0
    %6051 = vmatmul.mubr.f32.gmra.mrb[0].mxu0 %v5981
    %v6052 = vpop.f32.mrb[0].mxu0
    %v6053 = vadd.f32 0.0, %v6052
    %v6054 = vpop.f32.mrb[0].mxu0
    %6055 = vdwg.mxu0
    %vm6056 = vcmask 9216
    %v6057 = vsel %vm6056, %v6053, -inf
    %6058 = vmax.xlane.f32.xlu0 %v6057
    %v6059 = vpop.xlane.xlu0 %6058
    %v6060 = vsub.f32 %v6053, %v6059
    %v6061 = vmul.f32 %v6060, 1.442695
    %v6062 = vpow.pop %v6061
    %v6063 = vsel %vm6056, %v6062, 0.0
    %6064 = vadd.xlane.f32.xlu0 %v6063
    %v6065 = vpop.xlane.xlu0 %6064
    %v6066 = vlog2.pop %v6065
    %v6067 = vmul.f32 %v6066, 0.6931472
    %v6068 = vadd.f32 %v6059, %v6067
    %v6069 = vmul.f32 %v5979, %v5971
    %vm6070 = vcmask 254976
    %v6071 = vsel %vm6070, %v6069, 0.0
    %6072 = vadd.xlane.f32.xlu0 %v6071
    %v6073 = vpop.xlane.xlu0 %6072
    %v6074 = vsub.f32 %v6073, %v6068
    %vm6075 = vcmask 1024
    %v6076 = vsel %vm6075, %v6074, 0.0
    %6077 = vadd.xlane.f32.xlu0 %v6076
    %v6078 = vpop.xlane.xlu0 %6077
    %v6079 = vrot.slane %v6078, 4
    %v6080 = vadd.f32 %v6078, %v6079
    %v6081 = vrot.slane %v6080, 2
    %v6082 = vadd.f32 %v6080, %v6081
    %v6083 = vrot.slane %v6082, 1
    %v6084 = vadd.f32 %v6082, %v6083
    %s6085 = vtos %v6084
    %s6086 = sadd.f32 %s6085, 0.0
    %s6087 = smul.u32 %s280, 2
    %s6088 = scalar_lea.vmem %s2, %s6087
    %v6089 = vld [vmem:[%s6088] sm:$0x3]
    %6090 = vrot.lane.b32.xlu0 %v5971, 96
    %v6091 = vpop.permute.xlu0 %6090
    %v6093 = vsel %vm337, %v6089, 0
    %v6095 = vsel %vm337, %v6091, 0
    %6097 = vmatprep.subr.mxu0 0.0
    %6098 = vmatpush1.xpose.msra.mxu0 %v6095
    %6099 = vmatprep.subr.mxu0 0.0
    %6100 = vmatpush1.xpose.msra.mxu0 0.0
    %6101 = vmatprep.subr.mxu0 0.0
    %6102 = vmatpush1.xpose.msra.mxu0 0.0
    %6103 = vmatprep.subr.mxu0 0.0
    %6104 = vmatpush1.xpose.msra.mxu0 0.0
    %6105 = vmatprep.subr.mxu0 0.0
    %6106 = vmatpush1.xpose.msra.mxu0 0.0
    %6107 = vmatprep.subr.mxu0 0.0
    %6108 = vmatpush1.xpose.msra.mxu0 0.0
    %6109 = vmatprep.subr.mxu0 0.0
    %6110 = vmatpush1.xpose.msra.mxu0 0.0
    %6111 = vmatprep.subr.mxu0 0.0
    %6112 = vmatpush1.xpose.msra.mxu0 0.0
    %6113 = vmatprep.subr.mxu0 0.0
    %6114 = vmatpush1.xpose.msra.mxu0 0.0
    %6115 = vmatprep.subr.mxu0 0.0
    %6116 = vmatpush1.xpose.msra.mxu0 0.0
    %6117 = vmatprep.subr.mxu0 0.0
    %6118 = vmatpush1.xpose.msra.mxu0 0.0
    %6119 = vmatprep.subr.mxu0 0.0
    %6120 = vmatpush1.xpose.msra.mxu0 0.0
    %6121 = vmatprep.subr.mxu0 0.0
    %6122 = vmatpush1.xpose.msra.mxu0 0.0
    %6123 = vmatprep.subr.mxu0 0.0
    %6124 = vmatpush1.xpose.msra.mxu0 0.0
    %6125 = vmatprep.subr.mxu0 0.0
    %6126 = vmatpush1.xpose.msra.mxu0 0.0
    %6127 = vmatprep.subr.mxu0 0.0
    %6128 = vmatpush1.xpose.msra.mxu0 0.0
    %6129 = vmatprep.subr.mxu0 0.0
    %6130 = vmatpush1.xpose.msra.mxu0 0.0
    %6131 = vmatprep.subr.mxu0 0.0
    %6132 = vmatpush1.xpose.msra.mxu0 0.0
    %6133 = vmatprep.subr.mxu0 0.0
    %6134 = vmatpush1.xpose.msra.mxu0 0.0
    %6135 = vmatprep.subr.mxu0 0.0
    %6136 = vmatpush1.xpose.msra.mxu0 0.0
    %6137 = vmatprep.subr.mxu0 0.0
    %6138 = vmatpush1.xpose.msra.mxu0 0.0
    %6139 = vmatprep.subr.mxu0 0.0
    %6140 = vmatpush1.xpose.msra.mxu0 0.0
    %6141 = vmatprep.subr.mxu0 0.0
    %6142 = vmatpush1.xpose.msra.mxu0 0.0
    %6143 = vmatprep.subr.mxu0 0.0
    %6144 = vmatpush1.xpose.msra.mxu0 0.0
    %6145 = vmatprep.subr.mxu0 0.0
    %6146 = vmatpush1.xpose.msra.mxu0 0.0
    %6147 = vmatprep.subr.mxu0 0.0
    %6148 = vmatpush1.xpose.msra.mxu0 0.0
    %6149 = vmatprep.subr.mxu0 0.0
    %6150 = vmatpush1.xpose.msra.mxu0 0.0
    %6151 = vmatprep.subr.mxu0 0.0
    %6152 = vmatpush1.xpose.msra.mxu0 0.0
    %6153 = vmatprep.subr.mxu0 0.0
    %6154 = vmatpush1.xpose.msra.mxu0 0.0
    %6155 = vmatprep.subr.mxu0 0.0
    %6156 = vmatpush1.xpose.msra.mxu0 0.0
    %6157 = vmatprep.subr.mxu0 0.0
    %6158 = vmatpush1.xpose.msra.mxu0 0.0
    %6159 = vmatprep.subr.mxu0 0.0
    %6160 = vmatpush1.xpose.msra.mxu0 0.0
    %6161 = vmatprep.mubr.f32.mxu0 0.0
    %6162 = vmatmul.mubr.f32.gmra.mrb[0].mxu0 %v6093
    %v6163 = vpop.f32.mrb[0].mxu0
    %v6164 = vadd.f32 0.0, %v6163
    %v6165 = vpop.f32.mrb[0].mxu0
    %6166 = vdwg.mxu0
    %v6167 = vsel %vm6056, %v6164, -inf
    %6168 = vmax.xlane.f32.xlu0 %v6167
    %v6169 = vpop.xlane.xlu0 %6168
    %v6170 = vsub.f32 %v6164, %v6169
    %v6171 = vmul.f32 %v6170, 1.442695
    %v6172 = vpow.pop %v6171
    %v6173 = vsel %vm6056, %v6172, 0.0
    %6174 = vadd.xlane.f32.xlu0 %v6173
    %v6175 = vpop.xlane.xlu0 %6174
    %v6176 = vlog2.pop %v6175
    %v6177 = vmul.f32 %v6176, 0.6931472
    %v6178 = vadd.f32 %v6169, %v6177
    %v6180 = vmul.f32 %v6089, %v6091
    %v6181 = vsel %vm6070, %v6180, 0.0
    %6182 = vadd.xlane.f32.xlu0 %v6181
    %v6183 = vpop.xlane.xlu0 %6182
    %v6184 = vsub.f32 %v6183, %v6178
    %v6185 = vsel %vm6075, %v6184, 0.0
    %6186 = vadd.xlane.f32.xlu0 %v6185
    %v6187 = vpop.xlane.xlu0 %6186
    %v6188 = vrot.slane %v6187, 4
    %v6189 = vadd.f32 %v6187, %v6188
    %v6190 = vrot.slane %v6189, 2
    %v6191 = vadd.f32 %v6189, %v6190
    %v6192 = vrot.slane %v6191, 1
    %v6193 = vadd.f32 %v6191, %v6192
    %s6194 = vtos %v6193
    %s6195 = sadd.f32 %s6086, %s6194
    %s6196 = sadd.s32 %s279, 3
    %s6197 = smul.u32 %s6196, 2
    %s6198 = scalar_lea.vmem %s2, %s6197
    %v6199 = vld [vmem:[%s6198] sm:$0x3]
    %6200 = vrot.lane.b32.xlu0 %v5971, 64
    %v6201 = vpop.permute.xlu0 %6200
    %v6203 = vsel %vm337, %v6199, 0
    %v6205 = vsel %vm337, %v6201, 0
    %6207 = vmatprep.subr.mxu0 0.0
    %6208 = vmatpush1.xpose.msra.mxu0 %v6205
    %6209 = vmatprep.subr.mxu0 0.0
    %6210 = vmatpush1.xpose.msra.mxu0 0.0
    %6211 = vmatprep.subr.mxu0 0.0
    %6212 = vmatpush1.xpose.msra.mxu0 0.0
    %6213 = vmatprep.subr.mxu0 0.0
    %6214 = vmatpush1.xpose.msra.mxu0 0.0
    %6215 = vmatprep.subr.mxu0 0.0
    %6216 = vmatpush1.xpose.msra.mxu0 0.0
    %6217 = vmatprep.subr.mxu0 0.0
    %6218 = vmatpush1.xpose.msra.mxu0 0.0
    %6219 = vmatprep.subr.mxu0 0.0
    %6220 = vmatpush1.xpose.msra.mxu0 0.0
    %6221 = vmatprep.subr.mxu0 0.0
    %6222 = vmatpush1.xpose.msra.mxu0 0.0
    %6223 = vmatprep.subr.mxu0 0.0
    %6224 = vmatpush1.xpose.msra.mxu0 0.0
    %6225 = vmatprep.subr.mxu0 0.0
    %6226 = vmatpush1.xpose.msra.mxu0 0.0
    %6227 = vmatprep.subr.mxu0 0.0
    %6228 = vmatpush1.xpose.msra.mxu0 0.0
    %6229 = vmatprep.subr.mxu0 0.0
    %6230 = vmatpush1.xpose.msra.mxu0 0.0
    %6231 = vmatprep.subr.mxu0 0.0
    %6232 = vmatpush1.xpose.msra.mxu0 0.0
    %6233 = vmatprep.subr.mxu0 0.0
    %6234 = vmatpush1.xpose.msra.mxu0 0.0
    %6235 = vmatprep.subr.mxu0 0.0
    %6236 = vmatpush1.xpose.msra.mxu0 0.0
    %6237 = vmatprep.subr.mxu0 0.0
    %6238 = vmatpush1.xpose.msra.mxu0 0.0
    %6239 = vmatprep.subr.mxu0 0.0
    %6240 = vmatpush1.xpose.msra.mxu0 0.0
    %6241 = vmatprep.subr.mxu0 0.0
    %6242 = vmatpush1.xpose.msra.mxu0 0.0
    %6243 = vmatprep.subr.mxu0 0.0
    %6244 = vmatpush1.xpose.msra.mxu0 0.0
    %6245 = vmatprep.subr.mxu0 0.0
    %6246 = vmatpush1.xpose.msra.mxu0 0.0
    %6247 = vmatprep.subr.mxu0 0.0
    %6248 = vmatpush1.xpose.msra.mxu0 0.0
    %6249 = vmatprep.subr.mxu0 0.0
    %6250 = vmatpush1.xpose.msra.mxu0 0.0
    %6251 = vmatprep.subr.mxu0 0.0
    %6252 = vmatpush1.xpose.msra.mxu0 0.0
    %6253 = vmatprep.subr.mxu0 0.0
    %6254 = vmatpush1.xpose.msra.mxu0 0.0
    %6255 = vmatprep.subr.mxu0 0.0
    %6256 = vmatpush1.xpose.msra.mxu0 0.0
    %6257 = vmatprep.subr.mxu0 0.0
    %6258 = vmatpush1.xpose.msra.mxu0 0.0
    %6259 = vmatprep.subr.mxu0 0.0
    %6260 = vmatpush1.xpose.msra.mxu0 0.0
    %6261 = vmatprep.subr.mxu0 0.0
    %6262 = vmatpush1.xpose.msra.mxu0 0.0
    %6263 = vmatprep.subr.mxu0 0.0
    %6264 = vmatpush1.xpose.msra.mxu0 0.0
    %6265 = vmatprep.subr.mxu0 0.0
    %6266 = vmatpush1.xpose.msra.mxu0 0.0
    %6267 = vmatprep.subr.mxu0 0.0
    %6268 = vmatpush1.xpose.msra.mxu0 0.0
    %6269 = vmatprep.subr.mxu0 0.0
    %6270 = vmatpush1.xpose.msra.mxu0 0.0
    %6271 = vmatprep.mubr.f32.mxu0 0.0
    %6272 = vmatmul.mubr.f32.gmra.mrb[0].mxu0 %v6203
    %v6273 = vpop.f32.mrb[0].mxu0
    %v6274 = vadd.f32 0.0, %v6273
    %v6275 = vpop.f32.mrb[0].mxu0
    %6276 = vdwg.mxu0
    %v6277 = vsel %vm6056, %v6274, -inf
    %6278 = vmax.xlane.f32.xlu0 %v6277
    %v6279 = vpop.xlane.xlu0 %6278
    %v6280 = vsub.f32 %v6274, %v6279
    %v6281 = vmul.f32 %v6280, 1.442695
    %v6282 = vpow.pop %v6281
    %v6283 = vsel %vm6056, %v6282, 0.0
    %6284 = vadd.xlane.f32.xlu0 %v6283
    %v6285 = vpop.xlane.xlu0 %6284
    %v6286 = vlog2.pop %v6285
    %v6287 = vmul.f32 %v6286, 0.6931472
    %v6288 = vadd.f32 %v6279, %v6287
    %v6290 = vmul.f32 %v6199, %v6201
    %v6291 = vsel %vm6070, %v6290, 0.0
    %6292 = vadd.xlane.f32.xlu0 %v6291
    %v6293 = vpop.xlane.xlu0 %6292
    %v6294 = vsub.f32 %v6293, %v6288
    %v6295 = vsel %vm6075, %v6294, 0.0
    %6296 = vadd.xlane.f32.xlu0 %v6295
    %v6297 = vpop.xlane.xlu0 %6296
    %v6298 = vrot.slane %v6297, 4
    %v6299 = vadd.f32 %v6297, %v6298
    %v6300 = vrot.slane %v6299, 2
    %v6301 = vadd.f32 %v6299, %v6300
    %v6302 = vrot.slane %v6301, 1
    %v6303 = vadd.f32 %v6301, %v6302
    %s6304 = vtos %v6303
    %s6305 = sadd.f32 %s6195, %s6304
    %s6306 = sadd.s32 %s279, 4
    %s6307 = smul.u32 %s6306, 2
    %s6308 = scalar_lea.vmem %s2, %s6307
    %v6309 = vld [vmem:[%s6308] sm:$0x3]
    %6310 = vrot.lane.b32.xlu0 %v5971, 32
    %v6311 = vpop.permute.xlu0 %6310
    %v6313 = vsel %vm337, %v6309, 0
    %v6315 = vsel %vm337, %v6311, 0
    %6317 = vmatprep.subr.mxu0 0.0
    %6318 = vmatpush1.xpose.msra.mxu0 %v6315
    %6319 = vmatprep.subr.mxu0 0.0
    %6320 = vmatpush1.xpose.msra.mxu0 0.0
    %6321 = vmatprep.subr.mxu0 0.0
    %6322 = vmatpush1.xpose.msra.mxu0 0.0
    %6323 = vmatprep.subr.mxu0 0.0
    %6324 = vmatpush1.xpose.msra.mxu0 0.0
    %6325 = vmatprep.subr.mxu0 0.0
    %6326 = vmatpush1.xpose.msra.mxu0 0.0
    %6327 = vmatprep.subr.mxu0 0.0
    %6328 = vmatpush1.xpose.msra.mxu0 0.0
    %6329 = vmatprep.subr.mxu0 0.0
    %6330 = vmatpush1.xpose.msra.mxu0 0.0
    %6331 = vmatprep.subr.mxu0 0.0
    %6332 = vmatpush1.xpose.msra.mxu0 0.0
    %6333 = vmatprep.subr.mxu0 0.0
    %6334 = vmatpush1.xpose.msra.mxu0 0.0
    %6335 = vmatprep.subr.mxu0 0.0
    %6336 = vmatpush1.xpose.msra.mxu0 0.0
    %6337 = vmatprep.subr.mxu0 0.0
    %6338 = vmatpush1.xpose.msra.mxu0 0.0
    %6339 = vmatprep.subr.mxu0 0.0
    %6340 = vmatpush1.xpose.msra.mxu0 0.0
    %6341 = vmatprep.subr.mxu0 0.0
    %6342 = vmatpush1.xpose.msra.mxu0 0.0
    %6343 = vmatprep.subr.mxu0 0.0
    %6344 = vmatpush1.xpose.msra.mxu0 0.0
    %6345 = vmatprep.subr.mxu0 0.0
    %6346 = vmatpush1.xpose.msra.mxu0 0.0
    %6347 = vmatprep.subr.mxu0 0.0
    %6348 = vmatpush1.xpose.msra.mxu0 0.0
    %6349 = vmatprep.subr.mxu0 0.0
    %6350 = vmatpush1.xpose.msra.mxu0 0.0
    %6351 = vmatprep.subr.mxu0 0.0
    %6352 = vmatpush1.xpose.msra.mxu0 0.0
    %6353 = vmatprep.subr.mxu0 0.0
    %6354 = vmatpush1.xpose.msra.mxu0 0.0
    %6355 = vmatprep.subr.mxu0 0.0
    %6356 = vmatpush1.xpose.msra.mxu0 0.0
    %6357 = vmatprep.subr.mxu0 0.0
    %6358 = vmatpush1.xpose.msra.mxu0 0.0
    %6359 = vmatprep.subr.mxu0 0.0
    %6360 = vmatpush1.xpose.msra.mxu0 0.0
    %6361 = vmatprep.subr.mxu0 0.0
    %6362 = vmatpush1.xpose.msra.mxu0 0.0
    %6363 = vmatprep.subr.mxu0 0.0
    %6364 = vmatpush1.xpose.msra.mxu0 0.0
    %6365 = vmatprep.subr.mxu0 0.0
    %6366 = vmatpush1.xpose.msra.mxu0 0.0
    %6367 = vmatprep.subr.mxu0 0.0
    %6368 = vmatpush1.xpose.msra.mxu0 0.0
    %6369 = vmatprep.subr.mxu0 0.0
    %6370 = vmatpush1.xpose.msra.mxu0 0.0
    %6371 = vmatprep.subr.mxu0 0.0
    %6372 = vmatpush1.xpose.msra.mxu0 0.0
    %6373 = vmatprep.subr.mxu0 0.0
    %6374 = vmatpush1.xpose.msra.mxu0 0.0
    %6375 = vmatprep.subr.mxu0 0.0
    %6376 = vmatpush1.xpose.msra.mxu0 0.0
    %6377 = vmatprep.subr.mxu0 0.0
    %6378 = vmatpush1.xpose.msra.mxu0 0.0
    %6379 = vmatprep.subr.mxu0 0.0
    %6380 = vmatpush1.xpose.msra.mxu0 0.0
    %6381 = vmatprep.mubr.f32.mxu0 0.0
    %6382 = vmatmul.mubr.f32.gmra.mrb[0].mxu0 %v6313
    %v6383 = vpop.f32.mrb[0].mxu0
    %v6384 = vadd.f32 0.0, %v6383
    %v6385 = vpop.f32.mrb[0].mxu0
    %6386 = vdwg.mxu0
    %v6387 = vsel %vm6056, %v6384, -inf
    %6388 = vmax.xlane.f32.xlu0 %v6387
    %v6389 = vpop.xlane.xlu0 %6388
    %v6390 = vsub.f32 %v6384, %v6389
    %v6391 = vmul.f32 %v6390, 1.442695
    %v6392 = vpow.pop %v6391
    %v6393 = vsel %vm6056, %v6392, 0.0
    %6394 = vadd.xlane.f32.xlu0 %v6393
    %v6395 = vpop.xlane.xlu0 %6394
    %v6396 = vlog2.pop %v6395
    %v6397 = vmul.f32 %v6396, 0.6931472
    %v6398 = vadd.f32 %v6389, %v6397
    %v6400 = vmul.f32 %v6309, %v6311
    %v6401 = vsel %vm6070, %v6400, 0.0
    %6402 = vadd.xlane.f32.xlu0 %v6401
    %v6403 = vpop.xlane.xlu0 %6402
    %v6404 = vsub.f32 %v6403, %v6398
    %v6405 = vsel %vm6075, %v6404, 0.0
    %6406 = vadd.xlane.f32.xlu0 %v6405
    %v6407 = vpop.xlane.xlu0 %6406
    %v6408 = vrot.slane %v6407, 4
    %v6409 = vadd.f32 %v6407, %v6408
    %v6410 = vrot.slane %v6409, 2
    %v6411 = vadd.f32 %v6409, %v6410
    %v6412 = vrot.slane %v6411, 1
    %v6413 = vadd.f32 %v6411, %v6412
    %s6414 = vtos %v6413
    %s6415 = sadd.f32 %s6305, %s6414
    %v6416 = vrcp.pop -8.0
    %s6417 = vtos %v6416
    %s6418 = smul.f32 %s6415, %s6417
    %v6419 = vstv %s6418
    %v6420 = vadd.f32 %v6419, 0.0
    %vm6421 = vcmask 0
    %6422 = vst.msk [vmem:[#allocation27] sm:$0x1] %vm6421, %v6420
    %v6423 = vld [vmem:[%s19] sm:$0xf]
    %v6424 = vld [vmem:[%s19 + $0x4] sm:$0xf]
    %v6425 = vld [vmem:[%s19 + $0x8] sm:$0xf]
    %v6426 = vld [vmem:[%s19 + $0xc] sm:$0xf]
    %v6427 = vld [vmem:[%s19 + $0x10] sm:$0xf]
    %v6428 = vld [vmem:[%s19 + $0x14] sm:$0xf]
    %v6429 = vld [vmem:[%s19 + $0x18] sm:$0xf]
    %v6430 = vld [vmem:[%s19 + $0x1c] sm:$0xf]
    %v6431 = vld [vmem:[#allocation21] sm:$0x1]
    %v6433 = vlaneseq
    %v6434 = vshrl.u32 %v6433, 7
    %v6435 = vsub.s32 0, %v6434
    %v6436 = vrot.slane %v6431, %v6435
    %v6446 = vunpack.c.l.b16 %v6423
    %v6447 = vunpack.c.l.b16 %v6424
    %v6448 = vunpack.c.l.b16 %v6425
    %v6449 = vunpack.c.l.b16 %v6426
    %v6450 = vunpack.c.l.b16 %v6427
    %v6451 = vunpack.c.l.b16 %v6428
    %v6452 = vunpack.c.l.b16 %v6429
    %v6453 = vunpack.c.l.b16 %v6430
    %v6454 = vpack.c.b16 %v6447, %v6446
    %v6455 = vpack.c.b16 %v6449, %v6448
    %v6456 = vpack.c.b16 %v6451, %v6450
    %v6457 = vpack.c.b16 %v6453, %v6452
    %6462 = vmatprep.subr.bf16.mxu0 0
    %6463 = vmatpush1.bf16.msra.mxu0 %v6454
    %6464 = vmatprep.subr.bf16.mxu0 0
    %6465 = vmatpush1.bf16.msra.mxu0 %v6455
    %6466 = vmatprep.subr.bf16.mxu0 0
    %6467 = vmatpush1.bf16.msra.mxu0 %v6456
    %6468 = vmatprep.subr.bf16.mxu0 0
    %6469 = vmatpush1.bf16.msra.mxu0 %v6457
    %6470 = vmatprep.subr.bf16.mxu0 0
    %6471 = vmatpush1.bf16.msra.mxu0 0
    %6472 = vmatprep.subr.bf16.mxu0 0
    %6473 = vmatpush1.bf16.msra.mxu0 0
    %6474 = vmatprep.subr.bf16.mxu0 0
    %6475 = vmatpush1.bf16.msra.mxu0 0
    %6476 = vmatprep.subr.bf16.mxu0 0
    %6477 = vmatpush1.bf16.msra.mxu0 0
    %6478 = vmatprep.subr.bf16.mxu0 0
    %6479 = vmatpush1.bf16.msra.mxu0 0
    %6480 = vmatprep.subr.bf16.mxu0 0
    %6481 = vmatpush1.bf16.msra.mxu0 0
    %6482 = vmatprep.subr.bf16.mxu0 0
    %6483 = vmatpush1.bf16.msra.mxu0 0
    %6484 = vmatprep.subr.bf16.mxu0 0
    %6485 = vmatpush1.bf16.msra.mxu0 0
    %6486 = vmatprep.subr.bf16.mxu0 0
    %6487 = vmatpush1.bf16.msra.mxu0 0
    %6488 = vmatprep.subr.bf16.mxu0 0
    %6489 = vmatpush1.bf16.msra.mxu0 0
    %6490 = vmatprep.subr.bf16.mxu0 0
    %6491 = vmatpush1.bf16.msra.mxu0 0
    %6492 = vmatprep.subr.bf16.mxu0 0
    %6493 = vmatpush1.bf16.msra.mxu0 0
    %6494 = vmatprep.mubr.bf16.mxu0 0
    %6495 = vmatmul.mubr.bf16.gmra.mrb[0].mxu0 %v5934
    %v6496 = vpop.f32.mrb[0].mxu0
    %v6497 = vadd.f32 %v6436, %v6496
    %v6498 = vpop.f32.mrb[0].mxu0
    %v6499 = vpop.f32.mrb[0].mxu0
    %v6500 = vpop.f32.mrb[0].mxu0
    %6501 = vdwg.mxu0
    %vm6502 = vcmask 123904
    %v6503 = vsel %vm6502, %v6497, 0.0
    %v6504 = vrot.slane %v6503, 4
    %v6505 = vadd.f32 %v6503, %v6504
    %v6506 = vrot.slane %v6505, 2
    %v6507 = vadd.f32 %v6505, %v6506
    %v6508 = vrot.slane %v6507, 1
    %v6509 = vadd.f32 %v6507, %v6508
    %v6510 = vrcp.pop 2.0
    %v6511 = vmul.f32 %v6509, %v6510
    %v6512 = vsub.f32 %v6497, %v6511
    %v6513 = vmul.f32 %v6512, %v6512
    %v6514 = vsel %vm6502, %v6513, 0.0
    %v6515 = vrot.slane %v6514, 4
    %v6516 = vadd.f32 %v6514, %v6515
    %v6517 = vrot.slane %v6516, 2
    %v6518 = vadd.f32 %v6516, %v6517
    %v6519 = vrot.slane %v6518, 1
    %v6520 = vadd.f32 %v6518, %v6519
    %v6521 = vmul.f32 %v6520, %v6510
    %v6522 = vadd.f32 %v6521, 1e-05
    %v6523 = vrsqrt.pop %v6522
    %v6524 = vmul.f32 %v6512, %v6523
    %v6525 = vld [vmem:[#allocation23] sm:$0x1]
    %v6527 = vlaneseq
    %v6528 = vshrl.u32 %v6527, 7
    %v6529 = vsub.s32 0, %v6528
    %v6530 = vrot.slane %v6525, %v6529
    %v6532 = vmul.f32 %v6524, %v6530
    %v6533 = vld [vmem:[#allocation24] sm:$0x1]
    %v6535 = vlaneseq
    %v6536 = vshrl.u32 %v6535, 7
    %v6537 = vsub.s32 0, %v6536
    %v6538 = vrot.slane %v6533, %v6537
    %v6540 = vadd.f32 %v6532, %v6538
    %v6541 = vmax.f32 %v6540, 0.0
    %v6542 = vld [vmem:[%s23] sm:$0xf]
    %v6543 = vld [vmem:[%s23 + $0x4] sm:$0xf]
    %v6544 = vpack.c.bf16 %v6541, %v6541
    %v6545 = vld [vmem:[#allocation26] sm:$0x1]
    %v6547 = vlaneseq
    %v6548 = vshrl.u32 %v6547, 7
    %v6549 = vsub.s32 0, %v6548
    %v6550 = vrot.slane %v6545, %v6549
    %v6554 = vunpack.c.l.b16 %v6542
    %v6555 = vunpack.c.l.b16 %v6543
    %v6556 = vpack.c.b16 %v6555, %v6554
    %v6559 = vsel %vm614, %v6544, 0
    %6561 = vmatprep.subr.bf16.mxu0 0
    %6562 = vmatpush1.bf16.msra.mxu0 %v6556
    %6563 = vmatprep.subr.bf16.mxu0 0
    %6564 = vmatpush1.bf16.msra.mxu0 0
    %6565 = vmatprep.subr.bf16.mxu0 0
    %6566 = vmatpush1.bf16.msra.mxu0 0
    %6567 = vmatprep.subr.bf16.mxu0 0
    %6568 = vmatpush1.bf16.msra.mxu0 0
    %6569 = vmatprep.subr.bf16.mxu0 0
    %6570 = vmatpush1.bf16.msra.mxu0 0
    %6571 = vmatprep.subr.bf16.mxu0 0
    %6572 = vmatpush1.bf16.msra.mxu0 0
    %6573 = vmatprep.subr.bf16.mxu0 0
    %6574 = vmatpush1.bf16.msra.mxu0 0
    %6575 = vmatprep.subr.bf16.mxu0 0
    %6576 = vmatpush1.bf16.msra.mxu0 0
    %6577 = vmatprep.subr.bf16.mxu0 0
    %6578 = vmatpush1.bf16.msra.mxu0 0
    %6579 = vmatprep.subr.bf16.mxu0 0
    %6580 = vmatpush1.bf16.msra.mxu0 0
    %6581 = vmatprep.subr.bf16.mxu0 0
    %6582 = vmatpush1.bf16.msra.mxu0 0
    %6583 = vmatprep.subr.bf16.mxu0 0
    %6584 = vmatpush1.bf16.msra.mxu0 0
    %6585 = vmatprep.subr.bf16.mxu0 0
    %6586 = vmatpush1.bf16.msra.mxu0 0
    %6587 = vmatprep.subr.bf16.mxu0 0
    %6588 = vmatpush1.bf16.msra.mxu0 0
    %6589 = vmatprep.subr.bf16.mxu0 0
    %6590 = vmatpush1.bf16.msra.mxu0 0
    %6591 = vmatprep.subr.bf16.mxu0 0
    %6592 = vmatpush1.bf16.msra.mxu0 0
    %6593 = vmatprep.mubr.bf16.mxu0 0
    %6594 = vmatmul.mubr.bf16.gmra.mrb[0].mxu0 %v6559
    %v6595 = vpop.f32.mrb[0].mxu0
    %v6596 = vadd.f32 %v6550, %v6595
    %v6597 = vpop.f32.mrb[0].mxu0
    %v6598 = vpop.f32.mrb[0].mxu0
    %v6599 = vpop.f32.mrb[0].mxu0
    %6600 = vdwg.mxu0
    %vm6601 = vcmask 58368
    %6602 = vst.msk [vmem:[#allocation28] sm:$0x3] %vm6601, %v6596
    // Predicated region
    $region162: #{tc_forward.1} parent=1 // pred_check
      _
    $region163: #{tc_forward.1} parent=1 // pred_check_branch
      %6604 = sbr.rel (0) target = $region165
    $region164: #{tc_forward.1} parent=1 // pred_region
      %s6606 = ssub.s32 16, 16
      %6607 = vsyncadd [#allocation5], %s6606
      %s6609 = sshll.u32 [#allocation27], 4
      %s6610 = int_to_ptr.vmem [resolvable:$true] %s6609
      %6612 = dma.vmem_to_hbm [thread:$0]  %s6610, 16, %s25, [#allocation5]
    $region165: #{tc_forward.1} parent=1 // pred_fallthru
      _
    // Predicated region
    $region166: #{tc_forward.1} parent=1 // pred_check
      _
    $region167: #{tc_forward.1} parent=1 // pred_check_branch
      %6614 = sbr.rel (0) target = $region169
    $region168: #{tc_forward.1} parent=1 // pred_region
      %s6616 = ssub.s32 32, 32
      %6617 = vsyncadd [#allocation29], %s6616
      %s6619 = sshll.u32 [#allocation28], 4
      %s6620 = int_to_ptr.vmem [resolvable:$true] %s6619
      %6622 = dma.vmem_to_hbm [thread:$0]  %s6620, 32, %s26, [#allocation29]
    $region169: #{tc_forward.1} parent=1 // pred_fallthru
      _
    // Predicated region
    $region170: #{tc_forward.1} parent=1 // pred_check
      _
    $region171: #{tc_forward.1} parent=1 // pred_check_branch
      %6624 = sbr.rel (0) target = $region173
    $region172: #{tc_forward.1} parent=1 // pred_region
      %6625 = dma.done [#allocation5], 16
    $region173: #{tc_forward.1} parent=1 // pred_fallthru
      _
    // Predicated region
    $region174: #{tc_forward.1} parent=1 // pred_check
      _
    $region175: #{tc_forward.1} parent=1 // pred_check_branch
      %6627 = sbr.rel (0) target = $region177
    $region176: #{tc_forward.1} parent=1 // pred_region
      %6628 = dma.done [#allocation29], 32
    $region177: #{tc_forward.1} parent=1 // pred_fallthru
      _
    %6629 = vsyncpa [#allocation4], 1
    %6630 = vsyncpa [#allocation7], 1
    %6631 = vsyncpa [#allocation10], 1
    %6632 = vsyncpa [#allocation13], 1
    %6633 = vsyncpa [#allocation16], 1
    %6634 = vsyncpa [#allocation19], 1
    %6635 = vsyncpa [#allocation22], 1
    %6636 = vsyncpa [#allocation25], 1
    %6637 = vsyncpa [#allocation5], 1
    %6638 = vsyncpa [#allocation29], 1

</llo_original>
